<compile_context>
chip_gen: v7x
topology: tpu7x:2x2x1
jax: 0.10.0
libtpu: 0.0.40
codegen_flags: <defaults>
</compile_context>

<pallas_src>
import functools

import jax
import jax.numpy as jnp
import numpy as np
from jax import lax
from jax.experimental import pallas as pl
from jax.experimental.pallas import tpu as pltpu

BN_EPS = 1e-5


# ----------------------------- in-kernel math ------------------------------

def _recip(d):
    # EUP approximate reciprocal + one Newton-Raphson step -> ~full f32
    # precision, keeps the divide out of the (bottleneck) VALU slot.
    r = pl.reciprocal(d, approx=True)
    return r * (2.0 - d * r)


def _erf(x):
    # Abramowitz & Stegun 7.1.26, |abs error| <= 1.5e-7 (keeps erf-GELU
    # semantics without relying on an erf primitive lowering).
    p = 0.3275911
    a1, a2, a3, a4, a5 = 0.254829592, -0.284496736, 1.421413741, -1.453152027, 1.061405429
    ax = jnp.abs(x)
    t = _recip(1.0 + p * ax)
    poly = ((((a5 * t + a4) * t + a3) * t + a2) * t + a1) * t
    y = 1.0 - poly * jnp.exp(-ax * ax)
    return jnp.where(x >= 0.0, y, -y)


def _gelu(x):
    # exact (erf) GELU, matching torch.nn.functional.gelu default
    return 0.5 * x * (1.0 + _erf(x * 0.7071067811865476))


# ------------------------------- kernel -------------------------------------

def classifier_kernel(x_ref, w1c0_ref, wrest_ref, bn_ref, lin_w_ref, lin_b_ref,
                      o_ref, *, block_batch, seq_len):
    x = x_ref[...]                           # (N, Cin), N = Bt*T
    n = x.shape[0]
    bn = bn_ref[...]                         # (8, H): [s0,t0,s1,t1,s2,t2,s3,t3]

    # Per-row edge masks for k=3 'same' padding (also stop the sublane rolls
    # from leaking across sample boundaries). Built in-kernel -> no DMA stream.
    row = lax.broadcasted_iota(jnp.int32, (n, 1), 0)
    if seq_len & (seq_len - 1) == 0:
        t_idx = row & (seq_len - 1)          # power-of-two T: no int div/mod
    else:
        t_idx = lax.rem(row, seq_len)
    m_prev = (t_idx >= 1).astype(jnp.float32)
    m_next = (t_idx <= seq_len - 2).astype(jnp.float32)

    def conv_bn_gelu(h, w_taps, s, t, residual):
        # w_taps: (3, C, H); tap k multiplies x[t + k - 1].  Three accumulated
        # MXU dots instead of a lane-concat + single wide dot.
        h_prev = pltpu.roll(h, shift=1, axis=0) * m_prev         # h[t-1]
        h_next = pltpu.roll(h, shift=n - 1, axis=0) * m_next     # h[t+1]
        y = jnp.dot(h_prev, w_taps[0], preferred_element_type=jnp.float32)
        y = y + jnp.dot(h, w_taps[1], preferred_element_type=jnp.float32)
        y = y + jnp.dot(h_next, w_taps[2], preferred_element_type=jnp.float32)
        if residual:
            y = y + h
        # Conv bias + eval-mode BN folded into one affine (s, t).
        return _gelu(y * s + t)

    # ConvBlock 1 (in_dim != out_dim -> no residual on conv0)
    h = conv_bn_gelu(x, w1c0_ref[...], bn[0:1], bn[1:2], residual=False)
    h = conv_bn_gelu(h, wrest_ref[0], bn[2:3], bn[3:4], residual=True)
    # ConvBlock 2 (in_dim == out_dim -> residual on both convs)
    h = conv_bn_gelu(h, wrest_ref[1], bn[4:5], bn[5:6], residual=True)
    h = conv_bn_gelu(h, wrest_ref[2], bn[6:7], bn[7:8], residual=True)
    # TODO(synk): eval-mode semantics only (Dropout = identity, BatchNorm uses running stats).

    # AdaptiveAvgPool1d(1): in-kernel reshape + mean over each sample's T rows.
    pooled = jnp.mean(h.reshape(block_batch, seq_len, h.shape[-1]), axis=1)   # (Bt, H)

    # Linear head, lane-dense (num_classes padded to 128) store.
    o_ref[...] = (jnp.dot(pooled, lin_w_ref[...],
                          preferred_element_type=jnp.float32) + lin_b_ref[...])


# ------------------------------- wrapper ------------------------------------

def basic_conv_classifier(x_bct, kparams, num_classes, *, num_blocks=1):
    """x_bct: (B, C, T) float32 (PyTorch layout). Returns (B, num_classes).

    num_blocks: grid size. 1 (default) = whole batch in one step (best on
    v5e/v6e at small sizes); use 2 on v7x so both TensorCores get work.
    """
    B, C, T = x_bct.shape
    nc_pad = kparams["lin_w"].shape[1]

    B_pad = -(-B // num_blocks) * num_blocks
    Bt = B_pad // num_blocks
    n_rows = Bt * T
    assert n_rows % 8 == 0, "block rows (Bt*T) must be a multiple of 8"

    # TODO(synk): this layout transpose is still one standalone XLA op (extra
    # HBM round trip of x); left outside the kernel on purpose — an in-kernel
    # transpose of tiny unaligned (C,T) tiles is a lowering-robustness risk.
    x_btc = jnp.transpose(x_bct, (0, 2, 1)).astype(jnp.float32)   # (B, T, C)
    if B_pad != B:
        x_btc = jnp.pad(x_btc, ((0, B_pad - B), (0, 0), (0, 0)))
    x_flat = x_btc.reshape(B_pad * T, C)                          # (B_pad*T, C)

    kernel = functools.partial(classifier_kernel, block_batch=Bt, seq_len=T)

    in_specs = [
        pl.BlockSpec((n_rows, C), lambda i: (i, 0)),                      # activations
        pl.BlockSpec(kparams["w1c0"].shape, lambda i: (0, 0, 0)),         # (3, Cin, H)
        pl.BlockSpec(kparams["w_rest"].shape, lambda i: (0, 0, 0, 0)),    # (3, 3, H, H)
        pl.BlockSpec(kparams["bn"].shape, lambda i: (0, 0)),              # (8, H)
        pl.BlockSpec(kparams["lin_w"].shape, lambda i: (0, 0)),           # (H, 128)
        pl.BlockSpec(kparams["lin_b"].shape, lambda i: (0, 0)),           # (1, 128)
    ]

    out = pl.pallas_call(
        kernel,
        out_shape=jax.ShapeDtypeStruct((B_pad, nc_pad), jnp.float32),
        grid=(num_blocks,),
        in_specs=in_specs,
        out_specs=pl.BlockSpec((Bt, nc_pad), lambda i: (i, 0)),
        compiler_params=pltpu.CompilerParams(dimension_semantics=("parallel",)),
    )(x_flat, kparams["w1c0"], kparams["w_rest"], kparams["bn"],
      kparams["lin_w"], kparams["lin_b"])
    return out[:B, :num_classes]


# ----------------------------- parameters -----------------------------------

def init_raw_params(key, in_channels, hid_dim, num_classes):
    raw = {}
    keys = iter(jax.random.split(key, 64))

    def conv(prefix, cin, cout):
        raw[prefix + "_w"] = 0.2 * jax.random.normal(next(keys), (cout, cin, 3), jnp.float32)
        raw[prefix + "_b"] = 0.1 * jax.random.normal(next(keys), (cout,), jnp.float32)

    def bn(prefix, c):
        raw[prefix + "_g"] = 1.0 + 0.1 * jax.random.normal(next(keys), (c,), jnp.float32)
        raw[prefix + "_b"] = 0.1 * jax.random.normal(next(keys), (c,), jnp.float32)
        raw[prefix + "_m"] = 0.1 * jax.random.normal(next(keys), (c,), jnp.float32)
        raw[prefix + "_v"] = jax.random.uniform(next(keys), (c,), jnp.float32, 0.5, 1.5)

    conv("b1c0", in_channels, hid_dim); bn("b1n0", hid_dim)
    conv("b1c1", hid_dim, hid_dim);     bn("b1n1", hid_dim)
    conv("b2c0", hid_dim, hid_dim);     bn("b2n0", hid_dim)
    conv("b2c1", hid_dim, hid_dim);     bn("b2n1", hid_dim)
    raw["lin_w"] = 0.2 * jax.random.normal(next(keys), (num_classes, hid_dim), jnp.float32)
    raw["lin_b"] = 0.1 * jax.random.normal(next(keys), (num_classes,), jnp.float32)
    return raw


def fold_params(raw, eps=BN_EPS):
    """PyTorch-layout raw params -> packed, kernel-ready arrays."""
    def conv_taps(prefix):
        w = raw[prefix + "_w"]                                # (O, I, K=3)
        return jnp.transpose(w, (2, 1, 0))                    # (3, I, O): tap k hits x[t+k-1]

    def bn_fold(bn_prefix, conv_prefix):
        g, beta, m, v = (raw[bn_prefix + s] for s in ("_g", "_b", "_m", "_v"))
        s = g / jnp.sqrt(v + eps)
        t = s * (raw[conv_prefix + "_b"] - m) + beta          # conv bias folded in
        return s, t

    kp = {}
    kp["w1c0"] = conv_taps("b1c0")                                          # (3, Cin, H)
    kp["w_rest"] = jnp.stack([conv_taps("b1c1"), conv_taps("b2c0"),
                              conv_taps("b2c1")], axis=0)                   # (3, 3, H, H)
    rows = []
    for bnp, cvp in (("b1n0", "b1c0"), ("b1n1", "b1c1"),
                     ("b2n0", "b2c0"), ("b2n1", "b2c1")):
        s, t = bn_fold(bnp, cvp)
        rows += [s, t]
    kp["bn"] = jnp.stack(rows, axis=0)                                      # (8, H)

    nc, hd = raw["lin_w"].shape
    nc_pad = ((nc + 127) // 128) * 128
    kp["lin_w"] = jnp.zeros((hd, nc_pad), jnp.float32).at[:, :nc].set(raw["lin_w"].T)
    kp["lin_b"] = jnp.zeros((1, nc_pad), jnp.float32).at[:, :nc].set(raw["lin_b"][None, :])
    return kp


# ------------------------- pure-JAX reference --------------------------------

def reference_forward(x_bct, raw, eps=BN_EPS):
    gelu = lambda z: jax.nn.gelu(z, approximate=False)

    def conv(x, w, b):
        y = lax.conv_general_dilated(x, w, (1,), "SAME",
                                     dimension_numbers=("NCH", "OIH", "NCH"))
        return y + b[None, :, None]

    def bn(x, prefix):
        g, beta, m, v = (raw[prefix + s] for s in ("_g", "_b", "_m", "_v"))
        return ((x - m[None, :, None]) / jnp.sqrt(v[None, :, None] + eps)
                * g[None, :, None] + beta[None, :, None])

    h = conv(x_bct, raw["b1c0_w"], raw["b1c0_b"])            # no residual (dims differ)
    h = gelu(bn(h, "b1n0"))
    h = conv(h, raw["b1c1_w"], raw["b1c1_b"]) + h
    h = gelu(bn(h, "b1n1"))
    h = conv(h, raw["b2c0_w"], raw["b2c0_b"]) + h
    h = gelu(bn(h, "b2n0"))
    h = conv(h, raw["b2c1_w"], raw["b2c1_b"]) + h
    h = gelu(bn(h, "b2n1"))
    pooled = jnp.mean(h, axis=2)                             # (B, H)
    return pooled @ raw["lin_w"].T + raw["lin_b"][None, :]


if __name__ == "__main__":
    B, C, T = 16, 4, 16          # batch, in_channels, seq_len
    H, NUM_CLASSES = 32, 4       # hid_dim, num_classes

    key = jax.random.PRNGKey(0)
    kx, kp = jax.random.split(key)
    x = jax.random.normal(kx, (B, C, T), jnp.float32)        # (b, c, t) like PyTorch

    raw = init_raw_params(kp, C, H, NUM_CLASSES)
    kparams = fold_params(raw)

    # num_blocks=1: whole batch in one grid step (v5e/v6e); use 2 on v7x.
    out = basic_conv_classifier(x, kparams, NUM_CLASSES, num_blocks=1)
    out = jax.block_until_ready(out)

    ref = reference_forward(x, raw)
    np.testing.assert_allclose(np.asarray(out), np.asarray(ref), rtol=5e-4, atol=5e-4)
    print("KERNEL_OK")
</pallas_src>

<mosaic_0001>
module attributes {stable_mosaic.version = 11 : i64} {
  func.func @classifier_kernel(%arg0: i32, %arg1: memref<256x4xf32, #tpu.memory_space<vmem>>, %arg2: memref<3x4x32xf32, #tpu.memory_space<vmem>>, %arg3: memref<3x3x32x32xf32, #tpu.memory_space<vmem>>, %arg4: memref<8x32xf32, #tpu.memory_space<vmem>>, %arg5: memref<32x128xf32, #tpu.memory_space<vmem>>, %arg6: memref<1x128xf32, #tpu.memory_space<vmem>>, %arg7: memref<16x128xf32, #tpu.memory_space<vmem>>) attributes {dimension_semantics = [#tpu.dimension_semantics<parallel>], iteration_bounds = array<i64: 1>, scalar_prefetch = 0 : i64, scratch_operands = 0 : i64, tpu.core_type = #tpu.core_type<tc>, window_params = [{transform_indices = @transform_0, window_bounds = array<i64: 256, 4>}, {pipeline_mode = #tpu.pipeline_mode<synchronous>, transform_indices = @transform_1, window_bounds = array<i64: 3, 4, 32>}, {pipeline_mode = #tpu.pipeline_mode<synchronous>, transform_indices = @transform_2, window_bounds = array<i64: 3, 3, 32, 32>}, {pipeline_mode = #tpu.pipeline_mode<synchronous>, transform_indices = @transform_3, window_bounds = array<i64: 8, 32>}, {pipeline_mode = #tpu.pipeline_mode<synchronous>, transform_indices = @transform_4, window_bounds = array<i64: 32, 128>}, {pipeline_mode = #tpu.pipeline_mode<synchronous>, transform_indices = @transform_5, window_bounds = array<i64: 1, 128>}, {transform_indices = @transform_6, window_bounds = array<i64: 16, 128>}]} {
    %c0 = arith.constant 0 : index
    %c0_0 = arith.constant 0 : index
    %0 = vector.load %arg1[%c0, %c0_0] : memref<256x4xf32, #tpu.memory_space<vmem>>, vector<256x4xf32>
    %c0_1 = arith.constant 0 : index
    %c0_2 = arith.constant 0 : index
    %1 = vector.load %arg4[%c0_1, %c0_2] : memref<8x32xf32, #tpu.memory_space<vmem>>, vector<8x32xf32>
    %2 = tpu.iota {dimensions = array<i32: 0>} : vector<256x1xi32>
    %c15_i32 = arith.constant 15 : i32
    %3 = vector.broadcast %c15_i32 : i32 to vector<256x1xi32>
    %4 = arith.andi %2, %3 : vector<256x1xi32>
    %c1_i32 = arith.constant 1 : i32
    %5 = vector.broadcast %c1_i32 : i32 to vector<256x1xi32>
    %6 = arith.cmpi sge, %4, %5 : vector<256x1xi32>
    %7 = arith.extui %6 : vector<256x1xi1> to vector<256x1xi32>
    %8 = arith.sitofp %7 : vector<256x1xi32> to vector<256x1xf32>
    %c14_i32 = arith.constant 14 : i32
    %9 = vector.broadcast %c14_i32 : i32 to vector<256x1xi32>
    %10 = arith.cmpi sle, %4, %9 : vector<256x1xi32>
    %11 = arith.extui %10 : vector<256x1xi1> to vector<256x1xi32>
    %12 = arith.sitofp %11 : vector<256x1xi32> to vector<256x1xf32>
    %c0_3 = arith.constant 0 : index
    %c0_4 = arith.constant 0 : index
    %c0_5 = arith.constant 0 : index
    %13 = vector.load %arg2[%c0_3, %c0_4, %c0_5] : memref<3x4x32xf32, #tpu.memory_space<vmem>>, vector<3x4x32xf32>
    %14 = vector.extract_strided_slice %1 {offsets = [0, 0], sizes = [1, 32], strides = [1, 1]} : vector<8x32xf32> to vector<1x32xf32>
    %15 = vector.extract_strided_slice %1 {offsets = [1, 0], sizes = [1, 32], strides = [1, 1]} : vector<8x32xf32> to vector<1x32xf32>
    %c1_i32_6 = arith.constant 1 : i32
    %16 = tpu.dynamic_rotate %0 by %c1_i32_6 dim 0 : vector<256x4xf32>, i32 -> vector<256x4xf32>
    %17 = vector.broadcast %8 : vector<256x1xf32> to vector<256x4xf32>
    %18 = arith.mulf %16, %17 : vector<256x4xf32>
    %c255_i32 = arith.constant 255 : i32
    %19 = tpu.dynamic_rotate %0 by %c255_i32 dim 0 : vector<256x4xf32>, i32 -> vector<256x4xf32>
    %20 = vector.broadcast %12 : vector<256x1xf32> to vector<256x4xf32>
    %21 = arith.mulf %19, %20 : vector<256x4xf32>
    %22 = vector.extract_strided_slice %13 {offsets = [0, 0, 0], sizes = [1, 4, 32], strides = [1, 1, 1]} : vector<3x4x32xf32> to vector<1x4x32xf32>
    %23 = vector.shape_cast %22 : vector<1x4x32xf32> to vector<4x32xf32>
    %cst = arith.constant dense<0.000000e+00> : vector<256x32xf32>
    %24 = tpu.matmul %18, %23, %cst {dimension_numbers = #tpu.dot_dimension_numbers<[1], [0], [0], [1], [0, 0, 1, 1], [], []>} : vector<256x4xf32>, vector<4x32xf32>, vector<256x32xf32> -> vector<256x32xf32>
    %25 = vector.extract_strided_slice %13 {offsets = [1, 0, 0], sizes = [1, 4, 32], strides = [1, 1, 1]} : vector<3x4x32xf32> to vector<1x4x32xf32>
    %26 = vector.shape_cast %25 : vector<1x4x32xf32> to vector<4x32xf32>
    %cst_7 = arith.constant dense<0.000000e+00> : vector<256x32xf32>
    %27 = tpu.matmul %0, %26, %cst_7 {dimension_numbers = #tpu.dot_dimension_numbers<[1], [0], [0], [1], [0, 0, 1, 1], [], []>} : vector<256x4xf32>, vector<4x32xf32>, vector<256x32xf32> -> vector<256x32xf32>
    %28 = arith.addf %24, %27 : vector<256x32xf32>
    %29 = vector.extract_strided_slice %13 {offsets = [2, 0, 0], sizes = [1, 4, 32], strides = [1, 1, 1]} : vector<3x4x32xf32> to vector<1x4x32xf32>
    %30 = vector.shape_cast %29 : vector<1x4x32xf32> to vector<4x32xf32>
    %cst_8 = arith.constant dense<0.000000e+00> : vector<256x32xf32>
    %31 = tpu.matmul %21, %30, %cst_8 {dimension_numbers = #tpu.dot_dimension_numbers<[1], [0], [0], [1], [0, 0, 1, 1], [], []>} : vector<256x4xf32>, vector<4x32xf32>, vector<256x32xf32> -> vector<256x32xf32>
    %32 = arith.addf %28, %31 : vector<256x32xf32>
    %33 = vector.broadcast %14 : vector<1x32xf32> to vector<256x32xf32>
    %34 = arith.mulf %32, %33 : vector<256x32xf32>
    %35 = vector.broadcast %15 : vector<1x32xf32> to vector<256x32xf32>
    %36 = arith.addf %34, %35 : vector<256x32xf32>
    %cst_9 = arith.constant 5.000000e-01 : f32
    %37 = vector.broadcast %cst_9 : f32 to vector<256x32xf32>
    %38 = arith.mulf %37, %36 : vector<256x32xf32>
    %cst_10 = arith.constant 0.707106769 : f32
    %39 = vector.broadcast %cst_10 : f32 to vector<256x32xf32>
    %40 = arith.mulf %36, %39 : vector<256x32xf32>
    %41 = math.absf %40 : vector<256x32xf32>
    %cst_11 = arith.constant 0.327591091 : f32
    %42 = vector.broadcast %cst_11 : f32 to vector<256x32xf32>
    %43 = arith.mulf %42, %41 : vector<256x32xf32>
    %cst_12 = arith.constant 1.000000e+00 : f32
    %44 = vector.broadcast %cst_12 : f32 to vector<256x32xf32>
    %45 = arith.addf %44, %43 : vector<256x32xf32>
    %46 = tpu.reciprocal %45 {approx = true} : vector<256x32xf32> -> vector<256x32xf32>
    %47 = arith.mulf %45, %46 : vector<256x32xf32>
    %cst_13 = arith.constant 2.000000e+00 : f32
    %48 = vector.broadcast %cst_13 : f32 to vector<256x32xf32>
    %49 = arith.subf %48, %47 : vector<256x32xf32>
    %50 = arith.mulf %46, %49 : vector<256x32xf32>
    %cst_14 = arith.constant 1.06140542 : f32
    %51 = vector.broadcast %cst_14 : f32 to vector<256x32xf32>
    %52 = arith.mulf %51, %50 : vector<256x32xf32>
    %cst_15 = arith.constant -1.45315206 : f32
    %53 = vector.broadcast %cst_15 : f32 to vector<256x32xf32>
    %54 = arith.addf %52, %53 : vector<256x32xf32>
    %55 = arith.mulf %54, %50 : vector<256x32xf32>
    %cst_16 = arith.constant 1.42141378 : f32
    %56 = vector.broadcast %cst_16 : f32 to vector<256x32xf32>
    %57 = arith.addf %55, %56 : vector<256x32xf32>
    %58 = arith.mulf %57, %50 : vector<256x32xf32>
    %cst_17 = arith.constant -0.284496725 : f32
    %59 = vector.broadcast %cst_17 : f32 to vector<256x32xf32>
    %60 = arith.addf %58, %59 : vector<256x32xf32>
    %61 = arith.mulf %60, %50 : vector<256x32xf32>
    %cst_18 = arith.constant 0.254829586 : f32
    %62 = vector.broadcast %cst_18 : f32 to vector<256x32xf32>
    %63 = arith.addf %61, %62 : vector<256x32xf32>
    %64 = arith.mulf %63, %50 : vector<256x32xf32>
    %cst_19 = arith.constant 0.000000e+00 : f32
    %65 = vector.broadcast %cst_19 : f32 to vector<256x32xf32>
    %66 = arith.subf %65, %41 : vector<256x32xf32>
    %67 = arith.mulf %66, %41 : vector<256x32xf32>
    %68 = math.exp %67 : vector<256x32xf32>
    %69 = arith.mulf %64, %68 : vector<256x32xf32>
    %cst_20 = arith.constant 1.000000e+00 : f32
    %70 = vector.broadcast %cst_20 : f32 to vector<256x32xf32>
    %71 = arith.subf %70, %69 : vector<256x32xf32>
    %cst_21 = arith.constant 0.000000e+00 : f32
    %72 = vector.broadcast %cst_21 : f32 to vector<256x32xf32>
    %73 = arith.cmpf oge, %40, %72 : vector<256x32xf32>
    %cst_22 = arith.constant 0.000000e+00 : f32
    %74 = vector.broadcast %cst_22 : f32 to vector<256x32xf32>
    %75 = arith.subf %74, %71 : vector<256x32xf32>
    %76 = arith.select %73, %71, %75 : vector<256x32xi1>, vector<256x32xf32>
    %cst_23 = arith.constant 1.000000e+00 : f32
    %77 = vector.broadcast %cst_23 : f32 to vector<256x32xf32>
    %78 = arith.addf %77, %76 : vector<256x32xf32>
    %79 = arith.mulf %38, %78 : vector<256x32xf32>
    %c0_24 = arith.constant 0 : index
    %c0_25 = arith.constant 0 : index
    %c0_26 = arith.constant 0 : index
    %c0_27 = arith.constant 0 : index
    %80 = vector.load %arg3[%c0_24, %c0_25, %c0_26, %c0_27] : memref<3x3x32x32xf32, #tpu.memory_space<vmem>>, vector<1x3x32x32xf32>
    %81 = vector.shape_cast %80 : vector<1x3x32x32xf32> to vector<3x32x32xf32>
    %82 = vector.extract_strided_slice %1 {offsets = [2, 0], sizes = [1, 32], strides = [1, 1]} : vector<8x32xf32> to vector<1x32xf32>
    %83 = vector.extract_strided_slice %1 {offsets = [3, 0], sizes = [1, 32], strides = [1, 1]} : vector<8x32xf32> to vector<1x32xf32>
    %c1_i32_28 = arith.constant 1 : i32
    %84 = tpu.dynamic_rotate %79 by %c1_i32_28 dim 0 : vector<256x32xf32>, i32 -> vector<256x32xf32>
    %85 = vector.broadcast %8 : vector<256x1xf32> to vector<256x32xf32>
    %86 = arith.mulf %84, %85 : vector<256x32xf32>
    %c255_i32_29 = arith.constant 255 : i32
    %87 = tpu.dynamic_rotate %79 by %c255_i32_29 dim 0 : vector<256x32xf32>, i32 -> vector<256x32xf32>
    %88 = vector.broadcast %12 : vector<256x1xf32> to vector<256x32xf32>
    %89 = arith.mulf %87, %88 : vector<256x32xf32>
    %90 = vector.extract_strided_slice %81 {offsets = [0, 0, 0], sizes = [1, 32, 32], strides = [1, 1, 1]} : vector<3x32x32xf32> to vector<1x32x32xf32>
    %91 = vector.shape_cast %90 : vector<1x32x32xf32> to vector<32x32xf32>
    %cst_30 = arith.constant dense<0.000000e+00> : vector<256x32xf32>
    %92 = tpu.matmul %86, %91, %cst_30 {dimension_numbers = #tpu.dot_dimension_numbers<[1], [0], [0], [1], [0, 0, 1, 1], [], []>} : vector<256x32xf32>, vector<32x32xf32>, vector<256x32xf32> -> vector<256x32xf32>
    %93 = vector.extract_strided_slice %81 {offsets = [1, 0, 0], sizes = [1, 32, 32], strides = [1, 1, 1]} : vector<3x32x32xf32> to vector<1x32x32xf32>
    %94 = vector.shape_cast %93 : vector<1x32x32xf32> to vector<32x32xf32>
    %cst_31 = arith.constant dense<0.000000e+00> : vector<256x32xf32>
    %95 = tpu.matmul %79, %94, %cst_31 {dimension_numbers = #tpu.dot_dimension_numbers<[1], [0], [0], [1], [0, 0, 1, 1], [], []>} : vector<256x32xf32>, vector<32x32xf32>, vector<256x32xf32> -> vector<256x32xf32>
    %96 = arith.addf %92, %95 : vector<256x32xf32>
    %97 = vector.extract_strided_slice %81 {offsets = [2, 0, 0], sizes = [1, 32, 32], strides = [1, 1, 1]} : vector<3x32x32xf32> to vector<1x32x32xf32>
    %98 = vector.shape_cast %97 : vector<1x32x32xf32> to vector<32x32xf32>
    %cst_32 = arith.constant dense<0.000000e+00> : vector<256x32xf32>
    %99 = tpu.matmul %89, %98, %cst_32 {dimension_numbers = #tpu.dot_dimension_numbers<[1], [0], [0], [1], [0, 0, 1, 1], [], []>} : vector<256x32xf32>, vector<32x32xf32>, vector<256x32xf32> -> vector<256x32xf32>
    %100 = arith.addf %96, %99 : vector<256x32xf32>
    %101 = arith.addf %100, %79 : vector<256x32xf32>
    %102 = vector.broadcast %82 : vector<1x32xf32> to vector<256x32xf32>
    %103 = arith.mulf %101, %102 : vector<256x32xf32>
    %104 = vector.broadcast %83 : vector<1x32xf32> to vector<256x32xf32>
    %105 = arith.addf %103, %104 : vector<256x32xf32>
    %cst_33 = arith.constant 5.000000e-01 : f32
    %106 = vector.broadcast %cst_33 : f32 to vector<256x32xf32>
    %107 = arith.mulf %106, %105 : vector<256x32xf32>
    %cst_34 = arith.constant 0.707106769 : f32
    %108 = vector.broadcast %cst_34 : f32 to vector<256x32xf32>
    %109 = arith.mulf %105, %108 : vector<256x32xf32>
    %110 = math.absf %109 : vector<256x32xf32>
    %cst_35 = arith.constant 0.327591091 : f32
    %111 = vector.broadcast %cst_35 : f32 to vector<256x32xf32>
    %112 = arith.mulf %111, %110 : vector<256x32xf32>
    %cst_36 = arith.constant 1.000000e+00 : f32
    %113 = vector.broadcast %cst_36 : f32 to vector<256x32xf32>
    %114 = arith.addf %113, %112 : vector<256x32xf32>
    %115 = tpu.reciprocal %114 {approx = true} : vector<256x32xf32> -> vector<256x32xf32>
    %116 = arith.mulf %114, %115 : vector<256x32xf32>
    %cst_37 = arith.constant 2.000000e+00 : f32
    %117 = vector.broadcast %cst_37 : f32 to vector<256x32xf32>
    %118 = arith.subf %117, %116 : vector<256x32xf32>
    %119 = arith.mulf %115, %118 : vector<256x32xf32>
    %cst_38 = arith.constant 1.06140542 : f32
    %120 = vector.broadcast %cst_38 : f32 to vector<256x32xf32>
    %121 = arith.mulf %120, %119 : vector<256x32xf32>
    %cst_39 = arith.constant -1.45315206 : f32
    %122 = vector.broadcast %cst_39 : f32 to vector<256x32xf32>
    %123 = arith.addf %121, %122 : vector<256x32xf32>
    %124 = arith.mulf %123, %119 : vector<256x32xf32>
    %cst_40 = arith.constant 1.42141378 : f32
    %125 = vector.broadcast %cst_40 : f32 to vector<256x32xf32>
    %126 = arith.addf %124, %125 : vector<256x32xf32>
    %127 = arith.mulf %126, %119 : vector<256x32xf32>
    %cst_41 = arith.constant -0.284496725 : f32
    %128 = vector.broadcast %cst_41 : f32 to vector<256x32xf32>
    %129 = arith.addf %127, %128 : vector<256x32xf32>
    %130 = arith.mulf %129, %119 : vector<256x32xf32>
    %cst_42 = arith.constant 0.254829586 : f32
    %131 = vector.broadcast %cst_42 : f32 to vector<256x32xf32>
    %132 = arith.addf %130, %131 : vector<256x32xf32>
    %133 = arith.mulf %132, %119 : vector<256x32xf32>
    %cst_43 = arith.constant 0.000000e+00 : f32
    %134 = vector.broadcast %cst_43 : f32 to vector<256x32xf32>
    %135 = arith.subf %134, %110 : vector<256x32xf32>
    %136 = arith.mulf %135, %110 : vector<256x32xf32>
    %137 = math.exp %136 : vector<256x32xf32>
    %138 = arith.mulf %133, %137 : vector<256x32xf32>
    %cst_44 = arith.constant 1.000000e+00 : f32
    %139 = vector.broadcast %cst_44 : f32 to vector<256x32xf32>
    %140 = arith.subf %139, %138 : vector<256x32xf32>
    %cst_45 = arith.constant 0.000000e+00 : f32
    %141 = vector.broadcast %cst_45 : f32 to vector<256x32xf32>
    %142 = arith.cmpf oge, %109, %141 : vector<256x32xf32>
    %cst_46 = arith.constant 0.000000e+00 : f32
    %143 = vector.broadcast %cst_46 : f32 to vector<256x32xf32>
    %144 = arith.subf %143, %140 : vector<256x32xf32>
    %145 = arith.select %142, %140, %144 : vector<256x32xi1>, vector<256x32xf32>
    %cst_47 = arith.constant 1.000000e+00 : f32
    %146 = vector.broadcast %cst_47 : f32 to vector<256x32xf32>
    %147 = arith.addf %146, %145 : vector<256x32xf32>
    %148 = arith.mulf %107, %147 : vector<256x32xf32>
    %c1 = arith.constant 1 : index
    %c0_48 = arith.constant 0 : index
    %c0_49 = arith.constant 0 : index
    %c0_50 = arith.constant 0 : index
    %149 = vector.load %arg3[%c1, %c0_48, %c0_49, %c0_50] : memref<3x3x32x32xf32, #tpu.memory_space<vmem>>, vector<1x3x32x32xf32>
    %150 = vector.shape_cast %149 : vector<1x3x32x32xf32> to vector<3x32x32xf32>
    %151 = vector.extract_strided_slice %1 {offsets = [4, 0], sizes = [1, 32], strides = [1, 1]} : vector<8x32xf32> to vector<1x32xf32>
    %152 = vector.extract_strided_slice %1 {offsets = [5, 0], sizes = [1, 32], strides = [1, 1]} : vector<8x32xf32> to vector<1x32xf32>
    %c1_i32_51 = arith.constant 1 : i32
    %153 = tpu.dynamic_rotate %148 by %c1_i32_51 dim 0 : vector<256x32xf32>, i32 -> vector<256x32xf32>
    %154 = vector.broadcast %8 : vector<256x1xf32> to vector<256x32xf32>
    %155 = arith.mulf %153, %154 : vector<256x32xf32>
    %c255_i32_52 = arith.constant 255 : i32
    %156 = tpu.dynamic_rotate %148 by %c255_i32_52 dim 0 : vector<256x32xf32>, i32 -> vector<256x32xf32>
    %157 = vector.broadcast %12 : vector<256x1xf32> to vector<256x32xf32>
    %158 = arith.mulf %156, %157 : vector<256x32xf32>
    %159 = vector.extract_strided_slice %150 {offsets = [0, 0, 0], sizes = [1, 32, 32], strides = [1, 1, 1]} : vector<3x32x32xf32> to vector<1x32x32xf32>
    %160 = vector.shape_cast %159 : vector<1x32x32xf32> to vector<32x32xf32>
    %cst_53 = arith.constant dense<0.000000e+00> : vector<256x32xf32>
    %161 = tpu.matmul %155, %160, %cst_53 {dimension_numbers = #tpu.dot_dimension_numbers<[1], [0], [0], [1], [0, 0, 1, 1], [], []>} : vector<256x32xf32>, vector<32x32xf32>, vector<256x32xf32> -> vector<256x32xf32>
    %162 = vector.extract_strided_slice %150 {offsets = [1, 0, 0], sizes = [1, 32, 32], strides = [1, 1, 1]} : vector<3x32x32xf32> to vector<1x32x32xf32>
    %163 = vector.shape_cast %162 : vector<1x32x32xf32> to vector<32x32xf32>
    %cst_54 = arith.constant dense<0.000000e+00> : vector<256x32xf32>
    %164 = tpu.matmul %148, %163, %cst_54 {dimension_numbers = #tpu.dot_dimension_numbers<[1], [0], [0], [1], [0, 0, 1, 1], [], []>} : vector<256x32xf32>, vector<32x32xf32>, vector<256x32xf32> -> vector<256x32xf32>
    %165 = arith.addf %161, %164 : vector<256x32xf32>
    %166 = vector.extract_strided_slice %150 {offsets = [2, 0, 0], sizes = [1, 32, 32], strides = [1, 1, 1]} : vector<3x32x32xf32> to vector<1x32x32xf32>
    %167 = vector.shape_cast %166 : vector<1x32x32xf32> to vector<32x32xf32>
    %cst_55 = arith.constant dense<0.000000e+00> : vector<256x32xf32>
    %168 = tpu.matmul %158, %167, %cst_55 {dimension_numbers = #tpu.dot_dimension_numbers<[1], [0], [0], [1], [0, 0, 1, 1], [], []>} : vector<256x32xf32>, vector<32x32xf32>, vector<256x32xf32> -> vector<256x32xf32>
    %169 = arith.addf %165, %168 : vector<256x32xf32>
    %170 = arith.addf %169, %148 : vector<256x32xf32>
    %171 = vector.broadcast %151 : vector<1x32xf32> to vector<256x32xf32>
    %172 = arith.mulf %170, %171 : vector<256x32xf32>
    %173 = vector.broadcast %152 : vector<1x32xf32> to vector<256x32xf32>
    %174 = arith.addf %172, %173 : vector<256x32xf32>
    %cst_56 = arith.constant 5.000000e-01 : f32
    %175 = vector.broadcast %cst_56 : f32 to vector<256x32xf32>
    %176 = arith.mulf %175, %174 : vector<256x32xf32>
    %cst_57 = arith.constant 0.707106769 : f32
    %177 = vector.broadcast %cst_57 : f32 to vector<256x32xf32>
    %178 = arith.mulf %174, %177 : vector<256x32xf32>
    %179 = math.absf %178 : vector<256x32xf32>
    %cst_58 = arith.constant 0.327591091 : f32
    %180 = vector.broadcast %cst_58 : f32 to vector<256x32xf32>
    %181 = arith.mulf %180, %179 : vector<256x32xf32>
    %cst_59 = arith.constant 1.000000e+00 : f32
    %182 = vector.broadcast %cst_59 : f32 to vector<256x32xf32>
    %183 = arith.addf %182, %181 : vector<256x32xf32>
    %184 = tpu.reciprocal %183 {approx = true} : vector<256x32xf32> -> vector<256x32xf32>
    %185 = arith.mulf %183, %184 : vector<256x32xf32>
    %cst_60 = arith.constant 2.000000e+00 : f32
    %186 = vector.broadcast %cst_60 : f32 to vector<256x32xf32>
    %187 = arith.subf %186, %185 : vector<256x32xf32>
    %188 = arith.mulf %184, %187 : vector<256x32xf32>
    %cst_61 = arith.constant 1.06140542 : f32
    %189 = vector.broadcast %cst_61 : f32 to vector<256x32xf32>
    %190 = arith.mulf %189, %188 : vector<256x32xf32>
    %cst_62 = arith.constant -1.45315206 : f32
    %191 = vector.broadcast %cst_62 : f32 to vector<256x32xf32>
    %192 = arith.addf %190, %191 : vector<256x32xf32>
    %193 = arith.mulf %192, %188 : vector<256x32xf32>
    %cst_63 = arith.constant 1.42141378 : f32
    %194 = vector.broadcast %cst_63 : f32 to vector<256x32xf32>
    %195 = arith.addf %193, %194 : vector<256x32xf32>
    %196 = arith.mulf %195, %188 : vector<256x32xf32>
    %cst_64 = arith.constant -0.284496725 : f32
    %197 = vector.broadcast %cst_64 : f32 to vector<256x32xf32>
    %198 = arith.addf %196, %197 : vector<256x32xf32>
    %199 = arith.mulf %198, %188 : vector<256x32xf32>
    %cst_65 = arith.constant 0.254829586 : f32
    %200 = vector.broadcast %cst_65 : f32 to vector<256x32xf32>
    %201 = arith.addf %199, %200 : vector<256x32xf32>
    %202 = arith.mulf %201, %188 : vector<256x32xf32>
    %cst_66 = arith.constant 0.000000e+00 : f32
    %203 = vector.broadcast %cst_66 : f32 to vector<256x32xf32>
    %204 = arith.subf %203, %179 : vector<256x32xf32>
    %205 = arith.mulf %204, %179 : vector<256x32xf32>
    %206 = math.exp %205 : vector<256x32xf32>
    %207 = arith.mulf %202, %206 : vector<256x32xf32>
    %cst_67 = arith.constant 1.000000e+00 : f32
    %208 = vector.broadcast %cst_67 : f32 to vector<256x32xf32>
    %209 = arith.subf %208, %207 : vector<256x32xf32>
    %cst_68 = arith.constant 0.000000e+00 : f32
    %210 = vector.broadcast %cst_68 : f32 to vector<256x32xf32>
    %211 = arith.cmpf oge, %178, %210 : vector<256x32xf32>
    %cst_69 = arith.constant 0.000000e+00 : f32
    %212 = vector.broadcast %cst_69 : f32 to vector<256x32xf32>
    %213 = arith.subf %212, %209 : vector<256x32xf32>
    %214 = arith.select %211, %209, %213 : vector<256x32xi1>, vector<256x32xf32>
    %cst_70 = arith.constant 1.000000e+00 : f32
    %215 = vector.broadcast %cst_70 : f32 to vector<256x32xf32>
    %216 = arith.addf %215, %214 : vector<256x32xf32>
    %217 = arith.mulf %176, %216 : vector<256x32xf32>
    %c2 = arith.constant 2 : index
    %c0_71 = arith.constant 0 : index
    %c0_72 = arith.constant 0 : index
    %c0_73 = arith.constant 0 : index
    %218 = vector.load %arg3[%c2, %c0_71, %c0_72, %c0_73] : memref<3x3x32x32xf32, #tpu.memory_space<vmem>>, vector<1x3x32x32xf32>
    %219 = vector.shape_cast %218 : vector<1x3x32x32xf32> to vector<3x32x32xf32>
    %220 = vector.extract_strided_slice %1 {offsets = [6, 0], sizes = [1, 32], strides = [1, 1]} : vector<8x32xf32> to vector<1x32xf32>
    %221 = vector.extract_strided_slice %1 {offsets = [7, 0], sizes = [1, 32], strides = [1, 1]} : vector<8x32xf32> to vector<1x32xf32>
    %c1_i32_74 = arith.constant 1 : i32
    %222 = tpu.dynamic_rotate %217 by %c1_i32_74 dim 0 : vector<256x32xf32>, i32 -> vector<256x32xf32>
    %223 = vector.broadcast %8 : vector<256x1xf32> to vector<256x32xf32>
    %224 = arith.mulf %222, %223 : vector<256x32xf32>
    %c255_i32_75 = arith.constant 255 : i32
    %225 = tpu.dynamic_rotate %217 by %c255_i32_75 dim 0 : vector<256x32xf32>, i32 -> vector<256x32xf32>
    %226 = vector.broadcast %12 : vector<256x1xf32> to vector<256x32xf32>
    %227 = arith.mulf %225, %226 : vector<256x32xf32>
    %228 = vector.extract_strided_slice %219 {offsets = [0, 0, 0], sizes = [1, 32, 32], strides = [1, 1, 1]} : vector<3x32x32xf32> to vector<1x32x32xf32>
    %229 = vector.shape_cast %228 : vector<1x32x32xf32> to vector<32x32xf32>
    %cst_76 = arith.constant dense<0.000000e+00> : vector<256x32xf32>
    %230 = tpu.matmul %224, %229, %cst_76 {dimension_numbers = #tpu.dot_dimension_numbers<[1], [0], [0], [1], [0, 0, 1, 1], [], []>} : vector<256x32xf32>, vector<32x32xf32>, vector<256x32xf32> -> vector<256x32xf32>
    %231 = vector.extract_strided_slice %219 {offsets = [1, 0, 0], sizes = [1, 32, 32], strides = [1, 1, 1]} : vector<3x32x32xf32> to vector<1x32x32xf32>
    %232 = vector.shape_cast %231 : vector<1x32x32xf32> to vector<32x32xf32>
    %cst_77 = arith.constant dense<0.000000e+00> : vector<256x32xf32>
    %233 = tpu.matmul %217, %232, %cst_77 {dimension_numbers = #tpu.dot_dimension_numbers<[1], [0], [0], [1], [0, 0, 1, 1], [], []>} : vector<256x32xf32>, vector<32x32xf32>, vector<256x32xf32> -> vector<256x32xf32>
    %234 = arith.addf %230, %233 : vector<256x32xf32>
    %235 = vector.extract_strided_slice %219 {offsets = [2, 0, 0], sizes = [1, 32, 32], strides = [1, 1, 1]} : vector<3x32x32xf32> to vector<1x32x32xf32>
    %236 = vector.shape_cast %235 : vector<1x32x32xf32> to vector<32x32xf32>
    %cst_78 = arith.constant dense<0.000000e+00> : vector<256x32xf32>
    %237 = tpu.matmul %227, %236, %cst_78 {dimension_numbers = #tpu.dot_dimension_numbers<[1], [0], [0], [1], [0, 0, 1, 1], [], []>} : vector<256x32xf32>, vector<32x32xf32>, vector<256x32xf32> -> vector<256x32xf32>
    %238 = arith.addf %234, %237 : vector<256x32xf32>
    %239 = arith.addf %238, %217 : vector<256x32xf32>
    %240 = vector.broadcast %220 : vector<1x32xf32> to vector<256x32xf32>
    %241 = arith.mulf %239, %240 : vector<256x32xf32>
    %242 = vector.broadcast %221 : vector<1x32xf32> to vector<256x32xf32>
    %243 = arith.addf %241, %242 : vector<256x32xf32>
    %cst_79 = arith.constant 5.000000e-01 : f32
    %244 = vector.broadcast %cst_79 : f32 to vector<256x32xf32>
    %245 = arith.mulf %244, %243 : vector<256x32xf32>
    %cst_80 = arith.constant 0.707106769 : f32
    %246 = vector.broadcast %cst_80 : f32 to vector<256x32xf32>
    %247 = arith.mulf %243, %246 : vector<256x32xf32>
    %248 = math.absf %247 : vector<256x32xf32>
    %cst_81 = arith.constant 0.327591091 : f32
    %249 = vector.broadcast %cst_81 : f32 to vector<256x32xf32>
    %250 = arith.mulf %249, %248 : vector<256x32xf32>
    %cst_82 = arith.constant 1.000000e+00 : f32
    %251 = vector.broadcast %cst_82 : f32 to vector<256x32xf32>
    %252 = arith.addf %251, %250 : vector<256x32xf32>
    %253 = tpu.reciprocal %252 {approx = true} : vector<256x32xf32> -> vector<256x32xf32>
    %254 = arith.mulf %252, %253 : vector<256x32xf32>
    %cst_83 = arith.constant 2.000000e+00 : f32
    %255 = vector.broadcast %cst_83 : f32 to vector<256x32xf32>
    %256 = arith.subf %255, %254 : vector<256x32xf32>
    %257 = arith.mulf %253, %256 : vector<256x32xf32>
    %cst_84 = arith.constant 1.06140542 : f32
    %258 = vector.broadcast %cst_84 : f32 to vector<256x32xf32>
    %259 = arith.mulf %258, %257 : vector<256x32xf32>
    %cst_85 = arith.constant -1.45315206 : f32
    %260 = vector.broadcast %cst_85 : f32 to vector<256x32xf32>
    %261 = arith.addf %259, %260 : vector<256x32xf32>
    %262 = arith.mulf %261, %257 : vector<256x32xf32>
    %cst_86 = arith.constant 1.42141378 : f32
    %263 = vector.broadcast %cst_86 : f32 to vector<256x32xf32>
    %264 = arith.addf %262, %263 : vector<256x32xf32>
    %265 = arith.mulf %264, %257 : vector<256x32xf32>
    %cst_87 = arith.constant -0.284496725 : f32
    %266 = vector.broadcast %cst_87 : f32 to vector<256x32xf32>
    %267 = arith.addf %265, %266 : vector<256x32xf32>
    %268 = arith.mulf %267, %257 : vector<256x32xf32>
    %cst_88 = arith.constant 0.254829586 : f32
    %269 = vector.broadcast %cst_88 : f32 to vector<256x32xf32>
    %270 = arith.addf %268, %269 : vector<256x32xf32>
    %271 = arith.mulf %270, %257 : vector<256x32xf32>
    %cst_89 = arith.constant 0.000000e+00 : f32
    %272 = vector.broadcast %cst_89 : f32 to vector<256x32xf32>
    %273 = arith.subf %272, %248 : vector<256x32xf32>
    %274 = arith.mulf %273, %248 : vector<256x32xf32>
    %275 = math.exp %274 : vector<256x32xf32>
    %276 = arith.mulf %271, %275 : vector<256x32xf32>
    %cst_90 = arith.constant 1.000000e+00 : f32
    %277 = vector.broadcast %cst_90 : f32 to vector<256x32xf32>
    %278 = arith.subf %277, %276 : vector<256x32xf32>
    %cst_91 = arith.constant 0.000000e+00 : f32
    %279 = vector.broadcast %cst_91 : f32 to vector<256x32xf32>
    %280 = arith.cmpf oge, %247, %279 : vector<256x32xf32>
    %cst_92 = arith.constant 0.000000e+00 : f32
    %281 = vector.broadcast %cst_92 : f32 to vector<256x32xf32>
    %282 = arith.subf %281, %278 : vector<256x32xf32>
    %283 = arith.select %280, %278, %282 : vector<256x32xi1>, vector<256x32xf32>
    %cst_93 = arith.constant 1.000000e+00 : f32
    %284 = vector.broadcast %cst_93 : f32 to vector<256x32xf32>
    %285 = arith.addf %284, %283 : vector<256x32xf32>
    %286 = arith.mulf %245, %285 : vector<256x32xf32>
    %287 = vector.shape_cast %286 : vector<256x32xf32> to vector<16x16x32xf32>
    %cst_94 = arith.constant dense<0.000000e+00> : vector<16x32xf32>
    %288 = vector.multi_reduction <add>, %287, %cst_94 [1] : vector<16x16x32xf32> to vector<16x32xf32>
    %cst_95 = arith.constant 1.600000e+01 : f32
    %289 = vector.broadcast %cst_95 : f32 to vector<16x32xf32>
    %290 = arith.divf %288, %289 : vector<16x32xf32>
    %c0_96 = arith.constant 0 : index
    %c0_97 = arith.constant 0 : index
    %291 = vector.load %arg5[%c0_96, %c0_97] : memref<32x128xf32, #tpu.memory_space<vmem>>, vector<32x128xf32>
    %cst_98 = arith.constant dense<0.000000e+00> : vector<16x128xf32>
    %292 = tpu.matmul %290, %291, %cst_98 {dimension_numbers = #tpu.dot_dimension_numbers<[1], [0], [0], [1], [0, 0, 1, 1], [], []>} : vector<16x32xf32>, vector<32x128xf32>, vector<16x128xf32> -> vector<16x128xf32>
    %c0_99 = arith.constant 0 : index
    %c0_100 = arith.constant 0 : index
    %293 = vector.load %arg6[%c0_99, %c0_100] : memref<1x128xf32, #tpu.memory_space<vmem>>, vector<1x128xf32>
    %294 = vector.broadcast %293 : vector<1x128xf32> to vector<16x128xf32>
    %295 = arith.addf %292, %294 : vector<16x128xf32>
    %c0_101 = arith.constant 0 : index
    %c0_102 = arith.constant 0 : index
    %296 = vector.load %arg7[%c0_101, %c0_102] : memref<16x128xf32, #tpu.memory_space<vmem>>, vector<16x128xf32>
    tpu.vector_store %arg7[%c0_101, %c0_102], %295 {strides = array<i32>} : memref<16x128xf32, #tpu.memory_space<vmem>>, vector<16x128xf32>,
    return
  }
  func.func @transform_0(%arg0: i32) -> (i32, i32) {
    %c0_i32 = arith.constant 0 : i32
    %c0_i32_0 = arith.constant 0 : i32
    return %arg0, %c0_i32 : i32, i32
  }
  func.func @transform_1(%arg0: i32) -> (i32, i32, i32) {
    %c0_i32 = arith.constant 0 : i32
    %c0_i32_0 = arith.constant 0 : i32
    %c0_i32_1 = arith.constant 0 : i32
    %c0_i32_2 = arith.constant 0 : i32
    return %c0_i32, %c0_i32_0, %c0_i32_1 : i32, i32, i32
  }
  func.func @transform_2(%arg0: i32) -> (i32, i32, i32, i32) {
    %c0_i32 = arith.constant 0 : i32
    %c0_i32_0 = arith.constant 0 : i32
    %c0_i32_1 = arith.constant 0 : i32
    %c0_i32_2 = arith.constant 0 : i32
    %c0_i32_3 = arith.constant 0 : i32
    return %c0_i32, %c0_i32_0, %c0_i32_1, %c0_i32_2 : i32, i32, i32, i32
  }
  func.func @transform_3(%arg0: i32) -> (i32, i32) {
    %c0_i32 = arith.constant 0 : i32
    %c0_i32_0 = arith.constant 0 : i32
    %c0_i32_1 = arith.constant 0 : i32
    return %c0_i32, %c0_i32_0 : i32, i32
  }
  func.func @transform_4(%arg0: i32) -> (i32, i32) {
    %c0_i32 = arith.constant 0 : i32
    %c0_i32_0 = arith.constant 0 : i32
    %c0_i32_1 = arith.constant 0 : i32
    return %c0_i32, %c0_i32_0 : i32, i32
  }
  func.func @transform_5(%arg0: i32) -> (i32, i32) {
    %c0_i32 = arith.constant 0 : i32
    %c0_i32_0 = arith.constant 0 : i32
    %c0_i32_1 = arith.constant 0 : i32
    return %c0_i32, %c0_i32_0 : i32, i32
  }
  func.func @transform_6(%arg0: i32) -> (i32, i32) {
    %c0_i32 = arith.constant 0 : i32
    %c0_i32_0 = arith.constant 0 : i32
    return %arg0, %c0_i32 : i32, i32
  }
}

</mosaic_0001>

<llo_original>
// kernel: tpu_custom_call.1
$region0: #{tpu_custom_call.1}
  #allocation0 [shape = 'u32[]', space=smem, size = 0x4, offset = 0x4, fixed_abs, tag = 'smem constant byte address 0x4 - core index']
  #allocation1 [shape = 'u32[144,128]{1,0:T(1,128)}', space=vmem, size = 0x12000, scoped, tag = 'internal scratch']
  %s0 = inlined_call_operand.vmem [shape: f32[256,4], index: 0, kind: input, shape index: {}]
  %s1 = inlined_call_operand.vmem [shape: f32[3,4,32], index: 1, kind: input, shape index: {}]
  %s2 = inlined_call_operand.hbm [shape: f32[3,3,32,32], index: 2, kind: input, shape index: {}]
  %s3 = inlined_call_operand.vmem [shape: f32[8,32], index: 3, kind: input, shape index: {}]
  %s4 = inlined_call_operand.vmem [shape: f32[32,128], index: 4, kind: input, shape index: {}]
  %s5 = inlined_call_operand.vmem [shape: f32[1,128], index: 5, kind: input, shape index: {}]
  %s6 = inlined_call_operand.hbm [shape: f32[16,128], index: 6, kind: output, shape index: {}]
  %s7 = sld [smem:[#allocation0]]
  $region38: #{tpu_custom_call.1} parent=0
    _
  %s9 = ssub.s32 1, %s7
  %s10 = scalar_select 0, %s9, %s7
  $region1: #{tpu_custom_call.1} parent=0
    #allocation2 [shape = 'u8[147456]{0}', space=vmem, size = 0x24000, scoped, tag = 'input window, operand 2, single buffered']
    #allocation3 [shape = 's32[1]{0}', space=sflag, size = 0x4, scoped, tag = 'scoped memory for tpu_custom_call.1']
    #allocation4 [shape = 's32[1]{0}', space=sflag, size = 0x4, scoped, tag = 'scoped memory for tpu_custom_call.1']
    #allocation5 [shape = 'u8[8192]{0}', space=vmem, size = 0x2000, scoped, tag = 'output window, operand 0, single buffered']
    %11 = vsyncpa [#allocation3], 0
    %12 = vsyncpa [#allocation4], 0
    // Predicated region
    $region2: #{tpu_custom_call.1} parent=1 // pred_check
      _
    $region3: #{tpu_custom_call.1} parent=1 // pred_check_branch
      %14 = sbr.rel (0) target = $region5
    $region4: #{tpu_custom_call.1} parent=1 // pred_region
      _
    $region5: #{tpu_custom_call.1} parent=1 // pred_fallthru
      _
    // Predicated region
    $region6: #{tpu_custom_call.1} parent=1 // pred_check
      _
    $region7: #{tpu_custom_call.1} parent=1 // pred_check_branch
      %16 = sbr.rel (0) target = $region9
    $region8: #{tpu_custom_call.1} parent=1 // pred_region
      _
    $region9: #{tpu_custom_call.1} parent=1 // pred_fallthru
      _
    // Predicated region
    $region10: #{tpu_custom_call.1} parent=1 // pred_check
      _
    $region11: #{tpu_custom_call.1} parent=1 // pred_check_branch
      %18 = sbr.rel (0) target = $region13
    $region12: #{tpu_custom_call.1} parent=1 // pred_region
      %s20 = ssub.s32 4608, 4608
      %21 = vsyncadd [#allocation3], %s20
      %s22 = sshll.u32 [#allocation2], 4
      %s23 = int_to_ptr.vmem [resolvable:$true] %s22
      %28 = dma.hbm_to_vmem [thread:$0]  %s2, 4608, %s23, [#allocation3], 128, 128, 8
    $region13: #{tpu_custom_call.1} parent=1 // pred_fallthru
      _
    // Predicated region
    $region14: #{tpu_custom_call.1} parent=1 // pred_check
      _
    $region15: #{tpu_custom_call.1} parent=1 // pred_check_branch
      %30 = sbr.rel (0) target = $region17
    $region16: #{tpu_custom_call.1} parent=1 // pred_region
      _
    $region17: #{tpu_custom_call.1} parent=1 // pred_fallthru
      _
    // Predicated region
    $region18: #{tpu_custom_call.1} parent=1 // pred_check
      _
    $region19: #{tpu_custom_call.1} parent=1 // pred_check_branch
      %32 = sbr.rel (0) target = $region21
    $region20: #{tpu_custom_call.1} parent=1 // pred_region
      _
    $region21: #{tpu_custom_call.1} parent=1 // pred_fallthru
      _
    // Predicated region
    $region22: #{tpu_custom_call.1} parent=1 // pred_check
      _
    $region23: #{tpu_custom_call.1} parent=1 // pred_check_branch
      %34 = sbr.rel (0) target = $region25
    $region24: #{tpu_custom_call.1} parent=1 // pred_region
      _
    $region25: #{tpu_custom_call.1} parent=1 // pred_fallthru
      _
    // Predicated region
    $region26: #{tpu_custom_call.1} parent=1 // pred_check
      _
    $region27: #{tpu_custom_call.1} parent=1 // pred_check_branch
      %36 = sbr.rel (0) target = $region29
    $region28: #{tpu_custom_call.1} parent=1 // pred_region
      %37 = dma.done [#allocation3], 4608
    $region29: #{tpu_custom_call.1} parent=1 // pred_fallthru
      _
    %v38 = vld [vmem:[%s0] sm:$0xff]
    %v39 = vld [vmem:[%s0 + $0x8] sm:$0xff]
    %v40 = vld [vmem:[%s0 + $0x10] sm:$0xff]
    %v41 = vld [vmem:[%s0 + $0x18] sm:$0xff]
    %v42 = vld [vmem:[%s0 + $0x20] sm:$0xff]
    %v43 = vld [vmem:[%s0 + $0x28] sm:$0xff]
    %v44 = vld [vmem:[%s0 + $0x30] sm:$0xff]
    %v45 = vld [vmem:[%s0 + $0x38] sm:$0xff]
    %v46 = vld [vmem:[%s0 + $0x40] sm:$0xff]
    %v47 = vld [vmem:[%s0 + $0x48] sm:$0xff]
    %v48 = vld [vmem:[%s0 + $0x50] sm:$0xff]
    %v49 = vld [vmem:[%s0 + $0x58] sm:$0xff]
    %v50 = vld [vmem:[%s0 + $0x60] sm:$0xff]
    %v51 = vld [vmem:[%s0 + $0x68] sm:$0xff]
    %v52 = vld [vmem:[%s0 + $0x70] sm:$0xff]
    %v53 = vld [vmem:[%s0 + $0x78] sm:$0xff]
    %v54 = vld [vmem:[%s0 + $0x80] sm:$0xff]
    %v55 = vld [vmem:[%s0 + $0x88] sm:$0xff]
    %v56 = vld [vmem:[%s0 + $0x90] sm:$0xff]
    %v57 = vld [vmem:[%s0 + $0x98] sm:$0xff]
    %v58 = vld [vmem:[%s0 + $0xa0] sm:$0xff]
    %v59 = vld [vmem:[%s0 + $0xa8] sm:$0xff]
    %v60 = vld [vmem:[%s0 + $0xb0] sm:$0xff]
    %v61 = vld [vmem:[%s0 + $0xb8] sm:$0xff]
    %v62 = vld [vmem:[%s0 + $0xc0] sm:$0xff]
    %v63 = vld [vmem:[%s0 + $0xc8] sm:$0xff]
    %v64 = vld [vmem:[%s0 + $0xd0] sm:$0xff]
    %v65 = vld [vmem:[%s0 + $0xd8] sm:$0xff]
    %v66 = vld [vmem:[%s0 + $0xe0] sm:$0xff]
    %v67 = vld [vmem:[%s0 + $0xe8] sm:$0xff]
    %v68 = vld [vmem:[%s0 + $0xf0] sm:$0xff]
    %v69 = vld [vmem:[%s0 + $0xf8] sm:$0xff]
    %v70 = vld [vmem:[%s3] sm:$0xff]
    %v71 = vlaneseq
    %v72 = vshrl.u32 %v71, 7
    %v73 = vadd.s32 %v72, 8
    %v74 = vadd.s32 %v72, 16
    %v75 = vadd.s32 %v72, 24
    %v76 = vadd.s32 %v72, 32
    %v77 = vadd.s32 %v72, 40
    %v78 = vadd.s32 %v72, 48
    %v79 = vadd.s32 %v72, 56
    %v80 = vadd.s32 %v72, 64
    %v81 = vadd.s32 %v72, 72
    %v82 = vadd.s32 %v72, 80
    %v83 = vadd.s32 %v72, 88
    %v84 = vadd.s32 %v72, 96
    %v85 = vadd.s32 %v72, 104
    %v86 = vadd.s32 %v72, 112
    %v87 = vadd.s32 %v72, 120
    %v88 = vadd.s32 %v72, 128
    %v89 = vadd.s32 %v72, 136
    %v90 = vadd.s32 %v72, 144
    %v91 = vadd.s32 %v72, 152
    %v92 = vadd.s32 %v72, 160
    %v93 = vadd.s32 %v72, 168
    %v94 = vadd.s32 %v72, 176
    %v95 = vadd.s32 %v72, 184
    %v96 = vadd.s32 %v72, 192
    %v97 = vadd.s32 %v72, 200
    %v98 = vadd.s32 %v72, 208
    %v99 = vadd.s32 %v72, 216
    %v100 = vadd.s32 %v72, 224
    %v101 = vadd.s32 %v72, 232
    %v102 = vadd.s32 %v72, 240
    %v103 = vadd.s32 %v72, 248
    %v104 = vand.u32 %v72, 15
    %v105 = vand.u32 %v73, 15
    %v106 = vand.u32 %v74, 15
    %v107 = vand.u32 %v75, 15
    %v108 = vand.u32 %v76, 15
    %v109 = vand.u32 %v77, 15
    %v110 = vand.u32 %v78, 15
    %v111 = vand.u32 %v79, 15
    %v112 = vand.u32 %v80, 15
    %v113 = vand.u32 %v81, 15
    %v114 = vand.u32 %v82, 15
    %v115 = vand.u32 %v83, 15
    %v116 = vand.u32 %v84, 15
    %v117 = vand.u32 %v85, 15
    %v118 = vand.u32 %v86, 15
    %v119 = vand.u32 %v87, 15
    %v120 = vand.u32 %v88, 15
    %v121 = vand.u32 %v89, 15
    %v122 = vand.u32 %v90, 15
    %v123 = vand.u32 %v91, 15
    %v124 = vand.u32 %v92, 15
    %v125 = vand.u32 %v93, 15
    %v126 = vand.u32 %v94, 15
    %v127 = vand.u32 %v95, 15
    %v128 = vand.u32 %v96, 15
    %v129 = vand.u32 %v97, 15
    %v130 = vand.u32 %v98, 15
    %v131 = vand.u32 %v99, 15
    %v132 = vand.u32 %v100, 15
    %v133 = vand.u32 %v101, 15
    %v134 = vand.u32 %v102, 15
    %v135 = vand.u32 %v103, 15
    %vm136 = vcmp.ge.s32.totalorder %v104, 1
    %vm137 = vcmp.ge.s32.totalorder %v105, 1
    %vm138 = vcmp.ge.s32.totalorder %v106, 1
    %vm139 = vcmp.ge.s32.totalorder %v107, 1
    %vm140 = vcmp.ge.s32.totalorder %v108, 1
    %vm141 = vcmp.ge.s32.totalorder %v109, 1
    %vm142 = vcmp.ge.s32.totalorder %v110, 1
    %vm143 = vcmp.ge.s32.totalorder %v111, 1
    %vm144 = vcmp.ge.s32.totalorder %v112, 1
    %vm145 = vcmp.ge.s32.totalorder %v113, 1
    %vm146 = vcmp.ge.s32.totalorder %v114, 1
    %vm147 = vcmp.ge.s32.totalorder %v115, 1
    %vm148 = vcmp.ge.s32.totalorder %v116, 1
    %vm149 = vcmp.ge.s32.totalorder %v117, 1
    %vm150 = vcmp.ge.s32.totalorder %v118, 1
    %vm151 = vcmp.ge.s32.totalorder %v119, 1
    %vm152 = vcmp.ge.s32.totalorder %v120, 1
    %vm153 = vcmp.ge.s32.totalorder %v121, 1
    %vm154 = vcmp.ge.s32.totalorder %v122, 1
    %vm155 = vcmp.ge.s32.totalorder %v123, 1
    %vm156 = vcmp.ge.s32.totalorder %v124, 1
    %vm157 = vcmp.ge.s32.totalorder %v125, 1
    %vm158 = vcmp.ge.s32.totalorder %v126, 1
    %vm159 = vcmp.ge.s32.totalorder %v127, 1
    %vm160 = vcmp.ge.s32.totalorder %v128, 1
    %vm161 = vcmp.ge.s32.totalorder %v129, 1
    %vm162 = vcmp.ge.s32.totalorder %v130, 1
    %vm163 = vcmp.ge.s32.totalorder %v131, 1
    %vm164 = vcmp.ge.s32.totalorder %v132, 1
    %vm165 = vcmp.ge.s32.totalorder %v133, 1
    %vm166 = vcmp.ge.s32.totalorder %v134, 1
    %vm167 = vcmp.ge.s32.totalorder %v135, 1
    %v168 = vsel %vm136, 1, 0
    %v169 = vsel %vm137, 1, 0
    %v170 = vsel %vm138, 1, 0
    %v171 = vsel %vm139, 1, 0
    %v172 = vsel %vm140, 1, 0
    %v173 = vsel %vm141, 1, 0
    %v174 = vsel %vm142, 1, 0
    %v175 = vsel %vm143, 1, 0
    %v176 = vsel %vm144, 1, 0
    %v177 = vsel %vm145, 1, 0
    %v178 = vsel %vm146, 1, 0
    %v179 = vsel %vm147, 1, 0
    %v180 = vsel %vm148, 1, 0
    %v181 = vsel %vm149, 1, 0
    %v182 = vsel %vm150, 1, 0
    %v183 = vsel %vm151, 1, 0
    %v184 = vsel %vm152, 1, 0
    %v185 = vsel %vm153, 1, 0
    %v186 = vsel %vm154, 1, 0
    %v187 = vsel %vm155, 1, 0
    %v188 = vsel %vm156, 1, 0
    %v189 = vsel %vm157, 1, 0
    %v190 = vsel %vm158, 1, 0
    %v191 = vsel %vm159, 1, 0
    %v192 = vsel %vm160, 1, 0
    %v193 = vsel %vm161, 1, 0
    %v194 = vsel %vm162, 1, 0
    %v195 = vsel %vm163, 1, 0
    %v196 = vsel %vm164, 1, 0
    %v197 = vsel %vm165, 1, 0
    %v198 = vsel %vm166, 1, 0
    %v199 = vsel %vm167, 1, 0
    %v200 = vcvt.s32.f32 %v168
    %v201 = vcvt.s32.f32 %v169
    %v202 = vcvt.s32.f32 %v170
    %v203 = vcvt.s32.f32 %v171
    %v204 = vcvt.s32.f32 %v172
    %v205 = vcvt.s32.f32 %v173
    %v206 = vcvt.s32.f32 %v174
    %v207 = vcvt.s32.f32 %v175
    %v208 = vcvt.s32.f32 %v176
    %v209 = vcvt.s32.f32 %v177
    %v210 = vcvt.s32.f32 %v178
    %v211 = vcvt.s32.f32 %v179
    %v212 = vcvt.s32.f32 %v180
    %v213 = vcvt.s32.f32 %v181
    %v214 = vcvt.s32.f32 %v182
    %v215 = vcvt.s32.f32 %v183
    %v216 = vcvt.s32.f32 %v184
    %v217 = vcvt.s32.f32 %v185
    %v218 = vcvt.s32.f32 %v186
    %v219 = vcvt.s32.f32 %v187
    %v220 = vcvt.s32.f32 %v188
    %v221 = vcvt.s32.f32 %v189
    %v222 = vcvt.s32.f32 %v190
    %v223 = vcvt.s32.f32 %v191
    %v224 = vcvt.s32.f32 %v192
    %v225 = vcvt.s32.f32 %v193
    %v226 = vcvt.s32.f32 %v194
    %v227 = vcvt.s32.f32 %v195
    %v228 = vcvt.s32.f32 %v196
    %v229 = vcvt.s32.f32 %v197
    %v230 = vcvt.s32.f32 %v198
    %v231 = vcvt.s32.f32 %v199
    %vm232 = vcmp.le.s32.totalorder %v104, 14
    %vm233 = vcmp.le.s32.totalorder %v105, 14
    %vm234 = vcmp.le.s32.totalorder %v106, 14
    %vm235 = vcmp.le.s32.totalorder %v107, 14
    %vm236 = vcmp.le.s32.totalorder %v108, 14
    %vm237 = vcmp.le.s32.totalorder %v109, 14
    %vm238 = vcmp.le.s32.totalorder %v110, 14
    %vm239 = vcmp.le.s32.totalorder %v111, 14
    %vm240 = vcmp.le.s32.totalorder %v112, 14
    %vm241 = vcmp.le.s32.totalorder %v113, 14
    %vm242 = vcmp.le.s32.totalorder %v114, 14
    %vm243 = vcmp.le.s32.totalorder %v115, 14
    %vm244 = vcmp.le.s32.totalorder %v116, 14
    %vm245 = vcmp.le.s32.totalorder %v117, 14
    %vm246 = vcmp.le.s32.totalorder %v118, 14
    %vm247 = vcmp.le.s32.totalorder %v119, 14
    %vm248 = vcmp.le.s32.totalorder %v120, 14
    %vm249 = vcmp.le.s32.totalorder %v121, 14
    %vm250 = vcmp.le.s32.totalorder %v122, 14
    %vm251 = vcmp.le.s32.totalorder %v123, 14
    %vm252 = vcmp.le.s32.totalorder %v124, 14
    %vm253 = vcmp.le.s32.totalorder %v125, 14
    %vm254 = vcmp.le.s32.totalorder %v126, 14
    %vm255 = vcmp.le.s32.totalorder %v127, 14
    %vm256 = vcmp.le.s32.totalorder %v128, 14
    %vm257 = vcmp.le.s32.totalorder %v129, 14
    %vm258 = vcmp.le.s32.totalorder %v130, 14
    %vm259 = vcmp.le.s32.totalorder %v131, 14
    %vm260 = vcmp.le.s32.totalorder %v132, 14
    %vm261 = vcmp.le.s32.totalorder %v133, 14
    %vm262 = vcmp.le.s32.totalorder %v134, 14
    %vm263 = vcmp.le.s32.totalorder %v135, 14
    %v264 = vsel %vm232, 1, 0
    %v265 = vsel %vm233, 1, 0
    %v266 = vsel %vm234, 1, 0
    %v267 = vsel %vm235, 1, 0
    %v268 = vsel %vm236, 1, 0
    %v269 = vsel %vm237, 1, 0
    %v270 = vsel %vm238, 1, 0
    %v271 = vsel %vm239, 1, 0
    %v272 = vsel %vm240, 1, 0
    %v273 = vsel %vm241, 1, 0
    %v274 = vsel %vm242, 1, 0
    %v275 = vsel %vm243, 1, 0
    %v276 = vsel %vm244, 1, 0
    %v277 = vsel %vm245, 1, 0
    %v278 = vsel %vm246, 1, 0
    %v279 = vsel %vm247, 1, 0
    %v280 = vsel %vm248, 1, 0
    %v281 = vsel %vm249, 1, 0
    %v282 = vsel %vm250, 1, 0
    %v283 = vsel %vm251, 1, 0
    %v284 = vsel %vm252, 1, 0
    %v285 = vsel %vm253, 1, 0
    %v286 = vsel %vm254, 1, 0
    %v287 = vsel %vm255, 1, 0
    %v288 = vsel %vm256, 1, 0
    %v289 = vsel %vm257, 1, 0
    %v290 = vsel %vm258, 1, 0
    %v291 = vsel %vm259, 1, 0
    %v292 = vsel %vm260, 1, 0
    %v293 = vsel %vm261, 1, 0
    %v294 = vsel %vm262, 1, 0
    %v295 = vsel %vm263, 1, 0
    %v296 = vcvt.s32.f32 %v264
    %v297 = vcvt.s32.f32 %v265
    %v298 = vcvt.s32.f32 %v266
    %v299 = vcvt.s32.f32 %v267
    %v300 = vcvt.s32.f32 %v268
    %v301 = vcvt.s32.f32 %v269
    %v302 = vcvt.s32.f32 %v270
    %v303 = vcvt.s32.f32 %v271
    %v304 = vcvt.s32.f32 %v272
    %v305 = vcvt.s32.f32 %v273
    %v306 = vcvt.s32.f32 %v274
    %v307 = vcvt.s32.f32 %v275
    %v308 = vcvt.s32.f32 %v276
    %v309 = vcvt.s32.f32 %v277
    %v310 = vcvt.s32.f32 %v278
    %v311 = vcvt.s32.f32 %v279
    %v312 = vcvt.s32.f32 %v280
    %v313 = vcvt.s32.f32 %v281
    %v314 = vcvt.s32.f32 %v282
    %v315 = vcvt.s32.f32 %v283
    %v316 = vcvt.s32.f32 %v284
    %v317 = vcvt.s32.f32 %v285
    %v318 = vcvt.s32.f32 %v286
    %v319 = vcvt.s32.f32 %v287
    %v320 = vcvt.s32.f32 %v288
    %v321 = vcvt.s32.f32 %v289
    %v322 = vcvt.s32.f32 %v290
    %v323 = vcvt.s32.f32 %v291
    %v324 = vcvt.s32.f32 %v292
    %v325 = vcvt.s32.f32 %v293
    %v326 = vcvt.s32.f32 %v294
    %v327 = vcvt.s32.f32 %v295
    %v328 = vld [vmem:[%s1] sm:$0xf]
    %v329 = vld [vmem:[%s1 + $0x4] sm:$0xf]
    %v330 = vld [vmem:[%s1 + $0x8] sm:$0xf]
    %v331 = vrot.slane %v38, 7
    %v332 = vrot.slane %v39, 7
    %v333 = vrot.slane %v40, 7
    %v334 = vrot.slane %v41, 7
    %v335 = vrot.slane %v42, 7
    %v336 = vrot.slane %v43, 7
    %v337 = vrot.slane %v44, 7
    %v338 = vrot.slane %v45, 7
    %v339 = vrot.slane %v46, 7
    %v340 = vrot.slane %v47, 7
    %v341 = vrot.slane %v48, 7
    %v342 = vrot.slane %v49, 7
    %v343 = vrot.slane %v50, 7
    %v344 = vrot.slane %v51, 7
    %v345 = vrot.slane %v52, 7
    %v346 = vrot.slane %v53, 7
    %v347 = vrot.slane %v54, 7
    %v348 = vrot.slane %v55, 7
    %v349 = vrot.slane %v56, 7
    %v350 = vrot.slane %v57, 7
    %v351 = vrot.slane %v58, 7
    %v352 = vrot.slane %v59, 7
    %v353 = vrot.slane %v60, 7
    %v354 = vrot.slane %v61, 7
    %v355 = vrot.slane %v62, 7
    %v356 = vrot.slane %v63, 7
    %v357 = vrot.slane %v64, 7
    %v358 = vrot.slane %v65, 7
    %v359 = vrot.slane %v66, 7
    %v360 = vrot.slane %v67, 7
    %v361 = vrot.slane %v68, 7
    %v362 = vrot.slane %v69, 7
    %vm363 = vcmp.lt.s32.totalorder %v72, 1
    %v364 = vsel %vm363, %v361, %v362
    %v365 = vsel %vm363, %v360, %v361
    %v366 = vsel %vm363, %v359, %v360
    %v367 = vsel %vm363, %v358, %v359
    %v368 = vsel %vm363, %v357, %v358
    %v369 = vsel %vm363, %v356, %v357
    %v370 = vsel %vm363, %v355, %v356
    %v371 = vsel %vm363, %v354, %v355
    %v372 = vsel %vm363, %v353, %v354
    %v373 = vsel %vm363, %v352, %v353
    %v374 = vsel %vm363, %v351, %v352
    %v375 = vsel %vm363, %v350, %v351
    %v376 = vsel %vm363, %v349, %v350
    %v377 = vsel %vm363, %v348, %v349
    %v378 = vsel %vm363, %v347, %v348
    %v379 = vsel %vm363, %v346, %v347
    %v380 = vsel %vm363, %v345, %v346
    %v381 = vsel %vm363, %v344, %v345
    %v382 = vsel %vm363, %v343, %v344
    %v383 = vsel %vm363, %v342, %v343
    %v384 = vsel %vm363, %v341, %v342
    %v385 = vsel %vm363, %v340, %v341
    %v386 = vsel %vm363, %v339, %v340
    %v387 = vsel %vm363, %v338, %v339
    %v388 = vsel %vm363, %v337, %v338
    %v389 = vsel %vm363, %v336, %v337
    %v390 = vsel %vm363, %v335, %v336
    %v391 = vsel %vm363, %v334, %v335
    %v392 = vsel %vm363, %v333, %v334
    %v393 = vsel %vm363, %v332, %v333
    %v394 = vsel %vm363, %v331, %v332
    %v395 = vsel %vm363, %v362, %v331
    %v396 = vmul.f32 %v395, %v200
    %v397 = vmul.f32 %v394, %v201
    %v398 = vmul.f32 %v393, %v202
    %v399 = vmul.f32 %v392, %v203
    %v400 = vmul.f32 %v391, %v204
    %v401 = vmul.f32 %v390, %v205
    %v402 = vmul.f32 %v389, %v206
    %v403 = vmul.f32 %v388, %v207
    %v404 = vmul.f32 %v387, %v208
    %v405 = vmul.f32 %v386, %v209
    %v406 = vmul.f32 %v385, %v210
    %v407 = vmul.f32 %v384, %v211
    %v408 = vmul.f32 %v383, %v212
    %v409 = vmul.f32 %v382, %v213
    %v410 = vmul.f32 %v381, %v214
    %v411 = vmul.f32 %v380, %v215
    %v412 = vmul.f32 %v379, %v216
    %v413 = vmul.f32 %v378, %v217
    %v414 = vmul.f32 %v377, %v218
    %v415 = vmul.f32 %v376, %v219
    %v416 = vmul.f32 %v375, %v220
    %v417 = vmul.f32 %v374, %v221
    %v418 = vmul.f32 %v373, %v222
    %v419 = vmul.f32 %v372, %v223
    %v420 = vmul.f32 %v371, %v224
    %v421 = vmul.f32 %v370, %v225
    %v422 = vmul.f32 %v369, %v226
    %v423 = vmul.f32 %v368, %v227
    %v424 = vmul.f32 %v367, %v228
    %v425 = vmul.f32 %v366, %v229
    %v426 = vmul.f32 %v365, %v230
    %v427 = vmul.f32 %v364, %v231
    %v428 = vrot.slane %v38, 1
    %v429 = vrot.slane %v39, 1
    %v430 = vrot.slane %v40, 1
    %v431 = vrot.slane %v41, 1
    %v432 = vrot.slane %v42, 1
    %v433 = vrot.slane %v43, 1
    %v434 = vrot.slane %v44, 1
    %v435 = vrot.slane %v45, 1
    %v436 = vrot.slane %v46, 1
    %v437 = vrot.slane %v47, 1
    %v438 = vrot.slane %v48, 1
    %v439 = vrot.slane %v49, 1
    %v440 = vrot.slane %v50, 1
    %v441 = vrot.slane %v51, 1
    %v442 = vrot.slane %v52, 1
    %v443 = vrot.slane %v53, 1
    %v444 = vrot.slane %v54, 1
    %v445 = vrot.slane %v55, 1
    %v446 = vrot.slane %v56, 1
    %v447 = vrot.slane %v57, 1
    %v448 = vrot.slane %v58, 1
    %v449 = vrot.slane %v59, 1
    %v450 = vrot.slane %v60, 1
    %v451 = vrot.slane %v61, 1
    %v452 = vrot.slane %v62, 1
    %v453 = vrot.slane %v63, 1
    %v454 = vrot.slane %v64, 1
    %v455 = vrot.slane %v65, 1
    %v456 = vrot.slane %v66, 1
    %v457 = vrot.slane %v67, 1
    %v458 = vrot.slane %v68, 1
    %v459 = vrot.slane %v69, 1
    %vm460 = vcmp.lt.s32.totalorder %v72, 7
    %v461 = vsel %vm460, %v458, %v459
    %v462 = vsel %vm460, %v457, %v458
    %v463 = vsel %vm460, %v456, %v457
    %v464 = vsel %vm460, %v455, %v456
    %v465 = vsel %vm460, %v454, %v455
    %v466 = vsel %vm460, %v453, %v454
    %v467 = vsel %vm460, %v452, %v453
    %v468 = vsel %vm460, %v451, %v452
    %v469 = vsel %vm460, %v450, %v451
    %v470 = vsel %vm460, %v449, %v450
    %v471 = vsel %vm460, %v448, %v449
    %v472 = vsel %vm460, %v447, %v448
    %v473 = vsel %vm460, %v446, %v447
    %v474 = vsel %vm460, %v445, %v446
    %v475 = vsel %vm460, %v444, %v445
    %v476 = vsel %vm460, %v443, %v444
    %v477 = vsel %vm460, %v442, %v443
    %v478 = vsel %vm460, %v441, %v442
    %v479 = vsel %vm460, %v440, %v441
    %v480 = vsel %vm460, %v439, %v440
    %v481 = vsel %vm460, %v438, %v439
    %v482 = vsel %vm460, %v437, %v438
    %v483 = vsel %vm460, %v436, %v437
    %v484 = vsel %vm460, %v435, %v436
    %v485 = vsel %vm460, %v434, %v435
    %v486 = vsel %vm460, %v433, %v434
    %v487 = vsel %vm460, %v432, %v433
    %v488 = vsel %vm460, %v431, %v432
    %v489 = vsel %vm460, %v430, %v431
    %v490 = vsel %vm460, %v429, %v430
    %v491 = vsel %vm460, %v428, %v429
    %v492 = vsel %vm460, %v459, %v428
    %v493 = vmul.f32 %v491, %v296
    %v494 = vmul.f32 %v490, %v297
    %v495 = vmul.f32 %v489, %v298
    %v496 = vmul.f32 %v488, %v299
    %v497 = vmul.f32 %v487, %v300
    %v498 = vmul.f32 %v486, %v301
    %v499 = vmul.f32 %v485, %v302
    %v500 = vmul.f32 %v484, %v303
    %v501 = vmul.f32 %v483, %v304
    %v502 = vmul.f32 %v482, %v305
    %v503 = vmul.f32 %v481, %v306
    %v504 = vmul.f32 %v480, %v307
    %v505 = vmul.f32 %v479, %v308
    %v506 = vmul.f32 %v478, %v309
    %v507 = vmul.f32 %v477, %v310
    %v508 = vmul.f32 %v476, %v311
    %v509 = vmul.f32 %v475, %v312
    %v510 = vmul.f32 %v474, %v313
    %v511 = vmul.f32 %v473, %v314
    %v512 = vmul.f32 %v472, %v315
    %v513 = vmul.f32 %v471, %v316
    %v514 = vmul.f32 %v470, %v317
    %v515 = vmul.f32 %v469, %v318
    %v516 = vmul.f32 %v468, %v319
    %v517 = vmul.f32 %v467, %v320
    %v518 = vmul.f32 %v466, %v321
    %v519 = vmul.f32 %v465, %v322
    %v520 = vmul.f32 %v464, %v323
    %v521 = vmul.f32 %v463, %v324
    %v522 = vmul.f32 %v462, %v325
    %v523 = vmul.f32 %v461, %v326
    %v524 = vmul.f32 %v492, %v327
    %vm525 = vcmask 31744
    %v527 = vsel %vm525, %v38, 0
    %v530 = vsel %vm525, %v39, 0
    %v533 = vsel %vm525, %v40, 0
    %v536 = vsel %vm525, %v41, 0
    %v539 = vsel %vm525, %v42, 0
    %v542 = vsel %vm525, %v43, 0
    %v545 = vsel %vm525, %v44, 0
    %v548 = vsel %vm525, %v45, 0
    %v551 = vsel %vm525, %v46, 0
    %v554 = vsel %vm525, %v47, 0
    %v557 = vsel %vm525, %v48, 0
    %v560 = vsel %vm525, %v49, 0
    %v563 = vsel %vm525, %v50, 0
    %v566 = vsel %vm525, %v51, 0
    %v569 = vsel %vm525, %v52, 0
    %v572 = vsel %vm525, %v53, 0
    %v575 = vsel %vm525, %v54, 0
    %v578 = vsel %vm525, %v55, 0
    %v581 = vsel %vm525, %v56, 0
    %v584 = vsel %vm525, %v57, 0
    %v587 = vsel %vm525, %v58, 0
    %v590 = vsel %vm525, %v59, 0
    %v593 = vsel %vm525, %v60, 0
    %v596 = vsel %vm525, %v61, 0
    %v599 = vsel %vm525, %v62, 0
    %v602 = vsel %vm525, %v63, 0
    %v605 = vsel %vm525, %v64, 0
    %v608 = vsel %vm525, %v65, 0
    %v611 = vsel %vm525, %v66, 0
    %v614 = vsel %vm525, %v67, 0
    %v617 = vsel %vm525, %v68, 0
    %v620 = vsel %vm525, %v69, 0
    %vm622 = vcmask 1043456
    %v624 = vsel %vm622, %v329, 0
    %626 = vmatprep.subr.mxu0 0.0
    %627 = vmatpush1.msra.mxu0 %v624
    %628 = vmatprep.subr.mxu0 0.0
    %629 = vmatpush1.msra.mxu0 0.0
    %630 = vmatprep.subr.mxu0 0.0
    %631 = vmatpush1.msra.mxu0 0.0
    %632 = vmatprep.subr.mxu0 0.0
    %633 = vmatpush1.msra.mxu0 0.0
    %634 = vmatprep.subr.mxu0 0.0
    %635 = vmatpush1.msra.mxu0 0.0
    %636 = vmatprep.subr.mxu0 0.0
    %637 = vmatpush1.msra.mxu0 0.0
    %638 = vmatprep.subr.mxu0 0.0
    %639 = vmatpush1.msra.mxu0 0.0
    %640 = vmatprep.subr.mxu0 0.0
    %641 = vmatpush1.msra.mxu0 0.0
    %642 = vmatprep.subr.mxu0 0.0
    %643 = vmatpush1.msra.mxu0 0.0
    %644 = vmatprep.subr.mxu0 0.0
    %645 = vmatpush1.msra.mxu0 0.0
    %646 = vmatprep.subr.mxu0 0.0
    %647 = vmatpush1.msra.mxu0 0.0
    %648 = vmatprep.subr.mxu0 0.0
    %649 = vmatpush1.msra.mxu0 0.0
    %650 = vmatprep.subr.mxu0 0.0
    %651 = vmatpush1.msra.mxu0 0.0
    %652 = vmatprep.subr.mxu0 0.0
    %653 = vmatpush1.msra.mxu0 0.0
    %654 = vmatprep.subr.mxu0 0.0
    %655 = vmatpush1.msra.mxu0 0.0
    %656 = vmatprep.subr.mxu0 0.0
    %657 = vmatpush1.msra.mxu0 0.0
    %658 = vmatprep.subr.mxu0 0.0
    %659 = vmatpush1.msra.mxu0 0.0
    %660 = vmatprep.subr.mxu0 0.0
    %661 = vmatpush1.msra.mxu0 0.0
    %662 = vmatprep.subr.mxu0 0.0
    %663 = vmatpush1.msra.mxu0 0.0
    %664 = vmatprep.subr.mxu0 0.0
    %665 = vmatpush1.msra.mxu0 0.0
    %666 = vmatprep.subr.mxu0 0.0
    %667 = vmatpush1.msra.mxu0 0.0
    %668 = vmatprep.subr.mxu0 0.0
    %669 = vmatpush1.msra.mxu0 0.0
    %670 = vmatprep.subr.mxu0 0.0
    %671 = vmatpush1.msra.mxu0 0.0
    %672 = vmatprep.subr.mxu0 0.0
    %673 = vmatpush1.msra.mxu0 0.0
    %674 = vmatprep.subr.mxu0 0.0
    %675 = vmatpush1.msra.mxu0 0.0
    %676 = vmatprep.subr.mxu0 0.0
    %677 = vmatpush1.msra.mxu0 0.0
    %678 = vmatprep.subr.mxu0 0.0
    %679 = vmatpush1.msra.mxu0 0.0
    %680 = vmatprep.subr.mxu0 0.0
    %681 = vmatpush1.msra.mxu0 0.0
    %682 = vmatprep.subr.mxu0 0.0
    %683 = vmatpush1.msra.mxu0 0.0
    %684 = vmatprep.subr.mxu0 0.0
    %685 = vmatpush1.msra.mxu0 0.0
    %686 = vmatprep.subr.mxu0 0.0
    %687 = vmatpush1.msra.mxu0 0.0
    %688 = vmatprep.subr.mxu0 0.0
    %689 = vmatpush1.msra.mxu0 0.0
    %690 = vmatprep.mubr.f32.mxu0 0.0
    %691 = vmatmul.mubr.f32.gmra.mrb[0].mxu0 %v527
    %v692 = vpop.f32.mrb[0].mxu0
    %v693 = vadd.f32 0.0, %v692
    %v694 = vpop.f32.mrb[0].mxu0
    %695 = vmatprep.mubr.f32.mxu0 0.0
    %696 = vmatmul.mubr.f32.gmra.mrb[0].mxu0 %v530
    %v697 = vpop.f32.mrb[0].mxu0
    %v698 = vadd.f32 0.0, %v697
    %v699 = vpop.f32.mrb[0].mxu0
    %700 = vmatprep.mubr.f32.mxu0 0.0
    %701 = vmatmul.mubr.f32.gmra.mrb[0].mxu0 %v533
    %v702 = vpop.f32.mrb[0].mxu0
    %v703 = vadd.f32 0.0, %v702
    %v704 = vpop.f32.mrb[0].mxu0
    %705 = vmatprep.mubr.f32.mxu0 0.0
    %706 = vmatmul.mubr.f32.gmra.mrb[0].mxu0 %v536
    %v707 = vpop.f32.mrb[0].mxu0
    %v708 = vadd.f32 0.0, %v707
    %v709 = vpop.f32.mrb[0].mxu0
    %710 = vmatprep.mubr.f32.mxu0 0.0
    %711 = vmatmul.mubr.f32.gmra.mrb[0].mxu0 %v539
    %v712 = vpop.f32.mrb[0].mxu0
    %v713 = vadd.f32 0.0, %v712
    %v714 = vpop.f32.mrb[0].mxu0
    %715 = vmatprep.mubr.f32.mxu0 0.0
    %716 = vmatmul.mubr.f32.gmra.mrb[0].mxu0 %v542
    %v717 = vpop.f32.mrb[0].mxu0
    %v718 = vadd.f32 0.0, %v717
    %v719 = vpop.f32.mrb[0].mxu0
    %720 = vmatprep.mubr.f32.mxu0 0.0
    %721 = vmatmul.mubr.f32.gmra.mrb[0].mxu0 %v545
    %v722 = vpop.f32.mrb[0].mxu0
    %v723 = vadd.f32 0.0, %v722
    %v724 = vpop.f32.mrb[0].mxu0
    %725 = vmatprep.mubr.f32.mxu0 0.0
    %726 = vmatmul.mubr.f32.gmra.mrb[0].mxu0 %v548
    %v727 = vpop.f32.mrb[0].mxu0
    %v728 = vadd.f32 0.0, %v727
    %v729 = vpop.f32.mrb[0].mxu0
    %730 = vmatprep.mubr.f32.mxu0 0.0
    %731 = vmatmul.mubr.f32.gmra.mrb[0].mxu0 %v551
    %v732 = vpop.f32.mrb[0].mxu0
    %v733 = vadd.f32 0.0, %v732
    %v734 = vpop.f32.mrb[0].mxu0
    %735 = vmatprep.mubr.f32.mxu0 0.0
    %736 = vmatmul.mubr.f32.gmra.mrb[0].mxu0 %v554
    %v737 = vpop.f32.mrb[0].mxu0
    %v738 = vadd.f32 0.0, %v737
    %v739 = vpop.f32.mrb[0].mxu0
    %740 = vmatprep.mubr.f32.mxu0 0.0
    %741 = vmatmul.mubr.f32.gmra.mrb[0].mxu0 %v557
    %v742 = vpop.f32.mrb[0].mxu0
    %v743 = vadd.f32 0.0, %v742
    %v744 = vpop.f32.mrb[0].mxu0
    %745 = vmatprep.mubr.f32.mxu0 0.0
    %746 = vmatmul.mubr.f32.gmra.mrb[0].mxu0 %v560
    %v747 = vpop.f32.mrb[0].mxu0
    %v748 = vadd.f32 0.0, %v747
    %v749 = vpop.f32.mrb[0].mxu0
    %750 = vmatprep.mubr.f32.mxu0 0.0
    %751 = vmatmul.mubr.f32.gmra.mrb[0].mxu0 %v563
    %v752 = vpop.f32.mrb[0].mxu0
    %v753 = vadd.f32 0.0, %v752
    %v754 = vpop.f32.mrb[0].mxu0
    %755 = vmatprep.mubr.f32.mxu0 0.0
    %756 = vmatmul.mubr.f32.gmra.mrb[0].mxu0 %v566
    %v757 = vpop.f32.mrb[0].mxu0
    %v758 = vadd.f32 0.0, %v757
    %v759 = vpop.f32.mrb[0].mxu0
    %760 = vmatprep.mubr.f32.mxu0 0.0
    %761 = vmatmul.mubr.f32.gmra.mrb[0].mxu0 %v569
    %v762 = vpop.f32.mrb[0].mxu0
    %v763 = vadd.f32 0.0, %v762
    %v764 = vpop.f32.mrb[0].mxu0
    %765 = vmatprep.mubr.f32.mxu0 0.0
    %766 = vmatmul.mubr.f32.gmra.mrb[0].mxu0 %v572
    %v767 = vpop.f32.mrb[0].mxu0
    %v768 = vadd.f32 0.0, %v767
    %v769 = vpop.f32.mrb[0].mxu0
    %770 = vmatprep.mubr.f32.mxu0 0.0
    %771 = vmatmul.mubr.f32.gmra.mrb[0].mxu0 %v575
    %v772 = vpop.f32.mrb[0].mxu0
    %v773 = vadd.f32 0.0, %v772
    %v774 = vpop.f32.mrb[0].mxu0
    %775 = vmatprep.mubr.f32.mxu0 0.0
    %776 = vmatmul.mubr.f32.gmra.mrb[0].mxu0 %v578
    %v777 = vpop.f32.mrb[0].mxu0
    %v778 = vadd.f32 0.0, %v777
    %v779 = vpop.f32.mrb[0].mxu0
    %780 = vmatprep.mubr.f32.mxu0 0.0
    %781 = vmatmul.mubr.f32.gmra.mrb[0].mxu0 %v581
    %v782 = vpop.f32.mrb[0].mxu0
    %v783 = vadd.f32 0.0, %v782
    %v784 = vpop.f32.mrb[0].mxu0
    %785 = vmatprep.mubr.f32.mxu0 0.0
    %786 = vmatmul.mubr.f32.gmra.mrb[0].mxu0 %v584
    %v787 = vpop.f32.mrb[0].mxu0
    %v788 = vadd.f32 0.0, %v787
    %v789 = vpop.f32.mrb[0].mxu0
    %790 = vmatprep.mubr.f32.mxu0 0.0
    %791 = vmatmul.mubr.f32.gmra.mrb[0].mxu0 %v587
    %v792 = vpop.f32.mrb[0].mxu0
    %v793 = vadd.f32 0.0, %v792
    %v794 = vpop.f32.mrb[0].mxu0
    %795 = vmatprep.mubr.f32.mxu0 0.0
    %796 = vmatmul.mubr.f32.gmra.mrb[0].mxu0 %v590
    %v797 = vpop.f32.mrb[0].mxu0
    %v798 = vadd.f32 0.0, %v797
    %v799 = vpop.f32.mrb[0].mxu0
    %800 = vmatprep.mubr.f32.mxu0 0.0
    %801 = vmatmul.mubr.f32.gmra.mrb[0].mxu0 %v593
    %v802 = vpop.f32.mrb[0].mxu0
    %v803 = vadd.f32 0.0, %v802
    %v804 = vpop.f32.mrb[0].mxu0
    %805 = vmatprep.mubr.f32.mxu0 0.0
    %806 = vmatmul.mubr.f32.gmra.mrb[0].mxu0 %v596
    %v807 = vpop.f32.mrb[0].mxu0
    %v808 = vadd.f32 0.0, %v807
    %v809 = vpop.f32.mrb[0].mxu0
    %810 = vmatprep.mubr.f32.mxu0 0.0
    %811 = vmatmul.mubr.f32.gmra.mrb[0].mxu0 %v599
    %v812 = vpop.f32.mrb[0].mxu0
    %v813 = vadd.f32 0.0, %v812
    %v814 = vpop.f32.mrb[0].mxu0
    %815 = vmatprep.mubr.f32.mxu0 0.0
    %816 = vmatmul.mubr.f32.gmra.mrb[0].mxu0 %v602
    %v817 = vpop.f32.mrb[0].mxu0
    %v818 = vadd.f32 0.0, %v817
    %v819 = vpop.f32.mrb[0].mxu0
    %820 = vmatprep.mubr.f32.mxu0 0.0
    %821 = vmatmul.mubr.f32.gmra.mrb[0].mxu0 %v605
    %v822 = vpop.f32.mrb[0].mxu0
    %v823 = vadd.f32 0.0, %v822
    %v824 = vpop.f32.mrb[0].mxu0
    %825 = vmatprep.mubr.f32.mxu0 0.0
    %826 = vmatmul.mubr.f32.gmra.mrb[0].mxu0 %v608
    %v827 = vpop.f32.mrb[0].mxu0
    %v828 = vadd.f32 0.0, %v827
    %v829 = vpop.f32.mrb[0].mxu0
    %830 = vmatprep.mubr.f32.mxu0 0.0
    %831 = vmatmul.mubr.f32.gmra.mrb[0].mxu0 %v611
    %v832 = vpop.f32.mrb[0].mxu0
    %v833 = vadd.f32 0.0, %v832
    %v834 = vpop.f32.mrb[0].mxu0
    %835 = vmatprep.mubr.f32.mxu0 0.0
    %836 = vmatmul.mubr.f32.gmra.mrb[0].mxu0 %v614
    %v837 = vpop.f32.mrb[0].mxu0
    %v838 = vadd.f32 0.0, %v837
    %v839 = vpop.f32.mrb[0].mxu0
    %840 = vmatprep.mubr.f32.mxu0 0.0
    %841 = vmatmul.mubr.f32.gmra.mrb[0].mxu0 %v617
    %v842 = vpop.f32.mrb[0].mxu0
    %v843 = vadd.f32 0.0, %v842
    %v844 = vpop.f32.mrb[0].mxu0
    %845 = vmatprep.mubr.f32.mxu0 0.0
    %846 = vmatmul.mubr.f32.gmra.mrb[0].mxu0 %v620
    %v847 = vpop.f32.mrb[0].mxu0
    %v848 = vadd.f32 0.0, %v847
    %v849 = vpop.f32.mrb[0].mxu0
    %850 = vdwg.mxu0
    %v852 = vsel %vm525, %v396, 0
    %v855 = vsel %vm525, %v397, 0
    %v858 = vsel %vm525, %v398, 0
    %v861 = vsel %vm525, %v399, 0
    %v864 = vsel %vm525, %v400, 0
    %v867 = vsel %vm525, %v401, 0
    %v870 = vsel %vm525, %v402, 0
    %v873 = vsel %vm525, %v403, 0
    %v876 = vsel %vm525, %v404, 0
    %v879 = vsel %vm525, %v405, 0
    %v882 = vsel %vm525, %v406, 0
    %v885 = vsel %vm525, %v407, 0
    %v888 = vsel %vm525, %v408, 0
    %v891 = vsel %vm525, %v409, 0
    %v894 = vsel %vm525, %v410, 0
    %v897 = vsel %vm525, %v411, 0
    %v900 = vsel %vm525, %v412, 0
    %v903 = vsel %vm525, %v413, 0
    %v906 = vsel %vm525, %v414, 0
    %v909 = vsel %vm525, %v415, 0
    %v912 = vsel %vm525, %v416, 0
    %v915 = vsel %vm525, %v417, 0
    %v918 = vsel %vm525, %v418, 0
    %v921 = vsel %vm525, %v419, 0
    %v924 = vsel %vm525, %v420, 0
    %v927 = vsel %vm525, %v421, 0
    %v930 = vsel %vm525, %v422, 0
    %v933 = vsel %vm525, %v423, 0
    %v936 = vsel %vm525, %v424, 0
    %v939 = vsel %vm525, %v425, 0
    %v942 = vsel %vm525, %v426, 0
    %v945 = vsel %vm525, %v427, 0
    %v948 = vsel %vm622, %v328, 0
    %950 = vmatprep.subr.mxu0 0.0
    %951 = vmatpush1.msra.mxu0 %v948
    %952 = vmatprep.subr.mxu0 0.0
    %953 = vmatpush1.msra.mxu0 0.0
    %954 = vmatprep.subr.mxu0 0.0
    %955 = vmatpush1.msra.mxu0 0.0
    %956 = vmatprep.subr.mxu0 0.0
    %957 = vmatpush1.msra.mxu0 0.0
    %958 = vmatprep.subr.mxu0 0.0
    %959 = vmatpush1.msra.mxu0 0.0
    %960 = vmatprep.subr.mxu0 0.0
    %961 = vmatpush1.msra.mxu0 0.0
    %962 = vmatprep.subr.mxu0 0.0
    %963 = vmatpush1.msra.mxu0 0.0
    %964 = vmatprep.subr.mxu0 0.0
    %965 = vmatpush1.msra.mxu0 0.0
    %966 = vmatprep.subr.mxu0 0.0
    %967 = vmatpush1.msra.mxu0 0.0
    %968 = vmatprep.subr.mxu0 0.0
    %969 = vmatpush1.msra.mxu0 0.0
    %970 = vmatprep.subr.mxu0 0.0
    %971 = vmatpush1.msra.mxu0 0.0
    %972 = vmatprep.subr.mxu0 0.0
    %973 = vmatpush1.msra.mxu0 0.0
    %974 = vmatprep.subr.mxu0 0.0
    %975 = vmatpush1.msra.mxu0 0.0
    %976 = vmatprep.subr.mxu0 0.0
    %977 = vmatpush1.msra.mxu0 0.0
    %978 = vmatprep.subr.mxu0 0.0
    %979 = vmatpush1.msra.mxu0 0.0
    %980 = vmatprep.subr.mxu0 0.0
    %981 = vmatpush1.msra.mxu0 0.0
    %982 = vmatprep.subr.mxu0 0.0
    %983 = vmatpush1.msra.mxu0 0.0
    %984 = vmatprep.subr.mxu0 0.0
    %985 = vmatpush1.msra.mxu0 0.0
    %986 = vmatprep.subr.mxu0 0.0
    %987 = vmatpush1.msra.mxu0 0.0
    %988 = vmatprep.subr.mxu0 0.0
    %989 = vmatpush1.msra.mxu0 0.0
    %990 = vmatprep.subr.mxu0 0.0
    %991 = vmatpush1.msra.mxu0 0.0
    %992 = vmatprep.subr.mxu0 0.0
    %993 = vmatpush1.msra.mxu0 0.0
    %994 = vmatprep.subr.mxu0 0.0
    %995 = vmatpush1.msra.mxu0 0.0
    %996 = vmatprep.subr.mxu0 0.0
    %997 = vmatpush1.msra.mxu0 0.0
    %998 = vmatprep.subr.mxu0 0.0
    %999 = vmatpush1.msra.mxu0 0.0
    %1000 = vmatprep.subr.mxu0 0.0
    %1001 = vmatpush1.msra.mxu0 0.0
    %1002 = vmatprep.subr.mxu0 0.0
    %1003 = vmatpush1.msra.mxu0 0.0
    %1004 = vmatprep.subr.mxu0 0.0
    %1005 = vmatpush1.msra.mxu0 0.0
    %1006 = vmatprep.subr.mxu0 0.0
    %1007 = vmatpush1.msra.mxu0 0.0
    %1008 = vmatprep.subr.mxu0 0.0
    %1009 = vmatpush1.msra.mxu0 0.0
    %1010 = vmatprep.subr.mxu0 0.0
    %1011 = vmatpush1.msra.mxu0 0.0
    %1012 = vmatprep.subr.mxu0 0.0
    %1013 = vmatpush1.msra.mxu0 0.0
    %1014 = vmatprep.mubr.f32.mxu0 0.0
    %1015 = vmatmul.mubr.f32.gmra.mrb[0].mxu0 %v852
    %v1016 = vpop.f32.mrb[0].mxu0
    %v1017 = vadd.f32 %v693, %v1016
    %v1018 = vpop.f32.mrb[0].mxu0
    %1019 = vmatprep.mubr.f32.mxu0 0.0
    %1020 = vmatmul.mubr.f32.gmra.mrb[0].mxu0 %v855
    %v1021 = vpop.f32.mrb[0].mxu0
    %v1022 = vadd.f32 %v698, %v1021
    %v1023 = vpop.f32.mrb[0].mxu0
    %1024 = vmatprep.mubr.f32.mxu0 0.0
    %1025 = vmatmul.mubr.f32.gmra.mrb[0].mxu0 %v858
    %v1026 = vpop.f32.mrb[0].mxu0
    %v1027 = vadd.f32 %v703, %v1026
    %v1028 = vpop.f32.mrb[0].mxu0
    %1029 = vmatprep.mubr.f32.mxu0 0.0
    %1030 = vmatmul.mubr.f32.gmra.mrb[0].mxu0 %v861
    %v1031 = vpop.f32.mrb[0].mxu0
    %v1032 = vadd.f32 %v708, %v1031
    %v1033 = vpop.f32.mrb[0].mxu0
    %1034 = vmatprep.mubr.f32.mxu0 0.0
    %1035 = vmatmul.mubr.f32.gmra.mrb[0].mxu0 %v864
    %v1036 = vpop.f32.mrb[0].mxu0
    %v1037 = vadd.f32 %v713, %v1036
    %v1038 = vpop.f32.mrb[0].mxu0
    %1039 = vmatprep.mubr.f32.mxu0 0.0
    %1040 = vmatmul.mubr.f32.gmra.mrb[0].mxu0 %v867
    %v1041 = vpop.f32.mrb[0].mxu0
    %v1042 = vadd.f32 %v718, %v1041
    %v1043 = vpop.f32.mrb[0].mxu0
    %1044 = vmatprep.mubr.f32.mxu0 0.0
    %1045 = vmatmul.mubr.f32.gmra.mrb[0].mxu0 %v870
    %v1046 = vpop.f32.mrb[0].mxu0
    %v1047 = vadd.f32 %v723, %v1046
    %v1048 = vpop.f32.mrb[0].mxu0
    %1049 = vmatprep.mubr.f32.mxu0 0.0
    %1050 = vmatmul.mubr.f32.gmra.mrb[0].mxu0 %v873
    %v1051 = vpop.f32.mrb[0].mxu0
    %v1052 = vadd.f32 %v728, %v1051
    %v1053 = vpop.f32.mrb[0].mxu0
    %1054 = vmatprep.mubr.f32.mxu0 0.0
    %1055 = vmatmul.mubr.f32.gmra.mrb[0].mxu0 %v876
    %v1056 = vpop.f32.mrb[0].mxu0
    %v1057 = vadd.f32 %v733, %v1056
    %v1058 = vpop.f32.mrb[0].mxu0
    %1059 = vmatprep.mubr.f32.mxu0 0.0
    %1060 = vmatmul.mubr.f32.gmra.mrb[0].mxu0 %v879
    %v1061 = vpop.f32.mrb[0].mxu0
    %v1062 = vadd.f32 %v738, %v1061
    %v1063 = vpop.f32.mrb[0].mxu0
    %1064 = vmatprep.mubr.f32.mxu0 0.0
    %1065 = vmatmul.mubr.f32.gmra.mrb[0].mxu0 %v882
    %v1066 = vpop.f32.mrb[0].mxu0
    %v1067 = vadd.f32 %v743, %v1066
    %v1068 = vpop.f32.mrb[0].mxu0
    %1069 = vmatprep.mubr.f32.mxu0 0.0
    %1070 = vmatmul.mubr.f32.gmra.mrb[0].mxu0 %v885
    %v1071 = vpop.f32.mrb[0].mxu0
    %v1072 = vadd.f32 %v748, %v1071
    %v1073 = vpop.f32.mrb[0].mxu0
    %1074 = vmatprep.mubr.f32.mxu0 0.0
    %1075 = vmatmul.mubr.f32.gmra.mrb[0].mxu0 %v888
    %v1076 = vpop.f32.mrb[0].mxu0
    %v1077 = vadd.f32 %v753, %v1076
    %v1078 = vpop.f32.mrb[0].mxu0
    %1079 = vmatprep.mubr.f32.mxu0 0.0
    %1080 = vmatmul.mubr.f32.gmra.mrb[0].mxu0 %v891
    %v1081 = vpop.f32.mrb[0].mxu0
    %v1082 = vadd.f32 %v758, %v1081
    %v1083 = vpop.f32.mrb[0].mxu0
    %1084 = vmatprep.mubr.f32.mxu0 0.0
    %1085 = vmatmul.mubr.f32.gmra.mrb[0].mxu0 %v894
    %v1086 = vpop.f32.mrb[0].mxu0
    %v1087 = vadd.f32 %v763, %v1086
    %v1088 = vpop.f32.mrb[0].mxu0
    %1089 = vmatprep.mubr.f32.mxu0 0.0
    %1090 = vmatmul.mubr.f32.gmra.mrb[0].mxu0 %v897
    %v1091 = vpop.f32.mrb[0].mxu0
    %v1092 = vadd.f32 %v768, %v1091
    %v1093 = vpop.f32.mrb[0].mxu0
    %1094 = vmatprep.mubr.f32.mxu0 0.0
    %1095 = vmatmul.mubr.f32.gmra.mrb[0].mxu0 %v900
    %v1096 = vpop.f32.mrb[0].mxu0
    %v1097 = vadd.f32 %v773, %v1096
    %v1098 = vpop.f32.mrb[0].mxu0
    %1099 = vmatprep.mubr.f32.mxu0 0.0
    %1100 = vmatmul.mubr.f32.gmra.mrb[0].mxu0 %v903
    %v1101 = vpop.f32.mrb[0].mxu0
    %v1102 = vadd.f32 %v778, %v1101
    %v1103 = vpop.f32.mrb[0].mxu0
    %1104 = vmatprep.mubr.f32.mxu0 0.0
    %1105 = vmatmul.mubr.f32.gmra.mrb[0].mxu0 %v906
    %v1106 = vpop.f32.mrb[0].mxu0
    %v1107 = vadd.f32 %v783, %v1106
    %v1108 = vpop.f32.mrb[0].mxu0
    %1109 = vmatprep.mubr.f32.mxu0 0.0
    %1110 = vmatmul.mubr.f32.gmra.mrb[0].mxu0 %v909
    %v1111 = vpop.f32.mrb[0].mxu0
    %v1112 = vadd.f32 %v788, %v1111
    %v1113 = vpop.f32.mrb[0].mxu0
    %1114 = vmatprep.mubr.f32.mxu0 0.0
    %1115 = vmatmul.mubr.f32.gmra.mrb[0].mxu0 %v912
    %v1116 = vpop.f32.mrb[0].mxu0
    %v1117 = vadd.f32 %v793, %v1116
    %v1118 = vpop.f32.mrb[0].mxu0
    %1119 = vmatprep.mubr.f32.mxu0 0.0
    %1120 = vmatmul.mubr.f32.gmra.mrb[0].mxu0 %v915
    %v1121 = vpop.f32.mrb[0].mxu0
    %v1122 = vadd.f32 %v798, %v1121
    %v1123 = vpop.f32.mrb[0].mxu0
    %1124 = vmatprep.mubr.f32.mxu0 0.0
    %1125 = vmatmul.mubr.f32.gmra.mrb[0].mxu0 %v918
    %v1126 = vpop.f32.mrb[0].mxu0
    %v1127 = vadd.f32 %v803, %v1126
    %v1128 = vpop.f32.mrb[0].mxu0
    %1129 = vmatprep.mubr.f32.mxu0 0.0
    %1130 = vmatmul.mubr.f32.gmra.mrb[0].mxu0 %v921
    %v1131 = vpop.f32.mrb[0].mxu0
    %v1132 = vadd.f32 %v808, %v1131
    %v1133 = vpop.f32.mrb[0].mxu0
    %1134 = vmatprep.mubr.f32.mxu0 0.0
    %1135 = vmatmul.mubr.f32.gmra.mrb[0].mxu0 %v924
    %v1136 = vpop.f32.mrb[0].mxu0
    %v1137 = vadd.f32 %v813, %v1136
    %v1138 = vpop.f32.mrb[0].mxu0
    %1139 = vmatprep.mubr.f32.mxu0 0.0
    %1140 = vmatmul.mubr.f32.gmra.mrb[0].mxu0 %v927
    %v1141 = vpop.f32.mrb[0].mxu0
    %v1142 = vadd.f32 %v818, %v1141
    %v1143 = vpop.f32.mrb[0].mxu0
    %1144 = vmatprep.mubr.f32.mxu0 0.0
    %1145 = vmatmul.mubr.f32.gmra.mrb[0].mxu0 %v930
    %v1146 = vpop.f32.mrb[0].mxu0
    %v1147 = vadd.f32 %v823, %v1146
    %v1148 = vpop.f32.mrb[0].mxu0
    %1149 = vmatprep.mubr.f32.mxu0 0.0
    %1150 = vmatmul.mubr.f32.gmra.mrb[0].mxu0 %v933
    %v1151 = vpop.f32.mrb[0].mxu0
    %v1152 = vadd.f32 %v828, %v1151
    %v1153 = vpop.f32.mrb[0].mxu0
    %1154 = vmatprep.mubr.f32.mxu0 0.0
    %1155 = vmatmul.mubr.f32.gmra.mrb[0].mxu0 %v936
    %v1156 = vpop.f32.mrb[0].mxu0
    %v1157 = vadd.f32 %v833, %v1156
    %v1158 = vpop.f32.mrb[0].mxu0
    %1159 = vmatprep.mubr.f32.mxu0 0.0
    %1160 = vmatmul.mubr.f32.gmra.mrb[0].mxu0 %v939
    %v1161 = vpop.f32.mrb[0].mxu0
    %v1162 = vadd.f32 %v838, %v1161
    %v1163 = vpop.f32.mrb[0].mxu0
    %1164 = vmatprep.mubr.f32.mxu0 0.0
    %1165 = vmatmul.mubr.f32.gmra.mrb[0].mxu0 %v942
    %v1166 = vpop.f32.mrb[0].mxu0
    %v1167 = vadd.f32 %v843, %v1166
    %v1168 = vpop.f32.mrb[0].mxu0
    %1169 = vmatprep.mubr.f32.mxu0 0.0
    %1170 = vmatmul.mubr.f32.gmra.mrb[0].mxu0 %v945
    %v1171 = vpop.f32.mrb[0].mxu0
    %v1172 = vadd.f32 %v848, %v1171
    %v1173 = vpop.f32.mrb[0].mxu0
    %1174 = vdwg.mxu0
    %v1176 = vsel %vm525, %v493, 0
    %v1179 = vsel %vm525, %v494, 0
    %v1182 = vsel %vm525, %v495, 0
    %v1185 = vsel %vm525, %v496, 0
    %v1188 = vsel %vm525, %v497, 0
    %v1191 = vsel %vm525, %v498, 0
    %v1194 = vsel %vm525, %v499, 0
    %v1197 = vsel %vm525, %v500, 0
    %v1200 = vsel %vm525, %v501, 0
    %v1203 = vsel %vm525, %v502, 0
    %v1206 = vsel %vm525, %v503, 0
    %v1209 = vsel %vm525, %v504, 0
    %v1212 = vsel %vm525, %v505, 0
    %v1215 = vsel %vm525, %v506, 0
    %v1218 = vsel %vm525, %v507, 0
    %v1221 = vsel %vm525, %v508, 0
    %v1224 = vsel %vm525, %v509, 0
    %v1227 = vsel %vm525, %v510, 0
    %v1230 = vsel %vm525, %v511, 0
    %v1233 = vsel %vm525, %v512, 0
    %v1236 = vsel %vm525, %v513, 0
    %v1239 = vsel %vm525, %v514, 0
    %v1242 = vsel %vm525, %v515, 0
    %v1245 = vsel %vm525, %v516, 0
    %v1248 = vsel %vm525, %v517, 0
    %v1251 = vsel %vm525, %v518, 0
    %v1254 = vsel %vm525, %v519, 0
    %v1257 = vsel %vm525, %v520, 0
    %v1260 = vsel %vm525, %v521, 0
    %v1263 = vsel %vm525, %v522, 0
    %v1266 = vsel %vm525, %v523, 0
    %v1269 = vsel %vm525, %v524, 0
    %v1272 = vsel %vm622, %v330, 0
    %1274 = vmatprep.subr.mxu0 0.0
    %1275 = vmatpush1.msra.mxu0 %v1272
    %1276 = vmatprep.subr.mxu0 0.0
    %1277 = vmatpush1.msra.mxu0 0.0
    %1278 = vmatprep.subr.mxu0 0.0
    %1279 = vmatpush1.msra.mxu0 0.0
    %1280 = vmatprep.subr.mxu0 0.0
    %1281 = vmatpush1.msra.mxu0 0.0
    %1282 = vmatprep.subr.mxu0 0.0
    %1283 = vmatpush1.msra.mxu0 0.0
    %1284 = vmatprep.subr.mxu0 0.0
    %1285 = vmatpush1.msra.mxu0 0.0
    %1286 = vmatprep.subr.mxu0 0.0
    %1287 = vmatpush1.msra.mxu0 0.0
    %1288 = vmatprep.subr.mxu0 0.0
    %1289 = vmatpush1.msra.mxu0 0.0
    %1290 = vmatprep.subr.mxu0 0.0
    %1291 = vmatpush1.msra.mxu0 0.0
    %1292 = vmatprep.subr.mxu0 0.0
    %1293 = vmatpush1.msra.mxu0 0.0
    %1294 = vmatprep.subr.mxu0 0.0
    %1295 = vmatpush1.msra.mxu0 0.0
    %1296 = vmatprep.subr.mxu0 0.0
    %1297 = vmatpush1.msra.mxu0 0.0
    %1298 = vmatprep.subr.mxu0 0.0
    %1299 = vmatpush1.msra.mxu0 0.0
    %1300 = vmatprep.subr.mxu0 0.0
    %1301 = vmatpush1.msra.mxu0 0.0
    %1302 = vmatprep.subr.mxu0 0.0
    %1303 = vmatpush1.msra.mxu0 0.0
    %1304 = vmatprep.subr.mxu0 0.0
    %1305 = vmatpush1.msra.mxu0 0.0
    %1306 = vmatprep.subr.mxu0 0.0
    %1307 = vmatpush1.msra.mxu0 0.0
    %1308 = vmatprep.subr.mxu0 0.0
    %1309 = vmatpush1.msra.mxu0 0.0
    %1310 = vmatprep.subr.mxu0 0.0
    %1311 = vmatpush1.msra.mxu0 0.0
    %1312 = vmatprep.subr.mxu0 0.0
    %1313 = vmatpush1.msra.mxu0 0.0
    %1314 = vmatprep.subr.mxu0 0.0
    %1315 = vmatpush1.msra.mxu0 0.0
    %1316 = vmatprep.subr.mxu0 0.0
    %1317 = vmatpush1.msra.mxu0 0.0
    %1318 = vmatprep.subr.mxu0 0.0
    %1319 = vmatpush1.msra.mxu0 0.0
    %1320 = vmatprep.subr.mxu0 0.0
    %1321 = vmatpush1.msra.mxu0 0.0
    %1322 = vmatprep.subr.mxu0 0.0
    %1323 = vmatpush1.msra.mxu0 0.0
    %1324 = vmatprep.subr.mxu0 0.0
    %1325 = vmatpush1.msra.mxu0 0.0
    %1326 = vmatprep.subr.mxu0 0.0
    %1327 = vmatpush1.msra.mxu0 0.0
    %1328 = vmatprep.subr.mxu0 0.0
    %1329 = vmatpush1.msra.mxu0 0.0
    %1330 = vmatprep.subr.mxu0 0.0
    %1331 = vmatpush1.msra.mxu0 0.0
    %1332 = vmatprep.subr.mxu0 0.0
    %1333 = vmatpush1.msra.mxu0 0.0
    %1334 = vmatprep.subr.mxu0 0.0
    %1335 = vmatpush1.msra.mxu0 0.0
    %1336 = vmatprep.subr.mxu0 0.0
    %1337 = vmatpush1.msra.mxu0 0.0
    %1338 = vmatprep.mubr.f32.mxu0 0.0
    %1339 = vmatmul.mubr.f32.gmra.mrb[0].mxu0 %v1176
    %v1340 = vpop.f32.mrb[0].mxu0
    %v1341 = vadd.f32 0.0, %v1340
    %v1342 = vpop.f32.mrb[0].mxu0
    %1343 = vmatprep.mubr.f32.mxu0 0.0
    %1344 = vmatmul.mubr.f32.gmra.mrb[0].mxu0 %v1179
    %v1345 = vpop.f32.mrb[0].mxu0
    %v1346 = vadd.f32 0.0, %v1345
    %v1347 = vpop.f32.mrb[0].mxu0
    %1348 = vmatprep.mubr.f32.mxu0 0.0
    %1349 = vmatmul.mubr.f32.gmra.mrb[0].mxu0 %v1182
    %v1350 = vpop.f32.mrb[0].mxu0
    %v1351 = vadd.f32 0.0, %v1350
    %v1352 = vpop.f32.mrb[0].mxu0
    %1353 = vmatprep.mubr.f32.mxu0 0.0
    %1354 = vmatmul.mubr.f32.gmra.mrb[0].mxu0 %v1185
    %v1355 = vpop.f32.mrb[0].mxu0
    %v1356 = vadd.f32 0.0, %v1355
    %v1357 = vpop.f32.mrb[0].mxu0
    %1358 = vmatprep.mubr.f32.mxu0 0.0
    %1359 = vmatmul.mubr.f32.gmra.mrb[0].mxu0 %v1188
    %v1360 = vpop.f32.mrb[0].mxu0
    %v1361 = vadd.f32 0.0, %v1360
    %v1362 = vpop.f32.mrb[0].mxu0
    %1363 = vmatprep.mubr.f32.mxu0 0.0
    %1364 = vmatmul.mubr.f32.gmra.mrb[0].mxu0 %v1191
    %v1365 = vpop.f32.mrb[0].mxu0
    %v1366 = vadd.f32 0.0, %v1365
    %v1367 = vpop.f32.mrb[0].mxu0
    %1368 = vmatprep.mubr.f32.mxu0 0.0
    %1369 = vmatmul.mubr.f32.gmra.mrb[0].mxu0 %v1194
    %v1370 = vpop.f32.mrb[0].mxu0
    %v1371 = vadd.f32 0.0, %v1370
    %v1372 = vpop.f32.mrb[0].mxu0
    %1373 = vmatprep.mubr.f32.mxu0 0.0
    %1374 = vmatmul.mubr.f32.gmra.mrb[0].mxu0 %v1197
    %v1375 = vpop.f32.mrb[0].mxu0
    %v1376 = vadd.f32 0.0, %v1375
    %v1377 = vpop.f32.mrb[0].mxu0
    %1378 = vmatprep.mubr.f32.mxu0 0.0
    %1379 = vmatmul.mubr.f32.gmra.mrb[0].mxu0 %v1200
    %v1380 = vpop.f32.mrb[0].mxu0
    %v1381 = vadd.f32 0.0, %v1380
    %v1382 = vpop.f32.mrb[0].mxu0
    %1383 = vmatprep.mubr.f32.mxu0 0.0
    %1384 = vmatmul.mubr.f32.gmra.mrb[0].mxu0 %v1203
    %v1385 = vpop.f32.mrb[0].mxu0
    %v1386 = vadd.f32 0.0, %v1385
    %v1387 = vpop.f32.mrb[0].mxu0
    %1388 = vmatprep.mubr.f32.mxu0 0.0
    %1389 = vmatmul.mubr.f32.gmra.mrb[0].mxu0 %v1206
    %v1390 = vpop.f32.mrb[0].mxu0
    %v1391 = vadd.f32 0.0, %v1390
    %v1392 = vpop.f32.mrb[0].mxu0
    %1393 = vmatprep.mubr.f32.mxu0 0.0
    %1394 = vmatmul.mubr.f32.gmra.mrb[0].mxu0 %v1209
    %v1395 = vpop.f32.mrb[0].mxu0
    %v1396 = vadd.f32 0.0, %v1395
    %v1397 = vpop.f32.mrb[0].mxu0
    %1398 = vmatprep.mubr.f32.mxu0 0.0
    %1399 = vmatmul.mubr.f32.gmra.mrb[0].mxu0 %v1212
    %v1400 = vpop.f32.mrb[0].mxu0
    %v1401 = vadd.f32 0.0, %v1400
    %v1402 = vpop.f32.mrb[0].mxu0
    %1403 = vmatprep.mubr.f32.mxu0 0.0
    %1404 = vmatmul.mubr.f32.gmra.mrb[0].mxu0 %v1215
    %v1405 = vpop.f32.mrb[0].mxu0
    %v1406 = vadd.f32 0.0, %v1405
    %v1407 = vpop.f32.mrb[0].mxu0
    %1408 = vmatprep.mubr.f32.mxu0 0.0
    %1409 = vmatmul.mubr.f32.gmra.mrb[0].mxu0 %v1218
    %v1410 = vpop.f32.mrb[0].mxu0
    %v1411 = vadd.f32 0.0, %v1410
    %v1412 = vpop.f32.mrb[0].mxu0
    %1413 = vmatprep.mubr.f32.mxu0 0.0
    %1414 = vmatmul.mubr.f32.gmra.mrb[0].mxu0 %v1221
    %v1415 = vpop.f32.mrb[0].mxu0
    %v1416 = vadd.f32 0.0, %v1415
    %v1417 = vpop.f32.mrb[0].mxu0
    %1418 = vmatprep.mubr.f32.mxu0 0.0
    %1419 = vmatmul.mubr.f32.gmra.mrb[0].mxu0 %v1224
    %v1420 = vpop.f32.mrb[0].mxu0
    %v1421 = vadd.f32 0.0, %v1420
    %v1422 = vpop.f32.mrb[0].mxu0
    %1423 = vmatprep.mubr.f32.mxu0 0.0
    %1424 = vmatmul.mubr.f32.gmra.mrb[0].mxu0 %v1227
    %v1425 = vpop.f32.mrb[0].mxu0
    %v1426 = vadd.f32 0.0, %v1425
    %v1427 = vpop.f32.mrb[0].mxu0
    %1428 = vmatprep.mubr.f32.mxu0 0.0
    %1429 = vmatmul.mubr.f32.gmra.mrb[0].mxu0 %v1230
    %v1430 = vpop.f32.mrb[0].mxu0
    %v1431 = vadd.f32 0.0, %v1430
    %v1432 = vpop.f32.mrb[0].mxu0
    %1433 = vmatprep.mubr.f32.mxu0 0.0
    %1434 = vmatmul.mubr.f32.gmra.mrb[0].mxu0 %v1233
    %v1435 = vpop.f32.mrb[0].mxu0
    %v1436 = vadd.f32 0.0, %v1435
    %v1437 = vpop.f32.mrb[0].mxu0
    %1438 = vmatprep.mubr.f32.mxu0 0.0
    %1439 = vmatmul.mubr.f32.gmra.mrb[0].mxu0 %v1236
    %v1440 = vpop.f32.mrb[0].mxu0
    %v1441 = vadd.f32 0.0, %v1440
    %v1442 = vpop.f32.mrb[0].mxu0
    %1443 = vmatprep.mubr.f32.mxu0 0.0
    %1444 = vmatmul.mubr.f32.gmra.mrb[0].mxu0 %v1239
    %v1445 = vpop.f32.mrb[0].mxu0
    %v1446 = vadd.f32 0.0, %v1445
    %v1447 = vpop.f32.mrb[0].mxu0
    %1448 = vmatprep.mubr.f32.mxu0 0.0
    %1449 = vmatmul.mubr.f32.gmra.mrb[0].mxu0 %v1242
    %v1450 = vpop.f32.mrb[0].mxu0
    %v1451 = vadd.f32 0.0, %v1450
    %v1452 = vpop.f32.mrb[0].mxu0
    %1453 = vmatprep.mubr.f32.mxu0 0.0
    %1454 = vmatmul.mubr.f32.gmra.mrb[0].mxu0 %v1245
    %v1455 = vpop.f32.mrb[0].mxu0
    %v1456 = vadd.f32 0.0, %v1455
    %v1457 = vpop.f32.mrb[0].mxu0
    %1458 = vmatprep.mubr.f32.mxu0 0.0
    %1459 = vmatmul.mubr.f32.gmra.mrb[0].mxu0 %v1248
    %v1460 = vpop.f32.mrb[0].mxu0
    %v1461 = vadd.f32 0.0, %v1460
    %v1462 = vpop.f32.mrb[0].mxu0
    %1463 = vmatprep.mubr.f32.mxu0 0.0
    %1464 = vmatmul.mubr.f32.gmra.mrb[0].mxu0 %v1251
    %v1465 = vpop.f32.mrb[0].mxu0
    %v1466 = vadd.f32 0.0, %v1465
    %v1467 = vpop.f32.mrb[0].mxu0
    %1468 = vmatprep.mubr.f32.mxu0 0.0
    %1469 = vmatmul.mubr.f32.gmra.mrb[0].mxu0 %v1254
    %v1470 = vpop.f32.mrb[0].mxu0
    %v1471 = vadd.f32 0.0, %v1470
    %v1472 = vpop.f32.mrb[0].mxu0
    %1473 = vmatprep.mubr.f32.mxu0 0.0
    %1474 = vmatmul.mubr.f32.gmra.mrb[0].mxu0 %v1257
    %v1475 = vpop.f32.mrb[0].mxu0
    %v1476 = vadd.f32 0.0, %v1475
    %v1477 = vpop.f32.mrb[0].mxu0
    %1478 = vmatprep.mubr.f32.mxu0 0.0
    %1479 = vmatmul.mubr.f32.gmra.mrb[0].mxu0 %v1260
    %v1480 = vpop.f32.mrb[0].mxu0
    %v1481 = vadd.f32 0.0, %v1480
    %v1482 = vpop.f32.mrb[0].mxu0
    %1483 = vmatprep.mubr.f32.mxu0 0.0
    %1484 = vmatmul.mubr.f32.gmra.mrb[0].mxu0 %v1263
    %v1485 = vpop.f32.mrb[0].mxu0
    %v1486 = vadd.f32 0.0, %v1485
    %v1487 = vpop.f32.mrb[0].mxu0
    %1488 = vmatprep.mubr.f32.mxu0 0.0
    %1489 = vmatmul.mubr.f32.gmra.mrb[0].mxu0 %v1266
    %v1490 = vpop.f32.mrb[0].mxu0
    %v1491 = vadd.f32 0.0, %v1490
    %v1492 = vpop.f32.mrb[0].mxu0
    %1493 = vmatprep.mubr.f32.mxu0 0.0
    %1494 = vmatmul.mubr.f32.gmra.mrb[0].mxu0 %v1269
    %v1495 = vpop.f32.mrb[0].mxu0
    %v1496 = vadd.f32 0.0, %v1495
    %v1497 = vpop.f32.mrb[0].mxu0
    %1498 = vdwg.mxu0
    %v1499 = vadd.f32 %v1017, %v1341
    %v1500 = vadd.f32 %v1022, %v1346
    %v1501 = vadd.f32 %v1027, %v1351
    %v1502 = vadd.f32 %v1032, %v1356
    %v1503 = vadd.f32 %v1037, %v1361
    %v1504 = vadd.f32 %v1042, %v1366
    %v1505 = vadd.f32 %v1047, %v1371
    %v1506 = vadd.f32 %v1052, %v1376
    %v1507 = vadd.f32 %v1057, %v1381
    %v1508 = vadd.f32 %v1062, %v1386
    %v1509 = vadd.f32 %v1067, %v1391
    %v1510 = vadd.f32 %v1072, %v1396
    %v1511 = vadd.f32 %v1077, %v1401
    %v1512 = vadd.f32 %v1082, %v1406
    %v1513 = vadd.f32 %v1087, %v1411
    %v1514 = vadd.f32 %v1092, %v1416
    %v1515 = vadd.f32 %v1097, %v1421
    %v1516 = vadd.f32 %v1102, %v1426
    %v1517 = vadd.f32 %v1107, %v1431
    %v1518 = vadd.f32 %v1112, %v1436
    %v1519 = vadd.f32 %v1117, %v1441
    %v1520 = vadd.f32 %v1122, %v1446
    %v1521 = vadd.f32 %v1127, %v1451
    %v1522 = vadd.f32 %v1132, %v1456
    %v1523 = vadd.f32 %v1137, %v1461
    %v1524 = vadd.f32 %v1142, %v1466
    %v1525 = vadd.f32 %v1147, %v1471
    %v1526 = vadd.f32 %v1152, %v1476
    %v1527 = vadd.f32 %v1157, %v1481
    %v1528 = vadd.f32 %v1162, %v1486
    %v1529 = vadd.f32 %v1167, %v1491
    %v1530 = vadd.f32 %v1172, %v1496
    %v1531 = vlaneseq
    %v1532 = vshrl.u32 %v1531, 7
    %v1533 = vsub.s32 0, %v1532
    %v1534 = vrot.slane %v70, %v1533
    %v1535 = vmul.f32 %v1499, %v1534
    %v1536 = vmul.f32 %v1500, %v1534
    %v1537 = vmul.f32 %v1501, %v1534
    %v1538 = vmul.f32 %v1502, %v1534
    %v1539 = vmul.f32 %v1503, %v1534
    %v1540 = vmul.f32 %v1504, %v1534
    %v1541 = vmul.f32 %v1505, %v1534
    %v1542 = vmul.f32 %v1506, %v1534
    %v1543 = vmul.f32 %v1507, %v1534
    %v1544 = vmul.f32 %v1508, %v1534
    %v1545 = vmul.f32 %v1509, %v1534
    %v1546 = vmul.f32 %v1510, %v1534
    %v1547 = vmul.f32 %v1511, %v1534
    %v1548 = vmul.f32 %v1512, %v1534
    %v1549 = vmul.f32 %v1513, %v1534
    %v1550 = vmul.f32 %v1514, %v1534
    %v1551 = vmul.f32 %v1515, %v1534
    %v1552 = vmul.f32 %v1516, %v1534
    %v1553 = vmul.f32 %v1517, %v1534
    %v1554 = vmul.f32 %v1518, %v1534
    %v1555 = vmul.f32 %v1519, %v1534
    %v1556 = vmul.f32 %v1520, %v1534
    %v1557 = vmul.f32 %v1521, %v1534
    %v1558 = vmul.f32 %v1522, %v1534
    %v1559 = vmul.f32 %v1523, %v1534
    %v1560 = vmul.f32 %v1524, %v1534
    %v1561 = vmul.f32 %v1525, %v1534
    %v1562 = vmul.f32 %v1526, %v1534
    %v1563 = vmul.f32 %v1527, %v1534
    %v1564 = vmul.f32 %v1528, %v1534
    %v1565 = vmul.f32 %v1529, %v1534
    %v1566 = vmul.f32 %v1530, %v1534
    %v1567 = vlaneseq
    %v1568 = vshrl.u32 %v1567, 7
    %v1569 = vsub.s32 1, %v1568
    %v1570 = vrot.slane %v70, %v1569
    %v1571 = vadd.f32 %v1535, %v1570
    %v1572 = vadd.f32 %v1536, %v1570
    %v1573 = vadd.f32 %v1537, %v1570
    %v1574 = vadd.f32 %v1538, %v1570
    %v1575 = vadd.f32 %v1539, %v1570
    %v1576 = vadd.f32 %v1540, %v1570
    %v1577 = vadd.f32 %v1541, %v1570
    %v1578 = vadd.f32 %v1542, %v1570
    %v1579 = vadd.f32 %v1543, %v1570
    %v1580 = vadd.f32 %v1544, %v1570
    %v1581 = vadd.f32 %v1545, %v1570
    %v1582 = vadd.f32 %v1546, %v1570
    %v1583 = vadd.f32 %v1547, %v1570
    %v1584 = vadd.f32 %v1548, %v1570
    %v1585 = vadd.f32 %v1549, %v1570
    %v1586 = vadd.f32 %v1550, %v1570
    %v1587 = vadd.f32 %v1551, %v1570
    %v1588 = vadd.f32 %v1552, %v1570
    %v1589 = vadd.f32 %v1553, %v1570
    %v1590 = vadd.f32 %v1554, %v1570
    %v1591 = vadd.f32 %v1555, %v1570
    %v1592 = vadd.f32 %v1556, %v1570
    %v1593 = vadd.f32 %v1557, %v1570
    %v1594 = vadd.f32 %v1558, %v1570
    %v1595 = vadd.f32 %v1559, %v1570
    %v1596 = vadd.f32 %v1560, %v1570
    %v1597 = vadd.f32 %v1561, %v1570
    %v1598 = vadd.f32 %v1562, %v1570
    %v1599 = vadd.f32 %v1563, %v1570
    %v1600 = vadd.f32 %v1564, %v1570
    %v1601 = vadd.f32 %v1565, %v1570
    %v1602 = vadd.f32 %v1566, %v1570
    %v1603 = vmul.f32 %v1571, 0.5
    %v1604 = vmul.f32 %v1572, 0.5
    %v1605 = vmul.f32 %v1573, 0.5
    %v1606 = vmul.f32 %v1574, 0.5
    %v1607 = vmul.f32 %v1575, 0.5
    %v1608 = vmul.f32 %v1576, 0.5
    %v1609 = vmul.f32 %v1577, 0.5
    %v1610 = vmul.f32 %v1578, 0.5
    %v1611 = vmul.f32 %v1579, 0.5
    %v1612 = vmul.f32 %v1580, 0.5
    %v1613 = vmul.f32 %v1581, 0.5
    %v1614 = vmul.f32 %v1582, 0.5
    %v1615 = vmul.f32 %v1583, 0.5
    %v1616 = vmul.f32 %v1584, 0.5
    %v1617 = vmul.f32 %v1585, 0.5
    %v1618 = vmul.f32 %v1586, 0.5
    %v1619 = vmul.f32 %v1587, 0.5
    %v1620 = vmul.f32 %v1588, 0.5
    %v1621 = vmul.f32 %v1589, 0.5
    %v1622 = vmul.f32 %v1590, 0.5
    %v1623 = vmul.f32 %v1591, 0.5
    %v1624 = vmul.f32 %v1592, 0.5
    %v1625 = vmul.f32 %v1593, 0.5
    %v1626 = vmul.f32 %v1594, 0.5
    %v1627 = vmul.f32 %v1595, 0.5
    %v1628 = vmul.f32 %v1596, 0.5
    %v1629 = vmul.f32 %v1597, 0.5
    %v1630 = vmul.f32 %v1598, 0.5
    %v1631 = vmul.f32 %v1599, 0.5
    %v1632 = vmul.f32 %v1600, 0.5
    %v1633 = vmul.f32 %v1601, 0.5
    %v1634 = vmul.f32 %v1602, 0.5
    %v1635 = vmul.f32 %v1571, 0.70710677
    %v1636 = vmul.f32 %v1572, 0.70710677
    %v1637 = vmul.f32 %v1573, 0.70710677
    %v1638 = vmul.f32 %v1574, 0.70710677
    %v1639 = vmul.f32 %v1575, 0.70710677
    %v1640 = vmul.f32 %v1576, 0.70710677
    %v1641 = vmul.f32 %v1577, 0.70710677
    %v1642 = vmul.f32 %v1578, 0.70710677
    %v1643 = vmul.f32 %v1579, 0.70710677
    %v1644 = vmul.f32 %v1580, 0.70710677
    %v1645 = vmul.f32 %v1581, 0.70710677
    %v1646 = vmul.f32 %v1582, 0.70710677
    %v1647 = vmul.f32 %v1583, 0.70710677
    %v1648 = vmul.f32 %v1584, 0.70710677
    %v1649 = vmul.f32 %v1585, 0.70710677
    %v1650 = vmul.f32 %v1586, 0.70710677
    %v1651 = vmul.f32 %v1587, 0.70710677
    %v1652 = vmul.f32 %v1588, 0.70710677
    %v1653 = vmul.f32 %v1589, 0.70710677
    %v1654 = vmul.f32 %v1590, 0.70710677
    %v1655 = vmul.f32 %v1591, 0.70710677
    %v1656 = vmul.f32 %v1592, 0.70710677
    %v1657 = vmul.f32 %v1593, 0.70710677
    %v1658 = vmul.f32 %v1594, 0.70710677
    %v1659 = vmul.f32 %v1595, 0.70710677
    %v1660 = vmul.f32 %v1596, 0.70710677
    %v1661 = vmul.f32 %v1597, 0.70710677
    %v1662 = vmul.f32 %v1598, 0.70710677
    %v1663 = vmul.f32 %v1599, 0.70710677
    %v1664 = vmul.f32 %v1600, 0.70710677
    %v1665 = vmul.f32 %v1601, 0.70710677
    %v1666 = vmul.f32 %v1602, 0.70710677
    %v1667 = vand.u32 2147483647, %v1635
    %v1668 = vand.u32 2147483647, %v1636
    %v1669 = vand.u32 2147483647, %v1637
    %v1670 = vand.u32 2147483647, %v1638
    %v1671 = vand.u32 2147483647, %v1639
    %v1672 = vand.u32 2147483647, %v1640
    %v1673 = vand.u32 2147483647, %v1641
    %v1674 = vand.u32 2147483647, %v1642
    %v1675 = vand.u32 2147483647, %v1643
    %v1676 = vand.u32 2147483647, %v1644
    %v1677 = vand.u32 2147483647, %v1645
    %v1678 = vand.u32 2147483647, %v1646
    %v1679 = vand.u32 2147483647, %v1647
    %v1680 = vand.u32 2147483647, %v1648
    %v1681 = vand.u32 2147483647, %v1649
    %v1682 = vand.u32 2147483647, %v1650
    %v1683 = vand.u32 2147483647, %v1651
    %v1684 = vand.u32 2147483647, %v1652
    %v1685 = vand.u32 2147483647, %v1653
    %v1686 = vand.u32 2147483647, %v1654
    %v1687 = vand.u32 2147483647, %v1655
    %v1688 = vand.u32 2147483647, %v1656
    %v1689 = vand.u32 2147483647, %v1657
    %v1690 = vand.u32 2147483647, %v1658
    %v1691 = vand.u32 2147483647, %v1659
    %v1692 = vand.u32 2147483647, %v1660
    %v1693 = vand.u32 2147483647, %v1661
    %v1694 = vand.u32 2147483647, %v1662
    %v1695 = vand.u32 2147483647, %v1663
    %v1696 = vand.u32 2147483647, %v1664
    %v1697 = vand.u32 2147483647, %v1665
    %v1698 = vand.u32 2147483647, %v1666
    %v1699 = vmul.f32 %v1667, 0.3275911
    %v1700 = vmul.f32 %v1668, 0.3275911
    %v1701 = vmul.f32 %v1669, 0.3275911
    %v1702 = vmul.f32 %v1670, 0.3275911
    %v1703 = vmul.f32 %v1671, 0.3275911
    %v1704 = vmul.f32 %v1672, 0.3275911
    %v1705 = vmul.f32 %v1673, 0.3275911
    %v1706 = vmul.f32 %v1674, 0.3275911
    %v1707 = vmul.f32 %v1675, 0.3275911
    %v1708 = vmul.f32 %v1676, 0.3275911
    %v1709 = vmul.f32 %v1677, 0.3275911
    %v1710 = vmul.f32 %v1678, 0.3275911
    %v1711 = vmul.f32 %v1679, 0.3275911
    %v1712 = vmul.f32 %v1680, 0.3275911
    %v1713 = vmul.f32 %v1681, 0.3275911
    %v1714 = vmul.f32 %v1682, 0.3275911
    %v1715 = vmul.f32 %v1683, 0.3275911
    %v1716 = vmul.f32 %v1684, 0.3275911
    %v1717 = vmul.f32 %v1685, 0.3275911
    %v1718 = vmul.f32 %v1686, 0.3275911
    %v1719 = vmul.f32 %v1687, 0.3275911
    %v1720 = vmul.f32 %v1688, 0.3275911
    %v1721 = vmul.f32 %v1689, 0.3275911
    %v1722 = vmul.f32 %v1690, 0.3275911
    %v1723 = vmul.f32 %v1691, 0.3275911
    %v1724 = vmul.f32 %v1692, 0.3275911
    %v1725 = vmul.f32 %v1693, 0.3275911
    %v1726 = vmul.f32 %v1694, 0.3275911
    %v1727 = vmul.f32 %v1695, 0.3275911
    %v1728 = vmul.f32 %v1696, 0.3275911
    %v1729 = vmul.f32 %v1697, 0.3275911
    %v1730 = vmul.f32 %v1698, 0.3275911
    %v1731 = vadd.f32 %v1699, 1.0
    %v1732 = vadd.f32 %v1700, 1.0
    %v1733 = vadd.f32 %v1701, 1.0
    %v1734 = vadd.f32 %v1702, 1.0
    %v1735 = vadd.f32 %v1703, 1.0
    %v1736 = vadd.f32 %v1704, 1.0
    %v1737 = vadd.f32 %v1705, 1.0
    %v1738 = vadd.f32 %v1706, 1.0
    %v1739 = vadd.f32 %v1707, 1.0
    %v1740 = vadd.f32 %v1708, 1.0
    %v1741 = vadd.f32 %v1709, 1.0
    %v1742 = vadd.f32 %v1710, 1.0
    %v1743 = vadd.f32 %v1711, 1.0
    %v1744 = vadd.f32 %v1712, 1.0
    %v1745 = vadd.f32 %v1713, 1.0
    %v1746 = vadd.f32 %v1714, 1.0
    %v1747 = vadd.f32 %v1715, 1.0
    %v1748 = vadd.f32 %v1716, 1.0
    %v1749 = vadd.f32 %v1717, 1.0
    %v1750 = vadd.f32 %v1718, 1.0
    %v1751 = vadd.f32 %v1719, 1.0
    %v1752 = vadd.f32 %v1720, 1.0
    %v1753 = vadd.f32 %v1721, 1.0
    %v1754 = vadd.f32 %v1722, 1.0
    %v1755 = vadd.f32 %v1723, 1.0
    %v1756 = vadd.f32 %v1724, 1.0
    %v1757 = vadd.f32 %v1725, 1.0
    %v1758 = vadd.f32 %v1726, 1.0
    %v1759 = vadd.f32 %v1727, 1.0
    %v1760 = vadd.f32 %v1728, 1.0
    %v1761 = vadd.f32 %v1729, 1.0
    %v1762 = vadd.f32 %v1730, 1.0
    %v1763 = vrcp.pop %v1731
    %v1764 = vrcp.pop %v1732
    %v1765 = vrcp.pop %v1733
    %v1766 = vrcp.pop %v1734
    %v1767 = vrcp.pop %v1735
    %v1768 = vrcp.pop %v1736
    %v1769 = vrcp.pop %v1737
    %v1770 = vrcp.pop %v1738
    %v1771 = vrcp.pop %v1739
    %v1772 = vrcp.pop %v1740
    %v1773 = vrcp.pop %v1741
    %v1774 = vrcp.pop %v1742
    %v1775 = vrcp.pop %v1743
    %v1776 = vrcp.pop %v1744
    %v1777 = vrcp.pop %v1745
    %v1778 = vrcp.pop %v1746
    %v1779 = vrcp.pop %v1747
    %v1780 = vrcp.pop %v1748
    %v1781 = vrcp.pop %v1749
    %v1782 = vrcp.pop %v1750
    %v1783 = vrcp.pop %v1751
    %v1784 = vrcp.pop %v1752
    %v1785 = vrcp.pop %v1753
    %v1786 = vrcp.pop %v1754
    %v1787 = vrcp.pop %v1755
    %v1788 = vrcp.pop %v1756
    %v1789 = vrcp.pop %v1757
    %v1790 = vrcp.pop %v1758
    %v1791 = vrcp.pop %v1759
    %v1792 = vrcp.pop %v1760
    %v1793 = vrcp.pop %v1761
    %v1794 = vrcp.pop %v1762
    %v1795 = vmul.f32 %v1731, %v1763
    %v1796 = vmul.f32 %v1732, %v1764
    %v1797 = vmul.f32 %v1733, %v1765
    %v1798 = vmul.f32 %v1734, %v1766
    %v1799 = vmul.f32 %v1735, %v1767
    %v1800 = vmul.f32 %v1736, %v1768
    %v1801 = vmul.f32 %v1737, %v1769
    %v1802 = vmul.f32 %v1738, %v1770
    %v1803 = vmul.f32 %v1739, %v1771
    %v1804 = vmul.f32 %v1740, %v1772
    %v1805 = vmul.f32 %v1741, %v1773
    %v1806 = vmul.f32 %v1742, %v1774
    %v1807 = vmul.f32 %v1743, %v1775
    %v1808 = vmul.f32 %v1744, %v1776
    %v1809 = vmul.f32 %v1745, %v1777
    %v1810 = vmul.f32 %v1746, %v1778
    %v1811 = vmul.f32 %v1747, %v1779
    %v1812 = vmul.f32 %v1748, %v1780
    %v1813 = vmul.f32 %v1749, %v1781
    %v1814 = vmul.f32 %v1750, %v1782
    %v1815 = vmul.f32 %v1751, %v1783
    %v1816 = vmul.f32 %v1752, %v1784
    %v1817 = vmul.f32 %v1753, %v1785
    %v1818 = vmul.f32 %v1754, %v1786
    %v1819 = vmul.f32 %v1755, %v1787
    %v1820 = vmul.f32 %v1756, %v1788
    %v1821 = vmul.f32 %v1757, %v1789
    %v1822 = vmul.f32 %v1758, %v1790
    %v1823 = vmul.f32 %v1759, %v1791
    %v1824 = vmul.f32 %v1760, %v1792
    %v1825 = vmul.f32 %v1761, %v1793
    %v1826 = vmul.f32 %v1762, %v1794
    %v1827 = vsub.f32 2.0, %v1795
    %v1828 = vsub.f32 2.0, %v1796
    %v1829 = vsub.f32 2.0, %v1797
    %v1830 = vsub.f32 2.0, %v1798
    %v1831 = vsub.f32 2.0, %v1799
    %v1832 = vsub.f32 2.0, %v1800
    %v1833 = vsub.f32 2.0, %v1801
    %v1834 = vsub.f32 2.0, %v1802
    %v1835 = vsub.f32 2.0, %v1803
    %v1836 = vsub.f32 2.0, %v1804
    %v1837 = vsub.f32 2.0, %v1805
    %v1838 = vsub.f32 2.0, %v1806
    %v1839 = vsub.f32 2.0, %v1807
    %v1840 = vsub.f32 2.0, %v1808
    %v1841 = vsub.f32 2.0, %v1809
    %v1842 = vsub.f32 2.0, %v1810
    %v1843 = vsub.f32 2.0, %v1811
    %v1844 = vsub.f32 2.0, %v1812
    %v1845 = vsub.f32 2.0, %v1813
    %v1846 = vsub.f32 2.0, %v1814
    %v1847 = vsub.f32 2.0, %v1815
    %v1848 = vsub.f32 2.0, %v1816
    %v1849 = vsub.f32 2.0, %v1817
    %v1850 = vsub.f32 2.0, %v1818
    %v1851 = vsub.f32 2.0, %v1819
    %v1852 = vsub.f32 2.0, %v1820
    %v1853 = vsub.f32 2.0, %v1821
    %v1854 = vsub.f32 2.0, %v1822
    %v1855 = vsub.f32 2.0, %v1823
    %v1856 = vsub.f32 2.0, %v1824
    %v1857 = vsub.f32 2.0, %v1825
    %v1858 = vsub.f32 2.0, %v1826
    %v1859 = vmul.f32 %v1763, %v1827
    %v1860 = vmul.f32 %v1764, %v1828
    %v1861 = vmul.f32 %v1765, %v1829
    %v1862 = vmul.f32 %v1766, %v1830
    %v1863 = vmul.f32 %v1767, %v1831
    %v1864 = vmul.f32 %v1768, %v1832
    %v1865 = vmul.f32 %v1769, %v1833
    %v1866 = vmul.f32 %v1770, %v1834
    %v1867 = vmul.f32 %v1771, %v1835
    %v1868 = vmul.f32 %v1772, %v1836
    %v1869 = vmul.f32 %v1773, %v1837
    %v1870 = vmul.f32 %v1774, %v1838
    %v1871 = vmul.f32 %v1775, %v1839
    %v1872 = vmul.f32 %v1776, %v1840
    %v1873 = vmul.f32 %v1777, %v1841
    %v1874 = vmul.f32 %v1778, %v1842
    %v1875 = vmul.f32 %v1779, %v1843
    %v1876 = vmul.f32 %v1780, %v1844
    %v1877 = vmul.f32 %v1781, %v1845
    %v1878 = vmul.f32 %v1782, %v1846
    %v1879 = vmul.f32 %v1783, %v1847
    %v1880 = vmul.f32 %v1784, %v1848
    %v1881 = vmul.f32 %v1785, %v1849
    %v1882 = vmul.f32 %v1786, %v1850
    %v1883 = vmul.f32 %v1787, %v1851
    %v1884 = vmul.f32 %v1788, %v1852
    %v1885 = vmul.f32 %v1789, %v1853
    %v1886 = vmul.f32 %v1790, %v1854
    %v1887 = vmul.f32 %v1791, %v1855
    %v1888 = vmul.f32 %v1792, %v1856
    %v1889 = vmul.f32 %v1793, %v1857
    %v1890 = vmul.f32 %v1794, %v1858
    %v1891 = vmul.f32 %v1859, 1.0614054
    %v1892 = vmul.f32 %v1860, 1.0614054
    %v1893 = vmul.f32 %v1861, 1.0614054
    %v1894 = vmul.f32 %v1862, 1.0614054
    %v1895 = vmul.f32 %v1863, 1.0614054
    %v1896 = vmul.f32 %v1864, 1.0614054
    %v1897 = vmul.f32 %v1865, 1.0614054
    %v1898 = vmul.f32 %v1866, 1.0614054
    %v1899 = vmul.f32 %v1867, 1.0614054
    %v1900 = vmul.f32 %v1868, 1.0614054
    %v1901 = vmul.f32 %v1869, 1.0614054
    %v1902 = vmul.f32 %v1870, 1.0614054
    %v1903 = vmul.f32 %v1871, 1.0614054
    %v1904 = vmul.f32 %v1872, 1.0614054
    %v1905 = vmul.f32 %v1873, 1.0614054
    %v1906 = vmul.f32 %v1874, 1.0614054
    %v1907 = vmul.f32 %v1875, 1.0614054
    %v1908 = vmul.f32 %v1876, 1.0614054
    %v1909 = vmul.f32 %v1877, 1.0614054
    %v1910 = vmul.f32 %v1878, 1.0614054
    %v1911 = vmul.f32 %v1879, 1.0614054
    %v1912 = vmul.f32 %v1880, 1.0614054
    %v1913 = vmul.f32 %v1881, 1.0614054
    %v1914 = vmul.f32 %v1882, 1.0614054
    %v1915 = vmul.f32 %v1883, 1.0614054
    %v1916 = vmul.f32 %v1884, 1.0614054
    %v1917 = vmul.f32 %v1885, 1.0614054
    %v1918 = vmul.f32 %v1886, 1.0614054
    %v1919 = vmul.f32 %v1887, 1.0614054
    %v1920 = vmul.f32 %v1888, 1.0614054
    %v1921 = vmul.f32 %v1889, 1.0614054
    %v1922 = vmul.f32 %v1890, 1.0614054
    %v1923 = vadd.f32 %v1891, -1.4531521
    %v1924 = vadd.f32 %v1892, -1.4531521
    %v1925 = vadd.f32 %v1893, -1.4531521
    %v1926 = vadd.f32 %v1894, -1.4531521
    %v1927 = vadd.f32 %v1895, -1.4531521
    %v1928 = vadd.f32 %v1896, -1.4531521
    %v1929 = vadd.f32 %v1897, -1.4531521
    %v1930 = vadd.f32 %v1898, -1.4531521
    %v1931 = vadd.f32 %v1899, -1.4531521
    %v1932 = vadd.f32 %v1900, -1.4531521
    %v1933 = vadd.f32 %v1901, -1.4531521
    %v1934 = vadd.f32 %v1902, -1.4531521
    %v1935 = vadd.f32 %v1903, -1.4531521
    %v1936 = vadd.f32 %v1904, -1.4531521
    %v1937 = vadd.f32 %v1905, -1.4531521
    %v1938 = vadd.f32 %v1906, -1.4531521
    %v1939 = vadd.f32 %v1907, -1.4531521
    %v1940 = vadd.f32 %v1908, -1.4531521
    %v1941 = vadd.f32 %v1909, -1.4531521
    %v1942 = vadd.f32 %v1910, -1.4531521
    %v1943 = vadd.f32 %v1911, -1.4531521
    %v1944 = vadd.f32 %v1912, -1.4531521
    %v1945 = vadd.f32 %v1913, -1.4531521
    %v1946 = vadd.f32 %v1914, -1.4531521
    %v1947 = vadd.f32 %v1915, -1.4531521
    %v1948 = vadd.f32 %v1916, -1.4531521
    %v1949 = vadd.f32 %v1917, -1.4531521
    %v1950 = vadd.f32 %v1918, -1.4531521
    %v1951 = vadd.f32 %v1919, -1.4531521
    %v1952 = vadd.f32 %v1920, -1.4531521
    %v1953 = vadd.f32 %v1921, -1.4531521
    %v1954 = vadd.f32 %v1922, -1.4531521
    %v1955 = vmul.f32 %v1923, %v1859
    %v1956 = vmul.f32 %v1924, %v1860
    %v1957 = vmul.f32 %v1925, %v1861
    %v1958 = vmul.f32 %v1926, %v1862
    %v1959 = vmul.f32 %v1927, %v1863
    %v1960 = vmul.f32 %v1928, %v1864
    %v1961 = vmul.f32 %v1929, %v1865
    %v1962 = vmul.f32 %v1930, %v1866
    %v1963 = vmul.f32 %v1931, %v1867
    %v1964 = vmul.f32 %v1932, %v1868
    %v1965 = vmul.f32 %v1933, %v1869
    %v1966 = vmul.f32 %v1934, %v1870
    %v1967 = vmul.f32 %v1935, %v1871
    %v1968 = vmul.f32 %v1936, %v1872
    %v1969 = vmul.f32 %v1937, %v1873
    %v1970 = vmul.f32 %v1938, %v1874
    %v1971 = vmul.f32 %v1939, %v1875
    %v1972 = vmul.f32 %v1940, %v1876
    %v1973 = vmul.f32 %v1941, %v1877
    %v1974 = vmul.f32 %v1942, %v1878
    %v1975 = vmul.f32 %v1943, %v1879
    %v1976 = vmul.f32 %v1944, %v1880
    %v1977 = vmul.f32 %v1945, %v1881
    %v1978 = vmul.f32 %v1946, %v1882
    %v1979 = vmul.f32 %v1947, %v1883
    %v1980 = vmul.f32 %v1948, %v1884
    %v1981 = vmul.f32 %v1949, %v1885
    %v1982 = vmul.f32 %v1950, %v1886
    %v1983 = vmul.f32 %v1951, %v1887
    %v1984 = vmul.f32 %v1952, %v1888
    %v1985 = vmul.f32 %v1953, %v1889
    %v1986 = vmul.f32 %v1954, %v1890
    %v1987 = vadd.f32 %v1955, 1.4214138
    %v1988 = vadd.f32 %v1956, 1.4214138
    %v1989 = vadd.f32 %v1957, 1.4214138
    %v1990 = vadd.f32 %v1958, 1.4214138
    %v1991 = vadd.f32 %v1959, 1.4214138
    %v1992 = vadd.f32 %v1960, 1.4214138
    %v1993 = vadd.f32 %v1961, 1.4214138
    %v1994 = vadd.f32 %v1962, 1.4214138
    %v1995 = vadd.f32 %v1963, 1.4214138
    %v1996 = vadd.f32 %v1964, 1.4214138
    %v1997 = vadd.f32 %v1965, 1.4214138
    %v1998 = vadd.f32 %v1966, 1.4214138
    %v1999 = vadd.f32 %v1967, 1.4214138
    %v2000 = vadd.f32 %v1968, 1.4214138
    %v2001 = vadd.f32 %v1969, 1.4214138
    %v2002 = vadd.f32 %v1970, 1.4214138
    %v2003 = vadd.f32 %v1971, 1.4214138
    %v2004 = vadd.f32 %v1972, 1.4214138
    %v2005 = vadd.f32 %v1973, 1.4214138
    %v2006 = vadd.f32 %v1974, 1.4214138
    %v2007 = vadd.f32 %v1975, 1.4214138
    %v2008 = vadd.f32 %v1976, 1.4214138
    %v2009 = vadd.f32 %v1977, 1.4214138
    %v2010 = vadd.f32 %v1978, 1.4214138
    %v2011 = vadd.f32 %v1979, 1.4214138
    %v2012 = vadd.f32 %v1980, 1.4214138
    %v2013 = vadd.f32 %v1981, 1.4214138
    %v2014 = vadd.f32 %v1982, 1.4214138
    %v2015 = vadd.f32 %v1983, 1.4214138
    %v2016 = vadd.f32 %v1984, 1.4214138
    %v2017 = vadd.f32 %v1985, 1.4214138
    %v2018 = vadd.f32 %v1986, 1.4214138
    %v2019 = vmul.f32 %v1987, %v1859
    %v2020 = vmul.f32 %v1988, %v1860
    %v2021 = vmul.f32 %v1989, %v1861
    %v2022 = vmul.f32 %v1990, %v1862
    %v2023 = vmul.f32 %v1991, %v1863
    %v2024 = vmul.f32 %v1992, %v1864
    %v2025 = vmul.f32 %v1993, %v1865
    %v2026 = vmul.f32 %v1994, %v1866
    %v2027 = vmul.f32 %v1995, %v1867
    %v2028 = vmul.f32 %v1996, %v1868
    %v2029 = vmul.f32 %v1997, %v1869
    %v2030 = vmul.f32 %v1998, %v1870
    %v2031 = vmul.f32 %v1999, %v1871
    %v2032 = vmul.f32 %v2000, %v1872
    %v2033 = vmul.f32 %v2001, %v1873
    %v2034 = vmul.f32 %v2002, %v1874
    %v2035 = vmul.f32 %v2003, %v1875
    %v2036 = vmul.f32 %v2004, %v1876
    %v2037 = vmul.f32 %v2005, %v1877
    %v2038 = vmul.f32 %v2006, %v1878
    %v2039 = vmul.f32 %v2007, %v1879
    %v2040 = vmul.f32 %v2008, %v1880
    %v2041 = vmul.f32 %v2009, %v1881
    %v2042 = vmul.f32 %v2010, %v1882
    %v2043 = vmul.f32 %v2011, %v1883
    %v2044 = vmul.f32 %v2012, %v1884
    %v2045 = vmul.f32 %v2013, %v1885
    %v2046 = vmul.f32 %v2014, %v1886
    %v2047 = vmul.f32 %v2015, %v1887
    %v2048 = vmul.f32 %v2016, %v1888
    %v2049 = vmul.f32 %v2017, %v1889
    %v2050 = vmul.f32 %v2018, %v1890
    %v2051 = vadd.f32 %v2019, -0.28449672
    %v2052 = vadd.f32 %v2020, -0.28449672
    %v2053 = vadd.f32 %v2021, -0.28449672
    %v2054 = vadd.f32 %v2022, -0.28449672
    %v2055 = vadd.f32 %v2023, -0.28449672
    %v2056 = vadd.f32 %v2024, -0.28449672
    %v2057 = vadd.f32 %v2025, -0.28449672
    %v2058 = vadd.f32 %v2026, -0.28449672
    %v2059 = vadd.f32 %v2027, -0.28449672
    %v2060 = vadd.f32 %v2028, -0.28449672
    %v2061 = vadd.f32 %v2029, -0.28449672
    %v2062 = vadd.f32 %v2030, -0.28449672
    %v2063 = vadd.f32 %v2031, -0.28449672
    %v2064 = vadd.f32 %v2032, -0.28449672
    %v2065 = vadd.f32 %v2033, -0.28449672
    %v2066 = vadd.f32 %v2034, -0.28449672
    %v2067 = vadd.f32 %v2035, -0.28449672
    %v2068 = vadd.f32 %v2036, -0.28449672
    %v2069 = vadd.f32 %v2037, -0.28449672
    %v2070 = vadd.f32 %v2038, -0.28449672
    %v2071 = vadd.f32 %v2039, -0.28449672
    %v2072 = vadd.f32 %v2040, -0.28449672
    %v2073 = vadd.f32 %v2041, -0.28449672
    %v2074 = vadd.f32 %v2042, -0.28449672
    %v2075 = vadd.f32 %v2043, -0.28449672
    %v2076 = vadd.f32 %v2044, -0.28449672
    %v2077 = vadd.f32 %v2045, -0.28449672
    %v2078 = vadd.f32 %v2046, -0.28449672
    %v2079 = vadd.f32 %v2047, -0.28449672
    %v2080 = vadd.f32 %v2048, -0.28449672
    %v2081 = vadd.f32 %v2049, -0.28449672
    %v2082 = vadd.f32 %v2050, -0.28449672
    %v2083 = vmul.f32 %v2051, %v1859
    %v2084 = vmul.f32 %v2052, %v1860
    %v2085 = vmul.f32 %v2053, %v1861
    %v2086 = vmul.f32 %v2054, %v1862
    %v2087 = vmul.f32 %v2055, %v1863
    %v2088 = vmul.f32 %v2056, %v1864
    %v2089 = vmul.f32 %v2057, %v1865
    %v2090 = vmul.f32 %v2058, %v1866
    %v2091 = vmul.f32 %v2059, %v1867
    %v2092 = vmul.f32 %v2060, %v1868
    %v2093 = vmul.f32 %v2061, %v1869
    %v2094 = vmul.f32 %v2062, %v1870
    %v2095 = vmul.f32 %v2063, %v1871
    %v2096 = vmul.f32 %v2064, %v1872
    %v2097 = vmul.f32 %v2065, %v1873
    %v2098 = vmul.f32 %v2066, %v1874
    %v2099 = vmul.f32 %v2067, %v1875
    %v2100 = vmul.f32 %v2068, %v1876
    %v2101 = vmul.f32 %v2069, %v1877
    %v2102 = vmul.f32 %v2070, %v1878
    %v2103 = vmul.f32 %v2071, %v1879
    %v2104 = vmul.f32 %v2072, %v1880
    %v2105 = vmul.f32 %v2073, %v1881
    %v2106 = vmul.f32 %v2074, %v1882
    %v2107 = vmul.f32 %v2075, %v1883
    %v2108 = vmul.f32 %v2076, %v1884
    %v2109 = vmul.f32 %v2077, %v1885
    %v2110 = vmul.f32 %v2078, %v1886
    %v2111 = vmul.f32 %v2079, %v1887
    %v2112 = vmul.f32 %v2080, %v1888
    %v2113 = vmul.f32 %v2081, %v1889
    %v2114 = vmul.f32 %v2082, %v1890
    %v2115 = vadd.f32 %v2083, 0.2548296
    %v2116 = vadd.f32 %v2084, 0.2548296
    %v2117 = vadd.f32 %v2085, 0.2548296
    %v2118 = vadd.f32 %v2086, 0.2548296
    %v2119 = vadd.f32 %v2087, 0.2548296
    %v2120 = vadd.f32 %v2088, 0.2548296
    %v2121 = vadd.f32 %v2089, 0.2548296
    %v2122 = vadd.f32 %v2090, 0.2548296
    %v2123 = vadd.f32 %v2091, 0.2548296
    %v2124 = vadd.f32 %v2092, 0.2548296
    %v2125 = vadd.f32 %v2093, 0.2548296
    %v2126 = vadd.f32 %v2094, 0.2548296
    %v2127 = vadd.f32 %v2095, 0.2548296
    %v2128 = vadd.f32 %v2096, 0.2548296
    %v2129 = vadd.f32 %v2097, 0.2548296
    %v2130 = vadd.f32 %v2098, 0.2548296
    %v2131 = vadd.f32 %v2099, 0.2548296
    %v2132 = vadd.f32 %v2100, 0.2548296
    %v2133 = vadd.f32 %v2101, 0.2548296
    %v2134 = vadd.f32 %v2102, 0.2548296
    %v2135 = vadd.f32 %v2103, 0.2548296
    %v2136 = vadd.f32 %v2104, 0.2548296
    %v2137 = vadd.f32 %v2105, 0.2548296
    %v2138 = vadd.f32 %v2106, 0.2548296
    %v2139 = vadd.f32 %v2107, 0.2548296
    %v2140 = vadd.f32 %v2108, 0.2548296
    %v2141 = vadd.f32 %v2109, 0.2548296
    %v2142 = vadd.f32 %v2110, 0.2548296
    %v2143 = vadd.f32 %v2111, 0.2548296
    %v2144 = vadd.f32 %v2112, 0.2548296
    %v2145 = vadd.f32 %v2113, 0.2548296
    %v2146 = vadd.f32 %v2114, 0.2548296
    %v2147 = vmul.f32 %v2115, %v1859
    %v2148 = vmul.f32 %v2116, %v1860
    %v2149 = vmul.f32 %v2117, %v1861
    %v2150 = vmul.f32 %v2118, %v1862
    %v2151 = vmul.f32 %v2119, %v1863
    %v2152 = vmul.f32 %v2120, %v1864
    %v2153 = vmul.f32 %v2121, %v1865
    %v2154 = vmul.f32 %v2122, %v1866
    %v2155 = vmul.f32 %v2123, %v1867
    %v2156 = vmul.f32 %v2124, %v1868
    %v2157 = vmul.f32 %v2125, %v1869
    %v2158 = vmul.f32 %v2126, %v1870
    %v2159 = vmul.f32 %v2127, %v1871
    %v2160 = vmul.f32 %v2128, %v1872
    %v2161 = vmul.f32 %v2129, %v1873
    %v2162 = vmul.f32 %v2130, %v1874
    %v2163 = vmul.f32 %v2131, %v1875
    %v2164 = vmul.f32 %v2132, %v1876
    %v2165 = vmul.f32 %v2133, %v1877
    %v2166 = vmul.f32 %v2134, %v1878
    %v2167 = vmul.f32 %v2135, %v1879
    %v2168 = vmul.f32 %v2136, %v1880
    %v2169 = vmul.f32 %v2137, %v1881
    %v2170 = vmul.f32 %v2138, %v1882
    %v2171 = vmul.f32 %v2139, %v1883
    %v2172 = vmul.f32 %v2140, %v1884
    %v2173 = vmul.f32 %v2141, %v1885
    %v2174 = vmul.f32 %v2142, %v1886
    %v2175 = vmul.f32 %v2143, %v1887
    %v2176 = vmul.f32 %v2144, %v1888
    %v2177 = vmul.f32 %v2145, %v1889
    %v2178 = vmul.f32 %v2146, %v1890
    %v2179 = vsub.f32 0.0, %v1667
    %v2180 = vsub.f32 0.0, %v1668
    %v2181 = vsub.f32 0.0, %v1669
    %v2182 = vsub.f32 0.0, %v1670
    %v2183 = vsub.f32 0.0, %v1671
    %v2184 = vsub.f32 0.0, %v1672
    %v2185 = vsub.f32 0.0, %v1673
    %v2186 = vsub.f32 0.0, %v1674
    %v2187 = vsub.f32 0.0, %v1675
    %v2188 = vsub.f32 0.0, %v1676
    %v2189 = vsub.f32 0.0, %v1677
    %v2190 = vsub.f32 0.0, %v1678
    %v2191 = vsub.f32 0.0, %v1679
    %v2192 = vsub.f32 0.0, %v1680
    %v2193 = vsub.f32 0.0, %v1681
    %v2194 = vsub.f32 0.0, %v1682
    %v2195 = vsub.f32 0.0, %v1683
    %v2196 = vsub.f32 0.0, %v1684
    %v2197 = vsub.f32 0.0, %v1685
    %v2198 = vsub.f32 0.0, %v1686
    %v2199 = vsub.f32 0.0, %v1687
    %v2200 = vsub.f32 0.0, %v1688
    %v2201 = vsub.f32 0.0, %v1689
    %v2202 = vsub.f32 0.0, %v1690
    %v2203 = vsub.f32 0.0, %v1691
    %v2204 = vsub.f32 0.0, %v1692
    %v2205 = vsub.f32 0.0, %v1693
    %v2206 = vsub.f32 0.0, %v1694
    %v2207 = vsub.f32 0.0, %v1695
    %v2208 = vsub.f32 0.0, %v1696
    %v2209 = vsub.f32 0.0, %v1697
    %v2210 = vsub.f32 0.0, %v1698
    %v2211 = vmul.f32 %v2179, %v1667
    %v2212 = vmul.f32 %v2180, %v1668
    %v2213 = vmul.f32 %v2181, %v1669
    %v2214 = vmul.f32 %v2182, %v1670
    %v2215 = vmul.f32 %v2183, %v1671
    %v2216 = vmul.f32 %v2184, %v1672
    %v2217 = vmul.f32 %v2185, %v1673
    %v2218 = vmul.f32 %v2186, %v1674
    %v2219 = vmul.f32 %v2187, %v1675
    %v2220 = vmul.f32 %v2188, %v1676
    %v2221 = vmul.f32 %v2189, %v1677
    %v2222 = vmul.f32 %v2190, %v1678
    %v2223 = vmul.f32 %v2191, %v1679
    %v2224 = vmul.f32 %v2192, %v1680
    %v2225 = vmul.f32 %v2193, %v1681
    %v2226 = vmul.f32 %v2194, %v1682
    %v2227 = vmul.f32 %v2195, %v1683
    %v2228 = vmul.f32 %v2196, %v1684
    %v2229 = vmul.f32 %v2197, %v1685
    %v2230 = vmul.f32 %v2198, %v1686
    %v2231 = vmul.f32 %v2199, %v1687
    %v2232 = vmul.f32 %v2200, %v1688
    %v2233 = vmul.f32 %v2201, %v1689
    %v2234 = vmul.f32 %v2202, %v1690
    %v2235 = vmul.f32 %v2203, %v1691
    %v2236 = vmul.f32 %v2204, %v1692
    %v2237 = vmul.f32 %v2205, %v1693
    %v2238 = vmul.f32 %v2206, %v1694
    %v2239 = vmul.f32 %v2207, %v1695
    %v2240 = vmul.f32 %v2208, %v1696
    %v2241 = vmul.f32 %v2209, %v1697
    %v2242 = vmul.f32 %v2210, %v1698
    %v2243 = vmul.f32 %v2211, 1.442695
    %v2244 = vpow.pop %v2243
    %v2245 = vmul.f32 %v2212, 1.442695
    %v2246 = vpow.pop %v2245
    %v2247 = vmul.f32 %v2213, 1.442695
    %v2248 = vpow.pop %v2247
    %v2249 = vmul.f32 %v2214, 1.442695
    %v2250 = vpow.pop %v2249
    %v2251 = vmul.f32 %v2215, 1.442695
    %v2252 = vpow.pop %v2251
    %v2253 = vmul.f32 %v2216, 1.442695
    %v2254 = vpow.pop %v2253
    %v2255 = vmul.f32 %v2217, 1.442695
    %v2256 = vpow.pop %v2255
    %v2257 = vmul.f32 %v2218, 1.442695
    %v2258 = vpow.pop %v2257
    %v2259 = vmul.f32 %v2219, 1.442695
    %v2260 = vpow.pop %v2259
    %v2261 = vmul.f32 %v2220, 1.442695
    %v2262 = vpow.pop %v2261
    %v2263 = vmul.f32 %v2221, 1.442695
    %v2264 = vpow.pop %v2263
    %v2265 = vmul.f32 %v2222, 1.442695
    %v2266 = vpow.pop %v2265
    %v2267 = vmul.f32 %v2223, 1.442695
    %v2268 = vpow.pop %v2267
    %v2269 = vmul.f32 %v2224, 1.442695
    %v2270 = vpow.pop %v2269
    %v2271 = vmul.f32 %v2225, 1.442695
    %v2272 = vpow.pop %v2271
    %v2273 = vmul.f32 %v2226, 1.442695
    %v2274 = vpow.pop %v2273
    %v2275 = vmul.f32 %v2227, 1.442695
    %v2276 = vpow.pop %v2275
    %v2277 = vmul.f32 %v2228, 1.442695
    %v2278 = vpow.pop %v2277
    %v2279 = vmul.f32 %v2229, 1.442695
    %v2280 = vpow.pop %v2279
    %v2281 = vmul.f32 %v2230, 1.442695
    %v2282 = vpow.pop %v2281
    %v2283 = vmul.f32 %v2231, 1.442695
    %v2284 = vpow.pop %v2283
    %v2285 = vmul.f32 %v2232, 1.442695
    %v2286 = vpow.pop %v2285
    %v2287 = vmul.f32 %v2233, 1.442695
    %v2288 = vpow.pop %v2287
    %v2289 = vmul.f32 %v2234, 1.442695
    %v2290 = vpow.pop %v2289
    %v2291 = vmul.f32 %v2235, 1.442695
    %v2292 = vpow.pop %v2291
    %v2293 = vmul.f32 %v2236, 1.442695
    %v2294 = vpow.pop %v2293
    %v2295 = vmul.f32 %v2237, 1.442695
    %v2296 = vpow.pop %v2295
    %v2297 = vmul.f32 %v2238, 1.442695
    %v2298 = vpow.pop %v2297
    %v2299 = vmul.f32 %v2239, 1.442695
    %v2300 = vpow.pop %v2299
    %v2301 = vmul.f32 %v2240, 1.442695
    %v2302 = vpow.pop %v2301
    %v2303 = vmul.f32 %v2241, 1.442695
    %v2304 = vpow.pop %v2303
    %v2305 = vmul.f32 %v2242, 1.442695
    %v2306 = vpow.pop %v2305
    %v2307 = vmul.f32 %v2147, %v2244
    %v2308 = vmul.f32 %v2148, %v2246
    %v2309 = vmul.f32 %v2149, %v2248
    %v2310 = vmul.f32 %v2150, %v2250
    %v2311 = vmul.f32 %v2151, %v2252
    %v2312 = vmul.f32 %v2152, %v2254
    %v2313 = vmul.f32 %v2153, %v2256
    %v2314 = vmul.f32 %v2154, %v2258
    %v2315 = vmul.f32 %v2155, %v2260
    %v2316 = vmul.f32 %v2156, %v2262
    %v2317 = vmul.f32 %v2157, %v2264
    %v2318 = vmul.f32 %v2158, %v2266
    %v2319 = vmul.f32 %v2159, %v2268
    %v2320 = vmul.f32 %v2160, %v2270
    %v2321 = vmul.f32 %v2161, %v2272
    %v2322 = vmul.f32 %v2162, %v2274
    %v2323 = vmul.f32 %v2163, %v2276
    %v2324 = vmul.f32 %v2164, %v2278
    %v2325 = vmul.f32 %v2165, %v2280
    %v2326 = vmul.f32 %v2166, %v2282
    %v2327 = vmul.f32 %v2167, %v2284
    %v2328 = vmul.f32 %v2168, %v2286
    %v2329 = vmul.f32 %v2169, %v2288
    %v2330 = vmul.f32 %v2170, %v2290
    %v2331 = vmul.f32 %v2171, %v2292
    %v2332 = vmul.f32 %v2172, %v2294
    %v2333 = vmul.f32 %v2173, %v2296
    %v2334 = vmul.f32 %v2174, %v2298
    %v2335 = vmul.f32 %v2175, %v2300
    %v2336 = vmul.f32 %v2176, %v2302
    %v2337 = vmul.f32 %v2177, %v2304
    %v2338 = vmul.f32 %v2178, %v2306
    %v2339 = vsub.f32 1.0, %v2307
    %v2340 = vsub.f32 1.0, %v2308
    %v2341 = vsub.f32 1.0, %v2309
    %v2342 = vsub.f32 1.0, %v2310
    %v2343 = vsub.f32 1.0, %v2311
    %v2344 = vsub.f32 1.0, %v2312
    %v2345 = vsub.f32 1.0, %v2313
    %v2346 = vsub.f32 1.0, %v2314
    %v2347 = vsub.f32 1.0, %v2315
    %v2348 = vsub.f32 1.0, %v2316
    %v2349 = vsub.f32 1.0, %v2317
    %v2350 = vsub.f32 1.0, %v2318
    %v2351 = vsub.f32 1.0, %v2319
    %v2352 = vsub.f32 1.0, %v2320
    %v2353 = vsub.f32 1.0, %v2321
    %v2354 = vsub.f32 1.0, %v2322
    %v2355 = vsub.f32 1.0, %v2323
    %v2356 = vsub.f32 1.0, %v2324
    %v2357 = vsub.f32 1.0, %v2325
    %v2358 = vsub.f32 1.0, %v2326
    %v2359 = vsub.f32 1.0, %v2327
    %v2360 = vsub.f32 1.0, %v2328
    %v2361 = vsub.f32 1.0, %v2329
    %v2362 = vsub.f32 1.0, %v2330
    %v2363 = vsub.f32 1.0, %v2331
    %v2364 = vsub.f32 1.0, %v2332
    %v2365 = vsub.f32 1.0, %v2333
    %v2366 = vsub.f32 1.0, %v2334
    %v2367 = vsub.f32 1.0, %v2335
    %v2368 = vsub.f32 1.0, %v2336
    %v2369 = vsub.f32 1.0, %v2337
    %v2370 = vsub.f32 1.0, %v2338
    %vm2371 = vcmp.ge.f32.partialorder %v1635, 0.0
    %vm2372 = vcmp.ge.f32.partialorder %v1636, 0.0
    %vm2373 = vcmp.ge.f32.partialorder %v1637, 0.0
    %vm2374 = vcmp.ge.f32.partialorder %v1638, 0.0
    %vm2375 = vcmp.ge.f32.partialorder %v1639, 0.0
    %vm2376 = vcmp.ge.f32.partialorder %v1640, 0.0
    %vm2377 = vcmp.ge.f32.partialorder %v1641, 0.0
    %vm2378 = vcmp.ge.f32.partialorder %v1642, 0.0
    %vm2379 = vcmp.ge.f32.partialorder %v1643, 0.0
    %vm2380 = vcmp.ge.f32.partialorder %v1644, 0.0
    %vm2381 = vcmp.ge.f32.partialorder %v1645, 0.0
    %vm2382 = vcmp.ge.f32.partialorder %v1646, 0.0
    %vm2383 = vcmp.ge.f32.partialorder %v1647, 0.0
    %vm2384 = vcmp.ge.f32.partialorder %v1648, 0.0
    %vm2385 = vcmp.ge.f32.partialorder %v1649, 0.0
    %vm2386 = vcmp.ge.f32.partialorder %v1650, 0.0
    %vm2387 = vcmp.ge.f32.partialorder %v1651, 0.0
    %vm2388 = vcmp.ge.f32.partialorder %v1652, 0.0
    %vm2389 = vcmp.ge.f32.partialorder %v1653, 0.0
    %vm2390 = vcmp.ge.f32.partialorder %v1654, 0.0
    %vm2391 = vcmp.ge.f32.partialorder %v1655, 0.0
    %vm2392 = vcmp.ge.f32.partialorder %v1656, 0.0
    %vm2393 = vcmp.ge.f32.partialorder %v1657, 0.0
    %vm2394 = vcmp.ge.f32.partialorder %v1658, 0.0
    %vm2395 = vcmp.ge.f32.partialorder %v1659, 0.0
    %vm2396 = vcmp.ge.f32.partialorder %v1660, 0.0
    %vm2397 = vcmp.ge.f32.partialorder %v1661, 0.0
    %vm2398 = vcmp.ge.f32.partialorder %v1662, 0.0
    %vm2399 = vcmp.ge.f32.partialorder %v1663, 0.0
    %vm2400 = vcmp.ge.f32.partialorder %v1664, 0.0
    %vm2401 = vcmp.ge.f32.partialorder %v1665, 0.0
    %vm2402 = vcmp.ge.f32.partialorder %v1666, 0.0
    %v2403 = vsub.f32 0.0, %v2339
    %v2404 = vsub.f32 0.0, %v2340
    %v2405 = vsub.f32 0.0, %v2341
    %v2406 = vsub.f32 0.0, %v2342
    %v2407 = vsub.f32 0.0, %v2343
    %v2408 = vsub.f32 0.0, %v2344
    %v2409 = vsub.f32 0.0, %v2345
    %v2410 = vsub.f32 0.0, %v2346
    %v2411 = vsub.f32 0.0, %v2347
    %v2412 = vsub.f32 0.0, %v2348
    %v2413 = vsub.f32 0.0, %v2349
    %v2414 = vsub.f32 0.0, %v2350
    %v2415 = vsub.f32 0.0, %v2351
    %v2416 = vsub.f32 0.0, %v2352
    %v2417 = vsub.f32 0.0, %v2353
    %v2418 = vsub.f32 0.0, %v2354
    %v2419 = vsub.f32 0.0, %v2355
    %v2420 = vsub.f32 0.0, %v2356
    %v2421 = vsub.f32 0.0, %v2357
    %v2422 = vsub.f32 0.0, %v2358
    %v2423 = vsub.f32 0.0, %v2359
    %v2424 = vsub.f32 0.0, %v2360
    %v2425 = vsub.f32 0.0, %v2361
    %v2426 = vsub.f32 0.0, %v2362
    %v2427 = vsub.f32 0.0, %v2363
    %v2428 = vsub.f32 0.0, %v2364
    %v2429 = vsub.f32 0.0, %v2365
    %v2430 = vsub.f32 0.0, %v2366
    %v2431 = vsub.f32 0.0, %v2367
    %v2432 = vsub.f32 0.0, %v2368
    %v2433 = vsub.f32 0.0, %v2369
    %v2434 = vsub.f32 0.0, %v2370
    %v2435 = vsel %vm2371, %v2339, %v2403
    %v2436 = vsel %vm2372, %v2340, %v2404
    %v2437 = vsel %vm2373, %v2341, %v2405
    %v2438 = vsel %vm2374, %v2342, %v2406
    %v2439 = vsel %vm2375, %v2343, %v2407
    %v2440 = vsel %vm2376, %v2344, %v2408
    %v2441 = vsel %vm2377, %v2345, %v2409
    %v2442 = vsel %vm2378, %v2346, %v2410
    %v2443 = vsel %vm2379, %v2347, %v2411
    %v2444 = vsel %vm2380, %v2348, %v2412
    %v2445 = vsel %vm2381, %v2349, %v2413
    %v2446 = vsel %vm2382, %v2350, %v2414
    %v2447 = vsel %vm2383, %v2351, %v2415
    %v2448 = vsel %vm2384, %v2352, %v2416
    %v2449 = vsel %vm2385, %v2353, %v2417
    %v2450 = vsel %vm2386, %v2354, %v2418
    %v2451 = vsel %vm2387, %v2355, %v2419
    %v2452 = vsel %vm2388, %v2356, %v2420
    %v2453 = vsel %vm2389, %v2357, %v2421
    %v2454 = vsel %vm2390, %v2358, %v2422
    %v2455 = vsel %vm2391, %v2359, %v2423
    %v2456 = vsel %vm2392, %v2360, %v2424
    %v2457 = vsel %vm2393, %v2361, %v2425
    %v2458 = vsel %vm2394, %v2362, %v2426
    %v2459 = vsel %vm2395, %v2363, %v2427
    %v2460 = vsel %vm2396, %v2364, %v2428
    %v2461 = vsel %vm2397, %v2365, %v2429
    %v2462 = vsel %vm2398, %v2366, %v2430
    %v2463 = vsel %vm2399, %v2367, %v2431
    %v2464 = vsel %vm2400, %v2368, %v2432
    %v2465 = vsel %vm2401, %v2369, %v2433
    %v2466 = vsel %vm2402, %v2370, %v2434
    %v2467 = vadd.f32 %v2435, 1.0
    %v2468 = vadd.f32 %v2436, 1.0
    %v2469 = vadd.f32 %v2437, 1.0
    %v2470 = vadd.f32 %v2438, 1.0
    %v2471 = vadd.f32 %v2439, 1.0
    %v2472 = vadd.f32 %v2440, 1.0
    %v2473 = vadd.f32 %v2441, 1.0
    %v2474 = vadd.f32 %v2442, 1.0
    %v2475 = vadd.f32 %v2443, 1.0
    %v2476 = vadd.f32 %v2444, 1.0
    %v2477 = vadd.f32 %v2445, 1.0
    %v2478 = vadd.f32 %v2446, 1.0
    %v2479 = vadd.f32 %v2447, 1.0
    %v2480 = vadd.f32 %v2448, 1.0
    %v2481 = vadd.f32 %v2449, 1.0
    %v2482 = vadd.f32 %v2450, 1.0
    %v2483 = vadd.f32 %v2451, 1.0
    %v2484 = vadd.f32 %v2452, 1.0
    %v2485 = vadd.f32 %v2453, 1.0
    %v2486 = vadd.f32 %v2454, 1.0
    %v2487 = vadd.f32 %v2455, 1.0
    %v2488 = vadd.f32 %v2456, 1.0
    %v2489 = vadd.f32 %v2457, 1.0
    %v2490 = vadd.f32 %v2458, 1.0
    %v2491 = vadd.f32 %v2459, 1.0
    %v2492 = vadd.f32 %v2460, 1.0
    %v2493 = vadd.f32 %v2461, 1.0
    %v2494 = vadd.f32 %v2462, 1.0
    %v2495 = vadd.f32 %v2463, 1.0
    %v2496 = vadd.f32 %v2464, 1.0
    %v2497 = vadd.f32 %v2465, 1.0
    %v2498 = vadd.f32 %v2466, 1.0
    %v2499 = vmul.f32 %v1603, %v2467
    %v2500 = vmul.f32 %v1604, %v2468
    %v2501 = vmul.f32 %v1605, %v2469
    %v2502 = vmul.f32 %v1606, %v2470
    %v2503 = vmul.f32 %v1607, %v2471
    %v2504 = vmul.f32 %v1608, %v2472
    %v2505 = vmul.f32 %v1609, %v2473
    %v2506 = vmul.f32 %v1610, %v2474
    %v2507 = vmul.f32 %v1611, %v2475
    %v2508 = vmul.f32 %v1612, %v2476
    %v2509 = vmul.f32 %v1613, %v2477
    %v2510 = vmul.f32 %v1614, %v2478
    %v2511 = vmul.f32 %v1615, %v2479
    %v2512 = vmul.f32 %v1616, %v2480
    %v2513 = vmul.f32 %v1617, %v2481
    %v2514 = vmul.f32 %v1618, %v2482
    %v2515 = vmul.f32 %v1619, %v2483
    %v2516 = vmul.f32 %v1620, %v2484
    %v2517 = vmul.f32 %v1621, %v2485
    %v2518 = vmul.f32 %v1622, %v2486
    %v2519 = vmul.f32 %v1623, %v2487
    %v2520 = vmul.f32 %v1624, %v2488
    %v2521 = vmul.f32 %v1625, %v2489
    %v2522 = vmul.f32 %v1626, %v2490
    %v2523 = vmul.f32 %v1627, %v2491
    %v2524 = vmul.f32 %v1628, %v2492
    %v2525 = vmul.f32 %v1629, %v2493
    %v2526 = vmul.f32 %v1630, %v2494
    %v2527 = vmul.f32 %v1631, %v2495
    %v2528 = vmul.f32 %v1632, %v2496
    %v2529 = vmul.f32 %v1633, %v2497
    %v2530 = vmul.f32 %v1634, %v2498
    %v2531 = vld [vmem:[#allocation2] sm:$0xff]
    %v2532 = vld [vmem:[#allocation2 + $0x8] sm:$0xff]
    %v2533 = vld [vmem:[#allocation2 + $0x10] sm:$0xff]
    %v2534 = vld [vmem:[#allocation2 + $0x18] sm:$0xff]
    %v2535 = vld [vmem:[#allocation2 + $0x20] sm:$0xff]
    %v2536 = vld [vmem:[#allocation2 + $0x28] sm:$0xff]
    %v2537 = vld [vmem:[#allocation2 + $0x30] sm:$0xff]
    %v2538 = vld [vmem:[#allocation2 + $0x38] sm:$0xff]
    %v2539 = vld [vmem:[#allocation2 + $0x40] sm:$0xff]
    %v2540 = vld [vmem:[#allocation2 + $0x48] sm:$0xff]
    %v2541 = vld [vmem:[#allocation2 + $0x50] sm:$0xff]
    %v2542 = vld [vmem:[#allocation2 + $0x58] sm:$0xff]
    %v2543 = vrot.slane %v2499, 7
    %v2544 = vrot.slane %v2500, 7
    %v2545 = vrot.slane %v2501, 7
    %v2546 = vrot.slane %v2502, 7
    %v2547 = vrot.slane %v2503, 7
    %v2548 = vrot.slane %v2504, 7
    %v2549 = vrot.slane %v2505, 7
    %v2550 = vrot.slane %v2506, 7
    %v2551 = vrot.slane %v2507, 7
    %v2552 = vrot.slane %v2508, 7
    %v2553 = vrot.slane %v2509, 7
    %v2554 = vrot.slane %v2510, 7
    %v2555 = vrot.slane %v2511, 7
    %v2556 = vrot.slane %v2512, 7
    %v2557 = vrot.slane %v2513, 7
    %v2558 = vrot.slane %v2514, 7
    %v2559 = vrot.slane %v2515, 7
    %v2560 = vrot.slane %v2516, 7
    %v2561 = vrot.slane %v2517, 7
    %v2562 = vrot.slane %v2518, 7
    %v2563 = vrot.slane %v2519, 7
    %v2564 = vrot.slane %v2520, 7
    %v2565 = vrot.slane %v2521, 7
    %v2566 = vrot.slane %v2522, 7
    %v2567 = vrot.slane %v2523, 7
    %v2568 = vrot.slane %v2524, 7
    %v2569 = vrot.slane %v2525, 7
    %v2570 = vrot.slane %v2526, 7
    %v2571 = vrot.slane %v2527, 7
    %v2572 = vrot.slane %v2528, 7
    %v2573 = vrot.slane %v2529, 7
    %v2574 = vrot.slane %v2530, 7
    %v2575 = vsel %vm363, %v2573, %v2574
    %v2576 = vsel %vm363, %v2572, %v2573
    %v2577 = vsel %vm363, %v2571, %v2572
    %v2578 = vsel %vm363, %v2570, %v2571
    %v2579 = vsel %vm363, %v2569, %v2570
    %v2580 = vsel %vm363, %v2568, %v2569
    %v2581 = vsel %vm363, %v2567, %v2568
    %v2582 = vsel %vm363, %v2566, %v2567
    %v2583 = vsel %vm363, %v2565, %v2566
    %v2584 = vsel %vm363, %v2564, %v2565
    %v2585 = vsel %vm363, %v2563, %v2564
    %v2586 = vsel %vm363, %v2562, %v2563
    %v2587 = vsel %vm363, %v2561, %v2562
    %v2588 = vsel %vm363, %v2560, %v2561
    %v2589 = vsel %vm363, %v2559, %v2560
    %v2590 = vsel %vm363, %v2558, %v2559
    %v2591 = vsel %vm363, %v2557, %v2558
    %v2592 = vsel %vm363, %v2556, %v2557
    %v2593 = vsel %vm363, %v2555, %v2556
    %v2594 = vsel %vm363, %v2554, %v2555
    %v2595 = vsel %vm363, %v2553, %v2554
    %v2596 = vsel %vm363, %v2552, %v2553
    %v2597 = vsel %vm363, %v2551, %v2552
    %v2598 = vsel %vm363, %v2550, %v2551
    %v2599 = vsel %vm363, %v2549, %v2550
    %v2600 = vsel %vm363, %v2548, %v2549
    %v2601 = vsel %vm363, %v2547, %v2548
    %v2602 = vsel %vm363, %v2546, %v2547
    %v2603 = vsel %vm363, %v2545, %v2546
    %v2604 = vsel %vm363, %v2544, %v2545
    %v2605 = vsel %vm363, %v2543, %v2544
    %v2606 = vsel %vm363, %v2574, %v2543
    %v2607 = vmul.f32 %v2606, %v200
    %v2608 = vmul.f32 %v2605, %v201
    %v2609 = vmul.f32 %v2604, %v202
    %v2610 = vmul.f32 %v2603, %v203
    %v2611 = vmul.f32 %v2602, %v204
    %v2612 = vmul.f32 %v2601, %v205
    %v2613 = vmul.f32 %v2600, %v206
    %v2614 = vmul.f32 %v2599, %v207
    %v2615 = vmul.f32 %v2598, %v208
    %v2616 = vmul.f32 %v2597, %v209
    %v2617 = vmul.f32 %v2596, %v210
    %v2618 = vmul.f32 %v2595, %v211
    %v2619 = vmul.f32 %v2594, %v212
    %v2620 = vmul.f32 %v2593, %v213
    %v2621 = vmul.f32 %v2592, %v214
    %v2622 = vmul.f32 %v2591, %v215
    %v2623 = vmul.f32 %v2590, %v216
    %v2624 = vmul.f32 %v2589, %v217
    %v2625 = vmul.f32 %v2588, %v218
    %v2626 = vmul.f32 %v2587, %v219
    %v2627 = vmul.f32 %v2586, %v220
    %v2628 = vmul.f32 %v2585, %v221
    %v2629 = vmul.f32 %v2584, %v222
    %v2630 = vmul.f32 %v2583, %v223
    %v2631 = vmul.f32 %v2582, %v224
    %v2632 = vmul.f32 %v2581, %v225
    %v2633 = vmul.f32 %v2580, %v226
    %v2634 = vmul.f32 %v2579, %v227
    %v2635 = vmul.f32 %v2578, %v228
    %v2636 = vmul.f32 %v2577, %v229
    %v2637 = vmul.f32 %v2576, %v230
    %v2638 = vmul.f32 %v2575, %v231
    %v2639 = vrot.slane %v2499, 1
    %v2640 = vrot.slane %v2500, 1
    %v2641 = vrot.slane %v2501, 1
    %v2642 = vrot.slane %v2502, 1
    %v2643 = vrot.slane %v2503, 1
    %v2644 = vrot.slane %v2504, 1
    %v2645 = vrot.slane %v2505, 1
    %v2646 = vrot.slane %v2506, 1
    %v2647 = vrot.slane %v2507, 1
    %v2648 = vrot.slane %v2508, 1
    %v2649 = vrot.slane %v2509, 1
    %v2650 = vrot.slane %v2510, 1
    %v2651 = vrot.slane %v2511, 1
    %v2652 = vrot.slane %v2512, 1
    %v2653 = vrot.slane %v2513, 1
    %v2654 = vrot.slane %v2514, 1
    %v2655 = vrot.slane %v2515, 1
    %v2656 = vrot.slane %v2516, 1
    %v2657 = vrot.slane %v2517, 1
    %v2658 = vrot.slane %v2518, 1
    %v2659 = vrot.slane %v2519, 1
    %v2660 = vrot.slane %v2520, 1
    %v2661 = vrot.slane %v2521, 1
    %v2662 = vrot.slane %v2522, 1
    %v2663 = vrot.slane %v2523, 1
    %v2664 = vrot.slane %v2524, 1
    %v2665 = vrot.slane %v2525, 1
    %v2666 = vrot.slane %v2526, 1
    %v2667 = vrot.slane %v2527, 1
    %v2668 = vrot.slane %v2528, 1
    %v2669 = vrot.slane %v2529, 1
    %v2670 = vrot.slane %v2530, 1
    %v2671 = vsel %vm460, %v2669, %v2670
    %v2672 = vsel %vm460, %v2668, %v2669
    %v2673 = vsel %vm460, %v2667, %v2668
    %v2674 = vsel %vm460, %v2666, %v2667
    %v2675 = vsel %vm460, %v2665, %v2666
    %v2676 = vsel %vm460, %v2664, %v2665
    %v2677 = vsel %vm460, %v2663, %v2664
    %v2678 = vsel %vm460, %v2662, %v2663
    %v2679 = vsel %vm460, %v2661, %v2662
    %v2680 = vsel %vm460, %v2660, %v2661
    %v2681 = vsel %vm460, %v2659, %v2660
    %v2682 = vsel %vm460, %v2658, %v2659
    %v2683 = vsel %vm460, %v2657, %v2658
    %v2684 = vsel %vm460, %v2656, %v2657
    %v2685 = vsel %vm460, %v2655, %v2656
    %v2686 = vsel %vm460, %v2654, %v2655
    %v2687 = vsel %vm460, %v2653, %v2654
    %v2688 = vsel %vm460, %v2652, %v2653
    %v2689 = vsel %vm460, %v2651, %v2652
    %v2690 = vsel %vm460, %v2650, %v2651
    %v2691 = vsel %vm460, %v2649, %v2650
    %v2692 = vsel %vm460, %v2648, %v2649
    %v2693 = vsel %vm460, %v2647, %v2648
    %v2694 = vsel %vm460, %v2646, %v2647
    %v2695 = vsel %vm460, %v2645, %v2646
    %v2696 = vsel %vm460, %v2644, %v2645
    %v2697 = vsel %vm460, %v2643, %v2644
    %v2698 = vsel %vm460, %v2642, %v2643
    %v2699 = vsel %vm460, %v2641, %v2642
    %v2700 = vsel %vm460, %v2640, %v2641
    %v2701 = vsel %vm460, %v2639, %v2640
    %v2702 = vsel %vm460, %v2670, %v2639
    %v2703 = vmul.f32 %v2701, %v296
    %v2704 = vmul.f32 %v2700, %v297
    %v2705 = vmul.f32 %v2699, %v298
    %v2706 = vmul.f32 %v2698, %v299
    %v2707 = vmul.f32 %v2697, %v300
    %v2708 = vmul.f32 %v2696, %v301
    %v2709 = vmul.f32 %v2695, %v302
    %v2710 = vmul.f32 %v2694, %v303
    %v2711 = vmul.f32 %v2693, %v304
    %v2712 = vmul.f32 %v2692, %v305
    %v2713 = vmul.f32 %v2691, %v306
    %v2714 = vmul.f32 %v2690, %v307
    %v2715 = vmul.f32 %v2689, %v308
    %v2716 = vmul.f32 %v2688, %v309
    %v2717 = vmul.f32 %v2687, %v310
    %v2718 = vmul.f32 %v2686, %v311
    %v2719 = vmul.f32 %v2685, %v312
    %v2720 = vmul.f32 %v2684, %v313
    %v2721 = vmul.f32 %v2683, %v314
    %v2722 = vmul.f32 %v2682, %v315
    %v2723 = vmul.f32 %v2681, %v316
    %v2724 = vmul.f32 %v2680, %v317
    %v2725 = vmul.f32 %v2679, %v318
    %v2726 = vmul.f32 %v2678, %v319
    %v2727 = vmul.f32 %v2677, %v320
    %v2728 = vmul.f32 %v2676, %v321
    %v2729 = vmul.f32 %v2675, %v322
    %v2730 = vmul.f32 %v2674, %v323
    %v2731 = vmul.f32 %v2673, %v324
    %v2732 = vmul.f32 %v2672, %v325
    %v2733 = vmul.f32 %v2671, %v326
    %v2734 = vmul.f32 %v2702, %v327
    %vm2735 = vcmask 261120
    %v2737 = vsel %vm2735, %v2499, 0
    %v2740 = vsel %vm2735, %v2500, 0
    %v2743 = vsel %vm2735, %v2501, 0
    %v2746 = vsel %vm2735, %v2502, 0
    %v2749 = vsel %vm2735, %v2503, 0
    %v2752 = vsel %vm2735, %v2504, 0
    %v2755 = vsel %vm2735, %v2505, 0
    %v2758 = vsel %vm2735, %v2506, 0
    %v2761 = vsel %vm2735, %v2507, 0
    %v2764 = vsel %vm2735, %v2508, 0
    %v2767 = vsel %vm2735, %v2509, 0
    %v2770 = vsel %vm2735, %v2510, 0
    %v2773 = vsel %vm2735, %v2511, 0
    %v2776 = vsel %vm2735, %v2512, 0
    %v2779 = vsel %vm2735, %v2513, 0
    %v2782 = vsel %vm2735, %v2514, 0
    %v2785 = vsel %vm2735, %v2515, 0
    %v2788 = vsel %vm2735, %v2516, 0
    %v2791 = vsel %vm2735, %v2517, 0
    %v2794 = vsel %vm2735, %v2518, 0
    %v2797 = vsel %vm2735, %v2519, 0
    %v2800 = vsel %vm2735, %v2520, 0
    %v2803 = vsel %vm2735, %v2521, 0
    %v2806 = vsel %vm2735, %v2522, 0
    %v2809 = vsel %vm2735, %v2523, 0
    %v2812 = vsel %vm2735, %v2524, 0
    %v2815 = vsel %vm2735, %v2525, 0
    %v2818 = vsel %vm2735, %v2526, 0
    %v2821 = vsel %vm2735, %v2527, 0
    %v2824 = vsel %vm2735, %v2528, 0
    %v2827 = vsel %vm2735, %v2529, 0
    %v2830 = vsel %vm2735, %v2530, 0
    %2832 = vmatprep.subr.mxu0 0.0
    %2833 = vmatpush1.msra.mxu0 %v2535
    %2834 = vmatprep.subr.mxu0 0.0
    %2835 = vmatpush1.msra.mxu0 %v2536
    %2836 = vmatprep.subr.mxu0 0.0
    %2837 = vmatpush1.msra.mxu0 %v2537
    %2838 = vmatprep.subr.mxu0 0.0
    %2839 = vmatpush1.msra.mxu0 %v2538
    %2840 = vmatprep.subr.mxu0 0.0
    %2841 = vmatpush1.msra.mxu0 0.0
    %2842 = vmatprep.subr.mxu0 0.0
    %2843 = vmatpush1.msra.mxu0 0.0
    %2844 = vmatprep.subr.mxu0 0.0
    %2845 = vmatpush1.msra.mxu0 0.0
    %2846 = vmatprep.subr.mxu0 0.0
    %2847 = vmatpush1.msra.mxu0 0.0
    %2848 = vmatprep.subr.mxu0 0.0
    %2849 = vmatpush1.msra.mxu0 0.0
    %2850 = vmatprep.subr.mxu0 0.0
    %2851 = vmatpush1.msra.mxu0 0.0
    %2852 = vmatprep.subr.mxu0 0.0
    %2853 = vmatpush1.msra.mxu0 0.0
    %2854 = vmatprep.subr.mxu0 0.0
    %2855 = vmatpush1.msra.mxu0 0.0
    %2856 = vmatprep.subr.mxu0 0.0
    %2857 = vmatpush1.msra.mxu0 0.0
    %2858 = vmatprep.subr.mxu0 0.0
    %2859 = vmatpush1.msra.mxu0 0.0
    %2860 = vmatprep.subr.mxu0 0.0
    %2861 = vmatpush1.msra.mxu0 0.0
    %2862 = vmatprep.subr.mxu0 0.0
    %2863 = vmatpush1.msra.mxu0 0.0
    %2864 = vmatprep.subr.mxu0 0.0
    %2865 = vmatpush1.msra.mxu0 0.0
    %2866 = vmatprep.subr.mxu0 0.0
    %2867 = vmatpush1.msra.mxu0 0.0
    %2868 = vmatprep.subr.mxu0 0.0
    %2869 = vmatpush1.msra.mxu0 0.0
    %2870 = vmatprep.subr.mxu0 0.0
    %2871 = vmatpush1.msra.mxu0 0.0
    %2872 = vmatprep.subr.mxu0 0.0
    %2873 = vmatpush1.msra.mxu0 0.0
    %2874 = vmatprep.subr.mxu0 0.0
    %2875 = vmatpush1.msra.mxu0 0.0
    %2876 = vmatprep.subr.mxu0 0.0
    %2877 = vmatpush1.msra.mxu0 0.0
    %2878 = vmatprep.subr.mxu0 0.0
    %2879 = vmatpush1.msra.mxu0 0.0
    %2880 = vmatprep.subr.mxu0 0.0
    %2881 = vmatpush1.msra.mxu0 0.0
    %2882 = vmatprep.subr.mxu0 0.0
    %2883 = vmatpush1.msra.mxu0 0.0
    %2884 = vmatprep.subr.mxu0 0.0
    %2885 = vmatpush1.msra.mxu0 0.0
    %2886 = vmatprep.subr.mxu0 0.0
    %2887 = vmatpush1.msra.mxu0 0.0
    %2888 = vmatprep.subr.mxu0 0.0
    %2889 = vmatpush1.msra.mxu0 0.0
    %2890 = vmatprep.subr.mxu0 0.0
    %2891 = vmatpush1.msra.mxu0 0.0
    %2892 = vmatprep.subr.mxu0 0.0
    %2893 = vmatpush1.msra.mxu0 0.0
    %2894 = vmatprep.subr.mxu0 0.0
    %2895 = vmatpush1.msra.mxu0 0.0
    %2896 = vmatprep.mubr.f32.mxu0 0.0
    %2897 = vmatmul.mubr.f32.gmra.mrb[0].mxu0 %v2737
    %v2898 = vpop.f32.mrb[0].mxu0
    %v2899 = vadd.f32 0.0, %v2898
    %v2900 = vpop.f32.mrb[0].mxu0
    %2901 = vmatprep.mubr.f32.mxu0 0.0
    %2902 = vmatmul.mubr.f32.gmra.mrb[0].mxu0 %v2740
    %v2903 = vpop.f32.mrb[0].mxu0
    %v2904 = vadd.f32 0.0, %v2903
    %v2905 = vpop.f32.mrb[0].mxu0
    %2906 = vmatprep.mubr.f32.mxu0 0.0
    %2907 = vmatmul.mubr.f32.gmra.mrb[0].mxu0 %v2743
    %v2908 = vpop.f32.mrb[0].mxu0
    %v2909 = vadd.f32 0.0, %v2908
    %v2910 = vpop.f32.mrb[0].mxu0
    %2911 = vmatprep.mubr.f32.mxu0 0.0
    %2912 = vmatmul.mubr.f32.gmra.mrb[0].mxu0 %v2746
    %v2913 = vpop.f32.mrb[0].mxu0
    %v2914 = vadd.f32 0.0, %v2913
    %v2915 = vpop.f32.mrb[0].mxu0
    %2916 = vmatprep.mubr.f32.mxu0 0.0
    %2917 = vmatmul.mubr.f32.gmra.mrb[0].mxu0 %v2749
    %v2918 = vpop.f32.mrb[0].mxu0
    %v2919 = vadd.f32 0.0, %v2918
    %v2920 = vpop.f32.mrb[0].mxu0
    %2921 = vmatprep.mubr.f32.mxu0 0.0
    %2922 = vmatmul.mubr.f32.gmra.mrb[0].mxu0 %v2752
    %v2923 = vpop.f32.mrb[0].mxu0
    %v2924 = vadd.f32 0.0, %v2923
    %v2925 = vpop.f32.mrb[0].mxu0
    %2926 = vmatprep.mubr.f32.mxu0 0.0
    %2927 = vmatmul.mubr.f32.gmra.mrb[0].mxu0 %v2755
    %v2928 = vpop.f32.mrb[0].mxu0
    %v2929 = vadd.f32 0.0, %v2928
    %v2930 = vpop.f32.mrb[0].mxu0
    %2931 = vmatprep.mubr.f32.mxu0 0.0
    %2932 = vmatmul.mubr.f32.gmra.mrb[0].mxu0 %v2758
    %v2933 = vpop.f32.mrb[0].mxu0
    %v2934 = vadd.f32 0.0, %v2933
    %v2935 = vpop.f32.mrb[0].mxu0
    %2936 = vmatprep.mubr.f32.mxu0 0.0
    %2937 = vmatmul.mubr.f32.gmra.mrb[0].mxu0 %v2761
    %v2938 = vpop.f32.mrb[0].mxu0
    %v2939 = vadd.f32 0.0, %v2938
    %v2940 = vpop.f32.mrb[0].mxu0
    %2941 = vmatprep.mubr.f32.mxu0 0.0
    %2942 = vmatmul.mubr.f32.gmra.mrb[0].mxu0 %v2764
    %v2943 = vpop.f32.mrb[0].mxu0
    %v2944 = vadd.f32 0.0, %v2943
    %v2945 = vpop.f32.mrb[0].mxu0
    %2946 = vmatprep.mubr.f32.mxu0 0.0
    %2947 = vmatmul.mubr.f32.gmra.mrb[0].mxu0 %v2767
    %v2948 = vpop.f32.mrb[0].mxu0
    %v2949 = vadd.f32 0.0, %v2948
    %v2950 = vpop.f32.mrb[0].mxu0
    %2951 = vmatprep.mubr.f32.mxu0 0.0
    %2952 = vmatmul.mubr.f32.gmra.mrb[0].mxu0 %v2770
    %v2953 = vpop.f32.mrb[0].mxu0
    %v2954 = vadd.f32 0.0, %v2953
    %v2955 = vpop.f32.mrb[0].mxu0
    %2956 = vmatprep.mubr.f32.mxu0 0.0
    %2957 = vmatmul.mubr.f32.gmra.mrb[0].mxu0 %v2773
    %v2958 = vpop.f32.mrb[0].mxu0
    %v2959 = vadd.f32 0.0, %v2958
    %v2960 = vpop.f32.mrb[0].mxu0
    %2961 = vmatprep.mubr.f32.mxu0 0.0
    %2962 = vmatmul.mubr.f32.gmra.mrb[0].mxu0 %v2776
    %v2963 = vpop.f32.mrb[0].mxu0
    %v2964 = vadd.f32 0.0, %v2963
    %v2965 = vpop.f32.mrb[0].mxu0
    %2966 = vmatprep.mubr.f32.mxu0 0.0
    %2967 = vmatmul.mubr.f32.gmra.mrb[0].mxu0 %v2779
    %v2968 = vpop.f32.mrb[0].mxu0
    %v2969 = vadd.f32 0.0, %v2968
    %v2970 = vpop.f32.mrb[0].mxu0
    %2971 = vmatprep.mubr.f32.mxu0 0.0
    %2972 = vmatmul.mubr.f32.gmra.mrb[0].mxu0 %v2782
    %v2973 = vpop.f32.mrb[0].mxu0
    %v2974 = vadd.f32 0.0, %v2973
    %v2975 = vpop.f32.mrb[0].mxu0
    %2976 = vmatprep.mubr.f32.mxu0 0.0
    %2977 = vmatmul.mubr.f32.gmra.mrb[0].mxu0 %v2785
    %v2978 = vpop.f32.mrb[0].mxu0
    %v2979 = vadd.f32 0.0, %v2978
    %v2980 = vpop.f32.mrb[0].mxu0
    %2981 = vmatprep.mubr.f32.mxu0 0.0
    %2982 = vmatmul.mubr.f32.gmra.mrb[0].mxu0 %v2788
    %v2983 = vpop.f32.mrb[0].mxu0
    %v2984 = vadd.f32 0.0, %v2983
    %v2985 = vpop.f32.mrb[0].mxu0
    %2986 = vmatprep.mubr.f32.mxu0 0.0
    %2987 = vmatmul.mubr.f32.gmra.mrb[0].mxu0 %v2791
    %v2988 = vpop.f32.mrb[0].mxu0
    %v2989 = vadd.f32 0.0, %v2988
    %v2990 = vpop.f32.mrb[0].mxu0
    %2991 = vmatprep.mubr.f32.mxu0 0.0
    %2992 = vmatmul.mubr.f32.gmra.mrb[0].mxu0 %v2794
    %v2993 = vpop.f32.mrb[0].mxu0
    %v2994 = vadd.f32 0.0, %v2993
    %v2995 = vpop.f32.mrb[0].mxu0
    %2996 = vmatprep.mubr.f32.mxu0 0.0
    %2997 = vmatmul.mubr.f32.gmra.mrb[0].mxu0 %v2797
    %v2998 = vpop.f32.mrb[0].mxu0
    %v2999 = vadd.f32 0.0, %v2998
    %v3000 = vpop.f32.mrb[0].mxu0
    %3001 = vmatprep.mubr.f32.mxu0 0.0
    %3002 = vmatmul.mubr.f32.gmra.mrb[0].mxu0 %v2800
    %v3003 = vpop.f32.mrb[0].mxu0
    %v3004 = vadd.f32 0.0, %v3003
    %v3005 = vpop.f32.mrb[0].mxu0
    %3006 = vmatprep.mubr.f32.mxu0 0.0
    %3007 = vmatmul.mubr.f32.gmra.mrb[0].mxu0 %v2803
    %v3008 = vpop.f32.mrb[0].mxu0
    %v3009 = vadd.f32 0.0, %v3008
    %v3010 = vpop.f32.mrb[0].mxu0
    %3011 = vmatprep.mubr.f32.mxu0 0.0
    %3012 = vmatmul.mubr.f32.gmra.mrb[0].mxu0 %v2806
    %v3013 = vpop.f32.mrb[0].mxu0
    %v3014 = vadd.f32 0.0, %v3013
    %v3015 = vpop.f32.mrb[0].mxu0
    %3016 = vmatprep.mubr.f32.mxu0 0.0
    %3017 = vmatmul.mubr.f32.gmra.mrb[0].mxu0 %v2809
    %v3018 = vpop.f32.mrb[0].mxu0
    %v3019 = vadd.f32 0.0, %v3018
    %v3020 = vpop.f32.mrb[0].mxu0
    %3021 = vmatprep.mubr.f32.mxu0 0.0
    %3022 = vmatmul.mubr.f32.gmra.mrb[0].mxu0 %v2812
    %v3023 = vpop.f32.mrb[0].mxu0
    %v3024 = vadd.f32 0.0, %v3023
    %v3025 = vpop.f32.mrb[0].mxu0
    %3026 = vmatprep.mubr.f32.mxu0 0.0
    %3027 = vmatmul.mubr.f32.gmra.mrb[0].mxu0 %v2815
    %v3028 = vpop.f32.mrb[0].mxu0
    %v3029 = vadd.f32 0.0, %v3028
    %v3030 = vpop.f32.mrb[0].mxu0
    %3031 = vmatprep.mubr.f32.mxu0 0.0
    %3032 = vmatmul.mubr.f32.gmra.mrb[0].mxu0 %v2818
    %v3033 = vpop.f32.mrb[0].mxu0
    %v3034 = vadd.f32 0.0, %v3033
    %v3035 = vpop.f32.mrb[0].mxu0
    %3036 = vmatprep.mubr.f32.mxu0 0.0
    %3037 = vmatmul.mubr.f32.gmra.mrb[0].mxu0 %v2821
    %v3038 = vpop.f32.mrb[0].mxu0
    %v3039 = vadd.f32 0.0, %v3038
    %v3040 = vpop.f32.mrb[0].mxu0
    %3041 = vmatprep.mubr.f32.mxu0 0.0
    %3042 = vmatmul.mubr.f32.gmra.mrb[0].mxu0 %v2824
    %v3043 = vpop.f32.mrb[0].mxu0
    %v3044 = vadd.f32 0.0, %v3043
    %v3045 = vpop.f32.mrb[0].mxu0
    %3046 = vmatprep.mubr.f32.mxu0 0.0
    %3047 = vmatmul.mubr.f32.gmra.mrb[0].mxu0 %v2827
    %v3048 = vpop.f32.mrb[0].mxu0
    %v3049 = vadd.f32 0.0, %v3048
    %v3050 = vpop.f32.mrb[0].mxu0
    %3051 = vmatprep.mubr.f32.mxu0 0.0
    %3052 = vmatmul.mubr.f32.gmra.mrb[0].mxu0 %v2830
    %v3053 = vpop.f32.mrb[0].mxu0
    %v3054 = vadd.f32 0.0, %v3053
    %v3055 = vpop.f32.mrb[0].mxu0
    %3056 = vdwg.mxu0
    %v3058 = vsel %vm2735, %v2607, 0
    %v3061 = vsel %vm2735, %v2608, 0
    %v3064 = vsel %vm2735, %v2609, 0
    %v3067 = vsel %vm2735, %v2610, 0
    %v3070 = vsel %vm2735, %v2611, 0
    %v3073 = vsel %vm2735, %v2612, 0
    %v3076 = vsel %vm2735, %v2613, 0
    %v3079 = vsel %vm2735, %v2614, 0
    %v3082 = vsel %vm2735, %v2615, 0
    %v3085 = vsel %vm2735, %v2616, 0
    %v3088 = vsel %vm2735, %v2617, 0
    %v3091 = vsel %vm2735, %v2618, 0
    %v3094 = vsel %vm2735, %v2619, 0
    %v3097 = vsel %vm2735, %v2620, 0
    %v3100 = vsel %vm2735, %v2621, 0
    %v3103 = vsel %vm2735, %v2622, 0
    %v3106 = vsel %vm2735, %v2623, 0
    %v3109 = vsel %vm2735, %v2624, 0
    %v3112 = vsel %vm2735, %v2625, 0
    %v3115 = vsel %vm2735, %v2626, 0
    %v3118 = vsel %vm2735, %v2627, 0
    %v3121 = vsel %vm2735, %v2628, 0
    %v3124 = vsel %vm2735, %v2629, 0
    %v3127 = vsel %vm2735, %v2630, 0
    %v3130 = vsel %vm2735, %v2631, 0
    %v3133 = vsel %vm2735, %v2632, 0
    %v3136 = vsel %vm2735, %v2633, 0
    %v3139 = vsel %vm2735, %v2634, 0
    %v3142 = vsel %vm2735, %v2635, 0
    %v3145 = vsel %vm2735, %v2636, 0
    %v3148 = vsel %vm2735, %v2637, 0
    %v3151 = vsel %vm2735, %v2638, 0
    %3153 = vmatprep.subr.mxu0 0.0
    %3154 = vmatpush1.msra.mxu0 %v2531
    %3155 = vmatprep.subr.mxu0 0.0
    %3156 = vmatpush1.msra.mxu0 %v2532
    %3157 = vmatprep.subr.mxu0 0.0
    %3158 = vmatpush1.msra.mxu0 %v2533
    %3159 = vmatprep.subr.mxu0 0.0
    %3160 = vmatpush1.msra.mxu0 %v2534
    %3161 = vmatprep.subr.mxu0 0.0
    %3162 = vmatpush1.msra.mxu0 0.0
    %3163 = vmatprep.subr.mxu0 0.0
    %3164 = vmatpush1.msra.mxu0 0.0
    %3165 = vmatprep.subr.mxu0 0.0
    %3166 = vmatpush1.msra.mxu0 0.0
    %3167 = vmatprep.subr.mxu0 0.0
    %3168 = vmatpush1.msra.mxu0 0.0
    %3169 = vmatprep.subr.mxu0 0.0
    %3170 = vmatpush1.msra.mxu0 0.0
    %3171 = vmatprep.subr.mxu0 0.0
    %3172 = vmatpush1.msra.mxu0 0.0
    %3173 = vmatprep.subr.mxu0 0.0
    %3174 = vmatpush1.msra.mxu0 0.0
    %3175 = vmatprep.subr.mxu0 0.0
    %3176 = vmatpush1.msra.mxu0 0.0
    %3177 = vmatprep.subr.mxu0 0.0
    %3178 = vmatpush1.msra.mxu0 0.0
    %3179 = vmatprep.subr.mxu0 0.0
    %3180 = vmatpush1.msra.mxu0 0.0
    %3181 = vmatprep.subr.mxu0 0.0
    %3182 = vmatpush1.msra.mxu0 0.0
    %3183 = vmatprep.subr.mxu0 0.0
    %3184 = vmatpush1.msra.mxu0 0.0
    %3185 = vmatprep.subr.mxu0 0.0
    %3186 = vmatpush1.msra.mxu0 0.0
    %3187 = vmatprep.subr.mxu0 0.0
    %3188 = vmatpush1.msra.mxu0 0.0
    %3189 = vmatprep.subr.mxu0 0.0
    %3190 = vmatpush1.msra.mxu0 0.0
    %3191 = vmatprep.subr.mxu0 0.0
    %3192 = vmatpush1.msra.mxu0 0.0
    %3193 = vmatprep.subr.mxu0 0.0
    %3194 = vmatpush1.msra.mxu0 0.0
    %3195 = vmatprep.subr.mxu0 0.0
    %3196 = vmatpush1.msra.mxu0 0.0
    %3197 = vmatprep.subr.mxu0 0.0
    %3198 = vmatpush1.msra.mxu0 0.0
    %3199 = vmatprep.subr.mxu0 0.0
    %3200 = vmatpush1.msra.mxu0 0.0
    %3201 = vmatprep.subr.mxu0 0.0
    %3202 = vmatpush1.msra.mxu0 0.0
    %3203 = vmatprep.subr.mxu0 0.0
    %3204 = vmatpush1.msra.mxu0 0.0
    %3205 = vmatprep.subr.mxu0 0.0
    %3206 = vmatpush1.msra.mxu0 0.0
    %3207 = vmatprep.subr.mxu0 0.0
    %3208 = vmatpush1.msra.mxu0 0.0
    %3209 = vmatprep.subr.mxu0 0.0
    %3210 = vmatpush1.msra.mxu0 0.0
    %3211 = vmatprep.subr.mxu0 0.0
    %3212 = vmatpush1.msra.mxu0 0.0
    %3213 = vmatprep.subr.mxu0 0.0
    %3214 = vmatpush1.msra.mxu0 0.0
    %3215 = vmatprep.subr.mxu0 0.0
    %3216 = vmatpush1.msra.mxu0 0.0
    %3217 = vmatprep.mubr.f32.mxu0 0.0
    %3218 = vmatmul.mubr.f32.gmra.mrb[0].mxu0 %v3058
    %v3219 = vpop.f32.mrb[0].mxu0
    %v3220 = vadd.f32 %v2899, %v3219
    %v3221 = vpop.f32.mrb[0].mxu0
    %3222 = vmatprep.mubr.f32.mxu0 0.0
    %3223 = vmatmul.mubr.f32.gmra.mrb[0].mxu0 %v3061
    %v3224 = vpop.f32.mrb[0].mxu0
    %v3225 = vadd.f32 %v2904, %v3224
    %v3226 = vpop.f32.mrb[0].mxu0
    %3227 = vmatprep.mubr.f32.mxu0 0.0
    %3228 = vmatmul.mubr.f32.gmra.mrb[0].mxu0 %v3064
    %v3229 = vpop.f32.mrb[0].mxu0
    %v3230 = vadd.f32 %v2909, %v3229
    %v3231 = vpop.f32.mrb[0].mxu0
    %3232 = vmatprep.mubr.f32.mxu0 0.0
    %3233 = vmatmul.mubr.f32.gmra.mrb[0].mxu0 %v3067
    %v3234 = vpop.f32.mrb[0].mxu0
    %v3235 = vadd.f32 %v2914, %v3234
    %v3236 = vpop.f32.mrb[0].mxu0
    %3237 = vmatprep.mubr.f32.mxu0 0.0
    %3238 = vmatmul.mubr.f32.gmra.mrb[0].mxu0 %v3070
    %v3239 = vpop.f32.mrb[0].mxu0
    %v3240 = vadd.f32 %v2919, %v3239
    %v3241 = vpop.f32.mrb[0].mxu0
    %3242 = vmatprep.mubr.f32.mxu0 0.0
    %3243 = vmatmul.mubr.f32.gmra.mrb[0].mxu0 %v3073
    %v3244 = vpop.f32.mrb[0].mxu0
    %v3245 = vadd.f32 %v2924, %v3244
    %v3246 = vpop.f32.mrb[0].mxu0
    %3247 = vmatprep.mubr.f32.mxu0 0.0
    %3248 = vmatmul.mubr.f32.gmra.mrb[0].mxu0 %v3076
    %v3249 = vpop.f32.mrb[0].mxu0
    %v3250 = vadd.f32 %v2929, %v3249
    %v3251 = vpop.f32.mrb[0].mxu0
    %3252 = vmatprep.mubr.f32.mxu0 0.0
    %3253 = vmatmul.mubr.f32.gmra.mrb[0].mxu0 %v3079
    %v3254 = vpop.f32.mrb[0].mxu0
    %v3255 = vadd.f32 %v2934, %v3254
    %v3256 = vpop.f32.mrb[0].mxu0
    %3257 = vmatprep.mubr.f32.mxu0 0.0
    %3258 = vmatmul.mubr.f32.gmra.mrb[0].mxu0 %v3082
    %v3259 = vpop.f32.mrb[0].mxu0
    %v3260 = vadd.f32 %v2939, %v3259
    %v3261 = vpop.f32.mrb[0].mxu0
    %3262 = vmatprep.mubr.f32.mxu0 0.0
    %3263 = vmatmul.mubr.f32.gmra.mrb[0].mxu0 %v3085
    %v3264 = vpop.f32.mrb[0].mxu0
    %v3265 = vadd.f32 %v2944, %v3264
    %v3266 = vpop.f32.mrb[0].mxu0
    %3267 = vmatprep.mubr.f32.mxu0 0.0
    %3268 = vmatmul.mubr.f32.gmra.mrb[0].mxu0 %v3088
    %v3269 = vpop.f32.mrb[0].mxu0
    %v3270 = vadd.f32 %v2949, %v3269
    %v3271 = vpop.f32.mrb[0].mxu0
    %3272 = vmatprep.mubr.f32.mxu0 0.0
    %3273 = vmatmul.mubr.f32.gmra.mrb[0].mxu0 %v3091
    %v3274 = vpop.f32.mrb[0].mxu0
    %v3275 = vadd.f32 %v2954, %v3274
    %v3276 = vpop.f32.mrb[0].mxu0
    %3277 = vmatprep.mubr.f32.mxu0 0.0
    %3278 = vmatmul.mubr.f32.gmra.mrb[0].mxu0 %v3094
    %v3279 = vpop.f32.mrb[0].mxu0
    %v3280 = vadd.f32 %v2959, %v3279
    %v3281 = vpop.f32.mrb[0].mxu0
    %3282 = vmatprep.mubr.f32.mxu0 0.0
    %3283 = vmatmul.mubr.f32.gmra.mrb[0].mxu0 %v3097
    %v3284 = vpop.f32.mrb[0].mxu0
    %v3285 = vadd.f32 %v2964, %v3284
    %v3286 = vpop.f32.mrb[0].mxu0
    %3287 = vmatprep.mubr.f32.mxu0 0.0
    %3288 = vmatmul.mubr.f32.gmra.mrb[0].mxu0 %v3100
    %v3289 = vpop.f32.mrb[0].mxu0
    %v3290 = vadd.f32 %v2969, %v3289
    %v3291 = vpop.f32.mrb[0].mxu0
    %3292 = vmatprep.mubr.f32.mxu0 0.0
    %3293 = vmatmul.mubr.f32.gmra.mrb[0].mxu0 %v3103
    %v3294 = vpop.f32.mrb[0].mxu0
    %v3295 = vadd.f32 %v2974, %v3294
    %v3296 = vpop.f32.mrb[0].mxu0
    %3297 = vmatprep.mubr.f32.mxu0 0.0
    %3298 = vmatmul.mubr.f32.gmra.mrb[0].mxu0 %v3106
    %v3299 = vpop.f32.mrb[0].mxu0
    %v3300 = vadd.f32 %v2979, %v3299
    %v3301 = vpop.f32.mrb[0].mxu0
    %3302 = vmatprep.mubr.f32.mxu0 0.0
    %3303 = vmatmul.mubr.f32.gmra.mrb[0].mxu0 %v3109
    %v3304 = vpop.f32.mrb[0].mxu0
    %v3305 = vadd.f32 %v2984, %v3304
    %v3306 = vpop.f32.mrb[0].mxu0
    %3307 = vmatprep.mubr.f32.mxu0 0.0
    %3308 = vmatmul.mubr.f32.gmra.mrb[0].mxu0 %v3112
    %v3309 = vpop.f32.mrb[0].mxu0
    %v3310 = vadd.f32 %v2989, %v3309
    %v3311 = vpop.f32.mrb[0].mxu0
    %3312 = vmatprep.mubr.f32.mxu0 0.0
    %3313 = vmatmul.mubr.f32.gmra.mrb[0].mxu0 %v3115
    %v3314 = vpop.f32.mrb[0].mxu0
    %v3315 = vadd.f32 %v2994, %v3314
    %v3316 = vpop.f32.mrb[0].mxu0
    %3317 = vmatprep.mubr.f32.mxu0 0.0
    %3318 = vmatmul.mubr.f32.gmra.mrb[0].mxu0 %v3118
    %v3319 = vpop.f32.mrb[0].mxu0
    %v3320 = vadd.f32 %v2999, %v3319
    %v3321 = vpop.f32.mrb[0].mxu0
    %3322 = vmatprep.mubr.f32.mxu0 0.0
    %3323 = vmatmul.mubr.f32.gmra.mrb[0].mxu0 %v3121
    %v3324 = vpop.f32.mrb[0].mxu0
    %v3325 = vadd.f32 %v3004, %v3324
    %v3326 = vpop.f32.mrb[0].mxu0
    %3327 = vmatprep.mubr.f32.mxu0 0.0
    %3328 = vmatmul.mubr.f32.gmra.mrb[0].mxu0 %v3124
    %v3329 = vpop.f32.mrb[0].mxu0
    %v3330 = vadd.f32 %v3009, %v3329
    %v3331 = vpop.f32.mrb[0].mxu0
    %3332 = vmatprep.mubr.f32.mxu0 0.0
    %3333 = vmatmul.mubr.f32.gmra.mrb[0].mxu0 %v3127
    %v3334 = vpop.f32.mrb[0].mxu0
    %v3335 = vadd.f32 %v3014, %v3334
    %v3336 = vpop.f32.mrb[0].mxu0
    %3337 = vmatprep.mubr.f32.mxu0 0.0
    %3338 = vmatmul.mubr.f32.gmra.mrb[0].mxu0 %v3130
    %v3339 = vpop.f32.mrb[0].mxu0
    %v3340 = vadd.f32 %v3019, %v3339
    %v3341 = vpop.f32.mrb[0].mxu0
    %3342 = vmatprep.mubr.f32.mxu0 0.0
    %3343 = vmatmul.mubr.f32.gmra.mrb[0].mxu0 %v3133
    %v3344 = vpop.f32.mrb[0].mxu0
    %v3345 = vadd.f32 %v3024, %v3344
    %v3346 = vpop.f32.mrb[0].mxu0
    %3347 = vmatprep.mubr.f32.mxu0 0.0
    %3348 = vmatmul.mubr.f32.gmra.mrb[0].mxu0 %v3136
    %v3349 = vpop.f32.mrb[0].mxu0
    %v3350 = vadd.f32 %v3029, %v3349
    %v3351 = vpop.f32.mrb[0].mxu0
    %3352 = vmatprep.mubr.f32.mxu0 0.0
    %3353 = vmatmul.mubr.f32.gmra.mrb[0].mxu0 %v3139
    %v3354 = vpop.f32.mrb[0].mxu0
    %v3355 = vadd.f32 %v3034, %v3354
    %v3356 = vpop.f32.mrb[0].mxu0
    %3357 = vmatprep.mubr.f32.mxu0 0.0
    %3358 = vmatmul.mubr.f32.gmra.mrb[0].mxu0 %v3142
    %v3359 = vpop.f32.mrb[0].mxu0
    %v3360 = vadd.f32 %v3039, %v3359
    %v3361 = vpop.f32.mrb[0].mxu0
    %3362 = vmatprep.mubr.f32.mxu0 0.0
    %3363 = vmatmul.mubr.f32.gmra.mrb[0].mxu0 %v3145
    %v3364 = vpop.f32.mrb[0].mxu0
    %v3365 = vadd.f32 %v3044, %v3364
    %v3366 = vpop.f32.mrb[0].mxu0
    %3367 = vmatprep.mubr.f32.mxu0 0.0
    %3368 = vmatmul.mubr.f32.gmra.mrb[0].mxu0 %v3148
    %v3369 = vpop.f32.mrb[0].mxu0
    %v3370 = vadd.f32 %v3049, %v3369
    %v3371 = vpop.f32.mrb[0].mxu0
    %3372 = vmatprep.mubr.f32.mxu0 0.0
    %3373 = vmatmul.mubr.f32.gmra.mrb[0].mxu0 %v3151
    %v3374 = vpop.f32.mrb[0].mxu0
    %v3375 = vadd.f32 %v3054, %v3374
    %v3376 = vpop.f32.mrb[0].mxu0
    %3377 = vdwg.mxu0
    %v3379 = vsel %vm2735, %v2703, 0
    %v3382 = vsel %vm2735, %v2704, 0
    %v3385 = vsel %vm2735, %v2705, 0
    %v3388 = vsel %vm2735, %v2706, 0
    %v3391 = vsel %vm2735, %v2707, 0
    %v3394 = vsel %vm2735, %v2708, 0
    %v3397 = vsel %vm2735, %v2709, 0
    %v3400 = vsel %vm2735, %v2710, 0
    %v3403 = vsel %vm2735, %v2711, 0
    %v3406 = vsel %vm2735, %v2712, 0
    %v3409 = vsel %vm2735, %v2713, 0
    %v3412 = vsel %vm2735, %v2714, 0
    %v3415 = vsel %vm2735, %v2715, 0
    %v3418 = vsel %vm2735, %v2716, 0
    %v3421 = vsel %vm2735, %v2717, 0
    %v3424 = vsel %vm2735, %v2718, 0
    %v3427 = vsel %vm2735, %v2719, 0
    %v3430 = vsel %vm2735, %v2720, 0
    %v3433 = vsel %vm2735, %v2721, 0
    %v3436 = vsel %vm2735, %v2722, 0
    %v3439 = vsel %vm2735, %v2723, 0
    %v3442 = vsel %vm2735, %v2724, 0
    %v3445 = vsel %vm2735, %v2725, 0
    %v3448 = vsel %vm2735, %v2726, 0
    %v3451 = vsel %vm2735, %v2727, 0
    %v3454 = vsel %vm2735, %v2728, 0
    %v3457 = vsel %vm2735, %v2729, 0
    %v3460 = vsel %vm2735, %v2730, 0
    %v3463 = vsel %vm2735, %v2731, 0
    %v3466 = vsel %vm2735, %v2732, 0
    %v3469 = vsel %vm2735, %v2733, 0
    %v3472 = vsel %vm2735, %v2734, 0
    %3474 = vmatprep.subr.mxu0 0.0
    %3475 = vmatpush1.msra.mxu0 %v2539
    %3476 = vmatprep.subr.mxu0 0.0
    %3477 = vmatpush1.msra.mxu0 %v2540
    %3478 = vmatprep.subr.mxu0 0.0
    %3479 = vmatpush1.msra.mxu0 %v2541
    %3480 = vmatprep.subr.mxu0 0.0
    %3481 = vmatpush1.msra.mxu0 %v2542
    %3482 = vmatprep.subr.mxu0 0.0
    %3483 = vmatpush1.msra.mxu0 0.0
    %3484 = vmatprep.subr.mxu0 0.0
    %3485 = vmatpush1.msra.mxu0 0.0
    %3486 = vmatprep.subr.mxu0 0.0
    %3487 = vmatpush1.msra.mxu0 0.0
    %3488 = vmatprep.subr.mxu0 0.0
    %3489 = vmatpush1.msra.mxu0 0.0
    %3490 = vmatprep.subr.mxu0 0.0
    %3491 = vmatpush1.msra.mxu0 0.0
    %3492 = vmatprep.subr.mxu0 0.0
    %3493 = vmatpush1.msra.mxu0 0.0
    %3494 = vmatprep.subr.mxu0 0.0
    %3495 = vmatpush1.msra.mxu0 0.0
    %3496 = vmatprep.subr.mxu0 0.0
    %3497 = vmatpush1.msra.mxu0 0.0
    %3498 = vmatprep.subr.mxu0 0.0
    %3499 = vmatpush1.msra.mxu0 0.0
    %3500 = vmatprep.subr.mxu0 0.0
    %3501 = vmatpush1.msra.mxu0 0.0
    %3502 = vmatprep.subr.mxu0 0.0
    %3503 = vmatpush1.msra.mxu0 0.0
    %3504 = vmatprep.subr.mxu0 0.0
    %3505 = vmatpush1.msra.mxu0 0.0
    %3506 = vmatprep.subr.mxu0 0.0
    %3507 = vmatpush1.msra.mxu0 0.0
    %3508 = vmatprep.subr.mxu0 0.0
    %3509 = vmatpush1.msra.mxu0 0.0
    %3510 = vmatprep.subr.mxu0 0.0
    %3511 = vmatpush1.msra.mxu0 0.0
    %3512 = vmatprep.subr.mxu0 0.0
    %3513 = vmatpush1.msra.mxu0 0.0
    %3514 = vmatprep.subr.mxu0 0.0
    %3515 = vmatpush1.msra.mxu0 0.0
    %3516 = vmatprep.subr.mxu0 0.0
    %3517 = vmatpush1.msra.mxu0 0.0
    %3518 = vmatprep.subr.mxu0 0.0
    %3519 = vmatpush1.msra.mxu0 0.0
    %3520 = vmatprep.subr.mxu0 0.0
    %3521 = vmatpush1.msra.mxu0 0.0
    %3522 = vmatprep.subr.mxu0 0.0
    %3523 = vmatpush1.msra.mxu0 0.0
    %3524 = vmatprep.subr.mxu0 0.0
    %3525 = vmatpush1.msra.mxu0 0.0
    %3526 = vmatprep.subr.mxu0 0.0
    %3527 = vmatpush1.msra.mxu0 0.0
    %3528 = vmatprep.subr.mxu0 0.0
    %3529 = vmatpush1.msra.mxu0 0.0
    %3530 = vmatprep.subr.mxu0 0.0
    %3531 = vmatpush1.msra.mxu0 0.0
    %3532 = vmatprep.subr.mxu0 0.0
    %3533 = vmatpush1.msra.mxu0 0.0
    %3534 = vmatprep.subr.mxu0 0.0
    %3535 = vmatpush1.msra.mxu0 0.0
    %3536 = vmatprep.subr.mxu0 0.0
    %3537 = vmatpush1.msra.mxu0 0.0
    %3538 = vmatprep.mubr.f32.mxu0 0.0
    %3539 = vmatmul.mubr.f32.gmra.mrb[0].mxu0 %v3379
    %v3540 = vpop.f32.mrb[0].mxu0
    %v3541 = vadd.f32 0.0, %v3540
    %v3542 = vpop.f32.mrb[0].mxu0
    %3543 = vmatprep.mubr.f32.mxu0 0.0
    %3544 = vmatmul.mubr.f32.gmra.mrb[0].mxu0 %v3382
    %v3545 = vpop.f32.mrb[0].mxu0
    %v3546 = vadd.f32 0.0, %v3545
    %v3547 = vpop.f32.mrb[0].mxu0
    %3548 = vmatprep.mubr.f32.mxu0 0.0
    %3549 = vmatmul.mubr.f32.gmra.mrb[0].mxu0 %v3385
    %v3550 = vpop.f32.mrb[0].mxu0
    %v3551 = vadd.f32 0.0, %v3550
    %v3552 = vpop.f32.mrb[0].mxu0
    %3553 = vmatprep.mubr.f32.mxu0 0.0
    %3554 = vmatmul.mubr.f32.gmra.mrb[0].mxu0 %v3388
    %v3555 = vpop.f32.mrb[0].mxu0
    %v3556 = vadd.f32 0.0, %v3555
    %v3557 = vpop.f32.mrb[0].mxu0
    %3558 = vmatprep.mubr.f32.mxu0 0.0
    %3559 = vmatmul.mubr.f32.gmra.mrb[0].mxu0 %v3391
    %v3560 = vpop.f32.mrb[0].mxu0
    %v3561 = vadd.f32 0.0, %v3560
    %v3562 = vpop.f32.mrb[0].mxu0
    %3563 = vmatprep.mubr.f32.mxu0 0.0
    %3564 = vmatmul.mubr.f32.gmra.mrb[0].mxu0 %v3394
    %v3565 = vpop.f32.mrb[0].mxu0
    %v3566 = vadd.f32 0.0, %v3565
    %v3567 = vpop.f32.mrb[0].mxu0
    %3568 = vmatprep.mubr.f32.mxu0 0.0
    %3569 = vmatmul.mubr.f32.gmra.mrb[0].mxu0 %v3397
    %v3570 = vpop.f32.mrb[0].mxu0
    %v3571 = vadd.f32 0.0, %v3570
    %v3572 = vpop.f32.mrb[0].mxu0
    %3573 = vmatprep.mubr.f32.mxu0 0.0
    %3574 = vmatmul.mubr.f32.gmra.mrb[0].mxu0 %v3400
    %v3575 = vpop.f32.mrb[0].mxu0
    %v3576 = vadd.f32 0.0, %v3575
    %v3577 = vpop.f32.mrb[0].mxu0
    %3578 = vmatprep.mubr.f32.mxu0 0.0
    %3579 = vmatmul.mubr.f32.gmra.mrb[0].mxu0 %v3403
    %v3580 = vpop.f32.mrb[0].mxu0
    %v3581 = vadd.f32 0.0, %v3580
    %v3582 = vpop.f32.mrb[0].mxu0
    %3583 = vmatprep.mubr.f32.mxu0 0.0
    %3584 = vmatmul.mubr.f32.gmra.mrb[0].mxu0 %v3406
    %v3585 = vpop.f32.mrb[0].mxu0
    %v3586 = vadd.f32 0.0, %v3585
    %v3587 = vpop.f32.mrb[0].mxu0
    %3588 = vmatprep.mubr.f32.mxu0 0.0
    %3589 = vmatmul.mubr.f32.gmra.mrb[0].mxu0 %v3409
    %v3590 = vpop.f32.mrb[0].mxu0
    %v3591 = vadd.f32 0.0, %v3590
    %v3592 = vpop.f32.mrb[0].mxu0
    %3593 = vmatprep.mubr.f32.mxu0 0.0
    %3594 = vmatmul.mubr.f32.gmra.mrb[0].mxu0 %v3412
    %v3595 = vpop.f32.mrb[0].mxu0
    %v3596 = vadd.f32 0.0, %v3595
    %v3597 = vpop.f32.mrb[0].mxu0
    %3598 = vmatprep.mubr.f32.mxu0 0.0
    %3599 = vmatmul.mubr.f32.gmra.mrb[0].mxu0 %v3415
    %v3600 = vpop.f32.mrb[0].mxu0
    %v3601 = vadd.f32 0.0, %v3600
    %v3602 = vpop.f32.mrb[0].mxu0
    %3603 = vmatprep.mubr.f32.mxu0 0.0
    %3604 = vmatmul.mubr.f32.gmra.mrb[0].mxu0 %v3418
    %v3605 = vpop.f32.mrb[0].mxu0
    %v3606 = vadd.f32 0.0, %v3605
    %v3607 = vpop.f32.mrb[0].mxu0
    %3608 = vmatprep.mubr.f32.mxu0 0.0
    %3609 = vmatmul.mubr.f32.gmra.mrb[0].mxu0 %v3421
    %v3610 = vpop.f32.mrb[0].mxu0
    %v3611 = vadd.f32 0.0, %v3610
    %v3612 = vpop.f32.mrb[0].mxu0
    %3613 = vmatprep.mubr.f32.mxu0 0.0
    %3614 = vmatmul.mubr.f32.gmra.mrb[0].mxu0 %v3424
    %v3615 = vpop.f32.mrb[0].mxu0
    %v3616 = vadd.f32 0.0, %v3615
    %v3617 = vpop.f32.mrb[0].mxu0
    %3618 = vmatprep.mubr.f32.mxu0 0.0
    %3619 = vmatmul.mubr.f32.gmra.mrb[0].mxu0 %v3427
    %v3620 = vpop.f32.mrb[0].mxu0
    %v3621 = vadd.f32 0.0, %v3620
    %v3622 = vpop.f32.mrb[0].mxu0
    %3623 = vmatprep.mubr.f32.mxu0 0.0
    %3624 = vmatmul.mubr.f32.gmra.mrb[0].mxu0 %v3430
    %v3625 = vpop.f32.mrb[0].mxu0
    %v3626 = vadd.f32 0.0, %v3625
    %v3627 = vpop.f32.mrb[0].mxu0
    %3628 = vmatprep.mubr.f32.mxu0 0.0
    %3629 = vmatmul.mubr.f32.gmra.mrb[0].mxu0 %v3433
    %v3630 = vpop.f32.mrb[0].mxu0
    %v3631 = vadd.f32 0.0, %v3630
    %v3632 = vpop.f32.mrb[0].mxu0
    %3633 = vmatprep.mubr.f32.mxu0 0.0
    %3634 = vmatmul.mubr.f32.gmra.mrb[0].mxu0 %v3436
    %v3635 = vpop.f32.mrb[0].mxu0
    %v3636 = vadd.f32 0.0, %v3635
    %v3637 = vpop.f32.mrb[0].mxu0
    %3638 = vmatprep.mubr.f32.mxu0 0.0
    %3639 = vmatmul.mubr.f32.gmra.mrb[0].mxu0 %v3439
    %v3640 = vpop.f32.mrb[0].mxu0
    %v3641 = vadd.f32 0.0, %v3640
    %v3642 = vpop.f32.mrb[0].mxu0
    %3643 = vmatprep.mubr.f32.mxu0 0.0
    %3644 = vmatmul.mubr.f32.gmra.mrb[0].mxu0 %v3442
    %v3645 = vpop.f32.mrb[0].mxu0
    %v3646 = vadd.f32 0.0, %v3645
    %v3647 = vpop.f32.mrb[0].mxu0
    %3648 = vmatprep.mubr.f32.mxu0 0.0
    %3649 = vmatmul.mubr.f32.gmra.mrb[0].mxu0 %v3445
    %v3650 = vpop.f32.mrb[0].mxu0
    %v3651 = vadd.f32 0.0, %v3650
    %v3652 = vpop.f32.mrb[0].mxu0
    %3653 = vmatprep.mubr.f32.mxu0 0.0
    %3654 = vmatmul.mubr.f32.gmra.mrb[0].mxu0 %v3448
    %v3655 = vpop.f32.mrb[0].mxu0
    %v3656 = vadd.f32 0.0, %v3655
    %v3657 = vpop.f32.mrb[0].mxu0
    %3658 = vmatprep.mubr.f32.mxu0 0.0
    %3659 = vmatmul.mubr.f32.gmra.mrb[0].mxu0 %v3451
    %v3660 = vpop.f32.mrb[0].mxu0
    %v3661 = vadd.f32 0.0, %v3660
    %v3662 = vpop.f32.mrb[0].mxu0
    %3663 = vmatprep.mubr.f32.mxu0 0.0
    %3664 = vmatmul.mubr.f32.gmra.mrb[0].mxu0 %v3454
    %v3665 = vpop.f32.mrb[0].mxu0
    %v3666 = vadd.f32 0.0, %v3665
    %v3667 = vpop.f32.mrb[0].mxu0
    %3668 = vmatprep.mubr.f32.mxu0 0.0
    %3669 = vmatmul.mubr.f32.gmra.mrb[0].mxu0 %v3457
    %v3670 = vpop.f32.mrb[0].mxu0
    %v3671 = vadd.f32 0.0, %v3670
    %v3672 = vpop.f32.mrb[0].mxu0
    %3673 = vmatprep.mubr.f32.mxu0 0.0
    %3674 = vmatmul.mubr.f32.gmra.mrb[0].mxu0 %v3460
    %v3675 = vpop.f32.mrb[0].mxu0
    %v3676 = vadd.f32 0.0, %v3675
    %v3677 = vpop.f32.mrb[0].mxu0
    %3678 = vmatprep.mubr.f32.mxu0 0.0
    %3679 = vmatmul.mubr.f32.gmra.mrb[0].mxu0 %v3463
    %v3680 = vpop.f32.mrb[0].mxu0
    %v3681 = vadd.f32 0.0, %v3680
    %v3682 = vpop.f32.mrb[0].mxu0
    %3683 = vmatprep.mubr.f32.mxu0 0.0
    %3684 = vmatmul.mubr.f32.gmra.mrb[0].mxu0 %v3466
    %v3685 = vpop.f32.mrb[0].mxu0
    %v3686 = vadd.f32 0.0, %v3685
    %v3687 = vpop.f32.mrb[0].mxu0
    %3688 = vmatprep.mubr.f32.mxu0 0.0
    %3689 = vmatmul.mubr.f32.gmra.mrb[0].mxu0 %v3469
    %v3690 = vpop.f32.mrb[0].mxu0
    %v3691 = vadd.f32 0.0, %v3690
    %v3692 = vpop.f32.mrb[0].mxu0
    %3693 = vmatprep.mubr.f32.mxu0 0.0
    %3694 = vmatmul.mubr.f32.gmra.mrb[0].mxu0 %v3472
    %v3695 = vpop.f32.mrb[0].mxu0
    %v3696 = vadd.f32 0.0, %v3695
    %v3697 = vpop.f32.mrb[0].mxu0
    %3698 = vdwg.mxu0
    %v3699 = vadd.f32 %v3220, %v3541
    %v3700 = vadd.f32 %v3225, %v3546
    %v3701 = vadd.f32 %v3230, %v3551
    %v3702 = vadd.f32 %v3235, %v3556
    %v3703 = vadd.f32 %v3240, %v3561
    %v3704 = vadd.f32 %v3245, %v3566
    %v3705 = vadd.f32 %v3250, %v3571
    %v3706 = vadd.f32 %v3255, %v3576
    %v3707 = vadd.f32 %v3260, %v3581
    %v3708 = vadd.f32 %v3265, %v3586
    %v3709 = vadd.f32 %v3270, %v3591
    %v3710 = vadd.f32 %v3275, %v3596
    %v3711 = vadd.f32 %v3280, %v3601
    %v3712 = vadd.f32 %v3285, %v3606
    %v3713 = vadd.f32 %v3290, %v3611
    %v3714 = vadd.f32 %v3295, %v3616
    %v3715 = vadd.f32 %v3300, %v3621
    %v3716 = vadd.f32 %v3305, %v3626
    %v3717 = vadd.f32 %v3310, %v3631
    %v3718 = vadd.f32 %v3315, %v3636
    %v3719 = vadd.f32 %v3320, %v3641
    %v3720 = vadd.f32 %v3325, %v3646
    %v3721 = vadd.f32 %v3330, %v3651
    %v3722 = vadd.f32 %v3335, %v3656
    %v3723 = vadd.f32 %v3340, %v3661
    %v3724 = vadd.f32 %v3345, %v3666
    %v3725 = vadd.f32 %v3350, %v3671
    %v3726 = vadd.f32 %v3355, %v3676
    %v3727 = vadd.f32 %v3360, %v3681
    %v3728 = vadd.f32 %v3365, %v3686
    %v3729 = vadd.f32 %v3370, %v3691
    %v3730 = vadd.f32 %v3375, %v3696
    %v3731 = vadd.f32 %v3699, %v2499
    %v3732 = vadd.f32 %v3700, %v2500
    %v3733 = vadd.f32 %v3701, %v2501
    %v3734 = vadd.f32 %v3702, %v2502
    %v3735 = vadd.f32 %v3703, %v2503
    %v3736 = vadd.f32 %v3704, %v2504
    %v3737 = vadd.f32 %v3705, %v2505
    %v3738 = vadd.f32 %v3706, %v2506
    %v3739 = vadd.f32 %v3707, %v2507
    %v3740 = vadd.f32 %v3708, %v2508
    %v3741 = vadd.f32 %v3709, %v2509
    %v3742 = vadd.f32 %v3710, %v2510
    %v3743 = vadd.f32 %v3711, %v2511
    %v3744 = vadd.f32 %v3712, %v2512
    %v3745 = vadd.f32 %v3713, %v2513
    %v3746 = vadd.f32 %v3714, %v2514
    %v3747 = vadd.f32 %v3715, %v2515
    %v3748 = vadd.f32 %v3716, %v2516
    %v3749 = vadd.f32 %v3717, %v2517
    %v3750 = vadd.f32 %v3718, %v2518
    %v3751 = vadd.f32 %v3719, %v2519
    %v3752 = vadd.f32 %v3720, %v2520
    %v3753 = vadd.f32 %v3721, %v2521
    %v3754 = vadd.f32 %v3722, %v2522
    %v3755 = vadd.f32 %v3723, %v2523
    %v3756 = vadd.f32 %v3724, %v2524
    %v3757 = vadd.f32 %v3725, %v2525
    %v3758 = vadd.f32 %v3726, %v2526
    %v3759 = vadd.f32 %v3727, %v2527
    %v3760 = vadd.f32 %v3728, %v2528
    %v3761 = vadd.f32 %v3729, %v2529
    %v3762 = vadd.f32 %v3730, %v2530
    %v3763 = vlaneseq
    %v3764 = vshrl.u32 %v3763, 7
    %v3765 = vsub.s32 2, %v3764
    %v3766 = vrot.slane %v70, %v3765
    %v3767 = vmul.f32 %v3731, %v3766
    %v3768 = vmul.f32 %v3732, %v3766
    %v3769 = vmul.f32 %v3733, %v3766
    %v3770 = vmul.f32 %v3734, %v3766
    %v3771 = vmul.f32 %v3735, %v3766
    %v3772 = vmul.f32 %v3736, %v3766
    %v3773 = vmul.f32 %v3737, %v3766
    %v3774 = vmul.f32 %v3738, %v3766
    %v3775 = vmul.f32 %v3739, %v3766
    %v3776 = vmul.f32 %v3740, %v3766
    %v3777 = vmul.f32 %v3741, %v3766
    %v3778 = vmul.f32 %v3742, %v3766
    %v3779 = vmul.f32 %v3743, %v3766
    %v3780 = vmul.f32 %v3744, %v3766
    %v3781 = vmul.f32 %v3745, %v3766
    %v3782 = vmul.f32 %v3746, %v3766
    %v3783 = vmul.f32 %v3747, %v3766
    %v3784 = vmul.f32 %v3748, %v3766
    %v3785 = vmul.f32 %v3749, %v3766
    %v3786 = vmul.f32 %v3750, %v3766
    %v3787 = vmul.f32 %v3751, %v3766
    %v3788 = vmul.f32 %v3752, %v3766
    %v3789 = vmul.f32 %v3753, %v3766
    %v3790 = vmul.f32 %v3754, %v3766
    %v3791 = vmul.f32 %v3755, %v3766
    %v3792 = vmul.f32 %v3756, %v3766
    %v3793 = vmul.f32 %v3757, %v3766
    %v3794 = vmul.f32 %v3758, %v3766
    %v3795 = vmul.f32 %v3759, %v3766
    %v3796 = vmul.f32 %v3760, %v3766
    %v3797 = vmul.f32 %v3761, %v3766
    %v3798 = vmul.f32 %v3762, %v3766
    %v3799 = vlaneseq
    %v3800 = vshrl.u32 %v3799, 7
    %v3801 = vsub.s32 3, %v3800
    %v3802 = vrot.slane %v70, %v3801
    %v3803 = vadd.f32 %v3767, %v3802
    %v3804 = vadd.f32 %v3768, %v3802
    %v3805 = vadd.f32 %v3769, %v3802
    %v3806 = vadd.f32 %v3770, %v3802
    %v3807 = vadd.f32 %v3771, %v3802
    %v3808 = vadd.f32 %v3772, %v3802
    %v3809 = vadd.f32 %v3773, %v3802
    %v3810 = vadd.f32 %v3774, %v3802
    %v3811 = vadd.f32 %v3775, %v3802
    %v3812 = vadd.f32 %v3776, %v3802
    %v3813 = vadd.f32 %v3777, %v3802
    %v3814 = vadd.f32 %v3778, %v3802
    %v3815 = vadd.f32 %v3779, %v3802
    %v3816 = vadd.f32 %v3780, %v3802
    %v3817 = vadd.f32 %v3781, %v3802
    %v3818 = vadd.f32 %v3782, %v3802
    %v3819 = vadd.f32 %v3783, %v3802
    %v3820 = vadd.f32 %v3784, %v3802
    %v3821 = vadd.f32 %v3785, %v3802
    %v3822 = vadd.f32 %v3786, %v3802
    %v3823 = vadd.f32 %v3787, %v3802
    %v3824 = vadd.f32 %v3788, %v3802
    %v3825 = vadd.f32 %v3789, %v3802
    %v3826 = vadd.f32 %v3790, %v3802
    %v3827 = vadd.f32 %v3791, %v3802
    %v3828 = vadd.f32 %v3792, %v3802
    %v3829 = vadd.f32 %v3793, %v3802
    %v3830 = vadd.f32 %v3794, %v3802
    %v3831 = vadd.f32 %v3795, %v3802
    %v3832 = vadd.f32 %v3796, %v3802
    %v3833 = vadd.f32 %v3797, %v3802
    %v3834 = vadd.f32 %v3798, %v3802
    %v3835 = vmul.f32 %v3803, 0.5
    %v3836 = vmul.f32 %v3804, 0.5
    %v3837 = vmul.f32 %v3805, 0.5
    %v3838 = vmul.f32 %v3806, 0.5
    %v3839 = vmul.f32 %v3807, 0.5
    %v3840 = vmul.f32 %v3808, 0.5
    %v3841 = vmul.f32 %v3809, 0.5
    %v3842 = vmul.f32 %v3810, 0.5
    %v3843 = vmul.f32 %v3811, 0.5
    %v3844 = vmul.f32 %v3812, 0.5
    %v3845 = vmul.f32 %v3813, 0.5
    %v3846 = vmul.f32 %v3814, 0.5
    %v3847 = vmul.f32 %v3815, 0.5
    %v3848 = vmul.f32 %v3816, 0.5
    %v3849 = vmul.f32 %v3817, 0.5
    %v3850 = vmul.f32 %v3818, 0.5
    %v3851 = vmul.f32 %v3819, 0.5
    %v3852 = vmul.f32 %v3820, 0.5
    %v3853 = vmul.f32 %v3821, 0.5
    %v3854 = vmul.f32 %v3822, 0.5
    %v3855 = vmul.f32 %v3823, 0.5
    %v3856 = vmul.f32 %v3824, 0.5
    %v3857 = vmul.f32 %v3825, 0.5
    %v3858 = vmul.f32 %v3826, 0.5
    %v3859 = vmul.f32 %v3827, 0.5
    %v3860 = vmul.f32 %v3828, 0.5
    %v3861 = vmul.f32 %v3829, 0.5
    %v3862 = vmul.f32 %v3830, 0.5
    %v3863 = vmul.f32 %v3831, 0.5
    %v3864 = vmul.f32 %v3832, 0.5
    %v3865 = vmul.f32 %v3833, 0.5
    %v3866 = vmul.f32 %v3834, 0.5
    %v3867 = vmul.f32 %v3803, 0.70710677
    %v3868 = vmul.f32 %v3804, 0.70710677
    %v3869 = vmul.f32 %v3805, 0.70710677
    %v3870 = vmul.f32 %v3806, 0.70710677
    %v3871 = vmul.f32 %v3807, 0.70710677
    %v3872 = vmul.f32 %v3808, 0.70710677
    %v3873 = vmul.f32 %v3809, 0.70710677
    %v3874 = vmul.f32 %v3810, 0.70710677
    %v3875 = vmul.f32 %v3811, 0.70710677
    %v3876 = vmul.f32 %v3812, 0.70710677
    %v3877 = vmul.f32 %v3813, 0.70710677
    %v3878 = vmul.f32 %v3814, 0.70710677
    %v3879 = vmul.f32 %v3815, 0.70710677
    %v3880 = vmul.f32 %v3816, 0.70710677
    %v3881 = vmul.f32 %v3817, 0.70710677
    %v3882 = vmul.f32 %v3818, 0.70710677
    %v3883 = vmul.f32 %v3819, 0.70710677
    %v3884 = vmul.f32 %v3820, 0.70710677
    %v3885 = vmul.f32 %v3821, 0.70710677
    %v3886 = vmul.f32 %v3822, 0.70710677
    %v3887 = vmul.f32 %v3823, 0.70710677
    %v3888 = vmul.f32 %v3824, 0.70710677
    %v3889 = vmul.f32 %v3825, 0.70710677
    %v3890 = vmul.f32 %v3826, 0.70710677
    %v3891 = vmul.f32 %v3827, 0.70710677
    %v3892 = vmul.f32 %v3828, 0.70710677
    %v3893 = vmul.f32 %v3829, 0.70710677
    %v3894 = vmul.f32 %v3830, 0.70710677
    %v3895 = vmul.f32 %v3831, 0.70710677
    %v3896 = vmul.f32 %v3832, 0.70710677
    %v3897 = vmul.f32 %v3833, 0.70710677
    %v3898 = vmul.f32 %v3834, 0.70710677
    %v3899 = vand.u32 2147483647, %v3867
    %v3900 = vand.u32 2147483647, %v3868
    %v3901 = vand.u32 2147483647, %v3869
    %v3902 = vand.u32 2147483647, %v3870
    %v3903 = vand.u32 2147483647, %v3871
    %v3904 = vand.u32 2147483647, %v3872
    %v3905 = vand.u32 2147483647, %v3873
    %v3906 = vand.u32 2147483647, %v3874
    %v3907 = vand.u32 2147483647, %v3875
    %v3908 = vand.u32 2147483647, %v3876
    %v3909 = vand.u32 2147483647, %v3877
    %v3910 = vand.u32 2147483647, %v3878
    %v3911 = vand.u32 2147483647, %v3879
    %v3912 = vand.u32 2147483647, %v3880
    %v3913 = vand.u32 2147483647, %v3881
    %v3914 = vand.u32 2147483647, %v3882
    %v3915 = vand.u32 2147483647, %v3883
    %v3916 = vand.u32 2147483647, %v3884
    %v3917 = vand.u32 2147483647, %v3885
    %v3918 = vand.u32 2147483647, %v3886
    %v3919 = vand.u32 2147483647, %v3887
    %v3920 = vand.u32 2147483647, %v3888
    %v3921 = vand.u32 2147483647, %v3889
    %v3922 = vand.u32 2147483647, %v3890
    %v3923 = vand.u32 2147483647, %v3891
    %v3924 = vand.u32 2147483647, %v3892
    %v3925 = vand.u32 2147483647, %v3893
    %v3926 = vand.u32 2147483647, %v3894
    %v3927 = vand.u32 2147483647, %v3895
    %v3928 = vand.u32 2147483647, %v3896
    %v3929 = vand.u32 2147483647, %v3897
    %v3930 = vand.u32 2147483647, %v3898
    %v3931 = vmul.f32 %v3899, 0.3275911
    %v3932 = vmul.f32 %v3900, 0.3275911
    %v3933 = vmul.f32 %v3901, 0.3275911
    %v3934 = vmul.f32 %v3902, 0.3275911
    %v3935 = vmul.f32 %v3903, 0.3275911
    %v3936 = vmul.f32 %v3904, 0.3275911
    %v3937 = vmul.f32 %v3905, 0.3275911
    %v3938 = vmul.f32 %v3906, 0.3275911
    %v3939 = vmul.f32 %v3907, 0.3275911
    %v3940 = vmul.f32 %v3908, 0.3275911
    %v3941 = vmul.f32 %v3909, 0.3275911
    %v3942 = vmul.f32 %v3910, 0.3275911
    %v3943 = vmul.f32 %v3911, 0.3275911
    %v3944 = vmul.f32 %v3912, 0.3275911
    %v3945 = vmul.f32 %v3913, 0.3275911
    %v3946 = vmul.f32 %v3914, 0.3275911
    %v3947 = vmul.f32 %v3915, 0.3275911
    %v3948 = vmul.f32 %v3916, 0.3275911
    %v3949 = vmul.f32 %v3917, 0.3275911
    %v3950 = vmul.f32 %v3918, 0.3275911
    %v3951 = vmul.f32 %v3919, 0.3275911
    %v3952 = vmul.f32 %v3920, 0.3275911
    %v3953 = vmul.f32 %v3921, 0.3275911
    %v3954 = vmul.f32 %v3922, 0.3275911
    %v3955 = vmul.f32 %v3923, 0.3275911
    %v3956 = vmul.f32 %v3924, 0.3275911
    %v3957 = vmul.f32 %v3925, 0.3275911
    %v3958 = vmul.f32 %v3926, 0.3275911
    %v3959 = vmul.f32 %v3927, 0.3275911
    %v3960 = vmul.f32 %v3928, 0.3275911
    %v3961 = vmul.f32 %v3929, 0.3275911
    %v3962 = vmul.f32 %v3930, 0.3275911
    %v3963 = vadd.f32 %v3931, 1.0
    %v3964 = vadd.f32 %v3932, 1.0
    %v3965 = vadd.f32 %v3933, 1.0
    %v3966 = vadd.f32 %v3934, 1.0
    %v3967 = vadd.f32 %v3935, 1.0
    %v3968 = vadd.f32 %v3936, 1.0
    %v3969 = vadd.f32 %v3937, 1.0
    %v3970 = vadd.f32 %v3938, 1.0
    %v3971 = vadd.f32 %v3939, 1.0
    %v3972 = vadd.f32 %v3940, 1.0
    %v3973 = vadd.f32 %v3941, 1.0
    %v3974 = vadd.f32 %v3942, 1.0
    %v3975 = vadd.f32 %v3943, 1.0
    %v3976 = vadd.f32 %v3944, 1.0
    %v3977 = vadd.f32 %v3945, 1.0
    %v3978 = vadd.f32 %v3946, 1.0
    %v3979 = vadd.f32 %v3947, 1.0
    %v3980 = vadd.f32 %v3948, 1.0
    %v3981 = vadd.f32 %v3949, 1.0
    %v3982 = vadd.f32 %v3950, 1.0
    %v3983 = vadd.f32 %v3951, 1.0
    %v3984 = vadd.f32 %v3952, 1.0
    %v3985 = vadd.f32 %v3953, 1.0
    %v3986 = vadd.f32 %v3954, 1.0
    %v3987 = vadd.f32 %v3955, 1.0
    %v3988 = vadd.f32 %v3956, 1.0
    %v3989 = vadd.f32 %v3957, 1.0
    %v3990 = vadd.f32 %v3958, 1.0
    %v3991 = vadd.f32 %v3959, 1.0
    %v3992 = vadd.f32 %v3960, 1.0
    %v3993 = vadd.f32 %v3961, 1.0
    %v3994 = vadd.f32 %v3962, 1.0
    %v3995 = vrcp.pop %v3963
    %v3996 = vrcp.pop %v3964
    %v3997 = vrcp.pop %v3965
    %v3998 = vrcp.pop %v3966
    %v3999 = vrcp.pop %v3967
    %v4000 = vrcp.pop %v3968
    %v4001 = vrcp.pop %v3969
    %v4002 = vrcp.pop %v3970
    %v4003 = vrcp.pop %v3971
    %v4004 = vrcp.pop %v3972
    %v4005 = vrcp.pop %v3973
    %v4006 = vrcp.pop %v3974
    %v4007 = vrcp.pop %v3975
    %v4008 = vrcp.pop %v3976
    %v4009 = vrcp.pop %v3977
    %v4010 = vrcp.pop %v3978
    %v4011 = vrcp.pop %v3979
    %v4012 = vrcp.pop %v3980
    %v4013 = vrcp.pop %v3981
    %v4014 = vrcp.pop %v3982
    %v4015 = vrcp.pop %v3983
    %v4016 = vrcp.pop %v3984
    %v4017 = vrcp.pop %v3985
    %v4018 = vrcp.pop %v3986
    %v4019 = vrcp.pop %v3987
    %v4020 = vrcp.pop %v3988
    %v4021 = vrcp.pop %v3989
    %v4022 = vrcp.pop %v3990
    %v4023 = vrcp.pop %v3991
    %v4024 = vrcp.pop %v3992
    %v4025 = vrcp.pop %v3993
    %v4026 = vrcp.pop %v3994
    %v4027 = vmul.f32 %v3963, %v3995
    %v4028 = vmul.f32 %v3964, %v3996
    %v4029 = vmul.f32 %v3965, %v3997
    %v4030 = vmul.f32 %v3966, %v3998
    %v4031 = vmul.f32 %v3967, %v3999
    %v4032 = vmul.f32 %v3968, %v4000
    %v4033 = vmul.f32 %v3969, %v4001
    %v4034 = vmul.f32 %v3970, %v4002
    %v4035 = vmul.f32 %v3971, %v4003
    %v4036 = vmul.f32 %v3972, %v4004
    %v4037 = vmul.f32 %v3973, %v4005
    %v4038 = vmul.f32 %v3974, %v4006
    %v4039 = vmul.f32 %v3975, %v4007
    %v4040 = vmul.f32 %v3976, %v4008
    %v4041 = vmul.f32 %v3977, %v4009
    %v4042 = vmul.f32 %v3978, %v4010
    %v4043 = vmul.f32 %v3979, %v4011
    %v4044 = vmul.f32 %v3980, %v4012
    %v4045 = vmul.f32 %v3981, %v4013
    %v4046 = vmul.f32 %v3982, %v4014
    %v4047 = vmul.f32 %v3983, %v4015
    %v4048 = vmul.f32 %v3984, %v4016
    %v4049 = vmul.f32 %v3985, %v4017
    %v4050 = vmul.f32 %v3986, %v4018
    %v4051 = vmul.f32 %v3987, %v4019
    %v4052 = vmul.f32 %v3988, %v4020
    %v4053 = vmul.f32 %v3989, %v4021
    %v4054 = vmul.f32 %v3990, %v4022
    %v4055 = vmul.f32 %v3991, %v4023
    %v4056 = vmul.f32 %v3992, %v4024
    %v4057 = vmul.f32 %v3993, %v4025
    %v4058 = vmul.f32 %v3994, %v4026
    %v4059 = vsub.f32 2.0, %v4027
    %v4060 = vsub.f32 2.0, %v4028
    %v4061 = vsub.f32 2.0, %v4029
    %v4062 = vsub.f32 2.0, %v4030
    %v4063 = vsub.f32 2.0, %v4031
    %v4064 = vsub.f32 2.0, %v4032
    %v4065 = vsub.f32 2.0, %v4033
    %v4066 = vsub.f32 2.0, %v4034
    %v4067 = vsub.f32 2.0, %v4035
    %v4068 = vsub.f32 2.0, %v4036
    %v4069 = vsub.f32 2.0, %v4037
    %v4070 = vsub.f32 2.0, %v4038
    %v4071 = vsub.f32 2.0, %v4039
    %v4072 = vsub.f32 2.0, %v4040
    %v4073 = vsub.f32 2.0, %v4041
    %v4074 = vsub.f32 2.0, %v4042
    %v4075 = vsub.f32 2.0, %v4043
    %v4076 = vsub.f32 2.0, %v4044
    %v4077 = vsub.f32 2.0, %v4045
    %v4078 = vsub.f32 2.0, %v4046
    %v4079 = vsub.f32 2.0, %v4047
    %v4080 = vsub.f32 2.0, %v4048
    %v4081 = vsub.f32 2.0, %v4049
    %v4082 = vsub.f32 2.0, %v4050
    %v4083 = vsub.f32 2.0, %v4051
    %v4084 = vsub.f32 2.0, %v4052
    %v4085 = vsub.f32 2.0, %v4053
    %v4086 = vsub.f32 2.0, %v4054
    %v4087 = vsub.f32 2.0, %v4055
    %v4088 = vsub.f32 2.0, %v4056
    %v4089 = vsub.f32 2.0, %v4057
    %v4090 = vsub.f32 2.0, %v4058
    %v4091 = vmul.f32 %v3995, %v4059
    %v4092 = vmul.f32 %v3996, %v4060
    %v4093 = vmul.f32 %v3997, %v4061
    %v4094 = vmul.f32 %v3998, %v4062
    %v4095 = vmul.f32 %v3999, %v4063
    %v4096 = vmul.f32 %v4000, %v4064
    %v4097 = vmul.f32 %v4001, %v4065
    %v4098 = vmul.f32 %v4002, %v4066
    %v4099 = vmul.f32 %v4003, %v4067
    %v4100 = vmul.f32 %v4004, %v4068
    %v4101 = vmul.f32 %v4005, %v4069
    %v4102 = vmul.f32 %v4006, %v4070
    %v4103 = vmul.f32 %v4007, %v4071
    %v4104 = vmul.f32 %v4008, %v4072
    %v4105 = vmul.f32 %v4009, %v4073
    %v4106 = vmul.f32 %v4010, %v4074
    %v4107 = vmul.f32 %v4011, %v4075
    %v4108 = vmul.f32 %v4012, %v4076
    %v4109 = vmul.f32 %v4013, %v4077
    %v4110 = vmul.f32 %v4014, %v4078
    %v4111 = vmul.f32 %v4015, %v4079
    %v4112 = vmul.f32 %v4016, %v4080
    %v4113 = vmul.f32 %v4017, %v4081
    %v4114 = vmul.f32 %v4018, %v4082
    %v4115 = vmul.f32 %v4019, %v4083
    %v4116 = vmul.f32 %v4020, %v4084
    %v4117 = vmul.f32 %v4021, %v4085
    %v4118 = vmul.f32 %v4022, %v4086
    %v4119 = vmul.f32 %v4023, %v4087
    %v4120 = vmul.f32 %v4024, %v4088
    %v4121 = vmul.f32 %v4025, %v4089
    %v4122 = vmul.f32 %v4026, %v4090
    %v4123 = vmul.f32 %v4091, 1.0614054
    %v4124 = vmul.f32 %v4092, 1.0614054
    %v4125 = vmul.f32 %v4093, 1.0614054
    %v4126 = vmul.f32 %v4094, 1.0614054
    %v4127 = vmul.f32 %v4095, 1.0614054
    %v4128 = vmul.f32 %v4096, 1.0614054
    %v4129 = vmul.f32 %v4097, 1.0614054
    %v4130 = vmul.f32 %v4098, 1.0614054
    %v4131 = vmul.f32 %v4099, 1.0614054
    %v4132 = vmul.f32 %v4100, 1.0614054
    %v4133 = vmul.f32 %v4101, 1.0614054
    %v4134 = vmul.f32 %v4102, 1.0614054
    %v4135 = vmul.f32 %v4103, 1.0614054
    %v4136 = vmul.f32 %v4104, 1.0614054
    %v4137 = vmul.f32 %v4105, 1.0614054
    %v4138 = vmul.f32 %v4106, 1.0614054
    %v4139 = vmul.f32 %v4107, 1.0614054
    %v4140 = vmul.f32 %v4108, 1.0614054
    %v4141 = vmul.f32 %v4109, 1.0614054
    %v4142 = vmul.f32 %v4110, 1.0614054
    %v4143 = vmul.f32 %v4111, 1.0614054
    %v4144 = vmul.f32 %v4112, 1.0614054
    %v4145 = vmul.f32 %v4113, 1.0614054
    %v4146 = vmul.f32 %v4114, 1.0614054
    %v4147 = vmul.f32 %v4115, 1.0614054
    %v4148 = vmul.f32 %v4116, 1.0614054
    %v4149 = vmul.f32 %v4117, 1.0614054
    %v4150 = vmul.f32 %v4118, 1.0614054
    %v4151 = vmul.f32 %v4119, 1.0614054
    %v4152 = vmul.f32 %v4120, 1.0614054
    %v4153 = vmul.f32 %v4121, 1.0614054
    %v4154 = vmul.f32 %v4122, 1.0614054
    %v4155 = vadd.f32 %v4123, -1.4531521
    %v4156 = vadd.f32 %v4124, -1.4531521
    %v4157 = vadd.f32 %v4125, -1.4531521
    %v4158 = vadd.f32 %v4126, -1.4531521
    %v4159 = vadd.f32 %v4127, -1.4531521
    %v4160 = vadd.f32 %v4128, -1.4531521
    %v4161 = vadd.f32 %v4129, -1.4531521
    %v4162 = vadd.f32 %v4130, -1.4531521
    %v4163 = vadd.f32 %v4131, -1.4531521
    %v4164 = vadd.f32 %v4132, -1.4531521
    %v4165 = vadd.f32 %v4133, -1.4531521
    %v4166 = vadd.f32 %v4134, -1.4531521
    %v4167 = vadd.f32 %v4135, -1.4531521
    %v4168 = vadd.f32 %v4136, -1.4531521
    %v4169 = vadd.f32 %v4137, -1.4531521
    %v4170 = vadd.f32 %v4138, -1.4531521
    %v4171 = vadd.f32 %v4139, -1.4531521
    %v4172 = vadd.f32 %v4140, -1.4531521
    %v4173 = vadd.f32 %v4141, -1.4531521
    %v4174 = vadd.f32 %v4142, -1.4531521
    %v4175 = vadd.f32 %v4143, -1.4531521
    %v4176 = vadd.f32 %v4144, -1.4531521
    %v4177 = vadd.f32 %v4145, -1.4531521
    %v4178 = vadd.f32 %v4146, -1.4531521
    %v4179 = vadd.f32 %v4147, -1.4531521
    %v4180 = vadd.f32 %v4148, -1.4531521
    %v4181 = vadd.f32 %v4149, -1.4531521
    %v4182 = vadd.f32 %v4150, -1.4531521
    %v4183 = vadd.f32 %v4151, -1.4531521
    %v4184 = vadd.f32 %v4152, -1.4531521
    %v4185 = vadd.f32 %v4153, -1.4531521
    %v4186 = vadd.f32 %v4154, -1.4531521
    %v4187 = vmul.f32 %v4155, %v4091
    %v4188 = vmul.f32 %v4156, %v4092
    %v4189 = vmul.f32 %v4157, %v4093
    %v4190 = vmul.f32 %v4158, %v4094
    %v4191 = vmul.f32 %v4159, %v4095
    %v4192 = vmul.f32 %v4160, %v4096
    %v4193 = vmul.f32 %v4161, %v4097
    %v4194 = vmul.f32 %v4162, %v4098
    %v4195 = vmul.f32 %v4163, %v4099
    %v4196 = vmul.f32 %v4164, %v4100
    %v4197 = vmul.f32 %v4165, %v4101
    %v4198 = vmul.f32 %v4166, %v4102
    %v4199 = vmul.f32 %v4167, %v4103
    %v4200 = vmul.f32 %v4168, %v4104
    %v4201 = vmul.f32 %v4169, %v4105
    %v4202 = vmul.f32 %v4170, %v4106
    %v4203 = vmul.f32 %v4171, %v4107
    %v4204 = vmul.f32 %v4172, %v4108
    %v4205 = vmul.f32 %v4173, %v4109
    %v4206 = vmul.f32 %v4174, %v4110
    %v4207 = vmul.f32 %v4175, %v4111
    %v4208 = vmul.f32 %v4176, %v4112
    %v4209 = vmul.f32 %v4177, %v4113
    %v4210 = vmul.f32 %v4178, %v4114
    %v4211 = vmul.f32 %v4179, %v4115
    %v4212 = vmul.f32 %v4180, %v4116
    %v4213 = vmul.f32 %v4181, %v4117
    %v4214 = vmul.f32 %v4182, %v4118
    %v4215 = vmul.f32 %v4183, %v4119
    %v4216 = vmul.f32 %v4184, %v4120
    %v4217 = vmul.f32 %v4185, %v4121
    %v4218 = vmul.f32 %v4186, %v4122
    %v4219 = vadd.f32 %v4187, 1.4214138
    %v4220 = vadd.f32 %v4188, 1.4214138
    %v4221 = vadd.f32 %v4189, 1.4214138
    %v4222 = vadd.f32 %v4190, 1.4214138
    %v4223 = vadd.f32 %v4191, 1.4214138
    %v4224 = vadd.f32 %v4192, 1.4214138
    %v4225 = vadd.f32 %v4193, 1.4214138
    %v4226 = vadd.f32 %v4194, 1.4214138
    %v4227 = vadd.f32 %v4195, 1.4214138
    %v4228 = vadd.f32 %v4196, 1.4214138
    %v4229 = vadd.f32 %v4197, 1.4214138
    %v4230 = vadd.f32 %v4198, 1.4214138
    %v4231 = vadd.f32 %v4199, 1.4214138
    %v4232 = vadd.f32 %v4200, 1.4214138
    %v4233 = vadd.f32 %v4201, 1.4214138
    %v4234 = vadd.f32 %v4202, 1.4214138
    %v4235 = vadd.f32 %v4203, 1.4214138
    %v4236 = vadd.f32 %v4204, 1.4214138
    %v4237 = vadd.f32 %v4205, 1.4214138
    %v4238 = vadd.f32 %v4206, 1.4214138
    %v4239 = vadd.f32 %v4207, 1.4214138
    %v4240 = vadd.f32 %v4208, 1.4214138
    %v4241 = vadd.f32 %v4209, 1.4214138
    %v4242 = vadd.f32 %v4210, 1.4214138
    %v4243 = vadd.f32 %v4211, 1.4214138
    %v4244 = vadd.f32 %v4212, 1.4214138
    %v4245 = vadd.f32 %v4213, 1.4214138
    %v4246 = vadd.f32 %v4214, 1.4214138
    %v4247 = vadd.f32 %v4215, 1.4214138
    %v4248 = vadd.f32 %v4216, 1.4214138
    %v4249 = vadd.f32 %v4217, 1.4214138
    %v4250 = vadd.f32 %v4218, 1.4214138
    %v4251 = vmul.f32 %v4219, %v4091
    %v4252 = vmul.f32 %v4220, %v4092
    %v4253 = vmul.f32 %v4221, %v4093
    %v4254 = vmul.f32 %v4222, %v4094
    %v4255 = vmul.f32 %v4223, %v4095
    %v4256 = vmul.f32 %v4224, %v4096
    %v4257 = vmul.f32 %v4225, %v4097
    %v4258 = vmul.f32 %v4226, %v4098
    %v4259 = vmul.f32 %v4227, %v4099
    %v4260 = vmul.f32 %v4228, %v4100
    %v4261 = vmul.f32 %v4229, %v4101
    %v4262 = vmul.f32 %v4230, %v4102
    %v4263 = vmul.f32 %v4231, %v4103
    %v4264 = vmul.f32 %v4232, %v4104
    %v4265 = vmul.f32 %v4233, %v4105
    %v4266 = vmul.f32 %v4234, %v4106
    %v4267 = vmul.f32 %v4235, %v4107
    %v4268 = vmul.f32 %v4236, %v4108
    %v4269 = vmul.f32 %v4237, %v4109
    %v4270 = vmul.f32 %v4238, %v4110
    %v4271 = vmul.f32 %v4239, %v4111
    %v4272 = vmul.f32 %v4240, %v4112
    %v4273 = vmul.f32 %v4241, %v4113
    %v4274 = vmul.f32 %v4242, %v4114
    %v4275 = vmul.f32 %v4243, %v4115
    %v4276 = vmul.f32 %v4244, %v4116
    %v4277 = vmul.f32 %v4245, %v4117
    %v4278 = vmul.f32 %v4246, %v4118
    %v4279 = vmul.f32 %v4247, %v4119
    %v4280 = vmul.f32 %v4248, %v4120
    %v4281 = vmul.f32 %v4249, %v4121
    %v4282 = vmul.f32 %v4250, %v4122
    %v4283 = vadd.f32 %v4251, -0.28449672
    %v4284 = vadd.f32 %v4252, -0.28449672
    %v4285 = vadd.f32 %v4253, -0.28449672
    %v4286 = vadd.f32 %v4254, -0.28449672
    %v4287 = vadd.f32 %v4255, -0.28449672
    %v4288 = vadd.f32 %v4256, -0.28449672
    %v4289 = vadd.f32 %v4257, -0.28449672
    %v4290 = vadd.f32 %v4258, -0.28449672
    %v4291 = vadd.f32 %v4259, -0.28449672
    %v4292 = vadd.f32 %v4260, -0.28449672
    %v4293 = vadd.f32 %v4261, -0.28449672
    %v4294 = vadd.f32 %v4262, -0.28449672
    %v4295 = vadd.f32 %v4263, -0.28449672
    %v4296 = vadd.f32 %v4264, -0.28449672
    %v4297 = vadd.f32 %v4265, -0.28449672
    %v4298 = vadd.f32 %v4266, -0.28449672
    %v4299 = vadd.f32 %v4267, -0.28449672
    %v4300 = vadd.f32 %v4268, -0.28449672
    %v4301 = vadd.f32 %v4269, -0.28449672
    %v4302 = vadd.f32 %v4270, -0.28449672
    %v4303 = vadd.f32 %v4271, -0.28449672
    %v4304 = vadd.f32 %v4272, -0.28449672
    %v4305 = vadd.f32 %v4273, -0.28449672
    %v4306 = vadd.f32 %v4274, -0.28449672
    %v4307 = vadd.f32 %v4275, -0.28449672
    %v4308 = vadd.f32 %v4276, -0.28449672
    %v4309 = vadd.f32 %v4277, -0.28449672
    %v4310 = vadd.f32 %v4278, -0.28449672
    %v4311 = vadd.f32 %v4279, -0.28449672
    %v4312 = vadd.f32 %v4280, -0.28449672
    %v4313 = vadd.f32 %v4281, -0.28449672
    %v4314 = vadd.f32 %v4282, -0.28449672
    %v4315 = vmul.f32 %v4283, %v4091
    %v4316 = vmul.f32 %v4284, %v4092
    %v4317 = vmul.f32 %v4285, %v4093
    %v4318 = vmul.f32 %v4286, %v4094
    %v4319 = vmul.f32 %v4287, %v4095
    %v4320 = vmul.f32 %v4288, %v4096
    %v4321 = vmul.f32 %v4289, %v4097
    %v4322 = vmul.f32 %v4290, %v4098
    %v4323 = vmul.f32 %v4291, %v4099
    %v4324 = vmul.f32 %v4292, %v4100
    %v4325 = vmul.f32 %v4293, %v4101
    %v4326 = vmul.f32 %v4294, %v4102
    %v4327 = vmul.f32 %v4295, %v4103
    %v4328 = vmul.f32 %v4296, %v4104
    %v4329 = vmul.f32 %v4297, %v4105
    %v4330 = vmul.f32 %v4298, %v4106
    %v4331 = vmul.f32 %v4299, %v4107
    %v4332 = vmul.f32 %v4300, %v4108
    %v4333 = vmul.f32 %v4301, %v4109
    %v4334 = vmul.f32 %v4302, %v4110
    %v4335 = vmul.f32 %v4303, %v4111
    %v4336 = vmul.f32 %v4304, %v4112
    %v4337 = vmul.f32 %v4305, %v4113
    %v4338 = vmul.f32 %v4306, %v4114
    %v4339 = vmul.f32 %v4307, %v4115
    %v4340 = vmul.f32 %v4308, %v4116
    %v4341 = vmul.f32 %v4309, %v4117
    %v4342 = vmul.f32 %v4310, %v4118
    %v4343 = vmul.f32 %v4311, %v4119
    %v4344 = vmul.f32 %v4312, %v4120
    %v4345 = vmul.f32 %v4313, %v4121
    %v4346 = vmul.f32 %v4314, %v4122
    %v4347 = vadd.f32 %v4315, 0.2548296
    %v4348 = vadd.f32 %v4316, 0.2548296
    %v4349 = vadd.f32 %v4317, 0.2548296
    %v4350 = vadd.f32 %v4318, 0.2548296
    %v4351 = vadd.f32 %v4319, 0.2548296
    %v4352 = vadd.f32 %v4320, 0.2548296
    %v4353 = vadd.f32 %v4321, 0.2548296
    %v4354 = vadd.f32 %v4322, 0.2548296
    %v4355 = vadd.f32 %v4323, 0.2548296
    %v4356 = vadd.f32 %v4324, 0.2548296
    %v4357 = vadd.f32 %v4325, 0.2548296
    %v4358 = vadd.f32 %v4326, 0.2548296
    %v4359 = vadd.f32 %v4327, 0.2548296
    %v4360 = vadd.f32 %v4328, 0.2548296
    %v4361 = vadd.f32 %v4329, 0.2548296
    %v4362 = vadd.f32 %v4330, 0.2548296
    %v4363 = vadd.f32 %v4331, 0.2548296
    %v4364 = vadd.f32 %v4332, 0.2548296
    %v4365 = vadd.f32 %v4333, 0.2548296
    %v4366 = vadd.f32 %v4334, 0.2548296
    %v4367 = vadd.f32 %v4335, 0.2548296
    %v4368 = vadd.f32 %v4336, 0.2548296
    %v4369 = vadd.f32 %v4337, 0.2548296
    %v4370 = vadd.f32 %v4338, 0.2548296
    %v4371 = vadd.f32 %v4339, 0.2548296
    %v4372 = vadd.f32 %v4340, 0.2548296
    %v4373 = vadd.f32 %v4341, 0.2548296
    %v4374 = vadd.f32 %v4342, 0.2548296
    %v4375 = vadd.f32 %v4343, 0.2548296
    %v4376 = vadd.f32 %v4344, 0.2548296
    %v4377 = vadd.f32 %v4345, 0.2548296
    %v4378 = vadd.f32 %v4346, 0.2548296
    %v4379 = vmul.f32 %v4347, %v4091
    %v4380 = vmul.f32 %v4348, %v4092
    %v4381 = vmul.f32 %v4349, %v4093
    %v4382 = vmul.f32 %v4350, %v4094
    %v4383 = vmul.f32 %v4351, %v4095
    %v4384 = vmul.f32 %v4352, %v4096
    %v4385 = vmul.f32 %v4353, %v4097
    %v4386 = vmul.f32 %v4354, %v4098
    %v4387 = vmul.f32 %v4355, %v4099
    %v4388 = vmul.f32 %v4356, %v4100
    %v4389 = vmul.f32 %v4357, %v4101
    %v4390 = vmul.f32 %v4358, %v4102
    %v4391 = vmul.f32 %v4359, %v4103
    %v4392 = vmul.f32 %v4360, %v4104
    %v4393 = vmul.f32 %v4361, %v4105
    %v4394 = vmul.f32 %v4362, %v4106
    %v4395 = vmul.f32 %v4363, %v4107
    %v4396 = vmul.f32 %v4364, %v4108
    %v4397 = vmul.f32 %v4365, %v4109
    %v4398 = vmul.f32 %v4366, %v4110
    %v4399 = vmul.f32 %v4367, %v4111
    %v4400 = vmul.f32 %v4368, %v4112
    %v4401 = vmul.f32 %v4369, %v4113
    %v4402 = vmul.f32 %v4370, %v4114
    %v4403 = vmul.f32 %v4371, %v4115
    %v4404 = vmul.f32 %v4372, %v4116
    %v4405 = vmul.f32 %v4373, %v4117
    %v4406 = vmul.f32 %v4374, %v4118
    %v4407 = vmul.f32 %v4375, %v4119
    %v4408 = vmul.f32 %v4376, %v4120
    %v4409 = vmul.f32 %v4377, %v4121
    %v4410 = vmul.f32 %v4378, %v4122
    %v4411 = vsub.f32 0.0, %v3899
    %v4412 = vsub.f32 0.0, %v3900
    %v4413 = vsub.f32 0.0, %v3901
    %v4414 = vsub.f32 0.0, %v3902
    %v4415 = vsub.f32 0.0, %v3903
    %v4416 = vsub.f32 0.0, %v3904
    %v4417 = vsub.f32 0.0, %v3905
    %v4418 = vsub.f32 0.0, %v3906
    %v4419 = vsub.f32 0.0, %v3907
    %v4420 = vsub.f32 0.0, %v3908
    %v4421 = vsub.f32 0.0, %v3909
    %v4422 = vsub.f32 0.0, %v3910
    %v4423 = vsub.f32 0.0, %v3911
    %v4424 = vsub.f32 0.0, %v3912
    %v4425 = vsub.f32 0.0, %v3913
    %v4426 = vsub.f32 0.0, %v3914
    %v4427 = vsub.f32 0.0, %v3915
    %v4428 = vsub.f32 0.0, %v3916
    %v4429 = vsub.f32 0.0, %v3917
    %v4430 = vsub.f32 0.0, %v3918
    %v4431 = vsub.f32 0.0, %v3919
    %v4432 = vsub.f32 0.0, %v3920
    %v4433 = vsub.f32 0.0, %v3921
    %v4434 = vsub.f32 0.0, %v3922
    %v4435 = vsub.f32 0.0, %v3923
    %v4436 = vsub.f32 0.0, %v3924
    %v4437 = vsub.f32 0.0, %v3925
    %v4438 = vsub.f32 0.0, %v3926
    %v4439 = vsub.f32 0.0, %v3927
    %v4440 = vsub.f32 0.0, %v3928
    %v4441 = vsub.f32 0.0, %v3929
    %v4442 = vsub.f32 0.0, %v3930
    %v4443 = vmul.f32 %v4411, %v3899
    %v4444 = vmul.f32 %v4412, %v3900
    %v4445 = vmul.f32 %v4413, %v3901
    %v4446 = vmul.f32 %v4414, %v3902
    %v4447 = vmul.f32 %v4415, %v3903
    %v4448 = vmul.f32 %v4416, %v3904
    %v4449 = vmul.f32 %v4417, %v3905
    %v4450 = vmul.f32 %v4418, %v3906
    %v4451 = vmul.f32 %v4419, %v3907
    %v4452 = vmul.f32 %v4420, %v3908
    %v4453 = vmul.f32 %v4421, %v3909
    %v4454 = vmul.f32 %v4422, %v3910
    %v4455 = vmul.f32 %v4423, %v3911
    %v4456 = vmul.f32 %v4424, %v3912
    %v4457 = vmul.f32 %v4425, %v3913
    %v4458 = vmul.f32 %v4426, %v3914
    %v4459 = vmul.f32 %v4427, %v3915
    %v4460 = vmul.f32 %v4428, %v3916
    %v4461 = vmul.f32 %v4429, %v3917
    %v4462 = vmul.f32 %v4430, %v3918
    %v4463 = vmul.f32 %v4431, %v3919
    %v4464 = vmul.f32 %v4432, %v3920
    %v4465 = vmul.f32 %v4433, %v3921
    %v4466 = vmul.f32 %v4434, %v3922
    %v4467 = vmul.f32 %v4435, %v3923
    %v4468 = vmul.f32 %v4436, %v3924
    %v4469 = vmul.f32 %v4437, %v3925
    %v4470 = vmul.f32 %v4438, %v3926
    %v4471 = vmul.f32 %v4439, %v3927
    %v4472 = vmul.f32 %v4440, %v3928
    %v4473 = vmul.f32 %v4441, %v3929
    %v4474 = vmul.f32 %v4442, %v3930
    %v4475 = vmul.f32 %v4443, 1.442695
    %v4476 = vpow.pop %v4475
    %v4477 = vmul.f32 %v4444, 1.442695
    %v4478 = vpow.pop %v4477
    %v4479 = vmul.f32 %v4445, 1.442695
    %v4480 = vpow.pop %v4479
    %v4481 = vmul.f32 %v4446, 1.442695
    %v4482 = vpow.pop %v4481
    %v4483 = vmul.f32 %v4447, 1.442695
    %v4484 = vpow.pop %v4483
    %v4485 = vmul.f32 %v4448, 1.442695
    %v4486 = vpow.pop %v4485
    %v4487 = vmul.f32 %v4449, 1.442695
    %v4488 = vpow.pop %v4487
    %v4489 = vmul.f32 %v4450, 1.442695
    %v4490 = vpow.pop %v4489
    %v4491 = vmul.f32 %v4451, 1.442695
    %v4492 = vpow.pop %v4491
    %v4493 = vmul.f32 %v4452, 1.442695
    %v4494 = vpow.pop %v4493
    %v4495 = vmul.f32 %v4453, 1.442695
    %v4496 = vpow.pop %v4495
    %v4497 = vmul.f32 %v4454, 1.442695
    %v4498 = vpow.pop %v4497
    %v4499 = vmul.f32 %v4455, 1.442695
    %v4500 = vpow.pop %v4499
    %v4501 = vmul.f32 %v4456, 1.442695
    %v4502 = vpow.pop %v4501
    %v4503 = vmul.f32 %v4457, 1.442695
    %v4504 = vpow.pop %v4503
    %v4505 = vmul.f32 %v4458, 1.442695
    %v4506 = vpow.pop %v4505
    %v4507 = vmul.f32 %v4459, 1.442695
    %v4508 = vpow.pop %v4507
    %v4509 = vmul.f32 %v4460, 1.442695
    %v4510 = vpow.pop %v4509
    %v4511 = vmul.f32 %v4461, 1.442695
    %v4512 = vpow.pop %v4511
    %v4513 = vmul.f32 %v4462, 1.442695
    %v4514 = vpow.pop %v4513
    %v4515 = vmul.f32 %v4463, 1.442695
    %v4516 = vpow.pop %v4515
    %v4517 = vmul.f32 %v4464, 1.442695
    %v4518 = vpow.pop %v4517
    %v4519 = vmul.f32 %v4465, 1.442695
    %v4520 = vpow.pop %v4519
    %v4521 = vmul.f32 %v4466, 1.442695
    %v4522 = vpow.pop %v4521
    %v4523 = vmul.f32 %v4467, 1.442695
    %v4524 = vpow.pop %v4523
    %v4525 = vmul.f32 %v4468, 1.442695
    %v4526 = vpow.pop %v4525
    %v4527 = vmul.f32 %v4469, 1.442695
    %v4528 = vpow.pop %v4527
    %v4529 = vmul.f32 %v4470, 1.442695
    %v4530 = vpow.pop %v4529
    %v4531 = vmul.f32 %v4471, 1.442695
    %v4532 = vpow.pop %v4531
    %v4533 = vmul.f32 %v4472, 1.442695
    %v4534 = vpow.pop %v4533
    %v4535 = vmul.f32 %v4473, 1.442695
    %v4536 = vpow.pop %v4535
    %v4537 = vmul.f32 %v4474, 1.442695
    %v4538 = vpow.pop %v4537
    %v4539 = vmul.f32 %v4379, %v4476
    %v4540 = vmul.f32 %v4380, %v4478
    %v4541 = vmul.f32 %v4381, %v4480
    %v4542 = vmul.f32 %v4382, %v4482
    %v4543 = vmul.f32 %v4383, %v4484
    %v4544 = vmul.f32 %v4384, %v4486
    %v4545 = vmul.f32 %v4385, %v4488
    %v4546 = vmul.f32 %v4386, %v4490
    %v4547 = vmul.f32 %v4387, %v4492
    %v4548 = vmul.f32 %v4388, %v4494
    %v4549 = vmul.f32 %v4389, %v4496
    %v4550 = vmul.f32 %v4390, %v4498
    %v4551 = vmul.f32 %v4391, %v4500
    %v4552 = vmul.f32 %v4392, %v4502
    %v4553 = vmul.f32 %v4393, %v4504
    %v4554 = vmul.f32 %v4394, %v4506
    %v4555 = vmul.f32 %v4395, %v4508
    %v4556 = vmul.f32 %v4396, %v4510
    %v4557 = vmul.f32 %v4397, %v4512
    %v4558 = vmul.f32 %v4398, %v4514
    %v4559 = vmul.f32 %v4399, %v4516
    %v4560 = vmul.f32 %v4400, %v4518
    %v4561 = vmul.f32 %v4401, %v4520
    %v4562 = vmul.f32 %v4402, %v4522
    %v4563 = vmul.f32 %v4403, %v4524
    %v4564 = vmul.f32 %v4404, %v4526
    %v4565 = vmul.f32 %v4405, %v4528
    %v4566 = vmul.f32 %v4406, %v4530
    %v4567 = vmul.f32 %v4407, %v4532
    %v4568 = vmul.f32 %v4408, %v4534
    %v4569 = vmul.f32 %v4409, %v4536
    %v4570 = vmul.f32 %v4410, %v4538
    %v4571 = vsub.f32 1.0, %v4539
    %v4572 = vsub.f32 1.0, %v4540
    %v4573 = vsub.f32 1.0, %v4541
    %v4574 = vsub.f32 1.0, %v4542
    %v4575 = vsub.f32 1.0, %v4543
    %v4576 = vsub.f32 1.0, %v4544
    %v4577 = vsub.f32 1.0, %v4545
    %v4578 = vsub.f32 1.0, %v4546
    %v4579 = vsub.f32 1.0, %v4547
    %v4580 = vsub.f32 1.0, %v4548
    %v4581 = vsub.f32 1.0, %v4549
    %v4582 = vsub.f32 1.0, %v4550
    %v4583 = vsub.f32 1.0, %v4551
    %v4584 = vsub.f32 1.0, %v4552
    %v4585 = vsub.f32 1.0, %v4553
    %v4586 = vsub.f32 1.0, %v4554
    %v4587 = vsub.f32 1.0, %v4555
    %v4588 = vsub.f32 1.0, %v4556
    %v4589 = vsub.f32 1.0, %v4557
    %v4590 = vsub.f32 1.0, %v4558
    %v4591 = vsub.f32 1.0, %v4559
    %v4592 = vsub.f32 1.0, %v4560
    %v4593 = vsub.f32 1.0, %v4561
    %v4594 = vsub.f32 1.0, %v4562
    %v4595 = vsub.f32 1.0, %v4563
    %v4596 = vsub.f32 1.0, %v4564
    %v4597 = vsub.f32 1.0, %v4565
    %v4598 = vsub.f32 1.0, %v4566
    %v4599 = vsub.f32 1.0, %v4567
    %v4600 = vsub.f32 1.0, %v4568
    %v4601 = vsub.f32 1.0, %v4569
    %v4602 = vsub.f32 1.0, %v4570
    %vm4603 = vcmp.ge.f32.partialorder %v3867, 0.0
    %vm4604 = vcmp.ge.f32.partialorder %v3868, 0.0
    %vm4605 = vcmp.ge.f32.partialorder %v3869, 0.0
    %vm4606 = vcmp.ge.f32.partialorder %v3870, 0.0
    %vm4607 = vcmp.ge.f32.partialorder %v3871, 0.0
    %vm4608 = vcmp.ge.f32.partialorder %v3872, 0.0
    %vm4609 = vcmp.ge.f32.partialorder %v3873, 0.0
    %vm4610 = vcmp.ge.f32.partialorder %v3874, 0.0
    %vm4611 = vcmp.ge.f32.partialorder %v3875, 0.0
    %vm4612 = vcmp.ge.f32.partialorder %v3876, 0.0
    %vm4613 = vcmp.ge.f32.partialorder %v3877, 0.0
    %vm4614 = vcmp.ge.f32.partialorder %v3878, 0.0
    %vm4615 = vcmp.ge.f32.partialorder %v3879, 0.0
    %vm4616 = vcmp.ge.f32.partialorder %v3880, 0.0
    %vm4617 = vcmp.ge.f32.partialorder %v3881, 0.0
    %vm4618 = vcmp.ge.f32.partialorder %v3882, 0.0
    %vm4619 = vcmp.ge.f32.partialorder %v3883, 0.0
    %vm4620 = vcmp.ge.f32.partialorder %v3884, 0.0
    %vm4621 = vcmp.ge.f32.partialorder %v3885, 0.0
    %vm4622 = vcmp.ge.f32.partialorder %v3886, 0.0
    %vm4623 = vcmp.ge.f32.partialorder %v3887, 0.0
    %vm4624 = vcmp.ge.f32.partialorder %v3888, 0.0
    %vm4625 = vcmp.ge.f32.partialorder %v3889, 0.0
    %vm4626 = vcmp.ge.f32.partialorder %v3890, 0.0
    %vm4627 = vcmp.ge.f32.partialorder %v3891, 0.0
    %vm4628 = vcmp.ge.f32.partialorder %v3892, 0.0
    %vm4629 = vcmp.ge.f32.partialorder %v3893, 0.0
    %vm4630 = vcmp.ge.f32.partialorder %v3894, 0.0
    %vm4631 = vcmp.ge.f32.partialorder %v3895, 0.0
    %vm4632 = vcmp.ge.f32.partialorder %v3896, 0.0
    %vm4633 = vcmp.ge.f32.partialorder %v3897, 0.0
    %vm4634 = vcmp.ge.f32.partialorder %v3898, 0.0
    %v4635 = vsub.f32 0.0, %v4571
    %v4636 = vsub.f32 0.0, %v4572
    %v4637 = vsub.f32 0.0, %v4573
    %v4638 = vsub.f32 0.0, %v4574
    %v4639 = vsub.f32 0.0, %v4575
    %v4640 = vsub.f32 0.0, %v4576
    %v4641 = vsub.f32 0.0, %v4577
    %v4642 = vsub.f32 0.0, %v4578
    %v4643 = vsub.f32 0.0, %v4579
    %v4644 = vsub.f32 0.0, %v4580
    %v4645 = vsub.f32 0.0, %v4581
    %v4646 = vsub.f32 0.0, %v4582
    %v4647 = vsub.f32 0.0, %v4583
    %v4648 = vsub.f32 0.0, %v4584
    %v4649 = vsub.f32 0.0, %v4585
    %v4650 = vsub.f32 0.0, %v4586
    %v4651 = vsub.f32 0.0, %v4587
    %v4652 = vsub.f32 0.0, %v4588
    %v4653 = vsub.f32 0.0, %v4589
    %v4654 = vsub.f32 0.0, %v4590
    %v4655 = vsub.f32 0.0, %v4591
    %v4656 = vsub.f32 0.0, %v4592
    %v4657 = vsub.f32 0.0, %v4593
    %v4658 = vsub.f32 0.0, %v4594
    %v4659 = vsub.f32 0.0, %v4595
    %v4660 = vsub.f32 0.0, %v4596
    %v4661 = vsub.f32 0.0, %v4597
    %v4662 = vsub.f32 0.0, %v4598
    %v4663 = vsub.f32 0.0, %v4599
    %v4664 = vsub.f32 0.0, %v4600
    %v4665 = vsub.f32 0.0, %v4601
    %v4666 = vsub.f32 0.0, %v4602
    %v4667 = vsel %vm4603, %v4571, %v4635
    %v4668 = vsel %vm4604, %v4572, %v4636
    %v4669 = vsel %vm4605, %v4573, %v4637
    %v4670 = vsel %vm4606, %v4574, %v4638
    %v4671 = vsel %vm4607, %v4575, %v4639
    %v4672 = vsel %vm4608, %v4576, %v4640
    %v4673 = vsel %vm4609, %v4577, %v4641
    %v4674 = vsel %vm4610, %v4578, %v4642
    %v4675 = vsel %vm4611, %v4579, %v4643
    %v4676 = vsel %vm4612, %v4580, %v4644
    %v4677 = vsel %vm4613, %v4581, %v4645
    %v4678 = vsel %vm4614, %v4582, %v4646
    %v4679 = vsel %vm4615, %v4583, %v4647
    %v4680 = vsel %vm4616, %v4584, %v4648
    %v4681 = vsel %vm4617, %v4585, %v4649
    %v4682 = vsel %vm4618, %v4586, %v4650
    %v4683 = vsel %vm4619, %v4587, %v4651
    %v4684 = vsel %vm4620, %v4588, %v4652
    %v4685 = vsel %vm4621, %v4589, %v4653
    %v4686 = vsel %vm4622, %v4590, %v4654
    %v4687 = vsel %vm4623, %v4591, %v4655
    %v4688 = vsel %vm4624, %v4592, %v4656
    %v4689 = vsel %vm4625, %v4593, %v4657
    %v4690 = vsel %vm4626, %v4594, %v4658
    %v4691 = vsel %vm4627, %v4595, %v4659
    %v4692 = vsel %vm4628, %v4596, %v4660
    %v4693 = vsel %vm4629, %v4597, %v4661
    %v4694 = vsel %vm4630, %v4598, %v4662
    %v4695 = vsel %vm4631, %v4599, %v4663
    %v4696 = vsel %vm4632, %v4600, %v4664
    %v4697 = vsel %vm4633, %v4601, %v4665
    %v4698 = vsel %vm4634, %v4602, %v4666
    %v4699 = vadd.f32 %v4667, 1.0
    %v4700 = vadd.f32 %v4668, 1.0
    %v4701 = vadd.f32 %v4669, 1.0
    %v4702 = vadd.f32 %v4670, 1.0
    %v4703 = vadd.f32 %v4671, 1.0
    %v4704 = vadd.f32 %v4672, 1.0
    %v4705 = vadd.f32 %v4673, 1.0
    %v4706 = vadd.f32 %v4674, 1.0
    %v4707 = vadd.f32 %v4675, 1.0
    %v4708 = vadd.f32 %v4676, 1.0
    %v4709 = vadd.f32 %v4677, 1.0
    %v4710 = vadd.f32 %v4678, 1.0
    %v4711 = vadd.f32 %v4679, 1.0
    %v4712 = vadd.f32 %v4680, 1.0
    %v4713 = vadd.f32 %v4681, 1.0
    %v4714 = vadd.f32 %v4682, 1.0
    %v4715 = vadd.f32 %v4683, 1.0
    %v4716 = vadd.f32 %v4684, 1.0
    %v4717 = vadd.f32 %v4685, 1.0
    %v4718 = vadd.f32 %v4686, 1.0
    %v4719 = vadd.f32 %v4687, 1.0
    %v4720 = vadd.f32 %v4688, 1.0
    %v4721 = vadd.f32 %v4689, 1.0
    %v4722 = vadd.f32 %v4690, 1.0
    %v4723 = vadd.f32 %v4691, 1.0
    %v4724 = vadd.f32 %v4692, 1.0
    %v4725 = vadd.f32 %v4693, 1.0
    %v4726 = vadd.f32 %v4694, 1.0
    %v4727 = vadd.f32 %v4695, 1.0
    %v4728 = vadd.f32 %v4696, 1.0
    %v4729 = vadd.f32 %v4697, 1.0
    %v4730 = vadd.f32 %v4698, 1.0
    %v4731 = vmul.f32 %v3835, %v4699
    %v4732 = vmul.f32 %v3836, %v4700
    %v4733 = vmul.f32 %v3837, %v4701
    %v4734 = vmul.f32 %v3838, %v4702
    %v4735 = vmul.f32 %v3839, %v4703
    %v4736 = vmul.f32 %v3840, %v4704
    %v4737 = vmul.f32 %v3841, %v4705
    %v4738 = vmul.f32 %v3842, %v4706
    %v4739 = vmul.f32 %v3843, %v4707
    %v4740 = vmul.f32 %v3844, %v4708
    %v4741 = vmul.f32 %v3845, %v4709
    %v4742 = vmul.f32 %v3846, %v4710
    %v4743 = vmul.f32 %v3847, %v4711
    %v4744 = vmul.f32 %v3848, %v4712
    %v4745 = vmul.f32 %v3849, %v4713
    %v4746 = vmul.f32 %v3850, %v4714
    %v4747 = vmul.f32 %v3851, %v4715
    %v4748 = vmul.f32 %v3852, %v4716
    %v4749 = vmul.f32 %v3853, %v4717
    %v4750 = vmul.f32 %v3854, %v4718
    %v4751 = vmul.f32 %v3855, %v4719
    %v4752 = vmul.f32 %v3856, %v4720
    %v4753 = vmul.f32 %v3857, %v4721
    %v4754 = vmul.f32 %v3858, %v4722
    %v4755 = vmul.f32 %v3859, %v4723
    %v4756 = vmul.f32 %v3860, %v4724
    %v4757 = vmul.f32 %v3861, %v4725
    %v4758 = vmul.f32 %v3862, %v4726
    %v4759 = vmul.f32 %v3863, %v4727
    %v4760 = vmul.f32 %v3864, %v4728
    %v4761 = vmul.f32 %v3865, %v4729
    %v4762 = vmul.f32 %v3866, %v4730
    %s4763 = scalar_lea.vmem [#allocation2], 96
    %v4764 = vld [vmem:[%s4763] sm:$0xff]
    %v4765 = vld [vmem:[%s4763 + $0x8] sm:$0xff]
    %v4766 = vld [vmem:[%s4763 + $0x10] sm:$0xff]
    %v4767 = vld [vmem:[%s4763 + $0x18] sm:$0xff]
    %v4768 = vld [vmem:[%s4763 + $0x20] sm:$0xff]
    %v4769 = vld [vmem:[%s4763 + $0x28] sm:$0xff]
    %v4770 = vld [vmem:[%s4763 + $0x30] sm:$0xff]
    %v4771 = vld [vmem:[%s4763 + $0x38] sm:$0xff]
    %v4772 = vld [vmem:[%s4763 + $0x40] sm:$0xff]
    %v4773 = vld [vmem:[%s4763 + $0x48] sm:$0xff]
    %v4774 = vld [vmem:[%s4763 + $0x50] sm:$0xff]
    %v4775 = vld [vmem:[%s4763 + $0x58] sm:$0xff]
    %v4776 = vrot.slane %v4731, 7
    %v4777 = vrot.slane %v4732, 7
    %v4778 = vrot.slane %v4733, 7
    %v4779 = vrot.slane %v4734, 7
    %v4780 = vrot.slane %v4735, 7
    %v4781 = vrot.slane %v4736, 7
    %v4782 = vrot.slane %v4737, 7
    %v4783 = vrot.slane %v4738, 7
    %v4784 = vrot.slane %v4739, 7
    %v4785 = vrot.slane %v4740, 7
    %v4786 = vrot.slane %v4741, 7
    %v4787 = vrot.slane %v4742, 7
    %v4788 = vrot.slane %v4743, 7
    %v4789 = vrot.slane %v4744, 7
    %v4790 = vrot.slane %v4745, 7
    %v4791 = vrot.slane %v4746, 7
    %v4792 = vrot.slane %v4747, 7
    %v4793 = vrot.slane %v4748, 7
    %v4794 = vrot.slane %v4749, 7
    %v4795 = vrot.slane %v4750, 7
    %v4796 = vrot.slane %v4751, 7
    %v4797 = vrot.slane %v4752, 7
    %v4798 = vrot.slane %v4753, 7
    %v4799 = vrot.slane %v4754, 7
    %v4800 = vrot.slane %v4755, 7
    %v4801 = vrot.slane %v4756, 7
    %v4802 = vrot.slane %v4757, 7
    %v4803 = vrot.slane %v4758, 7
    %v4804 = vrot.slane %v4759, 7
    %v4805 = vrot.slane %v4760, 7
    %v4806 = vrot.slane %v4761, 7
    %v4807 = vrot.slane %v4762, 7
    %v4808 = vsel %vm363, %v4806, %v4807
    %v4809 = vsel %vm363, %v4805, %v4806
    %v4810 = vsel %vm363, %v4804, %v4805
    %v4811 = vsel %vm363, %v4803, %v4804
    %v4812 = vsel %vm363, %v4802, %v4803
    %v4813 = vsel %vm363, %v4801, %v4802
    %v4814 = vsel %vm363, %v4800, %v4801
    %v4815 = vsel %vm363, %v4799, %v4800
    %v4816 = vsel %vm363, %v4798, %v4799
    %v4817 = vsel %vm363, %v4797, %v4798
    %v4818 = vsel %vm363, %v4796, %v4797
    %v4819 = vsel %vm363, %v4795, %v4796
    %v4820 = vsel %vm363, %v4794, %v4795
    %v4821 = vsel %vm363, %v4793, %v4794
    %v4822 = vsel %vm363, %v4792, %v4793
    %v4823 = vsel %vm363, %v4791, %v4792
    %v4824 = vsel %vm363, %v4790, %v4791
    %v4825 = vsel %vm363, %v4789, %v4790
    %v4826 = vsel %vm363, %v4788, %v4789
    %v4827 = vsel %vm363, %v4787, %v4788
    %v4828 = vsel %vm363, %v4786, %v4787
    %v4829 = vsel %vm363, %v4785, %v4786
    %v4830 = vsel %vm363, %v4784, %v4785
    %v4831 = vsel %vm363, %v4783, %v4784
    %v4832 = vsel %vm363, %v4782, %v4783
    %v4833 = vsel %vm363, %v4781, %v4782
    %v4834 = vsel %vm363, %v4780, %v4781
    %v4835 = vsel %vm363, %v4779, %v4780
    %v4836 = vsel %vm363, %v4778, %v4779
    %v4837 = vsel %vm363, %v4777, %v4778
    %v4838 = vsel %vm363, %v4776, %v4777
    %v4839 = vsel %vm363, %v4807, %v4776
    %v4840 = vmul.f32 %v4839, %v200
    %v4841 = vmul.f32 %v4838, %v201
    %v4842 = vmul.f32 %v4837, %v202
    %v4843 = vmul.f32 %v4836, %v203
    %v4844 = vmul.f32 %v4835, %v204
    %v4845 = vmul.f32 %v4834, %v205
    %v4846 = vmul.f32 %v4833, %v206
    %v4847 = vmul.f32 %v4832, %v207
    %v4848 = vmul.f32 %v4831, %v208
    %v4849 = vmul.f32 %v4830, %v209
    %v4850 = vmul.f32 %v4829, %v210
    %v4851 = vmul.f32 %v4828, %v211
    %v4852 = vmul.f32 %v4827, %v212
    %v4853 = vmul.f32 %v4826, %v213
    %v4854 = vmul.f32 %v4825, %v214
    %v4855 = vmul.f32 %v4824, %v215
    %v4856 = vmul.f32 %v4823, %v216
    %v4857 = vmul.f32 %v4822, %v217
    %v4858 = vmul.f32 %v4821, %v218
    %v4859 = vmul.f32 %v4820, %v219
    %v4860 = vmul.f32 %v4819, %v220
    %v4861 = vmul.f32 %v4818, %v221
    %v4862 = vmul.f32 %v4817, %v222
    %v4863 = vmul.f32 %v4816, %v223
    %v4864 = vmul.f32 %v4815, %v224
    %v4865 = vmul.f32 %v4814, %v225
    %v4866 = vmul.f32 %v4813, %v226
    %v4867 = vmul.f32 %v4812, %v227
    %v4868 = vmul.f32 %v4811, %v228
    %v4869 = vmul.f32 %v4810, %v229
    %v4870 = vmul.f32 %v4809, %v230
    %v4871 = vmul.f32 %v4808, %v231
    %v4872 = vrot.slane %v4731, 1
    %v4873 = vrot.slane %v4732, 1
    %v4874 = vrot.slane %v4733, 1
    %v4875 = vrot.slane %v4734, 1
    %v4876 = vrot.slane %v4735, 1
    %v4877 = vrot.slane %v4736, 1
    %v4878 = vrot.slane %v4737, 1
    %v4879 = vrot.slane %v4738, 1
    %v4880 = vrot.slane %v4739, 1
    %v4881 = vrot.slane %v4740, 1
    %v4882 = vrot.slane %v4741, 1
    %v4883 = vrot.slane %v4742, 1
    %v4884 = vrot.slane %v4743, 1
    %v4885 = vrot.slane %v4744, 1
    %v4886 = vrot.slane %v4745, 1
    %v4887 = vrot.slane %v4746, 1
    %v4888 = vrot.slane %v4747, 1
    %v4889 = vrot.slane %v4748, 1
    %v4890 = vrot.slane %v4749, 1
    %v4891 = vrot.slane %v4750, 1
    %v4892 = vrot.slane %v4751, 1
    %v4893 = vrot.slane %v4752, 1
    %v4894 = vrot.slane %v4753, 1
    %v4895 = vrot.slane %v4754, 1
    %v4896 = vrot.slane %v4755, 1
    %v4897 = vrot.slane %v4756, 1
    %v4898 = vrot.slane %v4757, 1
    %v4899 = vrot.slane %v4758, 1
    %v4900 = vrot.slane %v4759, 1
    %v4901 = vrot.slane %v4760, 1
    %v4902 = vrot.slane %v4761, 1
    %v4903 = vrot.slane %v4762, 1
    %v4904 = vsel %vm460, %v4902, %v4903
    %v4905 = vsel %vm460, %v4901, %v4902
    %v4906 = vsel %vm460, %v4900, %v4901
    %v4907 = vsel %vm460, %v4899, %v4900
    %v4908 = vsel %vm460, %v4898, %v4899
    %v4909 = vsel %vm460, %v4897, %v4898
    %v4910 = vsel %vm460, %v4896, %v4897
    %v4911 = vsel %vm460, %v4895, %v4896
    %v4912 = vsel %vm460, %v4894, %v4895
    %v4913 = vsel %vm460, %v4893, %v4894
    %v4914 = vsel %vm460, %v4892, %v4893
    %v4915 = vsel %vm460, %v4891, %v4892
    %v4916 = vsel %vm460, %v4890, %v4891
    %v4917 = vsel %vm460, %v4889, %v4890
    %v4918 = vsel %vm460, %v4888, %v4889
    %v4919 = vsel %vm460, %v4887, %v4888
    %v4920 = vsel %vm460, %v4886, %v4887
    %v4921 = vsel %vm460, %v4885, %v4886
    %v4922 = vsel %vm460, %v4884, %v4885
    %v4923 = vsel %vm460, %v4883, %v4884
    %v4924 = vsel %vm460, %v4882, %v4883
    %v4925 = vsel %vm460, %v4881, %v4882
    %v4926 = vsel %vm460, %v4880, %v4881
    %v4927 = vsel %vm460, %v4879, %v4880
    %v4928 = vsel %vm460, %v4878, %v4879
    %v4929 = vsel %vm460, %v4877, %v4878
    %v4930 = vsel %vm460, %v4876, %v4877
    %v4931 = vsel %vm460, %v4875, %v4876
    %v4932 = vsel %vm460, %v4874, %v4875
    %v4933 = vsel %vm460, %v4873, %v4874
    %v4934 = vsel %vm460, %v4872, %v4873
    %v4935 = vsel %vm460, %v4903, %v4872
    %v4936 = vmul.f32 %v4934, %v296
    %v4937 = vmul.f32 %v4933, %v297
    %v4938 = vmul.f32 %v4932, %v298
    %v4939 = vmul.f32 %v4931, %v299
    %v4940 = vmul.f32 %v4930, %v300
    %v4941 = vmul.f32 %v4929, %v301
    %v4942 = vmul.f32 %v4928, %v302
    %v4943 = vmul.f32 %v4927, %v303
    %v4944 = vmul.f32 %v4926, %v304
    %v4945 = vmul.f32 %v4925, %v305
    %v4946 = vmul.f32 %v4924, %v306
    %v4947 = vmul.f32 %v4923, %v307
    %v4948 = vmul.f32 %v4922, %v308
    %v4949 = vmul.f32 %v4921, %v309
    %v4950 = vmul.f32 %v4920, %v310
    %v4951 = vmul.f32 %v4919, %v311
    %v4952 = vmul.f32 %v4918, %v312
    %v4953 = vmul.f32 %v4917, %v313
    %v4954 = vmul.f32 %v4916, %v314
    %v4955 = vmul.f32 %v4915, %v315
    %v4956 = vmul.f32 %v4914, %v316
    %v4957 = vmul.f32 %v4913, %v317
    %v4958 = vmul.f32 %v4912, %v318
    %v4959 = vmul.f32 %v4911, %v319
    %v4960 = vmul.f32 %v4910, %v320
    %v4961 = vmul.f32 %v4909, %v321
    %v4962 = vmul.f32 %v4908, %v322
    %v4963 = vmul.f32 %v4907, %v323
    %v4964 = vmul.f32 %v4906, %v324
    %v4965 = vmul.f32 %v4905, %v325
    %v4966 = vmul.f32 %v4904, %v326
    %v4967 = vmul.f32 %v4935, %v327
    %v4969 = vsel %vm2735, %v4731, 0
    %v4972 = vsel %vm2735, %v4732, 0
    %v4975 = vsel %vm2735, %v4733, 0
    %v4978 = vsel %vm2735, %v4734, 0
    %v4981 = vsel %vm2735, %v4735, 0
    %v4984 = vsel %vm2735, %v4736, 0
    %v4987 = vsel %vm2735, %v4737, 0
    %v4990 = vsel %vm2735, %v4738, 0
    %v4993 = vsel %vm2735, %v4739, 0
    %v4996 = vsel %vm2735, %v4740, 0
    %v4999 = vsel %vm2735, %v4741, 0
    %v5002 = vsel %vm2735, %v4742, 0
    %v5005 = vsel %vm2735, %v4743, 0
    %v5008 = vsel %vm2735, %v4744, 0
    %v5011 = vsel %vm2735, %v4745, 0
    %v5014 = vsel %vm2735, %v4746, 0
    %v5017 = vsel %vm2735, %v4747, 0
    %v5020 = vsel %vm2735, %v4748, 0
    %v5023 = vsel %vm2735, %v4749, 0
    %v5026 = vsel %vm2735, %v4750, 0
    %v5029 = vsel %vm2735, %v4751, 0
    %v5032 = vsel %vm2735, %v4752, 0
    %v5035 = vsel %vm2735, %v4753, 0
    %v5038 = vsel %vm2735, %v4754, 0
    %v5041 = vsel %vm2735, %v4755, 0
    %v5044 = vsel %vm2735, %v4756, 0
    %v5047 = vsel %vm2735, %v4757, 0
    %v5050 = vsel %vm2735, %v4758, 0
    %v5053 = vsel %vm2735, %v4759, 0
    %v5056 = vsel %vm2735, %v4760, 0
    %v5059 = vsel %vm2735, %v4761, 0
    %v5062 = vsel %vm2735, %v4762, 0
    %5064 = vmatprep.subr.mxu0 0.0
    %5065 = vmatpush1.msra.mxu0 %v4768
    %5066 = vmatprep.subr.mxu0 0.0
    %5067 = vmatpush1.msra.mxu0 %v4769
    %5068 = vmatprep.subr.mxu0 0.0
    %5069 = vmatpush1.msra.mxu0 %v4770
    %5070 = vmatprep.subr.mxu0 0.0
    %5071 = vmatpush1.msra.mxu0 %v4771
    %5072 = vmatprep.subr.mxu0 0.0
    %5073 = vmatpush1.msra.mxu0 0.0
    %5074 = vmatprep.subr.mxu0 0.0
    %5075 = vmatpush1.msra.mxu0 0.0
    %5076 = vmatprep.subr.mxu0 0.0
    %5077 = vmatpush1.msra.mxu0 0.0
    %5078 = vmatprep.subr.mxu0 0.0
    %5079 = vmatpush1.msra.mxu0 0.0
    %5080 = vmatprep.subr.mxu0 0.0
    %5081 = vmatpush1.msra.mxu0 0.0
    %5082 = vmatprep.subr.mxu0 0.0
    %5083 = vmatpush1.msra.mxu0 0.0
    %5084 = vmatprep.subr.mxu0 0.0
    %5085 = vmatpush1.msra.mxu0 0.0
    %5086 = vmatprep.subr.mxu0 0.0
    %5087 = vmatpush1.msra.mxu0 0.0
    %5088 = vmatprep.subr.mxu0 0.0
    %5089 = vmatpush1.msra.mxu0 0.0
    %5090 = vmatprep.subr.mxu0 0.0
    %5091 = vmatpush1.msra.mxu0 0.0
    %5092 = vmatprep.subr.mxu0 0.0
    %5093 = vmatpush1.msra.mxu0 0.0
    %5094 = vmatprep.subr.mxu0 0.0
    %5095 = vmatpush1.msra.mxu0 0.0
    %5096 = vmatprep.subr.mxu0 0.0
    %5097 = vmatpush1.msra.mxu0 0.0
    %5098 = vmatprep.subr.mxu0 0.0
    %5099 = vmatpush1.msra.mxu0 0.0
    %5100 = vmatprep.subr.mxu0 0.0
    %5101 = vmatpush1.msra.mxu0 0.0
    %5102 = vmatprep.subr.mxu0 0.0
    %5103 = vmatpush1.msra.mxu0 0.0
    %5104 = vmatprep.subr.mxu0 0.0
    %5105 = vmatpush1.msra.mxu0 0.0
    %5106 = vmatprep.subr.mxu0 0.0
    %5107 = vmatpush1.msra.mxu0 0.0
    %5108 = vmatprep.subr.mxu0 0.0
    %5109 = vmatpush1.msra.mxu0 0.0
    %5110 = vmatprep.subr.mxu0 0.0
    %5111 = vmatpush1.msra.mxu0 0.0
    %5112 = vmatprep.subr.mxu0 0.0
    %5113 = vmatpush1.msra.mxu0 0.0
    %5114 = vmatprep.subr.mxu0 0.0
    %5115 = vmatpush1.msra.mxu0 0.0
    %5116 = vmatprep.subr.mxu0 0.0
    %5117 = vmatpush1.msra.mxu0 0.0
    %5118 = vmatprep.subr.mxu0 0.0
    %5119 = vmatpush1.msra.mxu0 0.0
    %5120 = vmatprep.subr.mxu0 0.0
    %5121 = vmatpush1.msra.mxu0 0.0
    %5122 = vmatprep.subr.mxu0 0.0
    %5123 = vmatpush1.msra.mxu0 0.0
    %5124 = vmatprep.subr.mxu0 0.0
    %5125 = vmatpush1.msra.mxu0 0.0
    %5126 = vmatprep.subr.mxu0 0.0
    %5127 = vmatpush1.msra.mxu0 0.0
    %5128 = vmatprep.mubr.f32.mxu0 0.0
    %5129 = vmatmul.mubr.f32.gmra.mrb[0].mxu0 %v4969
    %v5130 = vpop.f32.mrb[0].mxu0
    %v5131 = vadd.f32 0.0, %v5130
    %v5132 = vpop.f32.mrb[0].mxu0
    %5133 = vmatprep.mubr.f32.mxu0 0.0
    %5134 = vmatmul.mubr.f32.gmra.mrb[0].mxu0 %v4972
    %v5135 = vpop.f32.mrb[0].mxu0
    %v5136 = vadd.f32 0.0, %v5135
    %v5137 = vpop.f32.mrb[0].mxu0
    %5138 = vmatprep.mubr.f32.mxu0 0.0
    %5139 = vmatmul.mubr.f32.gmra.mrb[0].mxu0 %v4975
    %v5140 = vpop.f32.mrb[0].mxu0
    %v5141 = vadd.f32 0.0, %v5140
    %v5142 = vpop.f32.mrb[0].mxu0
    %5143 = vmatprep.mubr.f32.mxu0 0.0
    %5144 = vmatmul.mubr.f32.gmra.mrb[0].mxu0 %v4978
    %v5145 = vpop.f32.mrb[0].mxu0
    %v5146 = vadd.f32 0.0, %v5145
    %v5147 = vpop.f32.mrb[0].mxu0
    %5148 = vmatprep.mubr.f32.mxu0 0.0
    %5149 = vmatmul.mubr.f32.gmra.mrb[0].mxu0 %v4981
    %v5150 = vpop.f32.mrb[0].mxu0
    %v5151 = vadd.f32 0.0, %v5150
    %v5152 = vpop.f32.mrb[0].mxu0
    %5153 = vmatprep.mubr.f32.mxu0 0.0
    %5154 = vmatmul.mubr.f32.gmra.mrb[0].mxu0 %v4984
    %v5155 = vpop.f32.mrb[0].mxu0
    %v5156 = vadd.f32 0.0, %v5155
    %v5157 = vpop.f32.mrb[0].mxu0
    %5158 = vmatprep.mubr.f32.mxu0 0.0
    %5159 = vmatmul.mubr.f32.gmra.mrb[0].mxu0 %v4987
    %v5160 = vpop.f32.mrb[0].mxu0
    %v5161 = vadd.f32 0.0, %v5160
    %v5162 = vpop.f32.mrb[0].mxu0
    %5163 = vmatprep.mubr.f32.mxu0 0.0
    %5164 = vmatmul.mubr.f32.gmra.mrb[0].mxu0 %v4990
    %v5165 = vpop.f32.mrb[0].mxu0
    %v5166 = vadd.f32 0.0, %v5165
    %v5167 = vpop.f32.mrb[0].mxu0
    %5168 = vmatprep.mubr.f32.mxu0 0.0
    %5169 = vmatmul.mubr.f32.gmra.mrb[0].mxu0 %v4993
    %v5170 = vpop.f32.mrb[0].mxu0
    %v5171 = vadd.f32 0.0, %v5170
    %v5172 = vpop.f32.mrb[0].mxu0
    %5173 = vmatprep.mubr.f32.mxu0 0.0
    %5174 = vmatmul.mubr.f32.gmra.mrb[0].mxu0 %v4996
    %v5175 = vpop.f32.mrb[0].mxu0
    %v5176 = vadd.f32 0.0, %v5175
    %v5177 = vpop.f32.mrb[0].mxu0
    %5178 = vmatprep.mubr.f32.mxu0 0.0
    %5179 = vmatmul.mubr.f32.gmra.mrb[0].mxu0 %v4999
    %v5180 = vpop.f32.mrb[0].mxu0
    %v5181 = vadd.f32 0.0, %v5180
    %v5182 = vpop.f32.mrb[0].mxu0
    %5183 = vmatprep.mubr.f32.mxu0 0.0
    %5184 = vmatmul.mubr.f32.gmra.mrb[0].mxu0 %v5002
    %v5185 = vpop.f32.mrb[0].mxu0
    %v5186 = vadd.f32 0.0, %v5185
    %v5187 = vpop.f32.mrb[0].mxu0
    %5188 = vmatprep.mubr.f32.mxu0 0.0
    %5189 = vmatmul.mubr.f32.gmra.mrb[0].mxu0 %v5005
    %v5190 = vpop.f32.mrb[0].mxu0
    %v5191 = vadd.f32 0.0, %v5190
    %v5192 = vpop.f32.mrb[0].mxu0
    %5193 = vmatprep.mubr.f32.mxu0 0.0
    %5194 = vmatmul.mubr.f32.gmra.mrb[0].mxu0 %v5008
    %v5195 = vpop.f32.mrb[0].mxu0
    %v5196 = vadd.f32 0.0, %v5195
    %v5197 = vpop.f32.mrb[0].mxu0
    %5198 = vmatprep.mubr.f32.mxu0 0.0
    %5199 = vmatmul.mubr.f32.gmra.mrb[0].mxu0 %v5011
    %v5200 = vpop.f32.mrb[0].mxu0
    %v5201 = vadd.f32 0.0, %v5200
    %v5202 = vpop.f32.mrb[0].mxu0
    %5203 = vmatprep.mubr.f32.mxu0 0.0
    %5204 = vmatmul.mubr.f32.gmra.mrb[0].mxu0 %v5014
    %v5205 = vpop.f32.mrb[0].mxu0
    %v5206 = vadd.f32 0.0, %v5205
    %v5207 = vpop.f32.mrb[0].mxu0
    %5208 = vmatprep.mubr.f32.mxu0 0.0
    %5209 = vmatmul.mubr.f32.gmra.mrb[0].mxu0 %v5017
    %v5210 = vpop.f32.mrb[0].mxu0
    %v5211 = vadd.f32 0.0, %v5210
    %v5212 = vpop.f32.mrb[0].mxu0
    %5213 = vmatprep.mubr.f32.mxu0 0.0
    %5214 = vmatmul.mubr.f32.gmra.mrb[0].mxu0 %v5020
    %v5215 = vpop.f32.mrb[0].mxu0
    %v5216 = vadd.f32 0.0, %v5215
    %v5217 = vpop.f32.mrb[0].mxu0
    %5218 = vmatprep.mubr.f32.mxu0 0.0
    %5219 = vmatmul.mubr.f32.gmra.mrb[0].mxu0 %v5023
    %v5220 = vpop.f32.mrb[0].mxu0
    %v5221 = vadd.f32 0.0, %v5220
    %v5222 = vpop.f32.mrb[0].mxu0
    %5223 = vmatprep.mubr.f32.mxu0 0.0
    %5224 = vmatmul.mubr.f32.gmra.mrb[0].mxu0 %v5026
    %v5225 = vpop.f32.mrb[0].mxu0
    %v5226 = vadd.f32 0.0, %v5225
    %v5227 = vpop.f32.mrb[0].mxu0
    %5228 = vmatprep.mubr.f32.mxu0 0.0
    %5229 = vmatmul.mubr.f32.gmra.mrb[0].mxu0 %v5029
    %v5230 = vpop.f32.mrb[0].mxu0
    %v5231 = vadd.f32 0.0, %v5230
    %v5232 = vpop.f32.mrb[0].mxu0
    %5233 = vmatprep.mubr.f32.mxu0 0.0
    %5234 = vmatmul.mubr.f32.gmra.mrb[0].mxu0 %v5032
    %v5235 = vpop.f32.mrb[0].mxu0
    %v5236 = vadd.f32 0.0, %v5235
    %v5237 = vpop.f32.mrb[0].mxu0
    %5238 = vmatprep.mubr.f32.mxu0 0.0
    %5239 = vmatmul.mubr.f32.gmra.mrb[0].mxu0 %v5035
    %v5240 = vpop.f32.mrb[0].mxu0
    %v5241 = vadd.f32 0.0, %v5240
    %v5242 = vpop.f32.mrb[0].mxu0
    %5243 = vmatprep.mubr.f32.mxu0 0.0
    %5244 = vmatmul.mubr.f32.gmra.mrb[0].mxu0 %v5038
    %v5245 = vpop.f32.mrb[0].mxu0
    %v5246 = vadd.f32 0.0, %v5245
    %v5247 = vpop.f32.mrb[0].mxu0
    %5248 = vmatprep.mubr.f32.mxu0 0.0
    %5249 = vmatmul.mubr.f32.gmra.mrb[0].mxu0 %v5041
    %v5250 = vpop.f32.mrb[0].mxu0
    %v5251 = vadd.f32 0.0, %v5250
    %v5252 = vpop.f32.mrb[0].mxu0
    %5253 = vmatprep.mubr.f32.mxu0 0.0
    %5254 = vmatmul.mubr.f32.gmra.mrb[0].mxu0 %v5044
    %v5255 = vpop.f32.mrb[0].mxu0
    %v5256 = vadd.f32 0.0, %v5255
    %v5257 = vpop.f32.mrb[0].mxu0
    %5258 = vmatprep.mubr.f32.mxu0 0.0
    %5259 = vmatmul.mubr.f32.gmra.mrb[0].mxu0 %v5047
    %v5260 = vpop.f32.mrb[0].mxu0
    %v5261 = vadd.f32 0.0, %v5260
    %v5262 = vpop.f32.mrb[0].mxu0
    %5263 = vmatprep.mubr.f32.mxu0 0.0
    %5264 = vmatmul.mubr.f32.gmra.mrb[0].mxu0 %v5050
    %v5265 = vpop.f32.mrb[0].mxu0
    %v5266 = vadd.f32 0.0, %v5265
    %v5267 = vpop.f32.mrb[0].mxu0
    %5268 = vmatprep.mubr.f32.mxu0 0.0
    %5269 = vmatmul.mubr.f32.gmra.mrb[0].mxu0 %v5053
    %v5270 = vpop.f32.mrb[0].mxu0
    %v5271 = vadd.f32 0.0, %v5270
    %v5272 = vpop.f32.mrb[0].mxu0
    %5273 = vmatprep.mubr.f32.mxu0 0.0
    %5274 = vmatmul.mubr.f32.gmra.mrb[0].mxu0 %v5056
    %v5275 = vpop.f32.mrb[0].mxu0
    %v5276 = vadd.f32 0.0, %v5275
    %v5277 = vpop.f32.mrb[0].mxu0
    %5278 = vmatprep.mubr.f32.mxu0 0.0
    %5279 = vmatmul.mubr.f32.gmra.mrb[0].mxu0 %v5059
    %v5280 = vpop.f32.mrb[0].mxu0
    %v5281 = vadd.f32 0.0, %v5280
    %v5282 = vpop.f32.mrb[0].mxu0
    %5283 = vmatprep.mubr.f32.mxu0 0.0
    %5284 = vmatmul.mubr.f32.gmra.mrb[0].mxu0 %v5062
    %v5285 = vpop.f32.mrb[0].mxu0
    %v5286 = vadd.f32 0.0, %v5285
    %v5287 = vpop.f32.mrb[0].mxu0
    %5288 = vdwg.mxu0
    %v5290 = vsel %vm2735, %v4840, 0
    %v5293 = vsel %vm2735, %v4841, 0
    %v5296 = vsel %vm2735, %v4842, 0
    %v5299 = vsel %vm2735, %v4843, 0
    %v5302 = vsel %vm2735, %v4844, 0
    %v5305 = vsel %vm2735, %v4845, 0
    %v5308 = vsel %vm2735, %v4846, 0
    %v5311 = vsel %vm2735, %v4847, 0
    %v5314 = vsel %vm2735, %v4848, 0
    %v5317 = vsel %vm2735, %v4849, 0
    %v5320 = vsel %vm2735, %v4850, 0
    %v5323 = vsel %vm2735, %v4851, 0
    %v5326 = vsel %vm2735, %v4852, 0
    %v5329 = vsel %vm2735, %v4853, 0
    %v5332 = vsel %vm2735, %v4854, 0
    %v5335 = vsel %vm2735, %v4855, 0
    %v5338 = vsel %vm2735, %v4856, 0
    %v5341 = vsel %vm2735, %v4857, 0
    %v5344 = vsel %vm2735, %v4858, 0
    %v5347 = vsel %vm2735, %v4859, 0
    %v5350 = vsel %vm2735, %v4860, 0
    %v5353 = vsel %vm2735, %v4861, 0
    %v5356 = vsel %vm2735, %v4862, 0
    %v5359 = vsel %vm2735, %v4863, 0
    %v5362 = vsel %vm2735, %v4864, 0
    %v5365 = vsel %vm2735, %v4865, 0
    %v5368 = vsel %vm2735, %v4866, 0
    %v5371 = vsel %vm2735, %v4867, 0
    %v5374 = vsel %vm2735, %v4868, 0
    %v5377 = vsel %vm2735, %v4869, 0
    %v5380 = vsel %vm2735, %v4870, 0
    %v5383 = vsel %vm2735, %v4871, 0
    %5385 = vmatprep.subr.mxu0 0.0
    %5386 = vmatpush1.msra.mxu0 %v4764
    %5387 = vmatprep.subr.mxu0 0.0
    %5388 = vmatpush1.msra.mxu0 %v4765
    %5389 = vmatprep.subr.mxu0 0.0
    %5390 = vmatpush1.msra.mxu0 %v4766
    %5391 = vmatprep.subr.mxu0 0.0
    %5392 = vmatpush1.msra.mxu0 %v4767
    %5393 = vmatprep.subr.mxu0 0.0
    %5394 = vmatpush1.msra.mxu0 0.0
    %5395 = vmatprep.subr.mxu0 0.0
    %5396 = vmatpush1.msra.mxu0 0.0
    %5397 = vmatprep.subr.mxu0 0.0
    %5398 = vmatpush1.msra.mxu0 0.0
    %5399 = vmatprep.subr.mxu0 0.0
    %5400 = vmatpush1.msra.mxu0 0.0
    %5401 = vmatprep.subr.mxu0 0.0
    %5402 = vmatpush1.msra.mxu0 0.0
    %5403 = vmatprep.subr.mxu0 0.0
    %5404 = vmatpush1.msra.mxu0 0.0
    %5405 = vmatprep.subr.mxu0 0.0
    %5406 = vmatpush1.msra.mxu0 0.0
    %5407 = vmatprep.subr.mxu0 0.0
    %5408 = vmatpush1.msra.mxu0 0.0
    %5409 = vmatprep.subr.mxu0 0.0
    %5410 = vmatpush1.msra.mxu0 0.0
    %5411 = vmatprep.subr.mxu0 0.0
    %5412 = vmatpush1.msra.mxu0 0.0
    %5413 = vmatprep.subr.mxu0 0.0
    %5414 = vmatpush1.msra.mxu0 0.0
    %5415 = vmatprep.subr.mxu0 0.0
    %5416 = vmatpush1.msra.mxu0 0.0
    %5417 = vmatprep.subr.mxu0 0.0
    %5418 = vmatpush1.msra.mxu0 0.0
    %5419 = vmatprep.subr.mxu0 0.0
    %5420 = vmatpush1.msra.mxu0 0.0
    %5421 = vmatprep.subr.mxu0 0.0
    %5422 = vmatpush1.msra.mxu0 0.0
    %5423 = vmatprep.subr.mxu0 0.0
    %5424 = vmatpush1.msra.mxu0 0.0
    %5425 = vmatprep.subr.mxu0 0.0
    %5426 = vmatpush1.msra.mxu0 0.0
    %5427 = vmatprep.subr.mxu0 0.0
    %5428 = vmatpush1.msra.mxu0 0.0
    %5429 = vmatprep.subr.mxu0 0.0
    %5430 = vmatpush1.msra.mxu0 0.0
    %5431 = vmatprep.subr.mxu0 0.0
    %5432 = vmatpush1.msra.mxu0 0.0
    %5433 = vmatprep.subr.mxu0 0.0
    %5434 = vmatpush1.msra.mxu0 0.0
    %5435 = vmatprep.subr.mxu0 0.0
    %5436 = vmatpush1.msra.mxu0 0.0
    %5437 = vmatprep.subr.mxu0 0.0
    %5438 = vmatpush1.msra.mxu0 0.0
    %5439 = vmatprep.subr.mxu0 0.0
    %5440 = vmatpush1.msra.mxu0 0.0
    %5441 = vmatprep.subr.mxu0 0.0
    %5442 = vmatpush1.msra.mxu0 0.0
    %5443 = vmatprep.subr.mxu0 0.0
    %5444 = vmatpush1.msra.mxu0 0.0
    %5445 = vmatprep.subr.mxu0 0.0
    %5446 = vmatpush1.msra.mxu0 0.0
    %5447 = vmatprep.subr.mxu0 0.0
    %5448 = vmatpush1.msra.mxu0 0.0
    %5449 = vmatprep.mubr.f32.mxu0 0.0
    %5450 = vmatmul.mubr.f32.gmra.mrb[0].mxu0 %v5290
    %v5451 = vpop.f32.mrb[0].mxu0
    %v5452 = vadd.f32 %v5131, %v5451
    %v5453 = vpop.f32.mrb[0].mxu0
    %5454 = vmatprep.mubr.f32.mxu0 0.0
    %5455 = vmatmul.mubr.f32.gmra.mrb[0].mxu0 %v5293
    %v5456 = vpop.f32.mrb[0].mxu0
    %v5457 = vadd.f32 %v5136, %v5456
    %v5458 = vpop.f32.mrb[0].mxu0
    %5459 = vmatprep.mubr.f32.mxu0 0.0
    %5460 = vmatmul.mubr.f32.gmra.mrb[0].mxu0 %v5296
    %v5461 = vpop.f32.mrb[0].mxu0
    %v5462 = vadd.f32 %v5141, %v5461
    %v5463 = vpop.f32.mrb[0].mxu0
    %5464 = vmatprep.mubr.f32.mxu0 0.0
    %5465 = vmatmul.mubr.f32.gmra.mrb[0].mxu0 %v5299
    %v5466 = vpop.f32.mrb[0].mxu0
    %v5467 = vadd.f32 %v5146, %v5466
    %v5468 = vpop.f32.mrb[0].mxu0
    %5469 = vmatprep.mubr.f32.mxu0 0.0
    %5470 = vmatmul.mubr.f32.gmra.mrb[0].mxu0 %v5302
    %v5471 = vpop.f32.mrb[0].mxu0
    %v5472 = vadd.f32 %v5151, %v5471
    %v5473 = vpop.f32.mrb[0].mxu0
    %5474 = vmatprep.mubr.f32.mxu0 0.0
    %5475 = vmatmul.mubr.f32.gmra.mrb[0].mxu0 %v5305
    %v5476 = vpop.f32.mrb[0].mxu0
    %v5477 = vadd.f32 %v5156, %v5476
    %v5478 = vpop.f32.mrb[0].mxu0
    %5479 = vmatprep.mubr.f32.mxu0 0.0
    %5480 = vmatmul.mubr.f32.gmra.mrb[0].mxu0 %v5308
    %v5481 = vpop.f32.mrb[0].mxu0
    %v5482 = vadd.f32 %v5161, %v5481
    %v5483 = vpop.f32.mrb[0].mxu0
    %5484 = vmatprep.mubr.f32.mxu0 0.0
    %5485 = vmatmul.mubr.f32.gmra.mrb[0].mxu0 %v5311
    %v5486 = vpop.f32.mrb[0].mxu0
    %v5487 = vadd.f32 %v5166, %v5486
    %v5488 = vpop.f32.mrb[0].mxu0
    %5489 = vmatprep.mubr.f32.mxu0 0.0
    %5490 = vmatmul.mubr.f32.gmra.mrb[0].mxu0 %v5314
    %v5491 = vpop.f32.mrb[0].mxu0
    %v5492 = vadd.f32 %v5171, %v5491
    %v5493 = vpop.f32.mrb[0].mxu0
    %5494 = vmatprep.mubr.f32.mxu0 0.0
    %5495 = vmatmul.mubr.f32.gmra.mrb[0].mxu0 %v5317
    %v5496 = vpop.f32.mrb[0].mxu0
    %v5497 = vadd.f32 %v5176, %v5496
    %v5498 = vpop.f32.mrb[0].mxu0
    %5499 = vmatprep.mubr.f32.mxu0 0.0
    %5500 = vmatmul.mubr.f32.gmra.mrb[0].mxu0 %v5320
    %v5501 = vpop.f32.mrb[0].mxu0
    %v5502 = vadd.f32 %v5181, %v5501
    %v5503 = vpop.f32.mrb[0].mxu0
    %5504 = vmatprep.mubr.f32.mxu0 0.0
    %5505 = vmatmul.mubr.f32.gmra.mrb[0].mxu0 %v5323
    %v5506 = vpop.f32.mrb[0].mxu0
    %v5507 = vadd.f32 %v5186, %v5506
    %v5508 = vpop.f32.mrb[0].mxu0
    %5509 = vmatprep.mubr.f32.mxu0 0.0
    %5510 = vmatmul.mubr.f32.gmra.mrb[0].mxu0 %v5326
    %v5511 = vpop.f32.mrb[0].mxu0
    %v5512 = vadd.f32 %v5191, %v5511
    %v5513 = vpop.f32.mrb[0].mxu0
    %5514 = vmatprep.mubr.f32.mxu0 0.0
    %5515 = vmatmul.mubr.f32.gmra.mrb[0].mxu0 %v5329
    %v5516 = vpop.f32.mrb[0].mxu0
    %v5517 = vadd.f32 %v5196, %v5516
    %v5518 = vpop.f32.mrb[0].mxu0
    %5519 = vmatprep.mubr.f32.mxu0 0.0
    %5520 = vmatmul.mubr.f32.gmra.mrb[0].mxu0 %v5332
    %v5521 = vpop.f32.mrb[0].mxu0
    %v5522 = vadd.f32 %v5201, %v5521
    %v5523 = vpop.f32.mrb[0].mxu0
    %5524 = vmatprep.mubr.f32.mxu0 0.0
    %5525 = vmatmul.mubr.f32.gmra.mrb[0].mxu0 %v5335
    %v5526 = vpop.f32.mrb[0].mxu0
    %v5527 = vadd.f32 %v5206, %v5526
    %v5528 = vpop.f32.mrb[0].mxu0
    %5529 = vmatprep.mubr.f32.mxu0 0.0
    %5530 = vmatmul.mubr.f32.gmra.mrb[0].mxu0 %v5338
    %v5531 = vpop.f32.mrb[0].mxu0
    %v5532 = vadd.f32 %v5211, %v5531
    %v5533 = vpop.f32.mrb[0].mxu0
    %5534 = vmatprep.mubr.f32.mxu0 0.0
    %5535 = vmatmul.mubr.f32.gmra.mrb[0].mxu0 %v5341
    %v5536 = vpop.f32.mrb[0].mxu0
    %v5537 = vadd.f32 %v5216, %v5536
    %v5538 = vpop.f32.mrb[0].mxu0
    %5539 = vmatprep.mubr.f32.mxu0 0.0
    %5540 = vmatmul.mubr.f32.gmra.mrb[0].mxu0 %v5344
    %v5541 = vpop.f32.mrb[0].mxu0
    %v5542 = vadd.f32 %v5221, %v5541
    %v5543 = vpop.f32.mrb[0].mxu0
    %5544 = vmatprep.mubr.f32.mxu0 0.0
    %5545 = vmatmul.mubr.f32.gmra.mrb[0].mxu0 %v5347
    %v5546 = vpop.f32.mrb[0].mxu0
    %v5547 = vadd.f32 %v5226, %v5546
    %v5548 = vpop.f32.mrb[0].mxu0
    %5549 = vmatprep.mubr.f32.mxu0 0.0
    %5550 = vmatmul.mubr.f32.gmra.mrb[0].mxu0 %v5350
    %v5551 = vpop.f32.mrb[0].mxu0
    %v5552 = vadd.f32 %v5231, %v5551
    %v5553 = vpop.f32.mrb[0].mxu0
    %5554 = vmatprep.mubr.f32.mxu0 0.0
    %5555 = vmatmul.mubr.f32.gmra.mrb[0].mxu0 %v5353
    %v5556 = vpop.f32.mrb[0].mxu0
    %v5557 = vadd.f32 %v5236, %v5556
    %v5558 = vpop.f32.mrb[0].mxu0
    %5559 = vmatprep.mubr.f32.mxu0 0.0
    %5560 = vmatmul.mubr.f32.gmra.mrb[0].mxu0 %v5356
    %v5561 = vpop.f32.mrb[0].mxu0
    %v5562 = vadd.f32 %v5241, %v5561
    %v5563 = vpop.f32.mrb[0].mxu0
    %5564 = vmatprep.mubr.f32.mxu0 0.0
    %5565 = vmatmul.mubr.f32.gmra.mrb[0].mxu0 %v5359
    %v5566 = vpop.f32.mrb[0].mxu0
    %v5567 = vadd.f32 %v5246, %v5566
    %v5568 = vpop.f32.mrb[0].mxu0
    %5569 = vmatprep.mubr.f32.mxu0 0.0
    %5570 = vmatmul.mubr.f32.gmra.mrb[0].mxu0 %v5362
    %v5571 = vpop.f32.mrb[0].mxu0
    %v5572 = vadd.f32 %v5251, %v5571
    %v5573 = vpop.f32.mrb[0].mxu0
    %5574 = vmatprep.mubr.f32.mxu0 0.0
    %5575 = vmatmul.mubr.f32.gmra.mrb[0].mxu0 %v5365
    %v5576 = vpop.f32.mrb[0].mxu0
    %v5577 = vadd.f32 %v5256, %v5576
    %v5578 = vpop.f32.mrb[0].mxu0
    %5579 = vmatprep.mubr.f32.mxu0 0.0
    %5580 = vmatmul.mubr.f32.gmra.mrb[0].mxu0 %v5368
    %v5581 = vpop.f32.mrb[0].mxu0
    %v5582 = vadd.f32 %v5261, %v5581
    %v5583 = vpop.f32.mrb[0].mxu0
    %5584 = vmatprep.mubr.f32.mxu0 0.0
    %5585 = vmatmul.mubr.f32.gmra.mrb[0].mxu0 %v5371
    %v5586 = vpop.f32.mrb[0].mxu0
    %v5587 = vadd.f32 %v5266, %v5586
    %v5588 = vpop.f32.mrb[0].mxu0
    %5589 = vmatprep.mubr.f32.mxu0 0.0
    %5590 = vmatmul.mubr.f32.gmra.mrb[0].mxu0 %v5374
    %v5591 = vpop.f32.mrb[0].mxu0
    %v5592 = vadd.f32 %v5271, %v5591
    %v5593 = vpop.f32.mrb[0].mxu0
    %5594 = vmatprep.mubr.f32.mxu0 0.0
    %5595 = vmatmul.mubr.f32.gmra.mrb[0].mxu0 %v5377
    %v5596 = vpop.f32.mrb[0].mxu0
    %v5597 = vadd.f32 %v5276, %v5596
    %v5598 = vpop.f32.mrb[0].mxu0
    %5599 = vmatprep.mubr.f32.mxu0 0.0
    %5600 = vmatmul.mubr.f32.gmra.mrb[0].mxu0 %v5380
    %v5601 = vpop.f32.mrb[0].mxu0
    %v5602 = vadd.f32 %v5281, %v5601
    %v5603 = vpop.f32.mrb[0].mxu0
    %5604 = vmatprep.mubr.f32.mxu0 0.0
    %5605 = vmatmul.mubr.f32.gmra.mrb[0].mxu0 %v5383
    %v5606 = vpop.f32.mrb[0].mxu0
    %v5607 = vadd.f32 %v5286, %v5606
    %v5608 = vpop.f32.mrb[0].mxu0
    %5609 = vdwg.mxu0
    %v5611 = vsel %vm2735, %v4936, 0
    %v5614 = vsel %vm2735, %v4937, 0
    %v5617 = vsel %vm2735, %v4938, 0
    %v5620 = vsel %vm2735, %v4939, 0
    %v5623 = vsel %vm2735, %v4940, 0
    %v5626 = vsel %vm2735, %v4941, 0
    %v5629 = vsel %vm2735, %v4942, 0
    %v5632 = vsel %vm2735, %v4943, 0
    %v5635 = vsel %vm2735, %v4944, 0
    %v5638 = vsel %vm2735, %v4945, 0
    %v5641 = vsel %vm2735, %v4946, 0
    %v5644 = vsel %vm2735, %v4947, 0
    %v5647 = vsel %vm2735, %v4948, 0
    %v5650 = vsel %vm2735, %v4949, 0
    %v5653 = vsel %vm2735, %v4950, 0
    %v5656 = vsel %vm2735, %v4951, 0
    %v5659 = vsel %vm2735, %v4952, 0
    %v5662 = vsel %vm2735, %v4953, 0
    %v5665 = vsel %vm2735, %v4954, 0
    %v5668 = vsel %vm2735, %v4955, 0
    %v5671 = vsel %vm2735, %v4956, 0
    %v5674 = vsel %vm2735, %v4957, 0
    %v5677 = vsel %vm2735, %v4958, 0
    %v5680 = vsel %vm2735, %v4959, 0
    %v5683 = vsel %vm2735, %v4960, 0
    %v5686 = vsel %vm2735, %v4961, 0
    %v5689 = vsel %vm2735, %v4962, 0
    %v5692 = vsel %vm2735, %v4963, 0
    %v5695 = vsel %vm2735, %v4964, 0
    %v5698 = vsel %vm2735, %v4965, 0
    %v5701 = vsel %vm2735, %v4966, 0
    %v5704 = vsel %vm2735, %v4967, 0
    %5706 = vmatprep.subr.mxu0 0.0
    %5707 = vmatpush1.msra.mxu0 %v4772
    %5708 = vmatprep.subr.mxu0 0.0
    %5709 = vmatpush1.msra.mxu0 %v4773
    %5710 = vmatprep.subr.mxu0 0.0
    %5711 = vmatpush1.msra.mxu0 %v4774
    %5712 = vmatprep.subr.mxu0 0.0
    %5713 = vmatpush1.msra.mxu0 %v4775
    %5714 = vmatprep.subr.mxu0 0.0
    %5715 = vmatpush1.msra.mxu0 0.0
    %5716 = vmatprep.subr.mxu0 0.0
    %5717 = vmatpush1.msra.mxu0 0.0
    %5718 = vmatprep.subr.mxu0 0.0
    %5719 = vmatpush1.msra.mxu0 0.0
    %5720 = vmatprep.subr.mxu0 0.0
    %5721 = vmatpush1.msra.mxu0 0.0
    %5722 = vmatprep.subr.mxu0 0.0
    %5723 = vmatpush1.msra.mxu0 0.0
    %5724 = vmatprep.subr.mxu0 0.0
    %5725 = vmatpush1.msra.mxu0 0.0
    %5726 = vmatprep.subr.mxu0 0.0
    %5727 = vmatpush1.msra.mxu0 0.0
    %5728 = vmatprep.subr.mxu0 0.0
    %5729 = vmatpush1.msra.mxu0 0.0
    %5730 = vmatprep.subr.mxu0 0.0
    %5731 = vmatpush1.msra.mxu0 0.0
    %5732 = vmatprep.subr.mxu0 0.0
    %5733 = vmatpush1.msra.mxu0 0.0
    %5734 = vmatprep.subr.mxu0 0.0
    %5735 = vmatpush1.msra.mxu0 0.0
    %5736 = vmatprep.subr.mxu0 0.0
    %5737 = vmatpush1.msra.mxu0 0.0
    %5738 = vmatprep.subr.mxu0 0.0
    %5739 = vmatpush1.msra.mxu0 0.0
    %5740 = vmatprep.subr.mxu0 0.0
    %5741 = vmatpush1.msra.mxu0 0.0
    %5742 = vmatprep.subr.mxu0 0.0
    %5743 = vmatpush1.msra.mxu0 0.0
    %5744 = vmatprep.subr.mxu0 0.0
    %5745 = vmatpush1.msra.mxu0 0.0
    %5746 = vmatprep.subr.mxu0 0.0
    %5747 = vmatpush1.msra.mxu0 0.0
    %5748 = vmatprep.subr.mxu0 0.0
    %5749 = vmatpush1.msra.mxu0 0.0
    %5750 = vmatprep.subr.mxu0 0.0
    %5751 = vmatpush1.msra.mxu0 0.0
    %5752 = vmatprep.subr.mxu0 0.0
    %5753 = vmatpush1.msra.mxu0 0.0
    %5754 = vmatprep.subr.mxu0 0.0
    %5755 = vmatpush1.msra.mxu0 0.0
    %5756 = vmatprep.subr.mxu0 0.0
    %5757 = vmatpush1.msra.mxu0 0.0
    %5758 = vmatprep.subr.mxu0 0.0
    %5759 = vmatpush1.msra.mxu0 0.0
    %5760 = vmatprep.subr.mxu0 0.0
    %5761 = vmatpush1.msra.mxu0 0.0
    %5762 = vmatprep.subr.mxu0 0.0
    %5763 = vmatpush1.msra.mxu0 0.0
    %5764 = vmatprep.subr.mxu0 0.0
    %5765 = vmatpush1.msra.mxu0 0.0
    %5766 = vmatprep.subr.mxu0 0.0
    %5767 = vmatpush1.msra.mxu0 0.0
    %5768 = vmatprep.subr.mxu0 0.0
    %5769 = vmatpush1.msra.mxu0 0.0
    %5770 = vmatprep.mubr.f32.mxu0 0.0
    %5771 = vmatmul.mubr.f32.gmra.mrb[0].mxu0 %v5611
    %v5772 = vpop.f32.mrb[0].mxu0
    %v5773 = vadd.f32 0.0, %v5772
    %v5774 = vpop.f32.mrb[0].mxu0
    %5775 = vmatprep.mubr.f32.mxu0 0.0
    %5776 = vmatmul.mubr.f32.gmra.mrb[0].mxu0 %v5614
    %v5777 = vpop.f32.mrb[0].mxu0
    %v5778 = vadd.f32 0.0, %v5777
    %v5779 = vpop.f32.mrb[0].mxu0
    %5780 = vmatprep.mubr.f32.mxu0 0.0
    %5781 = vmatmul.mubr.f32.gmra.mrb[0].mxu0 %v5617
    %v5782 = vpop.f32.mrb[0].mxu0
    %v5783 = vadd.f32 0.0, %v5782
    %v5784 = vpop.f32.mrb[0].mxu0
    %5785 = vmatprep.mubr.f32.mxu0 0.0
    %5786 = vmatmul.mubr.f32.gmra.mrb[0].mxu0 %v5620
    %v5787 = vpop.f32.mrb[0].mxu0
    %v5788 = vadd.f32 0.0, %v5787
    %v5789 = vpop.f32.mrb[0].mxu0
    %5790 = vmatprep.mubr.f32.mxu0 0.0
    %5791 = vmatmul.mubr.f32.gmra.mrb[0].mxu0 %v5623
    %v5792 = vpop.f32.mrb[0].mxu0
    %v5793 = vadd.f32 0.0, %v5792
    %v5794 = vpop.f32.mrb[0].mxu0
    %5795 = vmatprep.mubr.f32.mxu0 0.0
    %5796 = vmatmul.mubr.f32.gmra.mrb[0].mxu0 %v5626
    %v5797 = vpop.f32.mrb[0].mxu0
    %v5798 = vadd.f32 0.0, %v5797
    %v5799 = vpop.f32.mrb[0].mxu0
    %5800 = vmatprep.mubr.f32.mxu0 0.0
    %5801 = vmatmul.mubr.f32.gmra.mrb[0].mxu0 %v5629
    %v5802 = vpop.f32.mrb[0].mxu0
    %v5803 = vadd.f32 0.0, %v5802
    %v5804 = vpop.f32.mrb[0].mxu0
    %5805 = vmatprep.mubr.f32.mxu0 0.0
    %5806 = vmatmul.mubr.f32.gmra.mrb[0].mxu0 %v5632
    %v5807 = vpop.f32.mrb[0].mxu0
    %v5808 = vadd.f32 0.0, %v5807
    %v5809 = vpop.f32.mrb[0].mxu0
    %5810 = vmatprep.mubr.f32.mxu0 0.0
    %5811 = vmatmul.mubr.f32.gmra.mrb[0].mxu0 %v5635
    %v5812 = vpop.f32.mrb[0].mxu0
    %v5813 = vadd.f32 0.0, %v5812
    %v5814 = vpop.f32.mrb[0].mxu0
    %5815 = vmatprep.mubr.f32.mxu0 0.0
    %5816 = vmatmul.mubr.f32.gmra.mrb[0].mxu0 %v5638
    %v5817 = vpop.f32.mrb[0].mxu0
    %v5818 = vadd.f32 0.0, %v5817
    %v5819 = vpop.f32.mrb[0].mxu0
    %5820 = vmatprep.mubr.f32.mxu0 0.0
    %5821 = vmatmul.mubr.f32.gmra.mrb[0].mxu0 %v5641
    %v5822 = vpop.f32.mrb[0].mxu0
    %v5823 = vadd.f32 0.0, %v5822
    %v5824 = vpop.f32.mrb[0].mxu0
    %5825 = vmatprep.mubr.f32.mxu0 0.0
    %5826 = vmatmul.mubr.f32.gmra.mrb[0].mxu0 %v5644
    %v5827 = vpop.f32.mrb[0].mxu0
    %v5828 = vadd.f32 0.0, %v5827
    %v5829 = vpop.f32.mrb[0].mxu0
    %5830 = vmatprep.mubr.f32.mxu0 0.0
    %5831 = vmatmul.mubr.f32.gmra.mrb[0].mxu0 %v5647
    %v5832 = vpop.f32.mrb[0].mxu0
    %v5833 = vadd.f32 0.0, %v5832
    %v5834 = vpop.f32.mrb[0].mxu0
    %5835 = vmatprep.mubr.f32.mxu0 0.0
    %5836 = vmatmul.mubr.f32.gmra.mrb[0].mxu0 %v5650
    %v5837 = vpop.f32.mrb[0].mxu0
    %v5838 = vadd.f32 0.0, %v5837
    %v5839 = vpop.f32.mrb[0].mxu0
    %5840 = vmatprep.mubr.f32.mxu0 0.0
    %5841 = vmatmul.mubr.f32.gmra.mrb[0].mxu0 %v5653
    %v5842 = vpop.f32.mrb[0].mxu0
    %v5843 = vadd.f32 0.0, %v5842
    %v5844 = vpop.f32.mrb[0].mxu0
    %5845 = vmatprep.mubr.f32.mxu0 0.0
    %5846 = vmatmul.mubr.f32.gmra.mrb[0].mxu0 %v5656
    %v5847 = vpop.f32.mrb[0].mxu0
    %v5848 = vadd.f32 0.0, %v5847
    %v5849 = vpop.f32.mrb[0].mxu0
    %5850 = vmatprep.mubr.f32.mxu0 0.0
    %5851 = vmatmul.mubr.f32.gmra.mrb[0].mxu0 %v5659
    %v5852 = vpop.f32.mrb[0].mxu0
    %v5853 = vadd.f32 0.0, %v5852
    %v5854 = vpop.f32.mrb[0].mxu0
    %5855 = vmatprep.mubr.f32.mxu0 0.0
    %5856 = vmatmul.mubr.f32.gmra.mrb[0].mxu0 %v5662
    %v5857 = vpop.f32.mrb[0].mxu0
    %v5858 = vadd.f32 0.0, %v5857
    %v5859 = vpop.f32.mrb[0].mxu0
    %5860 = vmatprep.mubr.f32.mxu0 0.0
    %5861 = vmatmul.mubr.f32.gmra.mrb[0].mxu0 %v5665
    %v5862 = vpop.f32.mrb[0].mxu0
    %v5863 = vadd.f32 0.0, %v5862
    %v5864 = vpop.f32.mrb[0].mxu0
    %5865 = vmatprep.mubr.f32.mxu0 0.0
    %5866 = vmatmul.mubr.f32.gmra.mrb[0].mxu0 %v5668
    %v5867 = vpop.f32.mrb[0].mxu0
    %v5868 = vadd.f32 0.0, %v5867
    %v5869 = vpop.f32.mrb[0].mxu0
    %5870 = vmatprep.mubr.f32.mxu0 0.0
    %5871 = vmatmul.mubr.f32.gmra.mrb[0].mxu0 %v5671
    %v5872 = vpop.f32.mrb[0].mxu0
    %v5873 = vadd.f32 0.0, %v5872
    %v5874 = vpop.f32.mrb[0].mxu0
    %5875 = vmatprep.mubr.f32.mxu0 0.0
    %5876 = vmatmul.mubr.f32.gmra.mrb[0].mxu0 %v5674
    %v5877 = vpop.f32.mrb[0].mxu0
    %v5878 = vadd.f32 0.0, %v5877
    %v5879 = vpop.f32.mrb[0].mxu0
    %5880 = vmatprep.mubr.f32.mxu0 0.0
    %5881 = vmatmul.mubr.f32.gmra.mrb[0].mxu0 %v5677
    %v5882 = vpop.f32.mrb[0].mxu0
    %v5883 = vadd.f32 0.0, %v5882
    %v5884 = vpop.f32.mrb[0].mxu0
    %5885 = vmatprep.mubr.f32.mxu0 0.0
    %5886 = vmatmul.mubr.f32.gmra.mrb[0].mxu0 %v5680
    %v5887 = vpop.f32.mrb[0].mxu0
    %v5888 = vadd.f32 0.0, %v5887
    %v5889 = vpop.f32.mrb[0].mxu0
    %5890 = vmatprep.mubr.f32.mxu0 0.0
    %5891 = vmatmul.mubr.f32.gmra.mrb[0].mxu0 %v5683
    %v5892 = vpop.f32.mrb[0].mxu0
    %v5893 = vadd.f32 0.0, %v5892
    %v5894 = vpop.f32.mrb[0].mxu0
    %5895 = vmatprep.mubr.f32.mxu0 0.0
    %5896 = vmatmul.mubr.f32.gmra.mrb[0].mxu0 %v5686
    %v5897 = vpop.f32.mrb[0].mxu0
    %v5898 = vadd.f32 0.0, %v5897
    %v5899 = vpop.f32.mrb[0].mxu0
    %5900 = vmatprep.mubr.f32.mxu0 0.0
    %5901 = vmatmul.mubr.f32.gmra.mrb[0].mxu0 %v5689
    %v5902 = vpop.f32.mrb[0].mxu0
    %v5903 = vadd.f32 0.0, %v5902
    %v5904 = vpop.f32.mrb[0].mxu0
    %5905 = vmatprep.mubr.f32.mxu0 0.0
    %5906 = vmatmul.mubr.f32.gmra.mrb[0].mxu0 %v5692
    %v5907 = vpop.f32.mrb[0].mxu0
    %v5908 = vadd.f32 0.0, %v5907
    %v5909 = vpop.f32.mrb[0].mxu0
    %5910 = vmatprep.mubr.f32.mxu0 0.0
    %5911 = vmatmul.mubr.f32.gmra.mrb[0].mxu0 %v5695
    %v5912 = vpop.f32.mrb[0].mxu0
    %v5913 = vadd.f32 0.0, %v5912
    %v5914 = vpop.f32.mrb[0].mxu0
    %5915 = vmatprep.mubr.f32.mxu0 0.0
    %5916 = vmatmul.mubr.f32.gmra.mrb[0].mxu0 %v5698
    %v5917 = vpop.f32.mrb[0].mxu0
    %v5918 = vadd.f32 0.0, %v5917
    %v5919 = vpop.f32.mrb[0].mxu0
    %5920 = vmatprep.mubr.f32.mxu0 0.0
    %5921 = vmatmul.mubr.f32.gmra.mrb[0].mxu0 %v5701
    %v5922 = vpop.f32.mrb[0].mxu0
    %v5923 = vadd.f32 0.0, %v5922
    %v5924 = vpop.f32.mrb[0].mxu0
    %5925 = vmatprep.mubr.f32.mxu0 0.0
    %5926 = vmatmul.mubr.f32.gmra.mrb[0].mxu0 %v5704
    %v5927 = vpop.f32.mrb[0].mxu0
    %v5928 = vadd.f32 0.0, %v5927
    %v5929 = vpop.f32.mrb[0].mxu0
    %5930 = vdwg.mxu0
    %v5931 = vadd.f32 %v5452, %v5773
    %v5932 = vadd.f32 %v5457, %v5778
    %v5933 = vadd.f32 %v5462, %v5783
    %v5934 = vadd.f32 %v5467, %v5788
    %v5935 = vadd.f32 %v5472, %v5793
    %v5936 = vadd.f32 %v5477, %v5798
    %v5937 = vadd.f32 %v5482, %v5803
    %v5938 = vadd.f32 %v5487, %v5808
    %v5939 = vadd.f32 %v5492, %v5813
    %v5940 = vadd.f32 %v5497, %v5818
    %v5941 = vadd.f32 %v5502, %v5823
    %v5942 = vadd.f32 %v5507, %v5828
    %v5943 = vadd.f32 %v5512, %v5833
    %v5944 = vadd.f32 %v5517, %v5838
    %v5945 = vadd.f32 %v5522, %v5843
    %v5946 = vadd.f32 %v5527, %v5848
    %v5947 = vadd.f32 %v5532, %v5853
    %v5948 = vadd.f32 %v5537, %v5858
    %v5949 = vadd.f32 %v5542, %v5863
    %v5950 = vadd.f32 %v5547, %v5868
    %v5951 = vadd.f32 %v5552, %v5873
    %v5952 = vadd.f32 %v5557, %v5878
    %v5953 = vadd.f32 %v5562, %v5883
    %v5954 = vadd.f32 %v5567, %v5888
    %v5955 = vadd.f32 %v5572, %v5893
    %v5956 = vadd.f32 %v5577, %v5898
    %v5957 = vadd.f32 %v5582, %v5903
    %v5958 = vadd.f32 %v5587, %v5908
    %v5959 = vadd.f32 %v5592, %v5913
    %v5960 = vadd.f32 %v5597, %v5918
    %v5961 = vadd.f32 %v5602, %v5923
    %v5962 = vadd.f32 %v5607, %v5928
    %v5963 = vadd.f32 %v5931, %v4731
    %v5964 = vadd.f32 %v5932, %v4732
    %v5965 = vadd.f32 %v5933, %v4733
    %v5966 = vadd.f32 %v5934, %v4734
    %v5967 = vadd.f32 %v5935, %v4735
    %v5968 = vadd.f32 %v5936, %v4736
    %v5969 = vadd.f32 %v5937, %v4737
    %v5970 = vadd.f32 %v5938, %v4738
    %v5971 = vadd.f32 %v5939, %v4739
    %v5972 = vadd.f32 %v5940, %v4740
    %v5973 = vadd.f32 %v5941, %v4741
    %v5974 = vadd.f32 %v5942, %v4742
    %v5975 = vadd.f32 %v5943, %v4743
    %v5976 = vadd.f32 %v5944, %v4744
    %v5977 = vadd.f32 %v5945, %v4745
    %v5978 = vadd.f32 %v5946, %v4746
    %v5979 = vadd.f32 %v5947, %v4747
    %v5980 = vadd.f32 %v5948, %v4748
    %v5981 = vadd.f32 %v5949, %v4749
    %v5982 = vadd.f32 %v5950, %v4750
    %v5983 = vadd.f32 %v5951, %v4751
    %v5984 = vadd.f32 %v5952, %v4752
    %v5985 = vadd.f32 %v5953, %v4753
    %v5986 = vadd.f32 %v5954, %v4754
    %v5987 = vadd.f32 %v5955, %v4755
    %v5988 = vadd.f32 %v5956, %v4756
    %v5989 = vadd.f32 %v5957, %v4757
    %v5990 = vadd.f32 %v5958, %v4758
    %v5991 = vadd.f32 %v5959, %v4759
    %v5992 = vadd.f32 %v5960, %v4760
    %v5993 = vadd.f32 %v5961, %v4761
    %v5994 = vadd.f32 %v5962, %v4762
    %v5995 = vlaneseq
    %v5996 = vshrl.u32 %v5995, 7
    %v5997 = vsub.s32 4, %v5996
    %v5998 = vrot.slane %v70, %v5997
    %v5999 = vmul.f32 %v5963, %v5998
    %v6000 = vmul.f32 %v5964, %v5998
    %v6001 = vmul.f32 %v5965, %v5998
    %v6002 = vmul.f32 %v5966, %v5998
    %v6003 = vmul.f32 %v5967, %v5998
    %v6004 = vmul.f32 %v5968, %v5998
    %v6005 = vmul.f32 %v5969, %v5998
    %v6006 = vmul.f32 %v5970, %v5998
    %v6007 = vmul.f32 %v5971, %v5998
    %v6008 = vmul.f32 %v5972, %v5998
    %v6009 = vmul.f32 %v5973, %v5998
    %v6010 = vmul.f32 %v5974, %v5998
    %v6011 = vmul.f32 %v5975, %v5998
    %v6012 = vmul.f32 %v5976, %v5998
    %v6013 = vmul.f32 %v5977, %v5998
    %v6014 = vmul.f32 %v5978, %v5998
    %v6015 = vmul.f32 %v5979, %v5998
    %v6016 = vmul.f32 %v5980, %v5998
    %v6017 = vmul.f32 %v5981, %v5998
    %v6018 = vmul.f32 %v5982, %v5998
    %v6019 = vmul.f32 %v5983, %v5998
    %v6020 = vmul.f32 %v5984, %v5998
    %v6021 = vmul.f32 %v5985, %v5998
    %v6022 = vmul.f32 %v5986, %v5998
    %v6023 = vmul.f32 %v5987, %v5998
    %v6024 = vmul.f32 %v5988, %v5998
    %v6025 = vmul.f32 %v5989, %v5998
    %v6026 = vmul.f32 %v5990, %v5998
    %v6027 = vmul.f32 %v5991, %v5998
    %v6028 = vmul.f32 %v5992, %v5998
    %v6029 = vmul.f32 %v5993, %v5998
    %v6030 = vmul.f32 %v5994, %v5998
    %v6031 = vlaneseq
    %v6032 = vshrl.u32 %v6031, 7
    %v6033 = vsub.s32 5, %v6032
    %v6034 = vrot.slane %v70, %v6033
    %v6035 = vadd.f32 %v5999, %v6034
    %v6036 = vadd.f32 %v6000, %v6034
    %v6037 = vadd.f32 %v6001, %v6034
    %v6038 = vadd.f32 %v6002, %v6034
    %v6039 = vadd.f32 %v6003, %v6034
    %v6040 = vadd.f32 %v6004, %v6034
    %v6041 = vadd.f32 %v6005, %v6034
    %v6042 = vadd.f32 %v6006, %v6034
    %v6043 = vadd.f32 %v6007, %v6034
    %v6044 = vadd.f32 %v6008, %v6034
    %v6045 = vadd.f32 %v6009, %v6034
    %v6046 = vadd.f32 %v6010, %v6034
    %v6047 = vadd.f32 %v6011, %v6034
    %v6048 = vadd.f32 %v6012, %v6034
    %v6049 = vadd.f32 %v6013, %v6034
    %v6050 = vadd.f32 %v6014, %v6034
    %v6051 = vadd.f32 %v6015, %v6034
    %v6052 = vadd.f32 %v6016, %v6034
    %v6053 = vadd.f32 %v6017, %v6034
    %v6054 = vadd.f32 %v6018, %v6034
    %v6055 = vadd.f32 %v6019, %v6034
    %v6056 = vadd.f32 %v6020, %v6034
    %v6057 = vadd.f32 %v6021, %v6034
    %v6058 = vadd.f32 %v6022, %v6034
    %v6059 = vadd.f32 %v6023, %v6034
    %v6060 = vadd.f32 %v6024, %v6034
    %v6061 = vadd.f32 %v6025, %v6034
    %v6062 = vadd.f32 %v6026, %v6034
    %v6063 = vadd.f32 %v6027, %v6034
    %v6064 = vadd.f32 %v6028, %v6034
    %v6065 = vadd.f32 %v6029, %v6034
    %v6066 = vadd.f32 %v6030, %v6034
    %v6067 = vmul.f32 %v6035, 0.5
    %v6068 = vmul.f32 %v6036, 0.5
    %v6069 = vmul.f32 %v6037, 0.5
    %v6070 = vmul.f32 %v6038, 0.5
    %v6071 = vmul.f32 %v6039, 0.5
    %v6072 = vmul.f32 %v6040, 0.5
    %v6073 = vmul.f32 %v6041, 0.5
    %v6074 = vmul.f32 %v6042, 0.5
    %v6075 = vmul.f32 %v6043, 0.5
    %v6076 = vmul.f32 %v6044, 0.5
    %v6077 = vmul.f32 %v6045, 0.5
    %v6078 = vmul.f32 %v6046, 0.5
    %v6079 = vmul.f32 %v6047, 0.5
    %v6080 = vmul.f32 %v6048, 0.5
    %v6081 = vmul.f32 %v6049, 0.5
    %v6082 = vmul.f32 %v6050, 0.5
    %v6083 = vmul.f32 %v6051, 0.5
    %v6084 = vmul.f32 %v6052, 0.5
    %v6085 = vmul.f32 %v6053, 0.5
    %v6086 = vmul.f32 %v6054, 0.5
    %v6087 = vmul.f32 %v6055, 0.5
    %v6088 = vmul.f32 %v6056, 0.5
    %v6089 = vmul.f32 %v6057, 0.5
    %v6090 = vmul.f32 %v6058, 0.5
    %v6091 = vmul.f32 %v6059, 0.5
    %v6092 = vmul.f32 %v6060, 0.5
    %v6093 = vmul.f32 %v6061, 0.5
    %v6094 = vmul.f32 %v6062, 0.5
    %v6095 = vmul.f32 %v6063, 0.5
    %v6096 = vmul.f32 %v6064, 0.5
    %v6097 = vmul.f32 %v6065, 0.5
    %v6098 = vmul.f32 %v6066, 0.5
    %v6099 = vmul.f32 %v6035, 0.70710677
    %v6100 = vmul.f32 %v6036, 0.70710677
    %v6101 = vmul.f32 %v6037, 0.70710677
    %v6102 = vmul.f32 %v6038, 0.70710677
    %v6103 = vmul.f32 %v6039, 0.70710677
    %v6104 = vmul.f32 %v6040, 0.70710677
    %v6105 = vmul.f32 %v6041, 0.70710677
    %v6106 = vmul.f32 %v6042, 0.70710677
    %v6107 = vmul.f32 %v6043, 0.70710677
    %v6108 = vmul.f32 %v6044, 0.70710677
    %v6109 = vmul.f32 %v6045, 0.70710677
    %v6110 = vmul.f32 %v6046, 0.70710677
    %v6111 = vmul.f32 %v6047, 0.70710677
    %v6112 = vmul.f32 %v6048, 0.70710677
    %v6113 = vmul.f32 %v6049, 0.70710677
    %v6114 = vmul.f32 %v6050, 0.70710677
    %v6115 = vmul.f32 %v6051, 0.70710677
    %v6116 = vmul.f32 %v6052, 0.70710677
    %v6117 = vmul.f32 %v6053, 0.70710677
    %v6118 = vmul.f32 %v6054, 0.70710677
    %v6119 = vmul.f32 %v6055, 0.70710677
    %v6120 = vmul.f32 %v6056, 0.70710677
    %v6121 = vmul.f32 %v6057, 0.70710677
    %v6122 = vmul.f32 %v6058, 0.70710677
    %v6123 = vmul.f32 %v6059, 0.70710677
    %v6124 = vmul.f32 %v6060, 0.70710677
    %v6125 = vmul.f32 %v6061, 0.70710677
    %v6126 = vmul.f32 %v6062, 0.70710677
    %v6127 = vmul.f32 %v6063, 0.70710677
    %v6128 = vmul.f32 %v6064, 0.70710677
    %v6129 = vmul.f32 %v6065, 0.70710677
    %v6130 = vmul.f32 %v6066, 0.70710677
    %v6131 = vand.u32 2147483647, %v6099
    %v6132 = vand.u32 2147483647, %v6100
    %v6133 = vand.u32 2147483647, %v6101
    %v6134 = vand.u32 2147483647, %v6102
    %v6135 = vand.u32 2147483647, %v6103
    %v6136 = vand.u32 2147483647, %v6104
    %v6137 = vand.u32 2147483647, %v6105
    %v6138 = vand.u32 2147483647, %v6106
    %v6139 = vand.u32 2147483647, %v6107
    %v6140 = vand.u32 2147483647, %v6108
    %v6141 = vand.u32 2147483647, %v6109
    %v6142 = vand.u32 2147483647, %v6110
    %v6143 = vand.u32 2147483647, %v6111
    %v6144 = vand.u32 2147483647, %v6112
    %v6145 = vand.u32 2147483647, %v6113
    %v6146 = vand.u32 2147483647, %v6114
    %v6147 = vand.u32 2147483647, %v6115
    %v6148 = vand.u32 2147483647, %v6116
    %v6149 = vand.u32 2147483647, %v6117
    %v6150 = vand.u32 2147483647, %v6118
    %v6151 = vand.u32 2147483647, %v6119
    %v6152 = vand.u32 2147483647, %v6120
    %v6153 = vand.u32 2147483647, %v6121
    %v6154 = vand.u32 2147483647, %v6122
    %v6155 = vand.u32 2147483647, %v6123
    %v6156 = vand.u32 2147483647, %v6124
    %v6157 = vand.u32 2147483647, %v6125
    %v6158 = vand.u32 2147483647, %v6126
    %v6159 = vand.u32 2147483647, %v6127
    %v6160 = vand.u32 2147483647, %v6128
    %v6161 = vand.u32 2147483647, %v6129
    %v6162 = vand.u32 2147483647, %v6130
    %v6163 = vmul.f32 %v6131, 0.3275911
    %v6164 = vmul.f32 %v6132, 0.3275911
    %v6165 = vmul.f32 %v6133, 0.3275911
    %v6166 = vmul.f32 %v6134, 0.3275911
    %v6167 = vmul.f32 %v6135, 0.3275911
    %v6168 = vmul.f32 %v6136, 0.3275911
    %v6169 = vmul.f32 %v6137, 0.3275911
    %v6170 = vmul.f32 %v6138, 0.3275911
    %v6171 = vmul.f32 %v6139, 0.3275911
    %v6172 = vmul.f32 %v6140, 0.3275911
    %v6173 = vmul.f32 %v6141, 0.3275911
    %v6174 = vmul.f32 %v6142, 0.3275911
    %v6175 = vmul.f32 %v6143, 0.3275911
    %v6176 = vmul.f32 %v6144, 0.3275911
    %v6177 = vmul.f32 %v6145, 0.3275911
    %v6178 = vmul.f32 %v6146, 0.3275911
    %v6179 = vmul.f32 %v6147, 0.3275911
    %v6180 = vmul.f32 %v6148, 0.3275911
    %v6181 = vmul.f32 %v6149, 0.3275911
    %v6182 = vmul.f32 %v6150, 0.3275911
    %v6183 = vmul.f32 %v6151, 0.3275911
    %v6184 = vmul.f32 %v6152, 0.3275911
    %v6185 = vmul.f32 %v6153, 0.3275911
    %v6186 = vmul.f32 %v6154, 0.3275911
    %v6187 = vmul.f32 %v6155, 0.3275911
    %v6188 = vmul.f32 %v6156, 0.3275911
    %v6189 = vmul.f32 %v6157, 0.3275911
    %v6190 = vmul.f32 %v6158, 0.3275911
    %v6191 = vmul.f32 %v6159, 0.3275911
    %v6192 = vmul.f32 %v6160, 0.3275911
    %v6193 = vmul.f32 %v6161, 0.3275911
    %v6194 = vmul.f32 %v6162, 0.3275911
    %v6195 = vadd.f32 %v6163, 1.0
    %v6196 = vadd.f32 %v6164, 1.0
    %v6197 = vadd.f32 %v6165, 1.0
    %v6198 = vadd.f32 %v6166, 1.0
    %v6199 = vadd.f32 %v6167, 1.0
    %v6200 = vadd.f32 %v6168, 1.0
    %v6201 = vadd.f32 %v6169, 1.0
    %v6202 = vadd.f32 %v6170, 1.0
    %v6203 = vadd.f32 %v6171, 1.0
    %v6204 = vadd.f32 %v6172, 1.0
    %v6205 = vadd.f32 %v6173, 1.0
    %v6206 = vadd.f32 %v6174, 1.0
    %v6207 = vadd.f32 %v6175, 1.0
    %v6208 = vadd.f32 %v6176, 1.0
    %v6209 = vadd.f32 %v6177, 1.0
    %v6210 = vadd.f32 %v6178, 1.0
    %v6211 = vadd.f32 %v6179, 1.0
    %v6212 = vadd.f32 %v6180, 1.0
    %v6213 = vadd.f32 %v6181, 1.0
    %v6214 = vadd.f32 %v6182, 1.0
    %v6215 = vadd.f32 %v6183, 1.0
    %v6216 = vadd.f32 %v6184, 1.0
    %v6217 = vadd.f32 %v6185, 1.0
    %v6218 = vadd.f32 %v6186, 1.0
    %v6219 = vadd.f32 %v6187, 1.0
    %v6220 = vadd.f32 %v6188, 1.0
    %v6221 = vadd.f32 %v6189, 1.0
    %v6222 = vadd.f32 %v6190, 1.0
    %v6223 = vadd.f32 %v6191, 1.0
    %v6224 = vadd.f32 %v6192, 1.0
    %v6225 = vadd.f32 %v6193, 1.0
    %v6226 = vadd.f32 %v6194, 1.0
    %v6227 = vrcp.pop %v6195
    %v6228 = vrcp.pop %v6196
    %v6229 = vrcp.pop %v6197
    %v6230 = vrcp.pop %v6198
    %v6231 = vrcp.pop %v6199
    %v6232 = vrcp.pop %v6200
    %v6233 = vrcp.pop %v6201
    %v6234 = vrcp.pop %v6202
    %v6235 = vrcp.pop %v6203
    %v6236 = vrcp.pop %v6204
    %v6237 = vrcp.pop %v6205
    %v6238 = vrcp.pop %v6206
    %v6239 = vrcp.pop %v6207
    %v6240 = vrcp.pop %v6208
    %v6241 = vrcp.pop %v6209
    %v6242 = vrcp.pop %v6210
    %v6243 = vrcp.pop %v6211
    %v6244 = vrcp.pop %v6212
    %v6245 = vrcp.pop %v6213
    %v6246 = vrcp.pop %v6214
    %v6247 = vrcp.pop %v6215
    %v6248 = vrcp.pop %v6216
    %v6249 = vrcp.pop %v6217
    %v6250 = vrcp.pop %v6218
    %v6251 = vrcp.pop %v6219
    %v6252 = vrcp.pop %v6220
    %v6253 = vrcp.pop %v6221
    %v6254 = vrcp.pop %v6222
    %v6255 = vrcp.pop %v6223
    %v6256 = vrcp.pop %v6224
    %v6257 = vrcp.pop %v6225
    %v6258 = vrcp.pop %v6226
    %v6259 = vmul.f32 %v6195, %v6227
    %v6260 = vmul.f32 %v6196, %v6228
    %v6261 = vmul.f32 %v6197, %v6229
    %v6262 = vmul.f32 %v6198, %v6230
    %v6263 = vmul.f32 %v6199, %v6231
    %v6264 = vmul.f32 %v6200, %v6232
    %v6265 = vmul.f32 %v6201, %v6233
    %v6266 = vmul.f32 %v6202, %v6234
    %v6267 = vmul.f32 %v6203, %v6235
    %v6268 = vmul.f32 %v6204, %v6236
    %v6269 = vmul.f32 %v6205, %v6237
    %v6270 = vmul.f32 %v6206, %v6238
    %v6271 = vmul.f32 %v6207, %v6239
    %v6272 = vmul.f32 %v6208, %v6240
    %v6273 = vmul.f32 %v6209, %v6241
    %v6274 = vmul.f32 %v6210, %v6242
    %v6275 = vmul.f32 %v6211, %v6243
    %v6276 = vmul.f32 %v6212, %v6244
    %v6277 = vmul.f32 %v6213, %v6245
    %v6278 = vmul.f32 %v6214, %v6246
    %v6279 = vmul.f32 %v6215, %v6247
    %v6280 = vmul.f32 %v6216, %v6248
    %v6281 = vmul.f32 %v6217, %v6249
    %v6282 = vmul.f32 %v6218, %v6250
    %v6283 = vmul.f32 %v6219, %v6251
    %v6284 = vmul.f32 %v6220, %v6252
    %v6285 = vmul.f32 %v6221, %v6253
    %v6286 = vmul.f32 %v6222, %v6254
    %v6287 = vmul.f32 %v6223, %v6255
    %v6288 = vmul.f32 %v6224, %v6256
    %v6289 = vmul.f32 %v6225, %v6257
    %v6290 = vmul.f32 %v6226, %v6258
    %v6291 = vsub.f32 2.0, %v6259
    %v6292 = vsub.f32 2.0, %v6260
    %v6293 = vsub.f32 2.0, %v6261
    %v6294 = vsub.f32 2.0, %v6262
    %v6295 = vsub.f32 2.0, %v6263
    %v6296 = vsub.f32 2.0, %v6264
    %v6297 = vsub.f32 2.0, %v6265
    %v6298 = vsub.f32 2.0, %v6266
    %v6299 = vsub.f32 2.0, %v6267
    %v6300 = vsub.f32 2.0, %v6268
    %v6301 = vsub.f32 2.0, %v6269
    %v6302 = vsub.f32 2.0, %v6270
    %v6303 = vsub.f32 2.0, %v6271
    %v6304 = vsub.f32 2.0, %v6272
    %v6305 = vsub.f32 2.0, %v6273
    %v6306 = vsub.f32 2.0, %v6274
    %v6307 = vsub.f32 2.0, %v6275
    %v6308 = vsub.f32 2.0, %v6276
    %v6309 = vsub.f32 2.0, %v6277
    %v6310 = vsub.f32 2.0, %v6278
    %v6311 = vsub.f32 2.0, %v6279
    %v6312 = vsub.f32 2.0, %v6280
    %v6313 = vsub.f32 2.0, %v6281
    %v6314 = vsub.f32 2.0, %v6282
    %v6315 = vsub.f32 2.0, %v6283
    %v6316 = vsub.f32 2.0, %v6284
    %v6317 = vsub.f32 2.0, %v6285
    %v6318 = vsub.f32 2.0, %v6286
    %v6319 = vsub.f32 2.0, %v6287
    %v6320 = vsub.f32 2.0, %v6288
    %v6321 = vsub.f32 2.0, %v6289
    %v6322 = vsub.f32 2.0, %v6290
    %v6323 = vmul.f32 %v6227, %v6291
    %v6324 = vmul.f32 %v6228, %v6292
    %v6325 = vmul.f32 %v6229, %v6293
    %v6326 = vmul.f32 %v6230, %v6294
    %v6327 = vmul.f32 %v6231, %v6295
    %v6328 = vmul.f32 %v6232, %v6296
    %v6329 = vmul.f32 %v6233, %v6297
    %v6330 = vmul.f32 %v6234, %v6298
    %v6331 = vmul.f32 %v6235, %v6299
    %v6332 = vmul.f32 %v6236, %v6300
    %v6333 = vmul.f32 %v6237, %v6301
    %v6334 = vmul.f32 %v6238, %v6302
    %v6335 = vmul.f32 %v6239, %v6303
    %v6336 = vmul.f32 %v6240, %v6304
    %v6337 = vmul.f32 %v6241, %v6305
    %v6338 = vmul.f32 %v6242, %v6306
    %v6339 = vmul.f32 %v6243, %v6307
    %v6340 = vmul.f32 %v6244, %v6308
    %v6341 = vmul.f32 %v6245, %v6309
    %v6342 = vmul.f32 %v6246, %v6310
    %v6343 = vmul.f32 %v6247, %v6311
    %v6344 = vmul.f32 %v6248, %v6312
    %v6345 = vmul.f32 %v6249, %v6313
    %v6346 = vmul.f32 %v6250, %v6314
    %v6347 = vmul.f32 %v6251, %v6315
    %v6348 = vmul.f32 %v6252, %v6316
    %v6349 = vmul.f32 %v6253, %v6317
    %v6350 = vmul.f32 %v6254, %v6318
    %v6351 = vmul.f32 %v6255, %v6319
    %v6352 = vmul.f32 %v6256, %v6320
    %v6353 = vmul.f32 %v6257, %v6321
    %v6354 = vmul.f32 %v6258, %v6322
    %v6355 = vmul.f32 %v6323, 1.0614054
    %v6356 = vmul.f32 %v6324, 1.0614054
    %v6357 = vmul.f32 %v6325, 1.0614054
    %v6358 = vmul.f32 %v6326, 1.0614054
    %v6359 = vmul.f32 %v6327, 1.0614054
    %v6360 = vmul.f32 %v6328, 1.0614054
    %v6361 = vmul.f32 %v6329, 1.0614054
    %v6362 = vmul.f32 %v6330, 1.0614054
    %v6363 = vmul.f32 %v6331, 1.0614054
    %v6364 = vmul.f32 %v6332, 1.0614054
    %v6365 = vmul.f32 %v6333, 1.0614054
    %v6366 = vmul.f32 %v6334, 1.0614054
    %v6367 = vmul.f32 %v6335, 1.0614054
    %v6368 = vmul.f32 %v6336, 1.0614054
    %v6369 = vmul.f32 %v6337, 1.0614054
    %v6370 = vmul.f32 %v6338, 1.0614054
    %v6371 = vmul.f32 %v6339, 1.0614054
    %v6372 = vmul.f32 %v6340, 1.0614054
    %v6373 = vmul.f32 %v6341, 1.0614054
    %v6374 = vmul.f32 %v6342, 1.0614054
    %v6375 = vmul.f32 %v6343, 1.0614054
    %v6376 = vmul.f32 %v6344, 1.0614054
    %v6377 = vmul.f32 %v6345, 1.0614054
    %v6378 = vmul.f32 %v6346, 1.0614054
    %v6379 = vmul.f32 %v6347, 1.0614054
    %v6380 = vmul.f32 %v6348, 1.0614054
    %v6381 = vmul.f32 %v6349, 1.0614054
    %v6382 = vmul.f32 %v6350, 1.0614054
    %v6383 = vmul.f32 %v6351, 1.0614054
    %v6384 = vmul.f32 %v6352, 1.0614054
    %v6385 = vmul.f32 %v6353, 1.0614054
    %v6386 = vmul.f32 %v6354, 1.0614054
    %v6387 = vadd.f32 %v6355, -1.4531521
    %v6388 = vadd.f32 %v6356, -1.4531521
    %v6389 = vadd.f32 %v6357, -1.4531521
    %v6390 = vadd.f32 %v6358, -1.4531521
    %v6391 = vadd.f32 %v6359, -1.4531521
    %v6392 = vadd.f32 %v6360, -1.4531521
    %v6393 = vadd.f32 %v6361, -1.4531521
    %v6394 = vadd.f32 %v6362, -1.4531521
    %v6395 = vadd.f32 %v6363, -1.4531521
    %v6396 = vadd.f32 %v6364, -1.4531521
    %v6397 = vadd.f32 %v6365, -1.4531521
    %v6398 = vadd.f32 %v6366, -1.4531521
    %v6399 = vadd.f32 %v6367, -1.4531521
    %v6400 = vadd.f32 %v6368, -1.4531521
    %v6401 = vadd.f32 %v6369, -1.4531521
    %v6402 = vadd.f32 %v6370, -1.4531521
    %v6403 = vadd.f32 %v6371, -1.4531521
    %v6404 = vadd.f32 %v6372, -1.4531521
    %v6405 = vadd.f32 %v6373, -1.4531521
    %v6406 = vadd.f32 %v6374, -1.4531521
    %v6407 = vadd.f32 %v6375, -1.4531521
    %v6408 = vadd.f32 %v6376, -1.4531521
    %v6409 = vadd.f32 %v6377, -1.4531521
    %v6410 = vadd.f32 %v6378, -1.4531521
    %v6411 = vadd.f32 %v6379, -1.4531521
    %v6412 = vadd.f32 %v6380, -1.4531521
    %v6413 = vadd.f32 %v6381, -1.4531521
    %v6414 = vadd.f32 %v6382, -1.4531521
    %v6415 = vadd.f32 %v6383, -1.4531521
    %v6416 = vadd.f32 %v6384, -1.4531521
    %v6417 = vadd.f32 %v6385, -1.4531521
    %v6418 = vadd.f32 %v6386, -1.4531521
    %v6419 = vmul.f32 %v6387, %v6323
    %v6420 = vmul.f32 %v6388, %v6324
    %v6421 = vmul.f32 %v6389, %v6325
    %v6422 = vmul.f32 %v6390, %v6326
    %v6423 = vmul.f32 %v6391, %v6327
    %v6424 = vmul.f32 %v6392, %v6328
    %v6425 = vmul.f32 %v6393, %v6329
    %v6426 = vmul.f32 %v6394, %v6330
    %v6427 = vmul.f32 %v6395, %v6331
    %v6428 = vmul.f32 %v6396, %v6332
    %v6429 = vmul.f32 %v6397, %v6333
    %v6430 = vmul.f32 %v6398, %v6334
    %v6431 = vmul.f32 %v6399, %v6335
    %v6432 = vmul.f32 %v6400, %v6336
    %v6433 = vmul.f32 %v6401, %v6337
    %v6434 = vmul.f32 %v6402, %v6338
    %v6435 = vmul.f32 %v6403, %v6339
    %v6436 = vmul.f32 %v6404, %v6340
    %v6437 = vmul.f32 %v6405, %v6341
    %v6438 = vmul.f32 %v6406, %v6342
    %v6439 = vmul.f32 %v6407, %v6343
    %v6440 = vmul.f32 %v6408, %v6344
    %v6441 = vmul.f32 %v6409, %v6345
    %v6442 = vmul.f32 %v6410, %v6346
    %v6443 = vmul.f32 %v6411, %v6347
    %v6444 = vmul.f32 %v6412, %v6348
    %v6445 = vmul.f32 %v6413, %v6349
    %v6446 = vmul.f32 %v6414, %v6350
    %v6447 = vmul.f32 %v6415, %v6351
    %v6448 = vmul.f32 %v6416, %v6352
    %v6449 = vmul.f32 %v6417, %v6353
    %v6450 = vmul.f32 %v6418, %v6354
    %v6451 = vadd.f32 %v6419, 1.4214138
    %v6452 = vadd.f32 %v6420, 1.4214138
    %v6453 = vadd.f32 %v6421, 1.4214138
    %v6454 = vadd.f32 %v6422, 1.4214138
    %v6455 = vadd.f32 %v6423, 1.4214138
    %v6456 = vadd.f32 %v6424, 1.4214138
    %v6457 = vadd.f32 %v6425, 1.4214138
    %v6458 = vadd.f32 %v6426, 1.4214138
    %v6459 = vadd.f32 %v6427, 1.4214138
    %v6460 = vadd.f32 %v6428, 1.4214138
    %v6461 = vadd.f32 %v6429, 1.4214138
    %v6462 = vadd.f32 %v6430, 1.4214138
    %v6463 = vadd.f32 %v6431, 1.4214138
    %v6464 = vadd.f32 %v6432, 1.4214138
    %v6465 = vadd.f32 %v6433, 1.4214138
    %v6466 = vadd.f32 %v6434, 1.4214138
    %v6467 = vadd.f32 %v6435, 1.4214138
    %v6468 = vadd.f32 %v6436, 1.4214138
    %v6469 = vadd.f32 %v6437, 1.4214138
    %v6470 = vadd.f32 %v6438, 1.4214138
    %v6471 = vadd.f32 %v6439, 1.4214138
    %v6472 = vadd.f32 %v6440, 1.4214138
    %v6473 = vadd.f32 %v6441, 1.4214138
    %v6474 = vadd.f32 %v6442, 1.4214138
    %v6475 = vadd.f32 %v6443, 1.4214138
    %v6476 = vadd.f32 %v6444, 1.4214138
    %v6477 = vadd.f32 %v6445, 1.4214138
    %v6478 = vadd.f32 %v6446, 1.4214138
    %v6479 = vadd.f32 %v6447, 1.4214138
    %v6480 = vadd.f32 %v6448, 1.4214138
    %v6481 = vadd.f32 %v6449, 1.4214138
    %v6482 = vadd.f32 %v6450, 1.4214138
    %v6483 = vmul.f32 %v6451, %v6323
    %v6484 = vmul.f32 %v6452, %v6324
    %v6485 = vmul.f32 %v6453, %v6325
    %v6486 = vmul.f32 %v6454, %v6326
    %v6487 = vmul.f32 %v6455, %v6327
    %v6488 = vmul.f32 %v6456, %v6328
    %v6489 = vmul.f32 %v6457, %v6329
    %v6490 = vmul.f32 %v6458, %v6330
    %v6491 = vmul.f32 %v6459, %v6331
    %v6492 = vmul.f32 %v6460, %v6332
    %v6493 = vmul.f32 %v6461, %v6333
    %v6494 = vmul.f32 %v6462, %v6334
    %v6495 = vmul.f32 %v6463, %v6335
    %v6496 = vmul.f32 %v6464, %v6336
    %v6497 = vmul.f32 %v6465, %v6337
    %v6498 = vmul.f32 %v6466, %v6338
    %v6499 = vmul.f32 %v6467, %v6339
    %v6500 = vmul.f32 %v6468, %v6340
    %v6501 = vmul.f32 %v6469, %v6341
    %v6502 = vmul.f32 %v6470, %v6342
    %v6503 = vmul.f32 %v6471, %v6343
    %v6504 = vmul.f32 %v6472, %v6344
    %v6505 = vmul.f32 %v6473, %v6345
    %v6506 = vmul.f32 %v6474, %v6346
    %v6507 = vmul.f32 %v6475, %v6347
    %v6508 = vmul.f32 %v6476, %v6348
    %v6509 = vmul.f32 %v6477, %v6349
    %v6510 = vmul.f32 %v6478, %v6350
    %v6511 = vmul.f32 %v6479, %v6351
    %v6512 = vmul.f32 %v6480, %v6352
    %v6513 = vmul.f32 %v6481, %v6353
    %v6514 = vmul.f32 %v6482, %v6354
    %v6515 = vadd.f32 %v6483, -0.28449672
    %v6516 = vadd.f32 %v6484, -0.28449672
    %v6517 = vadd.f32 %v6485, -0.28449672
    %v6518 = vadd.f32 %v6486, -0.28449672
    %v6519 = vadd.f32 %v6487, -0.28449672
    %v6520 = vadd.f32 %v6488, -0.28449672
    %v6521 = vadd.f32 %v6489, -0.28449672
    %v6522 = vadd.f32 %v6490, -0.28449672
    %v6523 = vadd.f32 %v6491, -0.28449672
    %v6524 = vadd.f32 %v6492, -0.28449672
    %v6525 = vadd.f32 %v6493, -0.28449672
    %v6526 = vadd.f32 %v6494, -0.28449672
    %v6527 = vadd.f32 %v6495, -0.28449672
    %v6528 = vadd.f32 %v6496, -0.28449672
    %v6529 = vadd.f32 %v6497, -0.28449672
    %v6530 = vadd.f32 %v6498, -0.28449672
    %v6531 = vadd.f32 %v6499, -0.28449672
    %v6532 = vadd.f32 %v6500, -0.28449672
    %v6533 = vadd.f32 %v6501, -0.28449672
    %v6534 = vadd.f32 %v6502, -0.28449672
    %v6535 = vadd.f32 %v6503, -0.28449672
    %v6536 = vadd.f32 %v6504, -0.28449672
    %v6537 = vadd.f32 %v6505, -0.28449672
    %v6538 = vadd.f32 %v6506, -0.28449672
    %v6539 = vadd.f32 %v6507, -0.28449672
    %v6540 = vadd.f32 %v6508, -0.28449672
    %v6541 = vadd.f32 %v6509, -0.28449672
    %v6542 = vadd.f32 %v6510, -0.28449672
    %v6543 = vadd.f32 %v6511, -0.28449672
    %v6544 = vadd.f32 %v6512, -0.28449672
    %v6545 = vadd.f32 %v6513, -0.28449672
    %v6546 = vadd.f32 %v6514, -0.28449672
    %v6547 = vmul.f32 %v6515, %v6323
    %v6548 = vmul.f32 %v6516, %v6324
    %v6549 = vmul.f32 %v6517, %v6325
    %v6550 = vmul.f32 %v6518, %v6326
    %v6551 = vmul.f32 %v6519, %v6327
    %v6552 = vmul.f32 %v6520, %v6328
    %v6553 = vmul.f32 %v6521, %v6329
    %v6554 = vmul.f32 %v6522, %v6330
    %v6555 = vmul.f32 %v6523, %v6331
    %v6556 = vmul.f32 %v6524, %v6332
    %v6557 = vmul.f32 %v6525, %v6333
    %v6558 = vmul.f32 %v6526, %v6334
    %v6559 = vmul.f32 %v6527, %v6335
    %v6560 = vmul.f32 %v6528, %v6336
    %v6561 = vmul.f32 %v6529, %v6337
    %v6562 = vmul.f32 %v6530, %v6338
    %v6563 = vmul.f32 %v6531, %v6339
    %v6564 = vmul.f32 %v6532, %v6340
    %v6565 = vmul.f32 %v6533, %v6341
    %v6566 = vmul.f32 %v6534, %v6342
    %v6567 = vmul.f32 %v6535, %v6343
    %v6568 = vmul.f32 %v6536, %v6344
    %v6569 = vmul.f32 %v6537, %v6345
    %v6570 = vmul.f32 %v6538, %v6346
    %v6571 = vmul.f32 %v6539, %v6347
    %v6572 = vmul.f32 %v6540, %v6348
    %v6573 = vmul.f32 %v6541, %v6349
    %v6574 = vmul.f32 %v6542, %v6350
    %v6575 = vmul.f32 %v6543, %v6351
    %v6576 = vmul.f32 %v6544, %v6352
    %v6577 = vmul.f32 %v6545, %v6353
    %v6578 = vmul.f32 %v6546, %v6354
    %v6579 = vadd.f32 %v6547, 0.2548296
    %v6580 = vadd.f32 %v6548, 0.2548296
    %v6581 = vadd.f32 %v6549, 0.2548296
    %v6582 = vadd.f32 %v6550, 0.2548296
    %v6583 = vadd.f32 %v6551, 0.2548296
    %v6584 = vadd.f32 %v6552, 0.2548296
    %v6585 = vadd.f32 %v6553, 0.2548296
    %v6586 = vadd.f32 %v6554, 0.2548296
    %v6587 = vadd.f32 %v6555, 0.2548296
    %v6588 = vadd.f32 %v6556, 0.2548296
    %v6589 = vadd.f32 %v6557, 0.2548296
    %v6590 = vadd.f32 %v6558, 0.2548296
    %v6591 = vadd.f32 %v6559, 0.2548296
    %v6592 = vadd.f32 %v6560, 0.2548296
    %v6593 = vadd.f32 %v6561, 0.2548296
    %v6594 = vadd.f32 %v6562, 0.2548296
    %v6595 = vadd.f32 %v6563, 0.2548296
    %v6596 = vadd.f32 %v6564, 0.2548296
    %v6597 = vadd.f32 %v6565, 0.2548296
    %v6598 = vadd.f32 %v6566, 0.2548296
    %v6599 = vadd.f32 %v6567, 0.2548296
    %v6600 = vadd.f32 %v6568, 0.2548296
    %v6601 = vadd.f32 %v6569, 0.2548296
    %v6602 = vadd.f32 %v6570, 0.2548296
    %v6603 = vadd.f32 %v6571, 0.2548296
    %v6604 = vadd.f32 %v6572, 0.2548296
    %v6605 = vadd.f32 %v6573, 0.2548296
    %v6606 = vadd.f32 %v6574, 0.2548296
    %v6607 = vadd.f32 %v6575, 0.2548296
    %v6608 = vadd.f32 %v6576, 0.2548296
    %v6609 = vadd.f32 %v6577, 0.2548296
    %v6610 = vadd.f32 %v6578, 0.2548296
    %v6611 = vmul.f32 %v6579, %v6323
    %v6612 = vmul.f32 %v6580, %v6324
    %v6613 = vmul.f32 %v6581, %v6325
    %v6614 = vmul.f32 %v6582, %v6326
    %v6615 = vmul.f32 %v6583, %v6327
    %v6616 = vmul.f32 %v6584, %v6328
    %v6617 = vmul.f32 %v6585, %v6329
    %v6618 = vmul.f32 %v6586, %v6330
    %v6619 = vmul.f32 %v6587, %v6331
    %v6620 = vmul.f32 %v6588, %v6332
    %v6621 = vmul.f32 %v6589, %v6333
    %v6622 = vmul.f32 %v6590, %v6334
    %v6623 = vmul.f32 %v6591, %v6335
    %v6624 = vmul.f32 %v6592, %v6336
    %v6625 = vmul.f32 %v6593, %v6337
    %v6626 = vmul.f32 %v6594, %v6338
    %v6627 = vmul.f32 %v6595, %v6339
    %v6628 = vmul.f32 %v6596, %v6340
    %v6629 = vmul.f32 %v6597, %v6341
    %v6630 = vmul.f32 %v6598, %v6342
    %v6631 = vmul.f32 %v6599, %v6343
    %v6632 = vmul.f32 %v6600, %v6344
    %v6633 = vmul.f32 %v6601, %v6345
    %v6634 = vmul.f32 %v6602, %v6346
    %v6635 = vmul.f32 %v6603, %v6347
    %v6636 = vmul.f32 %v6604, %v6348
    %v6637 = vmul.f32 %v6605, %v6349
    %v6638 = vmul.f32 %v6606, %v6350
    %v6639 = vmul.f32 %v6607, %v6351
    %v6640 = vmul.f32 %v6608, %v6352
    %v6641 = vmul.f32 %v6609, %v6353
    %v6642 = vmul.f32 %v6610, %v6354
    %v6643 = vsub.f32 0.0, %v6131
    %v6644 = vsub.f32 0.0, %v6132
    %v6645 = vsub.f32 0.0, %v6133
    %v6646 = vsub.f32 0.0, %v6134
    %v6647 = vsub.f32 0.0, %v6135
    %v6648 = vsub.f32 0.0, %v6136
    %v6649 = vsub.f32 0.0, %v6137
    %v6650 = vsub.f32 0.0, %v6138
    %v6651 = vsub.f32 0.0, %v6139
    %v6652 = vsub.f32 0.0, %v6140
    %v6653 = vsub.f32 0.0, %v6141
    %v6654 = vsub.f32 0.0, %v6142
    %v6655 = vsub.f32 0.0, %v6143
    %v6656 = vsub.f32 0.0, %v6144
    %v6657 = vsub.f32 0.0, %v6145
    %v6658 = vsub.f32 0.0, %v6146
    %v6659 = vsub.f32 0.0, %v6147
    %v6660 = vsub.f32 0.0, %v6148
    %v6661 = vsub.f32 0.0, %v6149
    %v6662 = vsub.f32 0.0, %v6150
    %v6663 = vsub.f32 0.0, %v6151
    %v6664 = vsub.f32 0.0, %v6152
    %v6665 = vsub.f32 0.0, %v6153
    %v6666 = vsub.f32 0.0, %v6154
    %v6667 = vsub.f32 0.0, %v6155
    %v6668 = vsub.f32 0.0, %v6156
    %v6669 = vsub.f32 0.0, %v6157
    %v6670 = vsub.f32 0.0, %v6158
    %v6671 = vsub.f32 0.0, %v6159
    %v6672 = vsub.f32 0.0, %v6160
    %v6673 = vsub.f32 0.0, %v6161
    %v6674 = vsub.f32 0.0, %v6162
    %v6675 = vmul.f32 %v6643, %v6131
    %v6676 = vmul.f32 %v6644, %v6132
    %v6677 = vmul.f32 %v6645, %v6133
    %v6678 = vmul.f32 %v6646, %v6134
    %v6679 = vmul.f32 %v6647, %v6135
    %v6680 = vmul.f32 %v6648, %v6136
    %v6681 = vmul.f32 %v6649, %v6137
    %v6682 = vmul.f32 %v6650, %v6138
    %v6683 = vmul.f32 %v6651, %v6139
    %v6684 = vmul.f32 %v6652, %v6140
    %v6685 = vmul.f32 %v6653, %v6141
    %v6686 = vmul.f32 %v6654, %v6142
    %v6687 = vmul.f32 %v6655, %v6143
    %v6688 = vmul.f32 %v6656, %v6144
    %v6689 = vmul.f32 %v6657, %v6145
    %v6690 = vmul.f32 %v6658, %v6146
    %v6691 = vmul.f32 %v6659, %v6147
    %v6692 = vmul.f32 %v6660, %v6148
    %v6693 = vmul.f32 %v6661, %v6149
    %v6694 = vmul.f32 %v6662, %v6150
    %v6695 = vmul.f32 %v6663, %v6151
    %v6696 = vmul.f32 %v6664, %v6152
    %v6697 = vmul.f32 %v6665, %v6153
    %v6698 = vmul.f32 %v6666, %v6154
    %v6699 = vmul.f32 %v6667, %v6155
    %v6700 = vmul.f32 %v6668, %v6156
    %v6701 = vmul.f32 %v6669, %v6157
    %v6702 = vmul.f32 %v6670, %v6158
    %v6703 = vmul.f32 %v6671, %v6159
    %v6704 = vmul.f32 %v6672, %v6160
    %v6705 = vmul.f32 %v6673, %v6161
    %v6706 = vmul.f32 %v6674, %v6162
    %v6707 = vmul.f32 %v6675, 1.442695
    %v6708 = vpow.pop %v6707
    %v6709 = vmul.f32 %v6676, 1.442695
    %v6710 = vpow.pop %v6709
    %v6711 = vmul.f32 %v6677, 1.442695
    %v6712 = vpow.pop %v6711
    %v6713 = vmul.f32 %v6678, 1.442695
    %v6714 = vpow.pop %v6713
    %v6715 = vmul.f32 %v6679, 1.442695
    %v6716 = vpow.pop %v6715
    %v6717 = vmul.f32 %v6680, 1.442695
    %v6718 = vpow.pop %v6717
    %v6719 = vmul.f32 %v6681, 1.442695
    %v6720 = vpow.pop %v6719
    %v6721 = vmul.f32 %v6682, 1.442695
    %v6722 = vpow.pop %v6721
    %v6723 = vmul.f32 %v6683, 1.442695
    %v6724 = vpow.pop %v6723
    %v6725 = vmul.f32 %v6684, 1.442695
    %v6726 = vpow.pop %v6725
    %v6727 = vmul.f32 %v6685, 1.442695
    %v6728 = vpow.pop %v6727
    %v6729 = vmul.f32 %v6686, 1.442695
    %v6730 = vpow.pop %v6729
    %v6731 = vmul.f32 %v6687, 1.442695
    %v6732 = vpow.pop %v6731
    %v6733 = vmul.f32 %v6688, 1.442695
    %v6734 = vpow.pop %v6733
    %v6735 = vmul.f32 %v6689, 1.442695
    %v6736 = vpow.pop %v6735
    %v6737 = vmul.f32 %v6690, 1.442695
    %v6738 = vpow.pop %v6737
    %v6739 = vmul.f32 %v6691, 1.442695
    %v6740 = vpow.pop %v6739
    %v6741 = vmul.f32 %v6692, 1.442695
    %v6742 = vpow.pop %v6741
    %v6743 = vmul.f32 %v6693, 1.442695
    %v6744 = vpow.pop %v6743
    %v6745 = vmul.f32 %v6694, 1.442695
    %v6746 = vpow.pop %v6745
    %v6747 = vmul.f32 %v6695, 1.442695
    %v6748 = vpow.pop %v6747
    %v6749 = vmul.f32 %v6696, 1.442695
    %v6750 = vpow.pop %v6749
    %v6751 = vmul.f32 %v6697, 1.442695
    %v6752 = vpow.pop %v6751
    %v6753 = vmul.f32 %v6698, 1.442695
    %v6754 = vpow.pop %v6753
    %v6755 = vmul.f32 %v6699, 1.442695
    %v6756 = vpow.pop %v6755
    %v6757 = vmul.f32 %v6700, 1.442695
    %v6758 = vpow.pop %v6757
    %v6759 = vmul.f32 %v6701, 1.442695
    %v6760 = vpow.pop %v6759
    %v6761 = vmul.f32 %v6702, 1.442695
    %v6762 = vpow.pop %v6761
    %v6763 = vmul.f32 %v6703, 1.442695
    %v6764 = vpow.pop %v6763
    %v6765 = vmul.f32 %v6704, 1.442695
    %v6766 = vpow.pop %v6765
    %v6767 = vmul.f32 %v6705, 1.442695
    %v6768 = vpow.pop %v6767
    %v6769 = vmul.f32 %v6706, 1.442695
    %v6770 = vpow.pop %v6769
    %v6771 = vmul.f32 %v6611, %v6708
    %v6772 = vmul.f32 %v6612, %v6710
    %v6773 = vmul.f32 %v6613, %v6712
    %v6774 = vmul.f32 %v6614, %v6714
    %v6775 = vmul.f32 %v6615, %v6716
    %v6776 = vmul.f32 %v6616, %v6718
    %v6777 = vmul.f32 %v6617, %v6720
    %v6778 = vmul.f32 %v6618, %v6722
    %v6779 = vmul.f32 %v6619, %v6724
    %v6780 = vmul.f32 %v6620, %v6726
    %v6781 = vmul.f32 %v6621, %v6728
    %v6782 = vmul.f32 %v6622, %v6730
    %v6783 = vmul.f32 %v6623, %v6732
    %v6784 = vmul.f32 %v6624, %v6734
    %v6785 = vmul.f32 %v6625, %v6736
    %v6786 = vmul.f32 %v6626, %v6738
    %v6787 = vmul.f32 %v6627, %v6740
    %v6788 = vmul.f32 %v6628, %v6742
    %v6789 = vmul.f32 %v6629, %v6744
    %v6790 = vmul.f32 %v6630, %v6746
    %v6791 = vmul.f32 %v6631, %v6748
    %v6792 = vmul.f32 %v6632, %v6750
    %v6793 = vmul.f32 %v6633, %v6752
    %v6794 = vmul.f32 %v6634, %v6754
    %v6795 = vmul.f32 %v6635, %v6756
    %v6796 = vmul.f32 %v6636, %v6758
    %v6797 = vmul.f32 %v6637, %v6760
    %v6798 = vmul.f32 %v6638, %v6762
    %v6799 = vmul.f32 %v6639, %v6764
    %v6800 = vmul.f32 %v6640, %v6766
    %v6801 = vmul.f32 %v6641, %v6768
    %v6802 = vmul.f32 %v6642, %v6770
    %v6803 = vsub.f32 1.0, %v6771
    %v6804 = vsub.f32 1.0, %v6772
    %v6805 = vsub.f32 1.0, %v6773
    %v6806 = vsub.f32 1.0, %v6774
    %v6807 = vsub.f32 1.0, %v6775
    %v6808 = vsub.f32 1.0, %v6776
    %v6809 = vsub.f32 1.0, %v6777
    %v6810 = vsub.f32 1.0, %v6778
    %v6811 = vsub.f32 1.0, %v6779
    %v6812 = vsub.f32 1.0, %v6780
    %v6813 = vsub.f32 1.0, %v6781
    %v6814 = vsub.f32 1.0, %v6782
    %v6815 = vsub.f32 1.0, %v6783
    %v6816 = vsub.f32 1.0, %v6784
    %v6817 = vsub.f32 1.0, %v6785
    %v6818 = vsub.f32 1.0, %v6786
    %v6819 = vsub.f32 1.0, %v6787
    %v6820 = vsub.f32 1.0, %v6788
    %v6821 = vsub.f32 1.0, %v6789
    %v6822 = vsub.f32 1.0, %v6790
    %v6823 = vsub.f32 1.0, %v6791
    %v6824 = vsub.f32 1.0, %v6792
    %v6825 = vsub.f32 1.0, %v6793
    %v6826 = vsub.f32 1.0, %v6794
    %v6827 = vsub.f32 1.0, %v6795
    %v6828 = vsub.f32 1.0, %v6796
    %v6829 = vsub.f32 1.0, %v6797
    %v6830 = vsub.f32 1.0, %v6798
    %v6831 = vsub.f32 1.0, %v6799
    %v6832 = vsub.f32 1.0, %v6800
    %v6833 = vsub.f32 1.0, %v6801
    %v6834 = vsub.f32 1.0, %v6802
    %vm6835 = vcmp.ge.f32.partialorder %v6099, 0.0
    %vm6836 = vcmp.ge.f32.partialorder %v6100, 0.0
    %vm6837 = vcmp.ge.f32.partialorder %v6101, 0.0
    %vm6838 = vcmp.ge.f32.partialorder %v6102, 0.0
    %vm6839 = vcmp.ge.f32.partialorder %v6103, 0.0
    %vm6840 = vcmp.ge.f32.partialorder %v6104, 0.0
    %vm6841 = vcmp.ge.f32.partialorder %v6105, 0.0
    %vm6842 = vcmp.ge.f32.partialorder %v6106, 0.0
    %vm6843 = vcmp.ge.f32.partialorder %v6107, 0.0
    %vm6844 = vcmp.ge.f32.partialorder %v6108, 0.0
    %vm6845 = vcmp.ge.f32.partialorder %v6109, 0.0
    %vm6846 = vcmp.ge.f32.partialorder %v6110, 0.0
    %vm6847 = vcmp.ge.f32.partialorder %v6111, 0.0
    %vm6848 = vcmp.ge.f32.partialorder %v6112, 0.0
    %vm6849 = vcmp.ge.f32.partialorder %v6113, 0.0
    %vm6850 = vcmp.ge.f32.partialorder %v6114, 0.0
    %vm6851 = vcmp.ge.f32.partialorder %v6115, 0.0
    %vm6852 = vcmp.ge.f32.partialorder %v6116, 0.0
    %vm6853 = vcmp.ge.f32.partialorder %v6117, 0.0
    %vm6854 = vcmp.ge.f32.partialorder %v6118, 0.0
    %vm6855 = vcmp.ge.f32.partialorder %v6119, 0.0
    %vm6856 = vcmp.ge.f32.partialorder %v6120, 0.0
    %vm6857 = vcmp.ge.f32.partialorder %v6121, 0.0
    %vm6858 = vcmp.ge.f32.partialorder %v6122, 0.0
    %vm6859 = vcmp.ge.f32.partialorder %v6123, 0.0
    %vm6860 = vcmp.ge.f32.partialorder %v6124, 0.0
    %vm6861 = vcmp.ge.f32.partialorder %v6125, 0.0
    %vm6862 = vcmp.ge.f32.partialorder %v6126, 0.0
    %vm6863 = vcmp.ge.f32.partialorder %v6127, 0.0
    %vm6864 = vcmp.ge.f32.partialorder %v6128, 0.0
    %vm6865 = vcmp.ge.f32.partialorder %v6129, 0.0
    %vm6866 = vcmp.ge.f32.partialorder %v6130, 0.0
    %v6867 = vsub.f32 0.0, %v6803
    %v6868 = vsub.f32 0.0, %v6804
    %v6869 = vsub.f32 0.0, %v6805
    %v6870 = vsub.f32 0.0, %v6806
    %v6871 = vsub.f32 0.0, %v6807
    %v6872 = vsub.f32 0.0, %v6808
    %v6873 = vsub.f32 0.0, %v6809
    %v6874 = vsub.f32 0.0, %v6810
    %v6875 = vsub.f32 0.0, %v6811
    %v6876 = vsub.f32 0.0, %v6812
    %v6877 = vsub.f32 0.0, %v6813
    %v6878 = vsub.f32 0.0, %v6814
    %v6879 = vsub.f32 0.0, %v6815
    %v6880 = vsub.f32 0.0, %v6816
    %v6881 = vsub.f32 0.0, %v6817
    %v6882 = vsub.f32 0.0, %v6818
    %v6883 = vsub.f32 0.0, %v6819
    %v6884 = vsub.f32 0.0, %v6820
    %v6885 = vsub.f32 0.0, %v6821
    %v6886 = vsub.f32 0.0, %v6822
    %v6887 = vsub.f32 0.0, %v6823
    %v6888 = vsub.f32 0.0, %v6824
    %v6889 = vsub.f32 0.0, %v6825
    %v6890 = vsub.f32 0.0, %v6826
    %v6891 = vsub.f32 0.0, %v6827
    %v6892 = vsub.f32 0.0, %v6828
    %v6893 = vsub.f32 0.0, %v6829
    %v6894 = vsub.f32 0.0, %v6830
    %v6895 = vsub.f32 0.0, %v6831
    %v6896 = vsub.f32 0.0, %v6832
    %v6897 = vsub.f32 0.0, %v6833
    %v6898 = vsub.f32 0.0, %v6834
    %v6899 = vsel %vm6835, %v6803, %v6867
    %v6900 = vsel %vm6836, %v6804, %v6868
    %v6901 = vsel %vm6837, %v6805, %v6869
    %v6902 = vsel %vm6838, %v6806, %v6870
    %v6903 = vsel %vm6839, %v6807, %v6871
    %v6904 = vsel %vm6840, %v6808, %v6872
    %v6905 = vsel %vm6841, %v6809, %v6873
    %v6906 = vsel %vm6842, %v6810, %v6874
    %v6907 = vsel %vm6843, %v6811, %v6875
    %v6908 = vsel %vm6844, %v6812, %v6876
    %v6909 = vsel %vm6845, %v6813, %v6877
    %v6910 = vsel %vm6846, %v6814, %v6878
    %v6911 = vsel %vm6847, %v6815, %v6879
    %v6912 = vsel %vm6848, %v6816, %v6880
    %v6913 = vsel %vm6849, %v6817, %v6881
    %v6914 = vsel %vm6850, %v6818, %v6882
    %v6915 = vsel %vm6851, %v6819, %v6883
    %v6916 = vsel %vm6852, %v6820, %v6884
    %v6917 = vsel %vm6853, %v6821, %v6885
    %v6918 = vsel %vm6854, %v6822, %v6886
    %v6919 = vsel %vm6855, %v6823, %v6887
    %v6920 = vsel %vm6856, %v6824, %v6888
    %v6921 = vsel %vm6857, %v6825, %v6889
    %v6922 = vsel %vm6858, %v6826, %v6890
    %v6923 = vsel %vm6859, %v6827, %v6891
    %v6924 = vsel %vm6860, %v6828, %v6892
    %v6925 = vsel %vm6861, %v6829, %v6893
    %v6926 = vsel %vm6862, %v6830, %v6894
    %v6927 = vsel %vm6863, %v6831, %v6895
    %v6928 = vsel %vm6864, %v6832, %v6896
    %v6929 = vsel %vm6865, %v6833, %v6897
    %v6930 = vsel %vm6866, %v6834, %v6898
    %v6931 = vadd.f32 %v6899, 1.0
    %v6932 = vadd.f32 %v6900, 1.0
    %v6933 = vadd.f32 %v6901, 1.0
    %v6934 = vadd.f32 %v6902, 1.0
    %v6935 = vadd.f32 %v6903, 1.0
    %v6936 = vadd.f32 %v6904, 1.0
    %v6937 = vadd.f32 %v6905, 1.0
    %v6938 = vadd.f32 %v6906, 1.0
    %v6939 = vadd.f32 %v6907, 1.0
    %v6940 = vadd.f32 %v6908, 1.0
    %v6941 = vadd.f32 %v6909, 1.0
    %v6942 = vadd.f32 %v6910, 1.0
    %v6943 = vadd.f32 %v6911, 1.0
    %v6944 = vadd.f32 %v6912, 1.0
    %v6945 = vadd.f32 %v6913, 1.0
    %v6946 = vadd.f32 %v6914, 1.0
    %v6947 = vadd.f32 %v6915, 1.0
    %v6948 = vadd.f32 %v6916, 1.0
    %v6949 = vadd.f32 %v6917, 1.0
    %v6950 = vadd.f32 %v6918, 1.0
    %v6951 = vadd.f32 %v6919, 1.0
    %v6952 = vadd.f32 %v6920, 1.0
    %v6953 = vadd.f32 %v6921, 1.0
    %v6954 = vadd.f32 %v6922, 1.0
    %v6955 = vadd.f32 %v6923, 1.0
    %v6956 = vadd.f32 %v6924, 1.0
    %v6957 = vadd.f32 %v6925, 1.0
    %v6958 = vadd.f32 %v6926, 1.0
    %v6959 = vadd.f32 %v6927, 1.0
    %v6960 = vadd.f32 %v6928, 1.0
    %v6961 = vadd.f32 %v6929, 1.0
    %v6962 = vadd.f32 %v6930, 1.0
    %v6963 = vmul.f32 %v6067, %v6931
    %v6964 = vmul.f32 %v6068, %v6932
    %v6965 = vmul.f32 %v6069, %v6933
    %v6966 = vmul.f32 %v6070, %v6934
    %v6967 = vmul.f32 %v6071, %v6935
    %v6968 = vmul.f32 %v6072, %v6936
    %v6969 = vmul.f32 %v6073, %v6937
    %v6970 = vmul.f32 %v6074, %v6938
    %v6971 = vmul.f32 %v6075, %v6939
    %v6972 = vmul.f32 %v6076, %v6940
    %v6973 = vmul.f32 %v6077, %v6941
    %v6974 = vmul.f32 %v6078, %v6942
    %v6975 = vmul.f32 %v6079, %v6943
    %v6976 = vmul.f32 %v6080, %v6944
    %v6977 = vmul.f32 %v6081, %v6945
    %v6978 = vmul.f32 %v6082, %v6946
    %v6979 = vmul.f32 %v6083, %v6947
    %v6980 = vmul.f32 %v6084, %v6948
    %v6981 = vmul.f32 %v6085, %v6949
    %v6982 = vmul.f32 %v6086, %v6950
    %v6983 = vmul.f32 %v6087, %v6951
    %v6984 = vmul.f32 %v6088, %v6952
    %v6985 = vmul.f32 %v6089, %v6953
    %v6986 = vmul.f32 %v6090, %v6954
    %v6987 = vmul.f32 %v6091, %v6955
    %v6988 = vmul.f32 %v6092, %v6956
    %v6989 = vmul.f32 %v6093, %v6957
    %v6990 = vmul.f32 %v6094, %v6958
    %v6991 = vmul.f32 %v6095, %v6959
    %v6992 = vmul.f32 %v6096, %v6960
    %v6993 = vmul.f32 %v6097, %v6961
    %v6994 = vmul.f32 %v6098, %v6962
    %s6995 = scalar_lea.vmem [#allocation2], 192
    %v6996 = vld [vmem:[%s6995] sm:$0xff]
    %v6997 = vld [vmem:[%s6995 + $0x8] sm:$0xff]
    %v6998 = vld [vmem:[%s6995 + $0x10] sm:$0xff]
    %v6999 = vld [vmem:[%s6995 + $0x18] sm:$0xff]
    %v7000 = vld [vmem:[%s6995 + $0x20] sm:$0xff]
    %v7001 = vld [vmem:[%s6995 + $0x28] sm:$0xff]
    %v7002 = vld [vmem:[%s6995 + $0x30] sm:$0xff]
    %v7003 = vld [vmem:[%s6995 + $0x38] sm:$0xff]
    %v7004 = vld [vmem:[%s6995 + $0x40] sm:$0xff]
    %v7005 = vld [vmem:[%s6995 + $0x48] sm:$0xff]
    %v7006 = vld [vmem:[%s6995 + $0x50] sm:$0xff]
    %v7007 = vld [vmem:[%s6995 + $0x58] sm:$0xff]
    %v7008 = vrot.slane %v6963, 7
    %v7009 = vrot.slane %v6964, 7
    %v7010 = vrot.slane %v6965, 7
    %v7011 = vrot.slane %v6966, 7
    %v7012 = vrot.slane %v6967, 7
    %v7013 = vrot.slane %v6968, 7
    %v7014 = vrot.slane %v6969, 7
    %v7015 = vrot.slane %v6970, 7
    %v7016 = vrot.slane %v6971, 7
    %v7017 = vrot.slane %v6972, 7
    %v7018 = vrot.slane %v6973, 7
    %v7019 = vrot.slane %v6974, 7
    %v7020 = vrot.slane %v6975, 7
    %v7021 = vrot.slane %v6976, 7
    %v7022 = vrot.slane %v6977, 7
    %v7023 = vrot.slane %v6978, 7
    %v7024 = vrot.slane %v6979, 7
    %v7025 = vrot.slane %v6980, 7
    %v7026 = vrot.slane %v6981, 7
    %v7027 = vrot.slane %v6982, 7
    %v7028 = vrot.slane %v6983, 7
    %v7029 = vrot.slane %v6984, 7
    %v7030 = vrot.slane %v6985, 7
    %v7031 = vrot.slane %v6986, 7
    %v7032 = vrot.slane %v6987, 7
    %v7033 = vrot.slane %v6988, 7
    %v7034 = vrot.slane %v6989, 7
    %v7035 = vrot.slane %v6990, 7
    %v7036 = vrot.slane %v6991, 7
    %v7037 = vrot.slane %v6992, 7
    %v7038 = vrot.slane %v6993, 7
    %v7039 = vrot.slane %v6994, 7
    %v7040 = vsel %vm363, %v7038, %v7039
    %v7041 = vsel %vm363, %v7037, %v7038
    %v7042 = vsel %vm363, %v7036, %v7037
    %v7043 = vsel %vm363, %v7035, %v7036
    %v7044 = vsel %vm363, %v7034, %v7035
    %v7045 = vsel %vm363, %v7033, %v7034
    %v7046 = vsel %vm363, %v7032, %v7033
    %v7047 = vsel %vm363, %v7031, %v7032
    %v7048 = vsel %vm363, %v7030, %v7031
    %v7049 = vsel %vm363, %v7029, %v7030
    %v7050 = vsel %vm363, %v7028, %v7029
    %v7051 = vsel %vm363, %v7027, %v7028
    %v7052 = vsel %vm363, %v7026, %v7027
    %v7053 = vsel %vm363, %v7025, %v7026
    %v7054 = vsel %vm363, %v7024, %v7025
    %v7055 = vsel %vm363, %v7023, %v7024
    %v7056 = vsel %vm363, %v7022, %v7023
    %v7057 = vsel %vm363, %v7021, %v7022
    %v7058 = vsel %vm363, %v7020, %v7021
    %v7059 = vsel %vm363, %v7019, %v7020
    %v7060 = vsel %vm363, %v7018, %v7019
    %v7061 = vsel %vm363, %v7017, %v7018
    %v7062 = vsel %vm363, %v7016, %v7017
    %v7063 = vsel %vm363, %v7015, %v7016
    %v7064 = vsel %vm363, %v7014, %v7015
    %v7065 = vsel %vm363, %v7013, %v7014
    %v7066 = vsel %vm363, %v7012, %v7013
    %v7067 = vsel %vm363, %v7011, %v7012
    %v7068 = vsel %vm363, %v7010, %v7011
    %v7069 = vsel %vm363, %v7009, %v7010
    %v7070 = vsel %vm363, %v7008, %v7009
    %v7071 = vsel %vm363, %v7039, %v7008
    %v7072 = vmul.f32 %v7071, %v200
    %v7073 = vmul.f32 %v7070, %v201
    %v7074 = vmul.f32 %v7069, %v202
    %v7075 = vmul.f32 %v7068, %v203
    %v7076 = vmul.f32 %v7067, %v204
    %v7077 = vmul.f32 %v7066, %v205
    %v7078 = vmul.f32 %v7065, %v206
    %v7079 = vmul.f32 %v7064, %v207
    %v7080 = vmul.f32 %v7063, %v208
    %v7081 = vmul.f32 %v7062, %v209
    %v7082 = vmul.f32 %v7061, %v210
    %v7083 = vmul.f32 %v7060, %v211
    %v7084 = vmul.f32 %v7059, %v212
    %v7085 = vmul.f32 %v7058, %v213
    %v7086 = vmul.f32 %v7057, %v214
    %v7087 = vmul.f32 %v7056, %v215
    %v7088 = vmul.f32 %v7055, %v216
    %v7089 = vmul.f32 %v7054, %v217
    %v7090 = vmul.f32 %v7053, %v218
    %v7091 = vmul.f32 %v7052, %v219
    %v7092 = vmul.f32 %v7051, %v220
    %v7093 = vmul.f32 %v7050, %v221
    %v7094 = vmul.f32 %v7049, %v222
    %v7095 = vmul.f32 %v7048, %v223
    %v7096 = vmul.f32 %v7047, %v224
    %v7097 = vmul.f32 %v7046, %v225
    %v7098 = vmul.f32 %v7045, %v226
    %v7099 = vmul.f32 %v7044, %v227
    %v7100 = vmul.f32 %v7043, %v228
    %v7101 = vmul.f32 %v7042, %v229
    %v7102 = vmul.f32 %v7041, %v230
    %v7103 = vmul.f32 %v7040, %v231
    %v7104 = vrot.slane %v6963, 1
    %v7105 = vrot.slane %v6964, 1
    %v7106 = vrot.slane %v6965, 1
    %v7107 = vrot.slane %v6966, 1
    %v7108 = vrot.slane %v6967, 1
    %v7109 = vrot.slane %v6968, 1
    %v7110 = vrot.slane %v6969, 1
    %v7111 = vrot.slane %v6970, 1
    %v7112 = vrot.slane %v6971, 1
    %v7113 = vrot.slane %v6972, 1
    %v7114 = vrot.slane %v6973, 1
    %v7115 = vrot.slane %v6974, 1
    %v7116 = vrot.slane %v6975, 1
    %v7117 = vrot.slane %v6976, 1
    %v7118 = vrot.slane %v6977, 1
    %v7119 = vrot.slane %v6978, 1
    %v7120 = vrot.slane %v6979, 1
    %v7121 = vrot.slane %v6980, 1
    %v7122 = vrot.slane %v6981, 1
    %v7123 = vrot.slane %v6982, 1
    %v7124 = vrot.slane %v6983, 1
    %v7125 = vrot.slane %v6984, 1
    %v7126 = vrot.slane %v6985, 1
    %v7127 = vrot.slane %v6986, 1
    %v7128 = vrot.slane %v6987, 1
    %v7129 = vrot.slane %v6988, 1
    %v7130 = vrot.slane %v6989, 1
    %v7131 = vrot.slane %v6990, 1
    %v7132 = vrot.slane %v6991, 1
    %v7133 = vrot.slane %v6992, 1
    %v7134 = vrot.slane %v6993, 1
    %v7135 = vrot.slane %v6994, 1
    %v7136 = vsel %vm460, %v7134, %v7135
    %v7137 = vsel %vm460, %v7133, %v7134
    %v7138 = vsel %vm460, %v7132, %v7133
    %v7139 = vsel %vm460, %v7131, %v7132
    %v7140 = vsel %vm460, %v7130, %v7131
    %v7141 = vsel %vm460, %v7129, %v7130
    %v7142 = vsel %vm460, %v7128, %v7129
    %v7143 = vsel %vm460, %v7127, %v7128
    %v7144 = vsel %vm460, %v7126, %v7127
    %v7145 = vsel %vm460, %v7125, %v7126
    %v7146 = vsel %vm460, %v7124, %v7125
    %v7147 = vsel %vm460, %v7123, %v7124
    %v7148 = vsel %vm460, %v7122, %v7123
    %v7149 = vsel %vm460, %v7121, %v7122
    %v7150 = vsel %vm460, %v7120, %v7121
    %v7151 = vsel %vm460, %v7119, %v7120
    %v7152 = vsel %vm460, %v7118, %v7119
    %v7153 = vsel %vm460, %v7117, %v7118
    %v7154 = vsel %vm460, %v7116, %v7117
    %v7155 = vsel %vm460, %v7115, %v7116
    %v7156 = vsel %vm460, %v7114, %v7115
    %v7157 = vsel %vm460, %v7113, %v7114
    %v7158 = vsel %vm460, %v7112, %v7113
    %v7159 = vsel %vm460, %v7111, %v7112
    %v7160 = vsel %vm460, %v7110, %v7111
    %v7161 = vsel %vm460, %v7109, %v7110
    %v7162 = vsel %vm460, %v7108, %v7109
    %v7163 = vsel %vm460, %v7107, %v7108
    %v7164 = vsel %vm460, %v7106, %v7107
    %v7165 = vsel %vm460, %v7105, %v7106
    %v7166 = vsel %vm460, %v7104, %v7105
    %v7167 = vsel %vm460, %v7135, %v7104
    %v7168 = vmul.f32 %v7166, %v296
    %v7169 = vmul.f32 %v7165, %v297
    %v7170 = vmul.f32 %v7164, %v298
    %v7171 = vmul.f32 %v7163, %v299
    %v7172 = vmul.f32 %v7162, %v300
    %v7173 = vmul.f32 %v7161, %v301
    %v7174 = vmul.f32 %v7160, %v302
    %v7175 = vmul.f32 %v7159, %v303
    %v7176 = vmul.f32 %v7158, %v304
    %v7177 = vmul.f32 %v7157, %v305
    %v7178 = vmul.f32 %v7156, %v306
    %v7179 = vmul.f32 %v7155, %v307
    %v7180 = vmul.f32 %v7154, %v308
    %v7181 = vmul.f32 %v7153, %v309
    %v7182 = vmul.f32 %v7152, %v310
    %v7183 = vmul.f32 %v7151, %v311
    %v7184 = vmul.f32 %v7150, %v312
    %v7185 = vmul.f32 %v7149, %v313
    %v7186 = vmul.f32 %v7148, %v314
    %v7187 = vmul.f32 %v7147, %v315
    %v7188 = vmul.f32 %v7146, %v316
    %v7189 = vmul.f32 %v7145, %v317
    %v7190 = vmul.f32 %v7144, %v318
    %v7191 = vmul.f32 %v7143, %v319
    %v7192 = vmul.f32 %v7142, %v320
    %v7193 = vmul.f32 %v7141, %v321
    %v7194 = vmul.f32 %v7140, %v322
    %v7195 = vmul.f32 %v7139, %v323
    %v7196 = vmul.f32 %v7138, %v324
    %v7197 = vmul.f32 %v7137, %v325
    %v7198 = vmul.f32 %v7136, %v326
    %v7199 = vmul.f32 %v7167, %v327
    %v7201 = vsel %vm2735, %v6963, 0
    %v7204 = vsel %vm2735, %v6964, 0
    %v7207 = vsel %vm2735, %v6965, 0
    %v7210 = vsel %vm2735, %v6966, 0
    %v7213 = vsel %vm2735, %v6967, 0
    %v7216 = vsel %vm2735, %v6968, 0
    %v7219 = vsel %vm2735, %v6969, 0
    %v7222 = vsel %vm2735, %v6970, 0
    %v7225 = vsel %vm2735, %v6971, 0
    %v7228 = vsel %vm2735, %v6972, 0
    %v7231 = vsel %vm2735, %v6973, 0
    %v7234 = vsel %vm2735, %v6974, 0
    %v7237 = vsel %vm2735, %v6975, 0
    %v7240 = vsel %vm2735, %v6976, 0
    %v7243 = vsel %vm2735, %v6977, 0
    %v7246 = vsel %vm2735, %v6978, 0
    %v7249 = vsel %vm2735, %v6979, 0
    %v7252 = vsel %vm2735, %v6980, 0
    %v7255 = vsel %vm2735, %v6981, 0
    %v7258 = vsel %vm2735, %v6982, 0
    %v7261 = vsel %vm2735, %v6983, 0
    %v7264 = vsel %vm2735, %v6984, 0
    %v7267 = vsel %vm2735, %v6985, 0
    %v7270 = vsel %vm2735, %v6986, 0
    %v7273 = vsel %vm2735, %v6987, 0
    %v7276 = vsel %vm2735, %v6988, 0
    %v7279 = vsel %vm2735, %v6989, 0
    %v7282 = vsel %vm2735, %v6990, 0
    %v7285 = vsel %vm2735, %v6991, 0
    %v7288 = vsel %vm2735, %v6992, 0
    %v7291 = vsel %vm2735, %v6993, 0
    %v7294 = vsel %vm2735, %v6994, 0
    %7296 = vmatprep.subr.mxu0 0.0
    %7297 = vmatpush1.msra.mxu0 %v7000
    %7298 = vmatprep.subr.mxu0 0.0
    %7299 = vmatpush1.msra.mxu0 %v7001
    %7300 = vmatprep.subr.mxu0 0.0
    %7301 = vmatpush1.msra.mxu0 %v7002
    %7302 = vmatprep.subr.mxu0 0.0
    %7303 = vmatpush1.msra.mxu0 %v7003
    %7304 = vmatprep.subr.mxu0 0.0
    %7305 = vmatpush1.msra.mxu0 0.0
    %7306 = vmatprep.subr.mxu0 0.0
    %7307 = vmatpush1.msra.mxu0 0.0
    %7308 = vmatprep.subr.mxu0 0.0
    %7309 = vmatpush1.msra.mxu0 0.0
    %7310 = vmatprep.subr.mxu0 0.0
    %7311 = vmatpush1.msra.mxu0 0.0
    %7312 = vmatprep.subr.mxu0 0.0
    %7313 = vmatpush1.msra.mxu0 0.0
    %7314 = vmatprep.subr.mxu0 0.0
    %7315 = vmatpush1.msra.mxu0 0.0
    %7316 = vmatprep.subr.mxu0 0.0
    %7317 = vmatpush1.msra.mxu0 0.0
    %7318 = vmatprep.subr.mxu0 0.0
    %7319 = vmatpush1.msra.mxu0 0.0
    %7320 = vmatprep.subr.mxu0 0.0
    %7321 = vmatpush1.msra.mxu0 0.0
    %7322 = vmatprep.subr.mxu0 0.0
    %7323 = vmatpush1.msra.mxu0 0.0
    %7324 = vmatprep.subr.mxu0 0.0
    %7325 = vmatpush1.msra.mxu0 0.0
    %7326 = vmatprep.subr.mxu0 0.0
    %7327 = vmatpush1.msra.mxu0 0.0
    %7328 = vmatprep.subr.mxu0 0.0
    %7329 = vmatpush1.msra.mxu0 0.0
    %7330 = vmatprep.subr.mxu0 0.0
    %7331 = vmatpush1.msra.mxu0 0.0
    %7332 = vmatprep.subr.mxu0 0.0
    %7333 = vmatpush1.msra.mxu0 0.0
    %7334 = vmatprep.subr.mxu0 0.0
    %7335 = vmatpush1.msra.mxu0 0.0
    %7336 = vmatprep.subr.mxu0 0.0
    %7337 = vmatpush1.msra.mxu0 0.0
    %7338 = vmatprep.subr.mxu0 0.0
    %7339 = vmatpush1.msra.mxu0 0.0
    %7340 = vmatprep.subr.mxu0 0.0
    %7341 = vmatpush1.msra.mxu0 0.0
    %7342 = vmatprep.subr.mxu0 0.0
    %7343 = vmatpush1.msra.mxu0 0.0
    %7344 = vmatprep.subr.mxu0 0.0
    %7345 = vmatpush1.msra.mxu0 0.0
    %7346 = vmatprep.subr.mxu0 0.0
    %7347 = vmatpush1.msra.mxu0 0.0
    %7348 = vmatprep.subr.mxu0 0.0
    %7349 = vmatpush1.msra.mxu0 0.0
    %7350 = vmatprep.subr.mxu0 0.0
    %7351 = vmatpush1.msra.mxu0 0.0
    %7352 = vmatprep.subr.mxu0 0.0
    %7353 = vmatpush1.msra.mxu0 0.0
    %7354 = vmatprep.subr.mxu0 0.0
    %7355 = vmatpush1.msra.mxu0 0.0
    %7356 = vmatprep.subr.mxu0 0.0
    %7357 = vmatpush1.msra.mxu0 0.0
    %7358 = vmatprep.subr.mxu0 0.0
    %7359 = vmatpush1.msra.mxu0 0.0
    %7360 = vmatprep.mubr.f32.mxu0 0.0
    %7361 = vmatmul.mubr.f32.gmra.mrb[0].mxu0 %v7201
    %v7362 = vpop.f32.mrb[0].mxu0
    %v7363 = vadd.f32 0.0, %v7362
    %v7364 = vpop.f32.mrb[0].mxu0
    %7365 = vmatprep.mubr.f32.mxu0 0.0
    %7366 = vmatmul.mubr.f32.gmra.mrb[0].mxu0 %v7204
    %v7367 = vpop.f32.mrb[0].mxu0
    %v7368 = vadd.f32 0.0, %v7367
    %v7369 = vpop.f32.mrb[0].mxu0
    %7370 = vmatprep.mubr.f32.mxu0 0.0
    %7371 = vmatmul.mubr.f32.gmra.mrb[0].mxu0 %v7207
    %v7372 = vpop.f32.mrb[0].mxu0
    %v7373 = vadd.f32 0.0, %v7372
    %v7374 = vpop.f32.mrb[0].mxu0
    %7375 = vmatprep.mubr.f32.mxu0 0.0
    %7376 = vmatmul.mubr.f32.gmra.mrb[0].mxu0 %v7210
    %v7377 = vpop.f32.mrb[0].mxu0
    %v7378 = vadd.f32 0.0, %v7377
    %v7379 = vpop.f32.mrb[0].mxu0
    %7380 = vmatprep.mubr.f32.mxu0 0.0
    %7381 = vmatmul.mubr.f32.gmra.mrb[0].mxu0 %v7213
    %v7382 = vpop.f32.mrb[0].mxu0
    %v7383 = vadd.f32 0.0, %v7382
    %v7384 = vpop.f32.mrb[0].mxu0
    %7385 = vmatprep.mubr.f32.mxu0 0.0
    %7386 = vmatmul.mubr.f32.gmra.mrb[0].mxu0 %v7216
    %v7387 = vpop.f32.mrb[0].mxu0
    %v7388 = vadd.f32 0.0, %v7387
    %v7389 = vpop.f32.mrb[0].mxu0
    %7390 = vmatprep.mubr.f32.mxu0 0.0
    %7391 = vmatmul.mubr.f32.gmra.mrb[0].mxu0 %v7219
    %v7392 = vpop.f32.mrb[0].mxu0
    %v7393 = vadd.f32 0.0, %v7392
    %v7394 = vpop.f32.mrb[0].mxu0
    %7395 = vmatprep.mubr.f32.mxu0 0.0
    %7396 = vmatmul.mubr.f32.gmra.mrb[0].mxu0 %v7222
    %v7397 = vpop.f32.mrb[0].mxu0
    %v7398 = vadd.f32 0.0, %v7397
    %v7399 = vpop.f32.mrb[0].mxu0
    %7400 = vmatprep.mubr.f32.mxu0 0.0
    %7401 = vmatmul.mubr.f32.gmra.mrb[0].mxu0 %v7225
    %v7402 = vpop.f32.mrb[0].mxu0
    %v7403 = vadd.f32 0.0, %v7402
    %v7404 = vpop.f32.mrb[0].mxu0
    %7405 = vmatprep.mubr.f32.mxu0 0.0
    %7406 = vmatmul.mubr.f32.gmra.mrb[0].mxu0 %v7228
    %v7407 = vpop.f32.mrb[0].mxu0
    %v7408 = vadd.f32 0.0, %v7407
    %v7409 = vpop.f32.mrb[0].mxu0
    %7410 = vmatprep.mubr.f32.mxu0 0.0
    %7411 = vmatmul.mubr.f32.gmra.mrb[0].mxu0 %v7231
    %v7412 = vpop.f32.mrb[0].mxu0
    %v7413 = vadd.f32 0.0, %v7412
    %v7414 = vpop.f32.mrb[0].mxu0
    %7415 = vmatprep.mubr.f32.mxu0 0.0
    %7416 = vmatmul.mubr.f32.gmra.mrb[0].mxu0 %v7234
    %v7417 = vpop.f32.mrb[0].mxu0
    %v7418 = vadd.f32 0.0, %v7417
    %v7419 = vpop.f32.mrb[0].mxu0
    %7420 = vmatprep.mubr.f32.mxu0 0.0
    %7421 = vmatmul.mubr.f32.gmra.mrb[0].mxu0 %v7237
    %v7422 = vpop.f32.mrb[0].mxu0
    %v7423 = vadd.f32 0.0, %v7422
    %v7424 = vpop.f32.mrb[0].mxu0
    %7425 = vmatprep.mubr.f32.mxu0 0.0
    %7426 = vmatmul.mubr.f32.gmra.mrb[0].mxu0 %v7240
    %v7427 = vpop.f32.mrb[0].mxu0
    %v7428 = vadd.f32 0.0, %v7427
    %v7429 = vpop.f32.mrb[0].mxu0
    %7430 = vmatprep.mubr.f32.mxu0 0.0
    %7431 = vmatmul.mubr.f32.gmra.mrb[0].mxu0 %v7243
    %v7432 = vpop.f32.mrb[0].mxu0
    %v7433 = vadd.f32 0.0, %v7432
    %v7434 = vpop.f32.mrb[0].mxu0
    %7435 = vmatprep.mubr.f32.mxu0 0.0
    %7436 = vmatmul.mubr.f32.gmra.mrb[0].mxu0 %v7246
    %v7437 = vpop.f32.mrb[0].mxu0
    %v7438 = vadd.f32 0.0, %v7437
    %v7439 = vpop.f32.mrb[0].mxu0
    %7440 = vmatprep.mubr.f32.mxu0 0.0
    %7441 = vmatmul.mubr.f32.gmra.mrb[0].mxu0 %v7249
    %v7442 = vpop.f32.mrb[0].mxu0
    %v7443 = vadd.f32 0.0, %v7442
    %v7444 = vpop.f32.mrb[0].mxu0
    %7445 = vmatprep.mubr.f32.mxu0 0.0
    %7446 = vmatmul.mubr.f32.gmra.mrb[0].mxu0 %v7252
    %v7447 = vpop.f32.mrb[0].mxu0
    %v7448 = vadd.f32 0.0, %v7447
    %v7449 = vpop.f32.mrb[0].mxu0
    %7450 = vmatprep.mubr.f32.mxu0 0.0
    %7451 = vmatmul.mubr.f32.gmra.mrb[0].mxu0 %v7255
    %v7452 = vpop.f32.mrb[0].mxu0
    %v7453 = vadd.f32 0.0, %v7452
    %v7454 = vpop.f32.mrb[0].mxu0
    %7455 = vmatprep.mubr.f32.mxu0 0.0
    %7456 = vmatmul.mubr.f32.gmra.mrb[0].mxu0 %v7258
    %v7457 = vpop.f32.mrb[0].mxu0
    %v7458 = vadd.f32 0.0, %v7457
    %v7459 = vpop.f32.mrb[0].mxu0
    %7460 = vmatprep.mubr.f32.mxu0 0.0
    %7461 = vmatmul.mubr.f32.gmra.mrb[0].mxu0 %v7261
    %v7462 = vpop.f32.mrb[0].mxu0
    %v7463 = vadd.f32 0.0, %v7462
    %v7464 = vpop.f32.mrb[0].mxu0
    %7465 = vmatprep.mubr.f32.mxu0 0.0
    %7466 = vmatmul.mubr.f32.gmra.mrb[0].mxu0 %v7264
    %v7467 = vpop.f32.mrb[0].mxu0
    %v7468 = vadd.f32 0.0, %v7467
    %v7469 = vpop.f32.mrb[0].mxu0
    %7470 = vmatprep.mubr.f32.mxu0 0.0
    %7471 = vmatmul.mubr.f32.gmra.mrb[0].mxu0 %v7267
    %v7472 = vpop.f32.mrb[0].mxu0
    %v7473 = vadd.f32 0.0, %v7472
    %v7474 = vpop.f32.mrb[0].mxu0
    %7475 = vmatprep.mubr.f32.mxu0 0.0
    %7476 = vmatmul.mubr.f32.gmra.mrb[0].mxu0 %v7270
    %v7477 = vpop.f32.mrb[0].mxu0
    %v7478 = vadd.f32 0.0, %v7477
    %v7479 = vpop.f32.mrb[0].mxu0
    %7480 = vmatprep.mubr.f32.mxu0 0.0
    %7481 = vmatmul.mubr.f32.gmra.mrb[0].mxu0 %v7273
    %v7482 = vpop.f32.mrb[0].mxu0
    %v7483 = vadd.f32 0.0, %v7482
    %v7484 = vpop.f32.mrb[0].mxu0
    %7485 = vmatprep.mubr.f32.mxu0 0.0
    %7486 = vmatmul.mubr.f32.gmra.mrb[0].mxu0 %v7276
    %v7487 = vpop.f32.mrb[0].mxu0
    %v7488 = vadd.f32 0.0, %v7487
    %v7489 = vpop.f32.mrb[0].mxu0
    %7490 = vmatprep.mubr.f32.mxu0 0.0
    %7491 = vmatmul.mubr.f32.gmra.mrb[0].mxu0 %v7279
    %v7492 = vpop.f32.mrb[0].mxu0
    %v7493 = vadd.f32 0.0, %v7492
    %v7494 = vpop.f32.mrb[0].mxu0
    %7495 = vmatprep.mubr.f32.mxu0 0.0
    %7496 = vmatmul.mubr.f32.gmra.mrb[0].mxu0 %v7282
    %v7497 = vpop.f32.mrb[0].mxu0
    %v7498 = vadd.f32 0.0, %v7497
    %v7499 = vpop.f32.mrb[0].mxu0
    %7500 = vmatprep.mubr.f32.mxu0 0.0
    %7501 = vmatmul.mubr.f32.gmra.mrb[0].mxu0 %v7285
    %v7502 = vpop.f32.mrb[0].mxu0
    %v7503 = vadd.f32 0.0, %v7502
    %v7504 = vpop.f32.mrb[0].mxu0
    %7505 = vmatprep.mubr.f32.mxu0 0.0
    %7506 = vmatmul.mubr.f32.gmra.mrb[0].mxu0 %v7288
    %v7507 = vpop.f32.mrb[0].mxu0
    %v7508 = vadd.f32 0.0, %v7507
    %v7509 = vpop.f32.mrb[0].mxu0
    %7510 = vmatprep.mubr.f32.mxu0 0.0
    %7511 = vmatmul.mubr.f32.gmra.mrb[0].mxu0 %v7291
    %v7512 = vpop.f32.mrb[0].mxu0
    %v7513 = vadd.f32 0.0, %v7512
    %v7514 = vpop.f32.mrb[0].mxu0
    %7515 = vmatprep.mubr.f32.mxu0 0.0
    %7516 = vmatmul.mubr.f32.gmra.mrb[0].mxu0 %v7294
    %v7517 = vpop.f32.mrb[0].mxu0
    %v7518 = vadd.f32 0.0, %v7517
    %v7519 = vpop.f32.mrb[0].mxu0
    %7520 = vdwg.mxu0
    %v7522 = vsel %vm2735, %v7072, 0
    %v7525 = vsel %vm2735, %v7073, 0
    %v7528 = vsel %vm2735, %v7074, 0
    %v7531 = vsel %vm2735, %v7075, 0
    %v7534 = vsel %vm2735, %v7076, 0
    %v7537 = vsel %vm2735, %v7077, 0
    %v7540 = vsel %vm2735, %v7078, 0
    %v7543 = vsel %vm2735, %v7079, 0
    %v7546 = vsel %vm2735, %v7080, 0
    %v7549 = vsel %vm2735, %v7081, 0
    %v7552 = vsel %vm2735, %v7082, 0
    %v7555 = vsel %vm2735, %v7083, 0
    %v7558 = vsel %vm2735, %v7084, 0
    %v7561 = vsel %vm2735, %v7085, 0
    %v7564 = vsel %vm2735, %v7086, 0
    %v7567 = vsel %vm2735, %v7087, 0
    %v7570 = vsel %vm2735, %v7088, 0
    %v7573 = vsel %vm2735, %v7089, 0
    %v7576 = vsel %vm2735, %v7090, 0
    %v7579 = vsel %vm2735, %v7091, 0
    %v7582 = vsel %vm2735, %v7092, 0
    %v7585 = vsel %vm2735, %v7093, 0
    %v7588 = vsel %vm2735, %v7094, 0
    %v7591 = vsel %vm2735, %v7095, 0
    %v7594 = vsel %vm2735, %v7096, 0
    %v7597 = vsel %vm2735, %v7097, 0
    %v7600 = vsel %vm2735, %v7098, 0
    %v7603 = vsel %vm2735, %v7099, 0
    %v7606 = vsel %vm2735, %v7100, 0
    %v7609 = vsel %vm2735, %v7101, 0
    %v7612 = vsel %vm2735, %v7102, 0
    %v7615 = vsel %vm2735, %v7103, 0
    %7617 = vmatprep.subr.mxu0 0.0
    %7618 = vmatpush1.msra.mxu0 %v6996
    %7619 = vmatprep.subr.mxu0 0.0
    %7620 = vmatpush1.msra.mxu0 %v6997
    %7621 = vmatprep.subr.mxu0 0.0
    %7622 = vmatpush1.msra.mxu0 %v6998
    %7623 = vmatprep.subr.mxu0 0.0
    %7624 = vmatpush1.msra.mxu0 %v6999
    %7625 = vmatprep.subr.mxu0 0.0
    %7626 = vmatpush1.msra.mxu0 0.0
    %7627 = vmatprep.subr.mxu0 0.0
    %7628 = vmatpush1.msra.mxu0 0.0
    %7629 = vmatprep.subr.mxu0 0.0
    %7630 = vmatpush1.msra.mxu0 0.0
    %7631 = vmatprep.subr.mxu0 0.0
    %7632 = vmatpush1.msra.mxu0 0.0
    %7633 = vmatprep.subr.mxu0 0.0
    %7634 = vmatpush1.msra.mxu0 0.0
    %7635 = vmatprep.subr.mxu0 0.0
    %7636 = vmatpush1.msra.mxu0 0.0
    %7637 = vmatprep.subr.mxu0 0.0
    %7638 = vmatpush1.msra.mxu0 0.0
    %7639 = vmatprep.subr.mxu0 0.0
    %7640 = vmatpush1.msra.mxu0 0.0
    %7641 = vmatprep.subr.mxu0 0.0
    %7642 = vmatpush1.msra.mxu0 0.0
    %7643 = vmatprep.subr.mxu0 0.0
    %7644 = vmatpush1.msra.mxu0 0.0
    %7645 = vmatprep.subr.mxu0 0.0
    %7646 = vmatpush1.msra.mxu0 0.0
    %7647 = vmatprep.subr.mxu0 0.0
    %7648 = vmatpush1.msra.mxu0 0.0
    %7649 = vmatprep.subr.mxu0 0.0
    %7650 = vmatpush1.msra.mxu0 0.0
    %7651 = vmatprep.subr.mxu0 0.0
    %7652 = vmatpush1.msra.mxu0 0.0
    %7653 = vmatprep.subr.mxu0 0.0
    %7654 = vmatpush1.msra.mxu0 0.0
    %7655 = vmatprep.subr.mxu0 0.0
    %7656 = vmatpush1.msra.mxu0 0.0
    %7657 = vmatprep.subr.mxu0 0.0
    %7658 = vmatpush1.msra.mxu0 0.0
    %7659 = vmatprep.subr.mxu0 0.0
    %7660 = vmatpush1.msra.mxu0 0.0
    %7661 = vmatprep.subr.mxu0 0.0
    %7662 = vmatpush1.msra.mxu0 0.0
    %7663 = vmatprep.subr.mxu0 0.0
    %7664 = vmatpush1.msra.mxu0 0.0
    %7665 = vmatprep.subr.mxu0 0.0
    %7666 = vmatpush1.msra.mxu0 0.0
    %7667 = vmatprep.subr.mxu0 0.0
    %7668 = vmatpush1.msra.mxu0 0.0
    %7669 = vmatprep.subr.mxu0 0.0
    %7670 = vmatpush1.msra.mxu0 0.0
    %7671 = vmatprep.subr.mxu0 0.0
    %7672 = vmatpush1.msra.mxu0 0.0
    %7673 = vmatprep.subr.mxu0 0.0
    %7674 = vmatpush1.msra.mxu0 0.0
    %7675 = vmatprep.subr.mxu0 0.0
    %7676 = vmatpush1.msra.mxu0 0.0
    %7677 = vmatprep.subr.mxu0 0.0
    %7678 = vmatpush1.msra.mxu0 0.0
    %7679 = vmatprep.subr.mxu0 0.0
    %7680 = vmatpush1.msra.mxu0 0.0
    %7681 = vmatprep.mubr.f32.mxu0 0.0
    %7682 = vmatmul.mubr.f32.gmra.mrb[0].mxu0 %v7522
    %v7683 = vpop.f32.mrb[0].mxu0
    %v7684 = vadd.f32 %v7363, %v7683
    %v7685 = vpop.f32.mrb[0].mxu0
    %7686 = vmatprep.mubr.f32.mxu0 0.0
    %7687 = vmatmul.mubr.f32.gmra.mrb[0].mxu0 %v7525
    %v7688 = vpop.f32.mrb[0].mxu0
    %v7689 = vadd.f32 %v7368, %v7688
    %v7690 = vpop.f32.mrb[0].mxu0
    %7691 = vmatprep.mubr.f32.mxu0 0.0
    %7692 = vmatmul.mubr.f32.gmra.mrb[0].mxu0 %v7528
    %v7693 = vpop.f32.mrb[0].mxu0
    %v7694 = vadd.f32 %v7373, %v7693
    %v7695 = vpop.f32.mrb[0].mxu0
    %7696 = vmatprep.mubr.f32.mxu0 0.0
    %7697 = vmatmul.mubr.f32.gmra.mrb[0].mxu0 %v7531
    %v7698 = vpop.f32.mrb[0].mxu0
    %v7699 = vadd.f32 %v7378, %v7698
    %v7700 = vpop.f32.mrb[0].mxu0
    %7701 = vmatprep.mubr.f32.mxu0 0.0
    %7702 = vmatmul.mubr.f32.gmra.mrb[0].mxu0 %v7534
    %v7703 = vpop.f32.mrb[0].mxu0
    %v7704 = vadd.f32 %v7383, %v7703
    %v7705 = vpop.f32.mrb[0].mxu0
    %7706 = vmatprep.mubr.f32.mxu0 0.0
    %7707 = vmatmul.mubr.f32.gmra.mrb[0].mxu0 %v7537
    %v7708 = vpop.f32.mrb[0].mxu0
    %v7709 = vadd.f32 %v7388, %v7708
    %v7710 = vpop.f32.mrb[0].mxu0
    %7711 = vmatprep.mubr.f32.mxu0 0.0
    %7712 = vmatmul.mubr.f32.gmra.mrb[0].mxu0 %v7540
    %v7713 = vpop.f32.mrb[0].mxu0
    %v7714 = vadd.f32 %v7393, %v7713
    %v7715 = vpop.f32.mrb[0].mxu0
    %7716 = vmatprep.mubr.f32.mxu0 0.0
    %7717 = vmatmul.mubr.f32.gmra.mrb[0].mxu0 %v7543
    %v7718 = vpop.f32.mrb[0].mxu0
    %v7719 = vadd.f32 %v7398, %v7718
    %v7720 = vpop.f32.mrb[0].mxu0
    %7721 = vmatprep.mubr.f32.mxu0 0.0
    %7722 = vmatmul.mubr.f32.gmra.mrb[0].mxu0 %v7546
    %v7723 = vpop.f32.mrb[0].mxu0
    %v7724 = vadd.f32 %v7403, %v7723
    %v7725 = vpop.f32.mrb[0].mxu0
    %7726 = vmatprep.mubr.f32.mxu0 0.0
    %7727 = vmatmul.mubr.f32.gmra.mrb[0].mxu0 %v7549
    %v7728 = vpop.f32.mrb[0].mxu0
    %v7729 = vadd.f32 %v7408, %v7728
    %v7730 = vpop.f32.mrb[0].mxu0
    %7731 = vmatprep.mubr.f32.mxu0 0.0
    %7732 = vmatmul.mubr.f32.gmra.mrb[0].mxu0 %v7552
    %v7733 = vpop.f32.mrb[0].mxu0
    %v7734 = vadd.f32 %v7413, %v7733
    %v7735 = vpop.f32.mrb[0].mxu0
    %7736 = vmatprep.mubr.f32.mxu0 0.0
    %7737 = vmatmul.mubr.f32.gmra.mrb[0].mxu0 %v7555
    %v7738 = vpop.f32.mrb[0].mxu0
    %v7739 = vadd.f32 %v7418, %v7738
    %v7740 = vpop.f32.mrb[0].mxu0
    %7741 = vmatprep.mubr.f32.mxu0 0.0
    %7742 = vmatmul.mubr.f32.gmra.mrb[0].mxu0 %v7558
    %v7743 = vpop.f32.mrb[0].mxu0
    %v7744 = vadd.f32 %v7423, %v7743
    %v7745 = vpop.f32.mrb[0].mxu0
    %7746 = vmatprep.mubr.f32.mxu0 0.0
    %7747 = vmatmul.mubr.f32.gmra.mrb[0].mxu0 %v7561
    %v7748 = vpop.f32.mrb[0].mxu0
    %v7749 = vadd.f32 %v7428, %v7748
    %v7750 = vpop.f32.mrb[0].mxu0
    %7751 = vmatprep.mubr.f32.mxu0 0.0
    %7752 = vmatmul.mubr.f32.gmra.mrb[0].mxu0 %v7564
    %v7753 = vpop.f32.mrb[0].mxu0
    %v7754 = vadd.f32 %v7433, %v7753
    %v7755 = vpop.f32.mrb[0].mxu0
    %7756 = vmatprep.mubr.f32.mxu0 0.0
    %7757 = vmatmul.mubr.f32.gmra.mrb[0].mxu0 %v7567
    %v7758 = vpop.f32.mrb[0].mxu0
    %v7759 = vadd.f32 %v7438, %v7758
    %v7760 = vpop.f32.mrb[0].mxu0
    %7761 = vmatprep.mubr.f32.mxu0 0.0
    %7762 = vmatmul.mubr.f32.gmra.mrb[0].mxu0 %v7570
    %v7763 = vpop.f32.mrb[0].mxu0
    %v7764 = vadd.f32 %v7443, %v7763
    %v7765 = vpop.f32.mrb[0].mxu0
    %7766 = vmatprep.mubr.f32.mxu0 0.0
    %7767 = vmatmul.mubr.f32.gmra.mrb[0].mxu0 %v7573
    %v7768 = vpop.f32.mrb[0].mxu0
    %v7769 = vadd.f32 %v7448, %v7768
    %v7770 = vpop.f32.mrb[0].mxu0
    %7771 = vmatprep.mubr.f32.mxu0 0.0
    %7772 = vmatmul.mubr.f32.gmra.mrb[0].mxu0 %v7576
    %v7773 = vpop.f32.mrb[0].mxu0
    %v7774 = vadd.f32 %v7453, %v7773
    %v7775 = vpop.f32.mrb[0].mxu0
    %7776 = vmatprep.mubr.f32.mxu0 0.0
    %7777 = vmatmul.mubr.f32.gmra.mrb[0].mxu0 %v7579
    %v7778 = vpop.f32.mrb[0].mxu0
    %v7779 = vadd.f32 %v7458, %v7778
    %v7780 = vpop.f32.mrb[0].mxu0
    %7781 = vmatprep.mubr.f32.mxu0 0.0
    %7782 = vmatmul.mubr.f32.gmra.mrb[0].mxu0 %v7582
    %v7783 = vpop.f32.mrb[0].mxu0
    %v7784 = vadd.f32 %v7463, %v7783
    %v7785 = vpop.f32.mrb[0].mxu0
    %7786 = vmatprep.mubr.f32.mxu0 0.0
    %7787 = vmatmul.mubr.f32.gmra.mrb[0].mxu0 %v7585
    %v7788 = vpop.f32.mrb[0].mxu0
    %v7789 = vadd.f32 %v7468, %v7788
    %v7790 = vpop.f32.mrb[0].mxu0
    %7791 = vmatprep.mubr.f32.mxu0 0.0
    %7792 = vmatmul.mubr.f32.gmra.mrb[0].mxu0 %v7588
    %v7793 = vpop.f32.mrb[0].mxu0
    %v7794 = vadd.f32 %v7473, %v7793
    %v7795 = vpop.f32.mrb[0].mxu0
    %7796 = vmatprep.mubr.f32.mxu0 0.0
    %7797 = vmatmul.mubr.f32.gmra.mrb[0].mxu0 %v7591
    %v7798 = vpop.f32.mrb[0].mxu0
    %v7799 = vadd.f32 %v7478, %v7798
    %v7800 = vpop.f32.mrb[0].mxu0
    %7801 = vmatprep.mubr.f32.mxu0 0.0
    %7802 = vmatmul.mubr.f32.gmra.mrb[0].mxu0 %v7594
    %v7803 = vpop.f32.mrb[0].mxu0
    %v7804 = vadd.f32 %v7483, %v7803
    %v7805 = vpop.f32.mrb[0].mxu0
    %7806 = vmatprep.mubr.f32.mxu0 0.0
    %7807 = vmatmul.mubr.f32.gmra.mrb[0].mxu0 %v7597
    %v7808 = vpop.f32.mrb[0].mxu0
    %v7809 = vadd.f32 %v7488, %v7808
    %v7810 = vpop.f32.mrb[0].mxu0
    %7811 = vmatprep.mubr.f32.mxu0 0.0
    %7812 = vmatmul.mubr.f32.gmra.mrb[0].mxu0 %v7600
    %v7813 = vpop.f32.mrb[0].mxu0
    %v7814 = vadd.f32 %v7493, %v7813
    %v7815 = vpop.f32.mrb[0].mxu0
    %7816 = vmatprep.mubr.f32.mxu0 0.0
    %7817 = vmatmul.mubr.f32.gmra.mrb[0].mxu0 %v7603
    %v7818 = vpop.f32.mrb[0].mxu0
    %v7819 = vadd.f32 %v7498, %v7818
    %v7820 = vpop.f32.mrb[0].mxu0
    %7821 = vmatprep.mubr.f32.mxu0 0.0
    %7822 = vmatmul.mubr.f32.gmra.mrb[0].mxu0 %v7606
    %v7823 = vpop.f32.mrb[0].mxu0
    %v7824 = vadd.f32 %v7503, %v7823
    %v7825 = vpop.f32.mrb[0].mxu0
    %7826 = vmatprep.mubr.f32.mxu0 0.0
    %7827 = vmatmul.mubr.f32.gmra.mrb[0].mxu0 %v7609
    %v7828 = vpop.f32.mrb[0].mxu0
    %v7829 = vadd.f32 %v7508, %v7828
    %v7830 = vpop.f32.mrb[0].mxu0
    %7831 = vmatprep.mubr.f32.mxu0 0.0
    %7832 = vmatmul.mubr.f32.gmra.mrb[0].mxu0 %v7612
    %v7833 = vpop.f32.mrb[0].mxu0
    %v7834 = vadd.f32 %v7513, %v7833
    %v7835 = vpop.f32.mrb[0].mxu0
    %7836 = vmatprep.mubr.f32.mxu0 0.0
    %7837 = vmatmul.mubr.f32.gmra.mrb[0].mxu0 %v7615
    %v7838 = vpop.f32.mrb[0].mxu0
    %v7839 = vadd.f32 %v7518, %v7838
    %v7840 = vpop.f32.mrb[0].mxu0
    %7841 = vdwg.mxu0
    %v7843 = vsel %vm2735, %v7168, 0
    %v7846 = vsel %vm2735, %v7169, 0
    %v7849 = vsel %vm2735, %v7170, 0
    %v7852 = vsel %vm2735, %v7171, 0
    %v7855 = vsel %vm2735, %v7172, 0
    %v7858 = vsel %vm2735, %v7173, 0
    %v7861 = vsel %vm2735, %v7174, 0
    %v7864 = vsel %vm2735, %v7175, 0
    %v7867 = vsel %vm2735, %v7176, 0
    %v7870 = vsel %vm2735, %v7177, 0
    %v7873 = vsel %vm2735, %v7178, 0
    %v7876 = vsel %vm2735, %v7179, 0
    %v7879 = vsel %vm2735, %v7180, 0
    %v7882 = vsel %vm2735, %v7181, 0
    %v7885 = vsel %vm2735, %v7182, 0
    %v7888 = vsel %vm2735, %v7183, 0
    %v7891 = vsel %vm2735, %v7184, 0
    %v7894 = vsel %vm2735, %v7185, 0
    %v7897 = vsel %vm2735, %v7186, 0
    %v7900 = vsel %vm2735, %v7187, 0
    %v7903 = vsel %vm2735, %v7188, 0
    %v7906 = vsel %vm2735, %v7189, 0
    %v7909 = vsel %vm2735, %v7190, 0
    %v7912 = vsel %vm2735, %v7191, 0
    %v7915 = vsel %vm2735, %v7192, 0
    %v7918 = vsel %vm2735, %v7193, 0
    %v7921 = vsel %vm2735, %v7194, 0
    %v7924 = vsel %vm2735, %v7195, 0
    %v7927 = vsel %vm2735, %v7196, 0
    %v7930 = vsel %vm2735, %v7197, 0
    %v7933 = vsel %vm2735, %v7198, 0
    %v7936 = vsel %vm2735, %v7199, 0
    %7938 = vmatprep.subr.mxu0 0.0
    %7939 = vmatpush1.msra.mxu0 %v7004
    %7940 = vmatprep.subr.mxu0 0.0
    %7941 = vmatpush1.msra.mxu0 %v7005
    %7942 = vmatprep.subr.mxu0 0.0
    %7943 = vmatpush1.msra.mxu0 %v7006
    %7944 = vmatprep.subr.mxu0 0.0
    %7945 = vmatpush1.msra.mxu0 %v7007
    %7946 = vmatprep.subr.mxu0 0.0
    %7947 = vmatpush1.msra.mxu0 0.0
    %7948 = vmatprep.subr.mxu0 0.0
    %7949 = vmatpush1.msra.mxu0 0.0
    %7950 = vmatprep.subr.mxu0 0.0
    %7951 = vmatpush1.msra.mxu0 0.0
    %7952 = vmatprep.subr.mxu0 0.0
    %7953 = vmatpush1.msra.mxu0 0.0
    %7954 = vmatprep.subr.mxu0 0.0
    %7955 = vmatpush1.msra.mxu0 0.0
    %7956 = vmatprep.subr.mxu0 0.0
    %7957 = vmatpush1.msra.mxu0 0.0
    %7958 = vmatprep.subr.mxu0 0.0
    %7959 = vmatpush1.msra.mxu0 0.0
    %7960 = vmatprep.subr.mxu0 0.0
    %7961 = vmatpush1.msra.mxu0 0.0
    %7962 = vmatprep.subr.mxu0 0.0
    %7963 = vmatpush1.msra.mxu0 0.0
    %7964 = vmatprep.subr.mxu0 0.0
    %7965 = vmatpush1.msra.mxu0 0.0
    %7966 = vmatprep.subr.mxu0 0.0
    %7967 = vmatpush1.msra.mxu0 0.0
    %7968 = vmatprep.subr.mxu0 0.0
    %7969 = vmatpush1.msra.mxu0 0.0
    %7970 = vmatprep.subr.mxu0 0.0
    %7971 = vmatpush1.msra.mxu0 0.0
    %7972 = vmatprep.subr.mxu0 0.0
    %7973 = vmatpush1.msra.mxu0 0.0
    %7974 = vmatprep.subr.mxu0 0.0
    %7975 = vmatpush1.msra.mxu0 0.0
    %7976 = vmatprep.subr.mxu0 0.0
    %7977 = vmatpush1.msra.mxu0 0.0
    %7978 = vmatprep.subr.mxu0 0.0
    %7979 = vmatpush1.msra.mxu0 0.0
    %7980 = vmatprep.subr.mxu0 0.0
    %7981 = vmatpush1.msra.mxu0 0.0
    %7982 = vmatprep.subr.mxu0 0.0
    %7983 = vmatpush1.msra.mxu0 0.0
    %7984 = vmatprep.subr.mxu0 0.0
    %7985 = vmatpush1.msra.mxu0 0.0
    %7986 = vmatprep.subr.mxu0 0.0
    %7987 = vmatpush1.msra.mxu0 0.0
    %7988 = vmatprep.subr.mxu0 0.0
    %7989 = vmatpush1.msra.mxu0 0.0
    %7990 = vmatprep.subr.mxu0 0.0
    %7991 = vmatpush1.msra.mxu0 0.0
    %7992 = vmatprep.subr.mxu0 0.0
    %7993 = vmatpush1.msra.mxu0 0.0
    %7994 = vmatprep.subr.mxu0 0.0
    %7995 = vmatpush1.msra.mxu0 0.0
    %7996 = vmatprep.subr.mxu0 0.0
    %7997 = vmatpush1.msra.mxu0 0.0
    %7998 = vmatprep.subr.mxu0 0.0
    %7999 = vmatpush1.msra.mxu0 0.0
    %8000 = vmatprep.subr.mxu0 0.0
    %8001 = vmatpush1.msra.mxu0 0.0
    %8002 = vmatprep.mubr.f32.mxu0 0.0
    %8003 = vmatmul.mubr.f32.gmra.mrb[0].mxu0 %v7843
    %v8004 = vpop.f32.mrb[0].mxu0
    %v8005 = vadd.f32 0.0, %v8004
    %v8006 = vpop.f32.mrb[0].mxu0
    %8007 = vmatprep.mubr.f32.mxu0 0.0
    %8008 = vmatmul.mubr.f32.gmra.mrb[0].mxu0 %v7846
    %v8009 = vpop.f32.mrb[0].mxu0
    %v8010 = vadd.f32 0.0, %v8009
    %v8011 = vpop.f32.mrb[0].mxu0
    %8012 = vmatprep.mubr.f32.mxu0 0.0
    %8013 = vmatmul.mubr.f32.gmra.mrb[0].mxu0 %v7849
    %v8014 = vpop.f32.mrb[0].mxu0
    %v8015 = vadd.f32 0.0, %v8014
    %v8016 = vpop.f32.mrb[0].mxu0
    %8017 = vmatprep.mubr.f32.mxu0 0.0
    %8018 = vmatmul.mubr.f32.gmra.mrb[0].mxu0 %v7852
    %v8019 = vpop.f32.mrb[0].mxu0
    %v8020 = vadd.f32 0.0, %v8019
    %v8021 = vpop.f32.mrb[0].mxu0
    %8022 = vmatprep.mubr.f32.mxu0 0.0
    %8023 = vmatmul.mubr.f32.gmra.mrb[0].mxu0 %v7855
    %v8024 = vpop.f32.mrb[0].mxu0
    %v8025 = vadd.f32 0.0, %v8024
    %v8026 = vpop.f32.mrb[0].mxu0
    %8027 = vmatprep.mubr.f32.mxu0 0.0
    %8028 = vmatmul.mubr.f32.gmra.mrb[0].mxu0 %v7858
    %v8029 = vpop.f32.mrb[0].mxu0
    %v8030 = vadd.f32 0.0, %v8029
    %v8031 = vpop.f32.mrb[0].mxu0
    %8032 = vmatprep.mubr.f32.mxu0 0.0
    %8033 = vmatmul.mubr.f32.gmra.mrb[0].mxu0 %v7861
    %v8034 = vpop.f32.mrb[0].mxu0
    %v8035 = vadd.f32 0.0, %v8034
    %v8036 = vpop.f32.mrb[0].mxu0
    %8037 = vmatprep.mubr.f32.mxu0 0.0
    %8038 = vmatmul.mubr.f32.gmra.mrb[0].mxu0 %v7864
    %v8039 = vpop.f32.mrb[0].mxu0
    %v8040 = vadd.f32 0.0, %v8039
    %v8041 = vpop.f32.mrb[0].mxu0
    %8042 = vmatprep.mubr.f32.mxu0 0.0
    %8043 = vmatmul.mubr.f32.gmra.mrb[0].mxu0 %v7867
    %v8044 = vpop.f32.mrb[0].mxu0
    %v8045 = vadd.f32 0.0, %v8044
    %v8046 = vpop.f32.mrb[0].mxu0
    %8047 = vmatprep.mubr.f32.mxu0 0.0
    %8048 = vmatmul.mubr.f32.gmra.mrb[0].mxu0 %v7870
    %v8049 = vpop.f32.mrb[0].mxu0
    %v8050 = vadd.f32 0.0, %v8049
    %v8051 = vpop.f32.mrb[0].mxu0
    %8052 = vmatprep.mubr.f32.mxu0 0.0
    %8053 = vmatmul.mubr.f32.gmra.mrb[0].mxu0 %v7873
    %v8054 = vpop.f32.mrb[0].mxu0
    %v8055 = vadd.f32 0.0, %v8054
    %v8056 = vpop.f32.mrb[0].mxu0
    %8057 = vmatprep.mubr.f32.mxu0 0.0
    %8058 = vmatmul.mubr.f32.gmra.mrb[0].mxu0 %v7876
    %v8059 = vpop.f32.mrb[0].mxu0
    %v8060 = vadd.f32 0.0, %v8059
    %v8061 = vpop.f32.mrb[0].mxu0
    %8062 = vmatprep.mubr.f32.mxu0 0.0
    %8063 = vmatmul.mubr.f32.gmra.mrb[0].mxu0 %v7879
    %v8064 = vpop.f32.mrb[0].mxu0
    %v8065 = vadd.f32 0.0, %v8064
    %v8066 = vpop.f32.mrb[0].mxu0
    %8067 = vmatprep.mubr.f32.mxu0 0.0
    %8068 = vmatmul.mubr.f32.gmra.mrb[0].mxu0 %v7882
    %v8069 = vpop.f32.mrb[0].mxu0
    %v8070 = vadd.f32 0.0, %v8069
    %v8071 = vpop.f32.mrb[0].mxu0
    %8072 = vmatprep.mubr.f32.mxu0 0.0
    %8073 = vmatmul.mubr.f32.gmra.mrb[0].mxu0 %v7885
    %v8074 = vpop.f32.mrb[0].mxu0
    %v8075 = vadd.f32 0.0, %v8074
    %v8076 = vpop.f32.mrb[0].mxu0
    %8077 = vmatprep.mubr.f32.mxu0 0.0
    %8078 = vmatmul.mubr.f32.gmra.mrb[0].mxu0 %v7888
    %v8079 = vpop.f32.mrb[0].mxu0
    %v8080 = vadd.f32 0.0, %v8079
    %v8081 = vpop.f32.mrb[0].mxu0
    %8082 = vmatprep.mubr.f32.mxu0 0.0
    %8083 = vmatmul.mubr.f32.gmra.mrb[0].mxu0 %v7891
    %v8084 = vpop.f32.mrb[0].mxu0
    %v8085 = vadd.f32 0.0, %v8084
    %v8086 = vpop.f32.mrb[0].mxu0
    %8087 = vmatprep.mubr.f32.mxu0 0.0
    %8088 = vmatmul.mubr.f32.gmra.mrb[0].mxu0 %v7894
    %v8089 = vpop.f32.mrb[0].mxu0
    %v8090 = vadd.f32 0.0, %v8089
    %v8091 = vpop.f32.mrb[0].mxu0
    %8092 = vmatprep.mubr.f32.mxu0 0.0
    %8093 = vmatmul.mubr.f32.gmra.mrb[0].mxu0 %v7897
    %v8094 = vpop.f32.mrb[0].mxu0
    %v8095 = vadd.f32 0.0, %v8094
    %v8096 = vpop.f32.mrb[0].mxu0
    %8097 = vmatprep.mubr.f32.mxu0 0.0
    %8098 = vmatmul.mubr.f32.gmra.mrb[0].mxu0 %v7900
    %v8099 = vpop.f32.mrb[0].mxu0
    %v8100 = vadd.f32 0.0, %v8099
    %v8101 = vpop.f32.mrb[0].mxu0
    %8102 = vmatprep.mubr.f32.mxu0 0.0
    %8103 = vmatmul.mubr.f32.gmra.mrb[0].mxu0 %v7903
    %v8104 = vpop.f32.mrb[0].mxu0
    %v8105 = vadd.f32 0.0, %v8104
    %v8106 = vpop.f32.mrb[0].mxu0
    %8107 = vmatprep.mubr.f32.mxu0 0.0
    %8108 = vmatmul.mubr.f32.gmra.mrb[0].mxu0 %v7906
    %v8109 = vpop.f32.mrb[0].mxu0
    %v8110 = vadd.f32 0.0, %v8109
    %v8111 = vpop.f32.mrb[0].mxu0
    %8112 = vmatprep.mubr.f32.mxu0 0.0
    %8113 = vmatmul.mubr.f32.gmra.mrb[0].mxu0 %v7909
    %v8114 = vpop.f32.mrb[0].mxu0
    %v8115 = vadd.f32 0.0, %v8114
    %v8116 = vpop.f32.mrb[0].mxu0
    %8117 = vmatprep.mubr.f32.mxu0 0.0
    %8118 = vmatmul.mubr.f32.gmra.mrb[0].mxu0 %v7912
    %v8119 = vpop.f32.mrb[0].mxu0
    %v8120 = vadd.f32 0.0, %v8119
    %v8121 = vpop.f32.mrb[0].mxu0
    %8122 = vmatprep.mubr.f32.mxu0 0.0
    %8123 = vmatmul.mubr.f32.gmra.mrb[0].mxu0 %v7915
    %v8124 = vpop.f32.mrb[0].mxu0
    %v8125 = vadd.f32 0.0, %v8124
    %v8126 = vpop.f32.mrb[0].mxu0
    %8127 = vmatprep.mubr.f32.mxu0 0.0
    %8128 = vmatmul.mubr.f32.gmra.mrb[0].mxu0 %v7918
    %v8129 = vpop.f32.mrb[0].mxu0
    %v8130 = vadd.f32 0.0, %v8129
    %v8131 = vpop.f32.mrb[0].mxu0
    %8132 = vmatprep.mubr.f32.mxu0 0.0
    %8133 = vmatmul.mubr.f32.gmra.mrb[0].mxu0 %v7921
    %v8134 = vpop.f32.mrb[0].mxu0
    %v8135 = vadd.f32 0.0, %v8134
    %v8136 = vpop.f32.mrb[0].mxu0
    %8137 = vmatprep.mubr.f32.mxu0 0.0
    %8138 = vmatmul.mubr.f32.gmra.mrb[0].mxu0 %v7924
    %v8139 = vpop.f32.mrb[0].mxu0
    %v8140 = vadd.f32 0.0, %v8139
    %v8141 = vpop.f32.mrb[0].mxu0
    %8142 = vmatprep.mubr.f32.mxu0 0.0
    %8143 = vmatmul.mubr.f32.gmra.mrb[0].mxu0 %v7927
    %v8144 = vpop.f32.mrb[0].mxu0
    %v8145 = vadd.f32 0.0, %v8144
    %v8146 = vpop.f32.mrb[0].mxu0
    %8147 = vmatprep.mubr.f32.mxu0 0.0
    %8148 = vmatmul.mubr.f32.gmra.mrb[0].mxu0 %v7930
    %v8149 = vpop.f32.mrb[0].mxu0
    %v8150 = vadd.f32 0.0, %v8149
    %v8151 = vpop.f32.mrb[0].mxu0
    %8152 = vmatprep.mubr.f32.mxu0 0.0
    %8153 = vmatmul.mubr.f32.gmra.mrb[0].mxu0 %v7933
    %v8154 = vpop.f32.mrb[0].mxu0
    %v8155 = vadd.f32 0.0, %v8154
    %v8156 = vpop.f32.mrb[0].mxu0
    %8157 = vmatprep.mubr.f32.mxu0 0.0
    %8158 = vmatmul.mubr.f32.gmra.mrb[0].mxu0 %v7936
    %v8159 = vpop.f32.mrb[0].mxu0
    %v8160 = vadd.f32 0.0, %v8159
    %v8161 = vpop.f32.mrb[0].mxu0
    %8162 = vdwg.mxu0
    %v8163 = vadd.f32 %v7684, %v8005
    %v8164 = vadd.f32 %v7689, %v8010
    %v8165 = vadd.f32 %v7694, %v8015
    %v8166 = vadd.f32 %v7699, %v8020
    %v8167 = vadd.f32 %v7704, %v8025
    %v8168 = vadd.f32 %v7709, %v8030
    %v8169 = vadd.f32 %v7714, %v8035
    %v8170 = vadd.f32 %v7719, %v8040
    %v8171 = vadd.f32 %v7724, %v8045
    %v8172 = vadd.f32 %v7729, %v8050
    %v8173 = vadd.f32 %v7734, %v8055
    %v8174 = vadd.f32 %v7739, %v8060
    %v8175 = vadd.f32 %v7744, %v8065
    %v8176 = vadd.f32 %v7749, %v8070
    %v8177 = vadd.f32 %v7754, %v8075
    %v8178 = vadd.f32 %v7759, %v8080
    %v8179 = vadd.f32 %v7764, %v8085
    %v8180 = vadd.f32 %v7769, %v8090
    %v8181 = vadd.f32 %v7774, %v8095
    %v8182 = vadd.f32 %v7779, %v8100
    %v8183 = vadd.f32 %v7784, %v8105
    %v8184 = vadd.f32 %v7789, %v8110
    %v8185 = vadd.f32 %v7794, %v8115
    %v8186 = vadd.f32 %v7799, %v8120
    %v8187 = vadd.f32 %v7804, %v8125
    %v8188 = vadd.f32 %v7809, %v8130
    %v8189 = vadd.f32 %v7814, %v8135
    %v8190 = vadd.f32 %v7819, %v8140
    %v8191 = vadd.f32 %v7824, %v8145
    %v8192 = vadd.f32 %v7829, %v8150
    %v8193 = vadd.f32 %v7834, %v8155
    %v8194 = vadd.f32 %v7839, %v8160
    %v8195 = vadd.f32 %v8163, %v6963
    %v8196 = vadd.f32 %v8164, %v6964
    %v8197 = vadd.f32 %v8165, %v6965
    %v8198 = vadd.f32 %v8166, %v6966
    %v8199 = vadd.f32 %v8167, %v6967
    %v8200 = vadd.f32 %v8168, %v6968
    %v8201 = vadd.f32 %v8169, %v6969
    %v8202 = vadd.f32 %v8170, %v6970
    %v8203 = vadd.f32 %v8171, %v6971
    %v8204 = vadd.f32 %v8172, %v6972
    %v8205 = vadd.f32 %v8173, %v6973
    %v8206 = vadd.f32 %v8174, %v6974
    %v8207 = vadd.f32 %v8175, %v6975
    %v8208 = vadd.f32 %v8176, %v6976
    %v8209 = vadd.f32 %v8177, %v6977
    %v8210 = vadd.f32 %v8178, %v6978
    %v8211 = vadd.f32 %v8179, %v6979
    %v8212 = vadd.f32 %v8180, %v6980
    %v8213 = vadd.f32 %v8181, %v6981
    %v8214 = vadd.f32 %v8182, %v6982
    %v8215 = vadd.f32 %v8183, %v6983
    %v8216 = vadd.f32 %v8184, %v6984
    %v8217 = vadd.f32 %v8185, %v6985
    %v8218 = vadd.f32 %v8186, %v6986
    %v8219 = vadd.f32 %v8187, %v6987
    %v8220 = vadd.f32 %v8188, %v6988
    %v8221 = vadd.f32 %v8189, %v6989
    %v8222 = vadd.f32 %v8190, %v6990
    %v8223 = vadd.f32 %v8191, %v6991
    %v8224 = vadd.f32 %v8192, %v6992
    %v8225 = vadd.f32 %v8193, %v6993
    %v8226 = vadd.f32 %v8194, %v6994
    %v8227 = vlaneseq
    %v8228 = vshrl.u32 %v8227, 7
    %v8229 = vsub.s32 6, %v8228
    %v8230 = vrot.slane %v70, %v8229
    %v8231 = vmul.f32 %v8195, %v8230
    %v8232 = vmul.f32 %v8196, %v8230
    %v8233 = vmul.f32 %v8197, %v8230
    %v8234 = vmul.f32 %v8198, %v8230
    %v8235 = vmul.f32 %v8199, %v8230
    %v8236 = vmul.f32 %v8200, %v8230
    %v8237 = vmul.f32 %v8201, %v8230
    %v8238 = vmul.f32 %v8202, %v8230
    %v8239 = vmul.f32 %v8203, %v8230
    %v8240 = vmul.f32 %v8204, %v8230
    %v8241 = vmul.f32 %v8205, %v8230
    %v8242 = vmul.f32 %v8206, %v8230
    %v8243 = vmul.f32 %v8207, %v8230
    %v8244 = vmul.f32 %v8208, %v8230
    %v8245 = vmul.f32 %v8209, %v8230
    %v8246 = vmul.f32 %v8210, %v8230
    %v8247 = vmul.f32 %v8211, %v8230
    %v8248 = vmul.f32 %v8212, %v8230
    %v8249 = vmul.f32 %v8213, %v8230
    %v8250 = vmul.f32 %v8214, %v8230
    %v8251 = vmul.f32 %v8215, %v8230
    %v8252 = vmul.f32 %v8216, %v8230
    %v8253 = vmul.f32 %v8217, %v8230
    %v8254 = vmul.f32 %v8218, %v8230
    %v8255 = vmul.f32 %v8219, %v8230
    %v8256 = vmul.f32 %v8220, %v8230
    %v8257 = vmul.f32 %v8221, %v8230
    %v8258 = vmul.f32 %v8222, %v8230
    %v8259 = vmul.f32 %v8223, %v8230
    %v8260 = vmul.f32 %v8224, %v8230
    %v8261 = vmul.f32 %v8225, %v8230
    %v8262 = vmul.f32 %v8226, %v8230
    %v8263 = vlaneseq
    %v8264 = vshrl.u32 %v8263, 7
    %v8265 = vsub.s32 7, %v8264
    %v8266 = vrot.slane %v70, %v8265
    %v8267 = vadd.f32 %v8231, %v8266
    %v8268 = vadd.f32 %v8232, %v8266
    %v8269 = vadd.f32 %v8233, %v8266
    %v8270 = vadd.f32 %v8234, %v8266
    %v8271 = vadd.f32 %v8235, %v8266
    %v8272 = vadd.f32 %v8236, %v8266
    %v8273 = vadd.f32 %v8237, %v8266
    %v8274 = vadd.f32 %v8238, %v8266
    %v8275 = vadd.f32 %v8239, %v8266
    %v8276 = vadd.f32 %v8240, %v8266
    %v8277 = vadd.f32 %v8241, %v8266
    %v8278 = vadd.f32 %v8242, %v8266
    %v8279 = vadd.f32 %v8243, %v8266
    %v8280 = vadd.f32 %v8244, %v8266
    %v8281 = vadd.f32 %v8245, %v8266
    %v8282 = vadd.f32 %v8246, %v8266
    %v8283 = vadd.f32 %v8247, %v8266
    %v8284 = vadd.f32 %v8248, %v8266
    %v8285 = vadd.f32 %v8249, %v8266
    %v8286 = vadd.f32 %v8250, %v8266
    %v8287 = vadd.f32 %v8251, %v8266
    %v8288 = vadd.f32 %v8252, %v8266
    %v8289 = vadd.f32 %v8253, %v8266
    %v8290 = vadd.f32 %v8254, %v8266
    %v8291 = vadd.f32 %v8255, %v8266
    %v8292 = vadd.f32 %v8256, %v8266
    %v8293 = vadd.f32 %v8257, %v8266
    %v8294 = vadd.f32 %v8258, %v8266
    %v8295 = vadd.f32 %v8259, %v8266
    %v8296 = vadd.f32 %v8260, %v8266
    %v8297 = vadd.f32 %v8261, %v8266
    %v8298 = vadd.f32 %v8262, %v8266
    %v8299 = vmul.f32 %v8267, 0.5
    %v8300 = vmul.f32 %v8268, 0.5
    %v8301 = vmul.f32 %v8269, 0.5
    %v8302 = vmul.f32 %v8270, 0.5
    %v8303 = vmul.f32 %v8271, 0.5
    %v8304 = vmul.f32 %v8272, 0.5
    %v8305 = vmul.f32 %v8273, 0.5
    %v8306 = vmul.f32 %v8274, 0.5
    %v8307 = vmul.f32 %v8275, 0.5
    %v8308 = vmul.f32 %v8276, 0.5
    %v8309 = vmul.f32 %v8277, 0.5
    %v8310 = vmul.f32 %v8278, 0.5
    %v8311 = vmul.f32 %v8279, 0.5
    %v8312 = vmul.f32 %v8280, 0.5
    %v8313 = vmul.f32 %v8281, 0.5
    %v8314 = vmul.f32 %v8282, 0.5
    %v8315 = vmul.f32 %v8283, 0.5
    %v8316 = vmul.f32 %v8284, 0.5
    %v8317 = vmul.f32 %v8285, 0.5
    %v8318 = vmul.f32 %v8286, 0.5
    %v8319 = vmul.f32 %v8287, 0.5
    %v8320 = vmul.f32 %v8288, 0.5
    %v8321 = vmul.f32 %v8289, 0.5
    %v8322 = vmul.f32 %v8290, 0.5
    %v8323 = vmul.f32 %v8291, 0.5
    %v8324 = vmul.f32 %v8292, 0.5
    %v8325 = vmul.f32 %v8293, 0.5
    %v8326 = vmul.f32 %v8294, 0.5
    %v8327 = vmul.f32 %v8295, 0.5
    %v8328 = vmul.f32 %v8296, 0.5
    %v8329 = vmul.f32 %v8297, 0.5
    %v8330 = vmul.f32 %v8298, 0.5
    %v8331 = vmul.f32 %v8267, 0.70710677
    %v8332 = vmul.f32 %v8268, 0.70710677
    %v8333 = vmul.f32 %v8269, 0.70710677
    %v8334 = vmul.f32 %v8270, 0.70710677
    %v8335 = vmul.f32 %v8271, 0.70710677
    %v8336 = vmul.f32 %v8272, 0.70710677
    %v8337 = vmul.f32 %v8273, 0.70710677
    %v8338 = vmul.f32 %v8274, 0.70710677
    %v8339 = vmul.f32 %v8275, 0.70710677
    %v8340 = vmul.f32 %v8276, 0.70710677
    %v8341 = vmul.f32 %v8277, 0.70710677
    %v8342 = vmul.f32 %v8278, 0.70710677
    %v8343 = vmul.f32 %v8279, 0.70710677
    %v8344 = vmul.f32 %v8280, 0.70710677
    %v8345 = vmul.f32 %v8281, 0.70710677
    %v8346 = vmul.f32 %v8282, 0.70710677
    %v8347 = vmul.f32 %v8283, 0.70710677
    %v8348 = vmul.f32 %v8284, 0.70710677
    %v8349 = vmul.f32 %v8285, 0.70710677
    %v8350 = vmul.f32 %v8286, 0.70710677
    %v8351 = vmul.f32 %v8287, 0.70710677
    %v8352 = vmul.f32 %v8288, 0.70710677
    %v8353 = vmul.f32 %v8289, 0.70710677
    %v8354 = vmul.f32 %v8290, 0.70710677
    %v8355 = vmul.f32 %v8291, 0.70710677
    %v8356 = vmul.f32 %v8292, 0.70710677
    %v8357 = vmul.f32 %v8293, 0.70710677
    %v8358 = vmul.f32 %v8294, 0.70710677
    %v8359 = vmul.f32 %v8295, 0.70710677
    %v8360 = vmul.f32 %v8296, 0.70710677
    %v8361 = vmul.f32 %v8297, 0.70710677
    %v8362 = vmul.f32 %v8298, 0.70710677
    %v8363 = vand.u32 2147483647, %v8331
    %v8364 = vand.u32 2147483647, %v8332
    %v8365 = vand.u32 2147483647, %v8333
    %v8366 = vand.u32 2147483647, %v8334
    %v8367 = vand.u32 2147483647, %v8335
    %v8368 = vand.u32 2147483647, %v8336
    %v8369 = vand.u32 2147483647, %v8337
    %v8370 = vand.u32 2147483647, %v8338
    %v8371 = vand.u32 2147483647, %v8339
    %v8372 = vand.u32 2147483647, %v8340
    %v8373 = vand.u32 2147483647, %v8341
    %v8374 = vand.u32 2147483647, %v8342
    %v8375 = vand.u32 2147483647, %v8343
    %v8376 = vand.u32 2147483647, %v8344
    %v8377 = vand.u32 2147483647, %v8345
    %v8378 = vand.u32 2147483647, %v8346
    %v8379 = vand.u32 2147483647, %v8347
    %v8380 = vand.u32 2147483647, %v8348
    %v8381 = vand.u32 2147483647, %v8349
    %v8382 = vand.u32 2147483647, %v8350
    %v8383 = vand.u32 2147483647, %v8351
    %v8384 = vand.u32 2147483647, %v8352
    %v8385 = vand.u32 2147483647, %v8353
    %v8386 = vand.u32 2147483647, %v8354
    %v8387 = vand.u32 2147483647, %v8355
    %v8388 = vand.u32 2147483647, %v8356
    %v8389 = vand.u32 2147483647, %v8357
    %v8390 = vand.u32 2147483647, %v8358
    %v8391 = vand.u32 2147483647, %v8359
    %v8392 = vand.u32 2147483647, %v8360
    %v8393 = vand.u32 2147483647, %v8361
    %v8394 = vand.u32 2147483647, %v8362
    %v8395 = vmul.f32 %v8363, 0.3275911
    %v8396 = vmul.f32 %v8364, 0.3275911
    %v8397 = vmul.f32 %v8365, 0.3275911
    %v8398 = vmul.f32 %v8366, 0.3275911
    %v8399 = vmul.f32 %v8367, 0.3275911
    %v8400 = vmul.f32 %v8368, 0.3275911
    %v8401 = vmul.f32 %v8369, 0.3275911
    %v8402 = vmul.f32 %v8370, 0.3275911
    %v8403 = vmul.f32 %v8371, 0.3275911
    %v8404 = vmul.f32 %v8372, 0.3275911
    %v8405 = vmul.f32 %v8373, 0.3275911
    %v8406 = vmul.f32 %v8374, 0.3275911
    %v8407 = vmul.f32 %v8375, 0.3275911
    %v8408 = vmul.f32 %v8376, 0.3275911
    %v8409 = vmul.f32 %v8377, 0.3275911
    %v8410 = vmul.f32 %v8378, 0.3275911
    %v8411 = vmul.f32 %v8379, 0.3275911
    %v8412 = vmul.f32 %v8380, 0.3275911
    %v8413 = vmul.f32 %v8381, 0.3275911
    %v8414 = vmul.f32 %v8382, 0.3275911
    %v8415 = vmul.f32 %v8383, 0.3275911
    %v8416 = vmul.f32 %v8384, 0.3275911
    %v8417 = vmul.f32 %v8385, 0.3275911
    %v8418 = vmul.f32 %v8386, 0.3275911
    %v8419 = vmul.f32 %v8387, 0.3275911
    %v8420 = vmul.f32 %v8388, 0.3275911
    %v8421 = vmul.f32 %v8389, 0.3275911
    %v8422 = vmul.f32 %v8390, 0.3275911
    %v8423 = vmul.f32 %v8391, 0.3275911
    %v8424 = vmul.f32 %v8392, 0.3275911
    %v8425 = vmul.f32 %v8393, 0.3275911
    %v8426 = vmul.f32 %v8394, 0.3275911
    %v8427 = vadd.f32 %v8395, 1.0
    %v8428 = vadd.f32 %v8396, 1.0
    %v8429 = vadd.f32 %v8397, 1.0
    %v8430 = vadd.f32 %v8398, 1.0
    %v8431 = vadd.f32 %v8399, 1.0
    %v8432 = vadd.f32 %v8400, 1.0
    %v8433 = vadd.f32 %v8401, 1.0
    %v8434 = vadd.f32 %v8402, 1.0
    %v8435 = vadd.f32 %v8403, 1.0
    %v8436 = vadd.f32 %v8404, 1.0
    %v8437 = vadd.f32 %v8405, 1.0
    %v8438 = vadd.f32 %v8406, 1.0
    %v8439 = vadd.f32 %v8407, 1.0
    %v8440 = vadd.f32 %v8408, 1.0
    %v8441 = vadd.f32 %v8409, 1.0
    %v8442 = vadd.f32 %v8410, 1.0
    %v8443 = vadd.f32 %v8411, 1.0
    %v8444 = vadd.f32 %v8412, 1.0
    %v8445 = vadd.f32 %v8413, 1.0
    %v8446 = vadd.f32 %v8414, 1.0
    %v8447 = vadd.f32 %v8415, 1.0
    %v8448 = vadd.f32 %v8416, 1.0
    %v8449 = vadd.f32 %v8417, 1.0
    %v8450 = vadd.f32 %v8418, 1.0
    %v8451 = vadd.f32 %v8419, 1.0
    %v8452 = vadd.f32 %v8420, 1.0
    %v8453 = vadd.f32 %v8421, 1.0
    %v8454 = vadd.f32 %v8422, 1.0
    %v8455 = vadd.f32 %v8423, 1.0
    %v8456 = vadd.f32 %v8424, 1.0
    %v8457 = vadd.f32 %v8425, 1.0
    %v8458 = vadd.f32 %v8426, 1.0
    %v8459 = vrcp.pop %v8427
    %v8460 = vrcp.pop %v8428
    %v8461 = vrcp.pop %v8429
    %v8462 = vrcp.pop %v8430
    %v8463 = vrcp.pop %v8431
    %v8464 = vrcp.pop %v8432
    %v8465 = vrcp.pop %v8433
    %v8466 = vrcp.pop %v8434
    %v8467 = vrcp.pop %v8435
    %v8468 = vrcp.pop %v8436
    %v8469 = vrcp.pop %v8437
    %v8470 = vrcp.pop %v8438
    %v8471 = vrcp.pop %v8439
    %v8472 = vrcp.pop %v8440
    %v8473 = vrcp.pop %v8441
    %v8474 = vrcp.pop %v8442
    %v8475 = vrcp.pop %v8443
    %v8476 = vrcp.pop %v8444
    %v8477 = vrcp.pop %v8445
    %v8478 = vrcp.pop %v8446
    %v8479 = vrcp.pop %v8447
    %v8480 = vrcp.pop %v8448
    %v8481 = vrcp.pop %v8449
    %v8482 = vrcp.pop %v8450
    %v8483 = vrcp.pop %v8451
    %v8484 = vrcp.pop %v8452
    %v8485 = vrcp.pop %v8453
    %v8486 = vrcp.pop %v8454
    %v8487 = vrcp.pop %v8455
    %v8488 = vrcp.pop %v8456
    %v8489 = vrcp.pop %v8457
    %v8490 = vrcp.pop %v8458
    %v8491 = vmul.f32 %v8427, %v8459
    %v8492 = vmul.f32 %v8428, %v8460
    %v8493 = vmul.f32 %v8429, %v8461
    %v8494 = vmul.f32 %v8430, %v8462
    %v8495 = vmul.f32 %v8431, %v8463
    %v8496 = vmul.f32 %v8432, %v8464
    %v8497 = vmul.f32 %v8433, %v8465
    %v8498 = vmul.f32 %v8434, %v8466
    %v8499 = vmul.f32 %v8435, %v8467
    %v8500 = vmul.f32 %v8436, %v8468
    %v8501 = vmul.f32 %v8437, %v8469
    %v8502 = vmul.f32 %v8438, %v8470
    %v8503 = vmul.f32 %v8439, %v8471
    %v8504 = vmul.f32 %v8440, %v8472
    %v8505 = vmul.f32 %v8441, %v8473
    %v8506 = vmul.f32 %v8442, %v8474
    %v8507 = vmul.f32 %v8443, %v8475
    %v8508 = vmul.f32 %v8444, %v8476
    %v8509 = vmul.f32 %v8445, %v8477
    %v8510 = vmul.f32 %v8446, %v8478
    %v8511 = vmul.f32 %v8447, %v8479
    %v8512 = vmul.f32 %v8448, %v8480
    %v8513 = vmul.f32 %v8449, %v8481
    %v8514 = vmul.f32 %v8450, %v8482
    %v8515 = vmul.f32 %v8451, %v8483
    %v8516 = vmul.f32 %v8452, %v8484
    %v8517 = vmul.f32 %v8453, %v8485
    %v8518 = vmul.f32 %v8454, %v8486
    %v8519 = vmul.f32 %v8455, %v8487
    %v8520 = vmul.f32 %v8456, %v8488
    %v8521 = vmul.f32 %v8457, %v8489
    %v8522 = vmul.f32 %v8458, %v8490
    %v8523 = vsub.f32 2.0, %v8491
    %v8524 = vsub.f32 2.0, %v8492
    %v8525 = vsub.f32 2.0, %v8493
    %v8526 = vsub.f32 2.0, %v8494
    %v8527 = vsub.f32 2.0, %v8495
    %v8528 = vsub.f32 2.0, %v8496
    %v8529 = vsub.f32 2.0, %v8497
    %v8530 = vsub.f32 2.0, %v8498
    %v8531 = vsub.f32 2.0, %v8499
    %v8532 = vsub.f32 2.0, %v8500
    %v8533 = vsub.f32 2.0, %v8501
    %v8534 = vsub.f32 2.0, %v8502
    %v8535 = vsub.f32 2.0, %v8503
    %v8536 = vsub.f32 2.0, %v8504
    %v8537 = vsub.f32 2.0, %v8505
    %v8538 = vsub.f32 2.0, %v8506
    %v8539 = vsub.f32 2.0, %v8507
    %v8540 = vsub.f32 2.0, %v8508
    %v8541 = vsub.f32 2.0, %v8509
    %v8542 = vsub.f32 2.0, %v8510
    %v8543 = vsub.f32 2.0, %v8511
    %v8544 = vsub.f32 2.0, %v8512
    %v8545 = vsub.f32 2.0, %v8513
    %v8546 = vsub.f32 2.0, %v8514
    %v8547 = vsub.f32 2.0, %v8515
    %v8548 = vsub.f32 2.0, %v8516
    %v8549 = vsub.f32 2.0, %v8517
    %v8550 = vsub.f32 2.0, %v8518
    %v8551 = vsub.f32 2.0, %v8519
    %v8552 = vsub.f32 2.0, %v8520
    %v8553 = vsub.f32 2.0, %v8521
    %v8554 = vsub.f32 2.0, %v8522
    %v8555 = vmul.f32 %v8459, %v8523
    %v8556 = vmul.f32 %v8460, %v8524
    %v8557 = vmul.f32 %v8461, %v8525
    %v8558 = vmul.f32 %v8462, %v8526
    %v8559 = vmul.f32 %v8463, %v8527
    %v8560 = vmul.f32 %v8464, %v8528
    %v8561 = vmul.f32 %v8465, %v8529
    %v8562 = vmul.f32 %v8466, %v8530
    %v8563 = vmul.f32 %v8467, %v8531
    %v8564 = vmul.f32 %v8468, %v8532
    %v8565 = vmul.f32 %v8469, %v8533
    %v8566 = vmul.f32 %v8470, %v8534
    %v8567 = vmul.f32 %v8471, %v8535
    %v8568 = vmul.f32 %v8472, %v8536
    %v8569 = vmul.f32 %v8473, %v8537
    %v8570 = vmul.f32 %v8474, %v8538
    %v8571 = vmul.f32 %v8475, %v8539
    %v8572 = vmul.f32 %v8476, %v8540
    %v8573 = vmul.f32 %v8477, %v8541
    %v8574 = vmul.f32 %v8478, %v8542
    %v8575 = vmul.f32 %v8479, %v8543
    %v8576 = vmul.f32 %v8480, %v8544
    %v8577 = vmul.f32 %v8481, %v8545
    %v8578 = vmul.f32 %v8482, %v8546
    %v8579 = vmul.f32 %v8483, %v8547
    %v8580 = vmul.f32 %v8484, %v8548
    %v8581 = vmul.f32 %v8485, %v8549
    %v8582 = vmul.f32 %v8486, %v8550
    %v8583 = vmul.f32 %v8487, %v8551
    %v8584 = vmul.f32 %v8488, %v8552
    %v8585 = vmul.f32 %v8489, %v8553
    %v8586 = vmul.f32 %v8490, %v8554
    %v8587 = vmul.f32 %v8555, 1.0614054
    %v8588 = vmul.f32 %v8556, 1.0614054
    %v8589 = vmul.f32 %v8557, 1.0614054
    %v8590 = vmul.f32 %v8558, 1.0614054
    %v8591 = vmul.f32 %v8559, 1.0614054
    %v8592 = vmul.f32 %v8560, 1.0614054
    %v8593 = vmul.f32 %v8561, 1.0614054
    %v8594 = vmul.f32 %v8562, 1.0614054
    %v8595 = vmul.f32 %v8563, 1.0614054
    %v8596 = vmul.f32 %v8564, 1.0614054
    %v8597 = vmul.f32 %v8565, 1.0614054
    %v8598 = vmul.f32 %v8566, 1.0614054
    %v8599 = vmul.f32 %v8567, 1.0614054
    %v8600 = vmul.f32 %v8568, 1.0614054
    %v8601 = vmul.f32 %v8569, 1.0614054
    %v8602 = vmul.f32 %v8570, 1.0614054
    %v8603 = vmul.f32 %v8571, 1.0614054
    %v8604 = vmul.f32 %v8572, 1.0614054
    %v8605 = vmul.f32 %v8573, 1.0614054
    %v8606 = vmul.f32 %v8574, 1.0614054
    %v8607 = vmul.f32 %v8575, 1.0614054
    %v8608 = vmul.f32 %v8576, 1.0614054
    %v8609 = vmul.f32 %v8577, 1.0614054
    %v8610 = vmul.f32 %v8578, 1.0614054
    %v8611 = vmul.f32 %v8579, 1.0614054
    %v8612 = vmul.f32 %v8580, 1.0614054
    %v8613 = vmul.f32 %v8581, 1.0614054
    %v8614 = vmul.f32 %v8582, 1.0614054
    %v8615 = vmul.f32 %v8583, 1.0614054
    %v8616 = vmul.f32 %v8584, 1.0614054
    %v8617 = vmul.f32 %v8585, 1.0614054
    %v8618 = vmul.f32 %v8586, 1.0614054
    %v8619 = vadd.f32 %v8587, -1.4531521
    %v8620 = vadd.f32 %v8588, -1.4531521
    %v8621 = vadd.f32 %v8589, -1.4531521
    %v8622 = vadd.f32 %v8590, -1.4531521
    %v8623 = vadd.f32 %v8591, -1.4531521
    %v8624 = vadd.f32 %v8592, -1.4531521
    %v8625 = vadd.f32 %v8593, -1.4531521
    %v8626 = vadd.f32 %v8594, -1.4531521
    %v8627 = vadd.f32 %v8595, -1.4531521
    %v8628 = vadd.f32 %v8596, -1.4531521
    %v8629 = vadd.f32 %v8597, -1.4531521
    %v8630 = vadd.f32 %v8598, -1.4531521
    %v8631 = vadd.f32 %v8599, -1.4531521
    %v8632 = vadd.f32 %v8600, -1.4531521
    %v8633 = vadd.f32 %v8601, -1.4531521
    %v8634 = vadd.f32 %v8602, -1.4531521
    %v8635 = vadd.f32 %v8603, -1.4531521
    %v8636 = vadd.f32 %v8604, -1.4531521
    %v8637 = vadd.f32 %v8605, -1.4531521
    %v8638 = vadd.f32 %v8606, -1.4531521
    %v8639 = vadd.f32 %v8607, -1.4531521
    %v8640 = vadd.f32 %v8608, -1.4531521
    %v8641 = vadd.f32 %v8609, -1.4531521
    %v8642 = vadd.f32 %v8610, -1.4531521
    %v8643 = vadd.f32 %v8611, -1.4531521
    %v8644 = vadd.f32 %v8612, -1.4531521
    %v8645 = vadd.f32 %v8613, -1.4531521
    %v8646 = vadd.f32 %v8614, -1.4531521
    %v8647 = vadd.f32 %v8615, -1.4531521
    %v8648 = vadd.f32 %v8616, -1.4531521
    %v8649 = vadd.f32 %v8617, -1.4531521
    %v8650 = vadd.f32 %v8618, -1.4531521
    %v8651 = vmul.f32 %v8619, %v8555
    %v8652 = vmul.f32 %v8620, %v8556
    %v8653 = vmul.f32 %v8621, %v8557
    %v8654 = vmul.f32 %v8622, %v8558
    %v8655 = vmul.f32 %v8623, %v8559
    %v8656 = vmul.f32 %v8624, %v8560
    %v8657 = vmul.f32 %v8625, %v8561
    %v8658 = vmul.f32 %v8626, %v8562
    %v8659 = vmul.f32 %v8627, %v8563
    %v8660 = vmul.f32 %v8628, %v8564
    %v8661 = vmul.f32 %v8629, %v8565
    %v8662 = vmul.f32 %v8630, %v8566
    %v8663 = vmul.f32 %v8631, %v8567
    %v8664 = vmul.f32 %v8632, %v8568
    %v8665 = vmul.f32 %v8633, %v8569
    %v8666 = vmul.f32 %v8634, %v8570
    %v8667 = vmul.f32 %v8635, %v8571
    %v8668 = vmul.f32 %v8636, %v8572
    %v8669 = vmul.f32 %v8637, %v8573
    %v8670 = vmul.f32 %v8638, %v8574
    %v8671 = vmul.f32 %v8639, %v8575
    %v8672 = vmul.f32 %v8640, %v8576
    %v8673 = vmul.f32 %v8641, %v8577
    %v8674 = vmul.f32 %v8642, %v8578
    %v8675 = vmul.f32 %v8643, %v8579
    %v8676 = vmul.f32 %v8644, %v8580
    %v8677 = vmul.f32 %v8645, %v8581
    %v8678 = vmul.f32 %v8646, %v8582
    %v8679 = vmul.f32 %v8647, %v8583
    %v8680 = vmul.f32 %v8648, %v8584
    %v8681 = vmul.f32 %v8649, %v8585
    %v8682 = vmul.f32 %v8650, %v8586
    %v8683 = vadd.f32 %v8651, 1.4214138
    %v8684 = vadd.f32 %v8652, 1.4214138
    %v8685 = vadd.f32 %v8653, 1.4214138
    %v8686 = vadd.f32 %v8654, 1.4214138
    %v8687 = vadd.f32 %v8655, 1.4214138
    %v8688 = vadd.f32 %v8656, 1.4214138
    %v8689 = vadd.f32 %v8657, 1.4214138
    %v8690 = vadd.f32 %v8658, 1.4214138
    %v8691 = vadd.f32 %v8659, 1.4214138
    %v8692 = vadd.f32 %v8660, 1.4214138
    %v8693 = vadd.f32 %v8661, 1.4214138
    %v8694 = vadd.f32 %v8662, 1.4214138
    %v8695 = vadd.f32 %v8663, 1.4214138
    %v8696 = vadd.f32 %v8664, 1.4214138
    %v8697 = vadd.f32 %v8665, 1.4214138
    %v8698 = vadd.f32 %v8666, 1.4214138
    %v8699 = vadd.f32 %v8667, 1.4214138
    %v8700 = vadd.f32 %v8668, 1.4214138
    %v8701 = vadd.f32 %v8669, 1.4214138
    %v8702 = vadd.f32 %v8670, 1.4214138
    %v8703 = vadd.f32 %v8671, 1.4214138
    %v8704 = vadd.f32 %v8672, 1.4214138
    %v8705 = vadd.f32 %v8673, 1.4214138
    %v8706 = vadd.f32 %v8674, 1.4214138
    %v8707 = vadd.f32 %v8675, 1.4214138
    %v8708 = vadd.f32 %v8676, 1.4214138
    %v8709 = vadd.f32 %v8677, 1.4214138
    %v8710 = vadd.f32 %v8678, 1.4214138
    %v8711 = vadd.f32 %v8679, 1.4214138
    %v8712 = vadd.f32 %v8680, 1.4214138
    %v8713 = vadd.f32 %v8681, 1.4214138
    %v8714 = vadd.f32 %v8682, 1.4214138
    %v8715 = vmul.f32 %v8683, %v8555
    %v8716 = vmul.f32 %v8684, %v8556
    %v8717 = vmul.f32 %v8685, %v8557
    %v8718 = vmul.f32 %v8686, %v8558
    %v8719 = vmul.f32 %v8687, %v8559
    %v8720 = vmul.f32 %v8688, %v8560
    %v8721 = vmul.f32 %v8689, %v8561
    %v8722 = vmul.f32 %v8690, %v8562
    %v8723 = vmul.f32 %v8691, %v8563
    %v8724 = vmul.f32 %v8692, %v8564
    %v8725 = vmul.f32 %v8693, %v8565
    %v8726 = vmul.f32 %v8694, %v8566
    %v8727 = vmul.f32 %v8695, %v8567
    %v8728 = vmul.f32 %v8696, %v8568
    %v8729 = vmul.f32 %v8697, %v8569
    %v8730 = vmul.f32 %v8698, %v8570
    %v8731 = vmul.f32 %v8699, %v8571
    %v8732 = vmul.f32 %v8700, %v8572
    %v8733 = vmul.f32 %v8701, %v8573
    %v8734 = vmul.f32 %v8702, %v8574
    %v8735 = vmul.f32 %v8703, %v8575
    %v8736 = vmul.f32 %v8704, %v8576
    %v8737 = vmul.f32 %v8705, %v8577
    %v8738 = vmul.f32 %v8706, %v8578
    %v8739 = vmul.f32 %v8707, %v8579
    %v8740 = vmul.f32 %v8708, %v8580
    %v8741 = vmul.f32 %v8709, %v8581
    %v8742 = vmul.f32 %v8710, %v8582
    %v8743 = vmul.f32 %v8711, %v8583
    %v8744 = vmul.f32 %v8712, %v8584
    %v8745 = vmul.f32 %v8713, %v8585
    %v8746 = vmul.f32 %v8714, %v8586
    %v8747 = vadd.f32 %v8715, -0.28449672
    %v8748 = vadd.f32 %v8716, -0.28449672
    %v8749 = vadd.f32 %v8717, -0.28449672
    %v8750 = vadd.f32 %v8718, -0.28449672
    %v8751 = vadd.f32 %v8719, -0.28449672
    %v8752 = vadd.f32 %v8720, -0.28449672
    %v8753 = vadd.f32 %v8721, -0.28449672
    %v8754 = vadd.f32 %v8722, -0.28449672
    %v8755 = vadd.f32 %v8723, -0.28449672
    %v8756 = vadd.f32 %v8724, -0.28449672
    %v8757 = vadd.f32 %v8725, -0.28449672
    %v8758 = vadd.f32 %v8726, -0.28449672
    %v8759 = vadd.f32 %v8727, -0.28449672
    %v8760 = vadd.f32 %v8728, -0.28449672
    %v8761 = vadd.f32 %v8729, -0.28449672
    %v8762 = vadd.f32 %v8730, -0.28449672
    %v8763 = vadd.f32 %v8731, -0.28449672
    %v8764 = vadd.f32 %v8732, -0.28449672
    %v8765 = vadd.f32 %v8733, -0.28449672
    %v8766 = vadd.f32 %v8734, -0.28449672
    %v8767 = vadd.f32 %v8735, -0.28449672
    %v8768 = vadd.f32 %v8736, -0.28449672
    %v8769 = vadd.f32 %v8737, -0.28449672
    %v8770 = vadd.f32 %v8738, -0.28449672
    %v8771 = vadd.f32 %v8739, -0.28449672
    %v8772 = vadd.f32 %v8740, -0.28449672
    %v8773 = vadd.f32 %v8741, -0.28449672
    %v8774 = vadd.f32 %v8742, -0.28449672
    %v8775 = vadd.f32 %v8743, -0.28449672
    %v8776 = vadd.f32 %v8744, -0.28449672
    %v8777 = vadd.f32 %v8745, -0.28449672
    %v8778 = vadd.f32 %v8746, -0.28449672
    %v8779 = vmul.f32 %v8747, %v8555
    %v8780 = vmul.f32 %v8748, %v8556
    %v8781 = vmul.f32 %v8749, %v8557
    %v8782 = vmul.f32 %v8750, %v8558
    %v8783 = vmul.f32 %v8751, %v8559
    %v8784 = vmul.f32 %v8752, %v8560
    %v8785 = vmul.f32 %v8753, %v8561
    %v8786 = vmul.f32 %v8754, %v8562
    %v8787 = vmul.f32 %v8755, %v8563
    %v8788 = vmul.f32 %v8756, %v8564
    %v8789 = vmul.f32 %v8757, %v8565
    %v8790 = vmul.f32 %v8758, %v8566
    %v8791 = vmul.f32 %v8759, %v8567
    %v8792 = vmul.f32 %v8760, %v8568
    %v8793 = vmul.f32 %v8761, %v8569
    %v8794 = vmul.f32 %v8762, %v8570
    %v8795 = vmul.f32 %v8763, %v8571
    %v8796 = vmul.f32 %v8764, %v8572
    %v8797 = vmul.f32 %v8765, %v8573
    %v8798 = vmul.f32 %v8766, %v8574
    %v8799 = vmul.f32 %v8767, %v8575
    %v8800 = vmul.f32 %v8768, %v8576
    %v8801 = vmul.f32 %v8769, %v8577
    %v8802 = vmul.f32 %v8770, %v8578
    %v8803 = vmul.f32 %v8771, %v8579
    %v8804 = vmul.f32 %v8772, %v8580
    %v8805 = vmul.f32 %v8773, %v8581
    %v8806 = vmul.f32 %v8774, %v8582
    %v8807 = vmul.f32 %v8775, %v8583
    %v8808 = vmul.f32 %v8776, %v8584
    %v8809 = vmul.f32 %v8777, %v8585
    %v8810 = vmul.f32 %v8778, %v8586
    %v8811 = vadd.f32 %v8779, 0.2548296
    %v8812 = vadd.f32 %v8780, 0.2548296
    %v8813 = vadd.f32 %v8781, 0.2548296
    %v8814 = vadd.f32 %v8782, 0.2548296
    %v8815 = vadd.f32 %v8783, 0.2548296
    %v8816 = vadd.f32 %v8784, 0.2548296
    %v8817 = vadd.f32 %v8785, 0.2548296
    %v8818 = vadd.f32 %v8786, 0.2548296
    %v8819 = vadd.f32 %v8787, 0.2548296
    %v8820 = vadd.f32 %v8788, 0.2548296
    %v8821 = vadd.f32 %v8789, 0.2548296
    %v8822 = vadd.f32 %v8790, 0.2548296
    %v8823 = vadd.f32 %v8791, 0.2548296
    %v8824 = vadd.f32 %v8792, 0.2548296
    %v8825 = vadd.f32 %v8793, 0.2548296
    %v8826 = vadd.f32 %v8794, 0.2548296
    %v8827 = vadd.f32 %v8795, 0.2548296
    %v8828 = vadd.f32 %v8796, 0.2548296
    %v8829 = vadd.f32 %v8797, 0.2548296
    %v8830 = vadd.f32 %v8798, 0.2548296
    %v8831 = vadd.f32 %v8799, 0.2548296
    %v8832 = vadd.f32 %v8800, 0.2548296
    %v8833 = vadd.f32 %v8801, 0.2548296
    %v8834 = vadd.f32 %v8802, 0.2548296
    %v8835 = vadd.f32 %v8803, 0.2548296
    %v8836 = vadd.f32 %v8804, 0.2548296
    %v8837 = vadd.f32 %v8805, 0.2548296
    %v8838 = vadd.f32 %v8806, 0.2548296
    %v8839 = vadd.f32 %v8807, 0.2548296
    %v8840 = vadd.f32 %v8808, 0.2548296
    %v8841 = vadd.f32 %v8809, 0.2548296
    %v8842 = vadd.f32 %v8810, 0.2548296
    %v8843 = vmul.f32 %v8811, %v8555
    %v8844 = vmul.f32 %v8812, %v8556
    %v8845 = vmul.f32 %v8813, %v8557
    %v8846 = vmul.f32 %v8814, %v8558
    %v8847 = vmul.f32 %v8815, %v8559
    %v8848 = vmul.f32 %v8816, %v8560
    %v8849 = vmul.f32 %v8817, %v8561
    %v8850 = vmul.f32 %v8818, %v8562
    %v8851 = vmul.f32 %v8819, %v8563
    %v8852 = vmul.f32 %v8820, %v8564
    %v8853 = vmul.f32 %v8821, %v8565
    %v8854 = vmul.f32 %v8822, %v8566
    %v8855 = vmul.f32 %v8823, %v8567
    %v8856 = vmul.f32 %v8824, %v8568
    %v8857 = vmul.f32 %v8825, %v8569
    %v8858 = vmul.f32 %v8826, %v8570
    %v8859 = vmul.f32 %v8827, %v8571
    %v8860 = vmul.f32 %v8828, %v8572
    %v8861 = vmul.f32 %v8829, %v8573
    %v8862 = vmul.f32 %v8830, %v8574
    %v8863 = vmul.f32 %v8831, %v8575
    %v8864 = vmul.f32 %v8832, %v8576
    %v8865 = vmul.f32 %v8833, %v8577
    %v8866 = vmul.f32 %v8834, %v8578
    %v8867 = vmul.f32 %v8835, %v8579
    %v8868 = vmul.f32 %v8836, %v8580
    %v8869 = vmul.f32 %v8837, %v8581
    %v8870 = vmul.f32 %v8838, %v8582
    %v8871 = vmul.f32 %v8839, %v8583
    %v8872 = vmul.f32 %v8840, %v8584
    %v8873 = vmul.f32 %v8841, %v8585
    %v8874 = vmul.f32 %v8842, %v8586
    %v8875 = vsub.f32 0.0, %v8363
    %v8876 = vsub.f32 0.0, %v8364
    %v8877 = vsub.f32 0.0, %v8365
    %v8878 = vsub.f32 0.0, %v8366
    %v8879 = vsub.f32 0.0, %v8367
    %v8880 = vsub.f32 0.0, %v8368
    %v8881 = vsub.f32 0.0, %v8369
    %v8882 = vsub.f32 0.0, %v8370
    %v8883 = vsub.f32 0.0, %v8371
    %v8884 = vsub.f32 0.0, %v8372
    %v8885 = vsub.f32 0.0, %v8373
    %v8886 = vsub.f32 0.0, %v8374
    %v8887 = vsub.f32 0.0, %v8375
    %v8888 = vsub.f32 0.0, %v8376
    %v8889 = vsub.f32 0.0, %v8377
    %v8890 = vsub.f32 0.0, %v8378
    %v8891 = vsub.f32 0.0, %v8379
    %v8892 = vsub.f32 0.0, %v8380
    %v8893 = vsub.f32 0.0, %v8381
    %v8894 = vsub.f32 0.0, %v8382
    %v8895 = vsub.f32 0.0, %v8383
    %v8896 = vsub.f32 0.0, %v8384
    %v8897 = vsub.f32 0.0, %v8385
    %v8898 = vsub.f32 0.0, %v8386
    %v8899 = vsub.f32 0.0, %v8387
    %v8900 = vsub.f32 0.0, %v8388
    %v8901 = vsub.f32 0.0, %v8389
    %v8902 = vsub.f32 0.0, %v8390
    %v8903 = vsub.f32 0.0, %v8391
    %v8904 = vsub.f32 0.0, %v8392
    %v8905 = vsub.f32 0.0, %v8393
    %v8906 = vsub.f32 0.0, %v8394
    %v8907 = vmul.f32 %v8875, %v8363
    %v8908 = vmul.f32 %v8876, %v8364
    %v8909 = vmul.f32 %v8877, %v8365
    %v8910 = vmul.f32 %v8878, %v8366
    %v8911 = vmul.f32 %v8879, %v8367
    %v8912 = vmul.f32 %v8880, %v8368
    %v8913 = vmul.f32 %v8881, %v8369
    %v8914 = vmul.f32 %v8882, %v8370
    %v8915 = vmul.f32 %v8883, %v8371
    %v8916 = vmul.f32 %v8884, %v8372
    %v8917 = vmul.f32 %v8885, %v8373
    %v8918 = vmul.f32 %v8886, %v8374
    %v8919 = vmul.f32 %v8887, %v8375
    %v8920 = vmul.f32 %v8888, %v8376
    %v8921 = vmul.f32 %v8889, %v8377
    %v8922 = vmul.f32 %v8890, %v8378
    %v8923 = vmul.f32 %v8891, %v8379
    %v8924 = vmul.f32 %v8892, %v8380
    %v8925 = vmul.f32 %v8893, %v8381
    %v8926 = vmul.f32 %v8894, %v8382
    %v8927 = vmul.f32 %v8895, %v8383
    %v8928 = vmul.f32 %v8896, %v8384
    %v8929 = vmul.f32 %v8897, %v8385
    %v8930 = vmul.f32 %v8898, %v8386
    %v8931 = vmul.f32 %v8899, %v8387
    %v8932 = vmul.f32 %v8900, %v8388
    %v8933 = vmul.f32 %v8901, %v8389
    %v8934 = vmul.f32 %v8902, %v8390
    %v8935 = vmul.f32 %v8903, %v8391
    %v8936 = vmul.f32 %v8904, %v8392
    %v8937 = vmul.f32 %v8905, %v8393
    %v8938 = vmul.f32 %v8906, %v8394
    %v8939 = vmul.f32 %v8907, 1.442695
    %v8940 = vpow.pop %v8939
    %v8941 = vmul.f32 %v8908, 1.442695
    %v8942 = vpow.pop %v8941
    %v8943 = vmul.f32 %v8909, 1.442695
    %v8944 = vpow.pop %v8943
    %v8945 = vmul.f32 %v8910, 1.442695
    %v8946 = vpow.pop %v8945
    %v8947 = vmul.f32 %v8911, 1.442695
    %v8948 = vpow.pop %v8947
    %v8949 = vmul.f32 %v8912, 1.442695
    %v8950 = vpow.pop %v8949
    %v8951 = vmul.f32 %v8913, 1.442695
    %v8952 = vpow.pop %v8951
    %v8953 = vmul.f32 %v8914, 1.442695
    %v8954 = vpow.pop %v8953
    %v8955 = vmul.f32 %v8915, 1.442695
    %v8956 = vpow.pop %v8955
    %v8957 = vmul.f32 %v8916, 1.442695
    %v8958 = vpow.pop %v8957
    %v8959 = vmul.f32 %v8917, 1.442695
    %v8960 = vpow.pop %v8959
    %v8961 = vmul.f32 %v8918, 1.442695
    %v8962 = vpow.pop %v8961
    %v8963 = vmul.f32 %v8919, 1.442695
    %v8964 = vpow.pop %v8963
    %v8965 = vmul.f32 %v8920, 1.442695
    %v8966 = vpow.pop %v8965
    %v8967 = vmul.f32 %v8921, 1.442695
    %v8968 = vpow.pop %v8967
    %v8969 = vmul.f32 %v8922, 1.442695
    %v8970 = vpow.pop %v8969
    %v8971 = vmul.f32 %v8923, 1.442695
    %v8972 = vpow.pop %v8971
    %v8973 = vmul.f32 %v8924, 1.442695
    %v8974 = vpow.pop %v8973
    %v8975 = vmul.f32 %v8925, 1.442695
    %v8976 = vpow.pop %v8975
    %v8977 = vmul.f32 %v8926, 1.442695
    %v8978 = vpow.pop %v8977
    %v8979 = vmul.f32 %v8927, 1.442695
    %v8980 = vpow.pop %v8979
    %v8981 = vmul.f32 %v8928, 1.442695
    %v8982 = vpow.pop %v8981
    %v8983 = vmul.f32 %v8929, 1.442695
    %v8984 = vpow.pop %v8983
    %v8985 = vmul.f32 %v8930, 1.442695
    %v8986 = vpow.pop %v8985
    %v8987 = vmul.f32 %v8931, 1.442695
    %v8988 = vpow.pop %v8987
    %v8989 = vmul.f32 %v8932, 1.442695
    %v8990 = vpow.pop %v8989
    %v8991 = vmul.f32 %v8933, 1.442695
    %v8992 = vpow.pop %v8991
    %v8993 = vmul.f32 %v8934, 1.442695
    %v8994 = vpow.pop %v8993
    %v8995 = vmul.f32 %v8935, 1.442695
    %v8996 = vpow.pop %v8995
    %v8997 = vmul.f32 %v8936, 1.442695
    %v8998 = vpow.pop %v8997
    %v8999 = vmul.f32 %v8937, 1.442695
    %v9000 = vpow.pop %v8999
    %v9001 = vmul.f32 %v8938, 1.442695
    %v9002 = vpow.pop %v9001
    %v9003 = vmul.f32 %v8843, %v8940
    %v9004 = vmul.f32 %v8844, %v8942
    %v9005 = vmul.f32 %v8845, %v8944
    %v9006 = vmul.f32 %v8846, %v8946
    %v9007 = vmul.f32 %v8847, %v8948
    %v9008 = vmul.f32 %v8848, %v8950
    %v9009 = vmul.f32 %v8849, %v8952
    %v9010 = vmul.f32 %v8850, %v8954
    %v9011 = vmul.f32 %v8851, %v8956
    %v9012 = vmul.f32 %v8852, %v8958
    %v9013 = vmul.f32 %v8853, %v8960
    %v9014 = vmul.f32 %v8854, %v8962
    %v9015 = vmul.f32 %v8855, %v8964
    %v9016 = vmul.f32 %v8856, %v8966
    %v9017 = vmul.f32 %v8857, %v8968
    %v9018 = vmul.f32 %v8858, %v8970
    %v9019 = vmul.f32 %v8859, %v8972
    %v9020 = vmul.f32 %v8860, %v8974
    %v9021 = vmul.f32 %v8861, %v8976
    %v9022 = vmul.f32 %v8862, %v8978
    %v9023 = vmul.f32 %v8863, %v8980
    %v9024 = vmul.f32 %v8864, %v8982
    %v9025 = vmul.f32 %v8865, %v8984
    %v9026 = vmul.f32 %v8866, %v8986
    %v9027 = vmul.f32 %v8867, %v8988
    %v9028 = vmul.f32 %v8868, %v8990
    %v9029 = vmul.f32 %v8869, %v8992
    %v9030 = vmul.f32 %v8870, %v8994
    %v9031 = vmul.f32 %v8871, %v8996
    %v9032 = vmul.f32 %v8872, %v8998
    %v9033 = vmul.f32 %v8873, %v9000
    %v9034 = vmul.f32 %v8874, %v9002
    %v9035 = vsub.f32 1.0, %v9003
    %v9036 = vsub.f32 1.0, %v9004
    %v9037 = vsub.f32 1.0, %v9005
    %v9038 = vsub.f32 1.0, %v9006
    %v9039 = vsub.f32 1.0, %v9007
    %v9040 = vsub.f32 1.0, %v9008
    %v9041 = vsub.f32 1.0, %v9009
    %v9042 = vsub.f32 1.0, %v9010
    %v9043 = vsub.f32 1.0, %v9011
    %v9044 = vsub.f32 1.0, %v9012
    %v9045 = vsub.f32 1.0, %v9013
    %v9046 = vsub.f32 1.0, %v9014
    %v9047 = vsub.f32 1.0, %v9015
    %v9048 = vsub.f32 1.0, %v9016
    %v9049 = vsub.f32 1.0, %v9017
    %v9050 = vsub.f32 1.0, %v9018
    %v9051 = vsub.f32 1.0, %v9019
    %v9052 = vsub.f32 1.0, %v9020
    %v9053 = vsub.f32 1.0, %v9021
    %v9054 = vsub.f32 1.0, %v9022
    %v9055 = vsub.f32 1.0, %v9023
    %v9056 = vsub.f32 1.0, %v9024
    %v9057 = vsub.f32 1.0, %v9025
    %v9058 = vsub.f32 1.0, %v9026
    %v9059 = vsub.f32 1.0, %v9027
    %v9060 = vsub.f32 1.0, %v9028
    %v9061 = vsub.f32 1.0, %v9029
    %v9062 = vsub.f32 1.0, %v9030
    %v9063 = vsub.f32 1.0, %v9031
    %v9064 = vsub.f32 1.0, %v9032
    %v9065 = vsub.f32 1.0, %v9033
    %v9066 = vsub.f32 1.0, %v9034
    %vm9067 = vcmp.ge.f32.partialorder %v8331, 0.0
    %vm9068 = vcmp.ge.f32.partialorder %v8332, 0.0
    %vm9069 = vcmp.ge.f32.partialorder %v8333, 0.0
    %vm9070 = vcmp.ge.f32.partialorder %v8334, 0.0
    %vm9071 = vcmp.ge.f32.partialorder %v8335, 0.0
    %vm9072 = vcmp.ge.f32.partialorder %v8336, 0.0
    %vm9073 = vcmp.ge.f32.partialorder %v8337, 0.0
    %vm9074 = vcmp.ge.f32.partialorder %v8338, 0.0
    %vm9075 = vcmp.ge.f32.partialorder %v8339, 0.0
    %vm9076 = vcmp.ge.f32.partialorder %v8340, 0.0
    %vm9077 = vcmp.ge.f32.partialorder %v8341, 0.0
    %vm9078 = vcmp.ge.f32.partialorder %v8342, 0.0
    %vm9079 = vcmp.ge.f32.partialorder %v8343, 0.0
    %vm9080 = vcmp.ge.f32.partialorder %v8344, 0.0
    %vm9081 = vcmp.ge.f32.partialorder %v8345, 0.0
    %vm9082 = vcmp.ge.f32.partialorder %v8346, 0.0
    %vm9083 = vcmp.ge.f32.partialorder %v8347, 0.0
    %vm9084 = vcmp.ge.f32.partialorder %v8348, 0.0
    %vm9085 = vcmp.ge.f32.partialorder %v8349, 0.0
    %vm9086 = vcmp.ge.f32.partialorder %v8350, 0.0
    %vm9087 = vcmp.ge.f32.partialorder %v8351, 0.0
    %vm9088 = vcmp.ge.f32.partialorder %v8352, 0.0
    %vm9089 = vcmp.ge.f32.partialorder %v8353, 0.0
    %vm9090 = vcmp.ge.f32.partialorder %v8354, 0.0
    %vm9091 = vcmp.ge.f32.partialorder %v8355, 0.0
    %vm9092 = vcmp.ge.f32.partialorder %v8356, 0.0
    %vm9093 = vcmp.ge.f32.partialorder %v8357, 0.0
    %vm9094 = vcmp.ge.f32.partialorder %v8358, 0.0
    %vm9095 = vcmp.ge.f32.partialorder %v8359, 0.0
    %vm9096 = vcmp.ge.f32.partialorder %v8360, 0.0
    %vm9097 = vcmp.ge.f32.partialorder %v8361, 0.0
    %vm9098 = vcmp.ge.f32.partialorder %v8362, 0.0
    %v9099 = vsub.f32 0.0, %v9035
    %v9100 = vsub.f32 0.0, %v9036
    %v9101 = vsub.f32 0.0, %v9037
    %v9102 = vsub.f32 0.0, %v9038
    %v9103 = vsub.f32 0.0, %v9039
    %v9104 = vsub.f32 0.0, %v9040
    %v9105 = vsub.f32 0.0, %v9041
    %v9106 = vsub.f32 0.0, %v9042
    %v9107 = vsub.f32 0.0, %v9043
    %v9108 = vsub.f32 0.0, %v9044
    %v9109 = vsub.f32 0.0, %v9045
    %v9110 = vsub.f32 0.0, %v9046
    %v9111 = vsub.f32 0.0, %v9047
    %v9112 = vsub.f32 0.0, %v9048
    %v9113 = vsub.f32 0.0, %v9049
    %v9114 = vsub.f32 0.0, %v9050
    %v9115 = vsub.f32 0.0, %v9051
    %v9116 = vsub.f32 0.0, %v9052
    %v9117 = vsub.f32 0.0, %v9053
    %v9118 = vsub.f32 0.0, %v9054
    %v9119 = vsub.f32 0.0, %v9055
    %v9120 = vsub.f32 0.0, %v9056
    %v9121 = vsub.f32 0.0, %v9057
    %v9122 = vsub.f32 0.0, %v9058
    %v9123 = vsub.f32 0.0, %v9059
    %v9124 = vsub.f32 0.0, %v9060
    %v9125 = vsub.f32 0.0, %v9061
    %v9126 = vsub.f32 0.0, %v9062
    %v9127 = vsub.f32 0.0, %v9063
    %v9128 = vsub.f32 0.0, %v9064
    %v9129 = vsub.f32 0.0, %v9065
    %v9130 = vsub.f32 0.0, %v9066
    %v9131 = vsel %vm9067, %v9035, %v9099
    %v9132 = vsel %vm9068, %v9036, %v9100
    %v9133 = vsel %vm9069, %v9037, %v9101
    %v9134 = vsel %vm9070, %v9038, %v9102
    %v9135 = vsel %vm9071, %v9039, %v9103
    %v9136 = vsel %vm9072, %v9040, %v9104
    %v9137 = vsel %vm9073, %v9041, %v9105
    %v9138 = vsel %vm9074, %v9042, %v9106
    %v9139 = vsel %vm9075, %v9043, %v9107
    %v9140 = vsel %vm9076, %v9044, %v9108
    %v9141 = vsel %vm9077, %v9045, %v9109
    %v9142 = vsel %vm9078, %v9046, %v9110
    %v9143 = vsel %vm9079, %v9047, %v9111
    %v9144 = vsel %vm9080, %v9048, %v9112
    %v9145 = vsel %vm9081, %v9049, %v9113
    %v9146 = vsel %vm9082, %v9050, %v9114
    %v9147 = vsel %vm9083, %v9051, %v9115
    %v9148 = vsel %vm9084, %v9052, %v9116
    %v9149 = vsel %vm9085, %v9053, %v9117
    %v9150 = vsel %vm9086, %v9054, %v9118
    %v9151 = vsel %vm9087, %v9055, %v9119
    %v9152 = vsel %vm9088, %v9056, %v9120
    %v9153 = vsel %vm9089, %v9057, %v9121
    %v9154 = vsel %vm9090, %v9058, %v9122
    %v9155 = vsel %vm9091, %v9059, %v9123
    %v9156 = vsel %vm9092, %v9060, %v9124
    %v9157 = vsel %vm9093, %v9061, %v9125
    %v9158 = vsel %vm9094, %v9062, %v9126
    %v9159 = vsel %vm9095, %v9063, %v9127
    %v9160 = vsel %vm9096, %v9064, %v9128
    %v9161 = vsel %vm9097, %v9065, %v9129
    %v9162 = vsel %vm9098, %v9066, %v9130
    %v9163 = vadd.f32 %v9131, 1.0
    %v9164 = vadd.f32 %v9132, 1.0
    %v9165 = vadd.f32 %v9133, 1.0
    %v9166 = vadd.f32 %v9134, 1.0
    %v9167 = vadd.f32 %v9135, 1.0
    %v9168 = vadd.f32 %v9136, 1.0
    %v9169 = vadd.f32 %v9137, 1.0
    %v9170 = vadd.f32 %v9138, 1.0
    %v9171 = vadd.f32 %v9139, 1.0
    %v9172 = vadd.f32 %v9140, 1.0
    %v9173 = vadd.f32 %v9141, 1.0
    %v9174 = vadd.f32 %v9142, 1.0
    %v9175 = vadd.f32 %v9143, 1.0
    %v9176 = vadd.f32 %v9144, 1.0
    %v9177 = vadd.f32 %v9145, 1.0
    %v9178 = vadd.f32 %v9146, 1.0
    %v9179 = vadd.f32 %v9147, 1.0
    %v9180 = vadd.f32 %v9148, 1.0
    %v9181 = vadd.f32 %v9149, 1.0
    %v9182 = vadd.f32 %v9150, 1.0
    %v9183 = vadd.f32 %v9151, 1.0
    %v9184 = vadd.f32 %v9152, 1.0
    %v9185 = vadd.f32 %v9153, 1.0
    %v9186 = vadd.f32 %v9154, 1.0
    %v9187 = vadd.f32 %v9155, 1.0
    %v9188 = vadd.f32 %v9156, 1.0
    %v9189 = vadd.f32 %v9157, 1.0
    %v9190 = vadd.f32 %v9158, 1.0
    %v9191 = vadd.f32 %v9159, 1.0
    %v9192 = vadd.f32 %v9160, 1.0
    %v9193 = vadd.f32 %v9161, 1.0
    %v9194 = vadd.f32 %v9162, 1.0
    %v9195 = vmul.f32 %v8299, %v9163
    %v9196 = vmul.f32 %v8300, %v9164
    %v9197 = vmul.f32 %v8301, %v9165
    %v9198 = vmul.f32 %v8302, %v9166
    %v9199 = vmul.f32 %v8303, %v9167
    %v9200 = vmul.f32 %v8304, %v9168
    %v9201 = vmul.f32 %v8305, %v9169
    %v9202 = vmul.f32 %v8306, %v9170
    %v9203 = vmul.f32 %v8307, %v9171
    %v9204 = vmul.f32 %v8308, %v9172
    %v9205 = vmul.f32 %v8309, %v9173
    %v9206 = vmul.f32 %v8310, %v9174
    %v9207 = vmul.f32 %v8311, %v9175
    %v9208 = vmul.f32 %v8312, %v9176
    %v9209 = vmul.f32 %v8313, %v9177
    %v9210 = vmul.f32 %v8314, %v9178
    %v9211 = vmul.f32 %v8315, %v9179
    %v9212 = vmul.f32 %v8316, %v9180
    %v9213 = vmul.f32 %v8317, %v9181
    %v9214 = vmul.f32 %v8318, %v9182
    %v9215 = vmul.f32 %v8319, %v9183
    %v9216 = vmul.f32 %v8320, %v9184
    %v9217 = vmul.f32 %v8321, %v9185
    %v9218 = vmul.f32 %v8322, %v9186
    %v9219 = vmul.f32 %v8323, %v9187
    %v9220 = vmul.f32 %v8324, %v9188
    %v9221 = vmul.f32 %v8325, %v9189
    %v9222 = vmul.f32 %v8326, %v9190
    %v9223 = vmul.f32 %v8327, %v9191
    %v9224 = vmul.f32 %v8328, %v9192
    %v9225 = vmul.f32 %v8329, %v9193
    %v9226 = vmul.f32 %v8330, %v9194
    %v9227 = vsel %vm2735, %v9195, 0.0
    %v9228 = vsel %vm2735, %v9196, 0.0
    %v9229 = vadd.f32 %v9227, %v9228
    %v9230 = vrot.slane %v9229, 4
    %v9231 = vadd.f32 %v9229, %v9230
    %v9232 = vrot.slane %v9231, 2
    %v9233 = vadd.f32 %v9231, %v9232
    %v9234 = vrot.slane %v9233, 1
    %v9235 = vadd.f32 %v9233, %v9234
    %v9236 = vsel %vm2735, %v9197, 0.0
    %v9237 = vsel %vm2735, %v9198, 0.0
    %v9238 = vadd.f32 %v9236, %v9237
    %v9239 = vrot.slane %v9238, 4
    %v9240 = vadd.f32 %v9238, %v9239
    %v9241 = vrot.slane %v9240, 2
    %v9242 = vadd.f32 %v9240, %v9241
    %v9243 = vrot.slane %v9242, 1
    %v9244 = vadd.f32 %v9242, %v9243
    %v9245 = vsel %vm2735, %v9199, 0.0
    %v9246 = vsel %vm2735, %v9200, 0.0
    %v9247 = vadd.f32 %v9245, %v9246
    %v9248 = vrot.slane %v9247, 4
    %v9249 = vadd.f32 %v9247, %v9248
    %v9250 = vrot.slane %v9249, 2
    %v9251 = vadd.f32 %v9249, %v9250
    %v9252 = vrot.slane %v9251, 1
    %v9253 = vadd.f32 %v9251, %v9252
    %v9254 = vsel %vm2735, %v9201, 0.0
    %v9255 = vsel %vm2735, %v9202, 0.0
    %v9256 = vadd.f32 %v9254, %v9255
    %v9257 = vrot.slane %v9256, 4
    %v9258 = vadd.f32 %v9256, %v9257
    %v9259 = vrot.slane %v9258, 2
    %v9260 = vadd.f32 %v9258, %v9259
    %v9261 = vrot.slane %v9260, 1
    %v9262 = vadd.f32 %v9260, %v9261
    %v9263 = vsel %vm2735, %v9203, 0.0
    %v9264 = vsel %vm2735, %v9204, 0.0
    %v9265 = vadd.f32 %v9263, %v9264
    %v9266 = vrot.slane %v9265, 4
    %v9267 = vadd.f32 %v9265, %v9266
    %v9268 = vrot.slane %v9267, 2
    %v9269 = vadd.f32 %v9267, %v9268
    %v9270 = vrot.slane %v9269, 1
    %v9271 = vadd.f32 %v9269, %v9270
    %v9272 = vsel %vm2735, %v9205, 0.0
    %v9273 = vsel %vm2735, %v9206, 0.0
    %v9274 = vadd.f32 %v9272, %v9273
    %v9275 = vrot.slane %v9274, 4
    %v9276 = vadd.f32 %v9274, %v9275
    %v9277 = vrot.slane %v9276, 2
    %v9278 = vadd.f32 %v9276, %v9277
    %v9279 = vrot.slane %v9278, 1
    %v9280 = vadd.f32 %v9278, %v9279
    %v9281 = vsel %vm2735, %v9207, 0.0
    %v9282 = vsel %vm2735, %v9208, 0.0
    %v9283 = vadd.f32 %v9281, %v9282
    %v9284 = vrot.slane %v9283, 4
    %v9285 = vadd.f32 %v9283, %v9284
    %v9286 = vrot.slane %v9285, 2
    %v9287 = vadd.f32 %v9285, %v9286
    %v9288 = vrot.slane %v9287, 1
    %v9289 = vadd.f32 %v9287, %v9288
    %v9290 = vsel %vm2735, %v9209, 0.0
    %v9291 = vsel %vm2735, %v9210, 0.0
    %v9292 = vadd.f32 %v9290, %v9291
    %v9293 = vrot.slane %v9292, 4
    %v9294 = vadd.f32 %v9292, %v9293
    %v9295 = vrot.slane %v9294, 2
    %v9296 = vadd.f32 %v9294, %v9295
    %v9297 = vrot.slane %v9296, 1
    %v9298 = vadd.f32 %v9296, %v9297
    %v9299 = vsel %vm2735, %v9211, 0.0
    %v9300 = vsel %vm2735, %v9212, 0.0
    %v9301 = vadd.f32 %v9299, %v9300
    %v9302 = vrot.slane %v9301, 4
    %v9303 = vadd.f32 %v9301, %v9302
    %v9304 = vrot.slane %v9303, 2
    %v9305 = vadd.f32 %v9303, %v9304
    %v9306 = vrot.slane %v9305, 1
    %v9307 = vadd.f32 %v9305, %v9306
    %v9308 = vsel %vm2735, %v9213, 0.0
    %v9309 = vsel %vm2735, %v9214, 0.0
    %v9310 = vadd.f32 %v9308, %v9309
    %v9311 = vrot.slane %v9310, 4
    %v9312 = vadd.f32 %v9310, %v9311
    %v9313 = vrot.slane %v9312, 2
    %v9314 = vadd.f32 %v9312, %v9313
    %v9315 = vrot.slane %v9314, 1
    %v9316 = vadd.f32 %v9314, %v9315
    %v9317 = vsel %vm2735, %v9215, 0.0
    %v9318 = vsel %vm2735, %v9216, 0.0
    %v9319 = vadd.f32 %v9317, %v9318
    %v9320 = vrot.slane %v9319, 4
    %v9321 = vadd.f32 %v9319, %v9320
    %v9322 = vrot.slane %v9321, 2
    %v9323 = vadd.f32 %v9321, %v9322
    %v9324 = vrot.slane %v9323, 1
    %v9325 = vadd.f32 %v9323, %v9324
    %v9326 = vsel %vm2735, %v9217, 0.0
    %v9327 = vsel %vm2735, %v9218, 0.0
    %v9328 = vadd.f32 %v9326, %v9327
    %v9329 = vrot.slane %v9328, 4
    %v9330 = vadd.f32 %v9328, %v9329
    %v9331 = vrot.slane %v9330, 2
    %v9332 = vadd.f32 %v9330, %v9331
    %v9333 = vrot.slane %v9332, 1
    %v9334 = vadd.f32 %v9332, %v9333
    %v9335 = vsel %vm2735, %v9219, 0.0
    %v9336 = vsel %vm2735, %v9220, 0.0
    %v9337 = vadd.f32 %v9335, %v9336
    %v9338 = vrot.slane %v9337, 4
    %v9339 = vadd.f32 %v9337, %v9338
    %v9340 = vrot.slane %v9339, 2
    %v9341 = vadd.f32 %v9339, %v9340
    %v9342 = vrot.slane %v9341, 1
    %v9343 = vadd.f32 %v9341, %v9342
    %v9344 = vsel %vm2735, %v9221, 0.0
    %v9345 = vsel %vm2735, %v9222, 0.0
    %v9346 = vadd.f32 %v9344, %v9345
    %v9347 = vrot.slane %v9346, 4
    %v9348 = vadd.f32 %v9346, %v9347
    %v9349 = vrot.slane %v9348, 2
    %v9350 = vadd.f32 %v9348, %v9349
    %v9351 = vrot.slane %v9350, 1
    %v9352 = vadd.f32 %v9350, %v9351
    %v9353 = vsel %vm2735, %v9223, 0.0
    %v9354 = vsel %vm2735, %v9224, 0.0
    %v9355 = vadd.f32 %v9353, %v9354
    %v9356 = vrot.slane %v9355, 4
    %v9357 = vadd.f32 %v9355, %v9356
    %v9358 = vrot.slane %v9357, 2
    %v9359 = vadd.f32 %v9357, %v9358
    %v9360 = vrot.slane %v9359, 1
    %v9361 = vadd.f32 %v9359, %v9360
    %v9362 = vsel %vm2735, %v9225, 0.0
    %v9363 = vsel %vm2735, %v9226, 0.0
    %v9364 = vadd.f32 %v9362, %v9363
    %v9365 = vrot.slane %v9364, 4
    %v9366 = vadd.f32 %v9364, %v9365
    %v9367 = vrot.slane %v9366, 2
    %v9368 = vadd.f32 %v9366, %v9367
    %v9369 = vrot.slane %v9368, 1
    %v9370 = vadd.f32 %v9368, %v9369
    %v9371 = vrcp.pop 16.0
    %v9372 = vmul.f32 %v9235, %v9371
    %v9373 = vmul.f32 %v9244, %v9371
    %v9374 = vmul.f32 %v9253, %v9371
    %v9375 = vmul.f32 %v9262, %v9371
    %v9376 = vmul.f32 %v9271, %v9371
    %v9377 = vmul.f32 %v9280, %v9371
    %v9378 = vmul.f32 %v9289, %v9371
    %v9379 = vmul.f32 %v9298, %v9371
    %v9380 = vmul.f32 %v9307, %v9371
    %v9381 = vmul.f32 %v9316, %v9371
    %v9382 = vmul.f32 %v9325, %v9371
    %v9383 = vmul.f32 %v9334, %v9371
    %v9384 = vmul.f32 %v9343, %v9371
    %v9385 = vmul.f32 %v9352, %v9371
    %v9386 = vmul.f32 %v9361, %v9371
    %v9387 = vmul.f32 %v9370, %v9371
    %v9388 = vld [vmem:[%s4] sm:$0xff]
    %v9389 = vld [vmem:[%s4 + $0x8] sm:$0xff]
    %v9390 = vld [vmem:[%s4 + $0x10] sm:$0xff]
    %v9391 = vld [vmem:[%s4 + $0x18] sm:$0xff]
    %v9392 = vld [vmem:[%s5] sm:$0x1]
    %v9394 = vlaneseq
    %v9395 = vshrl.u32 %v9394, 7
    %v9396 = vsub.s32 0, %v9395
    %v9397 = vrot.slane %v9392, %v9396
    %vm9415 = vcmask 1041409
    %v9416 = vsel %vm9415, %v9373, %v9372
    %vm9417 = vcmask 1042434
    %v9418 = vsel %vm9417, %v9374, %v9416
    %vm9419 = vcmask 1043459
    %v9420 = vsel %vm9419, %v9375, %v9418
    %vm9421 = vcmask 1044484
    %v9422 = vsel %vm9421, %v9376, %v9420
    %vm9423 = vcmask 1045509
    %v9424 = vsel %vm9423, %v9377, %v9422
    %vm9425 = vcmask 1046534
    %v9426 = vsel %vm9425, %v9378, %v9424
    %vm9427 = vcmask 1047559
    %v9428 = vsel %vm9427, %v9379, %v9426
    %v9429 = vsel %vm9415, %v9381, %v9380
    %v9430 = vsel %vm9417, %v9382, %v9429
    %v9431 = vsel %vm9419, %v9383, %v9430
    %v9432 = vsel %vm9421, %v9384, %v9431
    %v9433 = vsel %vm9423, %v9385, %v9432
    %v9434 = vsel %vm9425, %v9386, %v9433
    %v9435 = vsel %vm9427, %v9387, %v9434
    %v9436 = vsel %vm2735, %v9428, 0
    %v9438 = vsel %vm2735, %v9435, 0
    %9440 = vmatprep.subr.mxu0 0.0
    %9441 = vmatpush1.msra.mxu0 %v9388
    %9442 = vmatprep.subr.mxu0 0.0
    %9443 = vmatpush1.msra.mxu0 %v9389
    %9444 = vmatprep.subr.mxu0 0.0
    %9445 = vmatpush1.msra.mxu0 %v9390
    %9446 = vmatprep.subr.mxu0 0.0
    %9447 = vmatpush1.msra.mxu0 %v9391
    %9448 = vmatprep.subr.mxu0 0.0
    %9449 = vmatpush1.msra.mxu0 0.0
    %9450 = vmatprep.subr.mxu0 0.0
    %9451 = vmatpush1.msra.mxu0 0.0
    %9452 = vmatprep.subr.mxu0 0.0
    %9453 = vmatpush1.msra.mxu0 0.0
    %9454 = vmatprep.subr.mxu0 0.0
    %9455 = vmatpush1.msra.mxu0 0.0
    %9456 = vmatprep.subr.mxu0 0.0
    %9457 = vmatpush1.msra.mxu0 0.0
    %9458 = vmatprep.subr.mxu0 0.0
    %9459 = vmatpush1.msra.mxu0 0.0
    %9460 = vmatprep.subr.mxu0 0.0
    %9461 = vmatpush1.msra.mxu0 0.0
    %9462 = vmatprep.subr.mxu0 0.0
    %9463 = vmatpush1.msra.mxu0 0.0
    %9464 = vmatprep.subr.mxu0 0.0
    %9465 = vmatpush1.msra.mxu0 0.0
    %9466 = vmatprep.subr.mxu0 0.0
    %9467 = vmatpush1.msra.mxu0 0.0
    %9468 = vmatprep.subr.mxu0 0.0
    %9469 = vmatpush1.msra.mxu0 0.0
    %9470 = vmatprep.subr.mxu0 0.0
    %9471 = vmatpush1.msra.mxu0 0.0
    %9472 = vmatprep.subr.mxu0 0.0
    %9473 = vmatpush1.msra.mxu0 0.0
    %9474 = vmatprep.subr.mxu0 0.0
    %9475 = vmatpush1.msra.mxu0 0.0
    %9476 = vmatprep.subr.mxu0 0.0
    %9477 = vmatpush1.msra.mxu0 0.0
    %9478 = vmatprep.subr.mxu0 0.0
    %9479 = vmatpush1.msra.mxu0 0.0
    %9480 = vmatprep.subr.mxu0 0.0
    %9481 = vmatpush1.msra.mxu0 0.0
    %9482 = vmatprep.subr.mxu0 0.0
    %9483 = vmatpush1.msra.mxu0 0.0
    %9484 = vmatprep.subr.mxu0 0.0
    %9485 = vmatpush1.msra.mxu0 0.0
    %9486 = vmatprep.subr.mxu0 0.0
    %9487 = vmatpush1.msra.mxu0 0.0
    %9488 = vmatprep.subr.mxu0 0.0
    %9489 = vmatpush1.msra.mxu0 0.0
    %9490 = vmatprep.subr.mxu0 0.0
    %9491 = vmatpush1.msra.mxu0 0.0
    %9492 = vmatprep.subr.mxu0 0.0
    %9493 = vmatpush1.msra.mxu0 0.0
    %9494 = vmatprep.subr.mxu0 0.0
    %9495 = vmatpush1.msra.mxu0 0.0
    %9496 = vmatprep.subr.mxu0 0.0
    %9497 = vmatpush1.msra.mxu0 0.0
    %9498 = vmatprep.subr.mxu0 0.0
    %9499 = vmatpush1.msra.mxu0 0.0
    %9500 = vmatprep.subr.mxu0 0.0
    %9501 = vmatpush1.msra.mxu0 0.0
    %9502 = vmatprep.subr.mxu0 0.0
    %9503 = vmatpush1.msra.mxu0 0.0
    %9504 = vmatprep.mubr.f32.mxu0 0.0
    %9505 = vmatmul.mubr.f32.gmra.mrb[0].mxu0 %v9436
    %v9506 = vpop.f32.mrb[0].mxu0
    %v9507 = vadd.f32 %v9397, %v9506
    %v9508 = vpop.f32.mrb[0].mxu0
    %9509 = vmatprep.mubr.f32.mxu0 0.0
    %9510 = vmatmul.mubr.f32.gmra.mrb[0].mxu0 %v9438
    %v9511 = vpop.f32.mrb[0].mxu0
    %v9512 = vadd.f32 %v9397, %v9511
    %v9513 = vpop.f32.mrb[0].mxu0
    %9514 = vdwg.mxu0
    %9515 = vst [vmem:[#allocation5] sm:$0xff] %v9507
    %9516 = vst [vmem:[#allocation5 + $0x8] sm:$0xff] %v9512
    // Predicated region
    $region30: #{tpu_custom_call.1} parent=1 // pred_check
      _
    $region31: #{tpu_custom_call.1} parent=1 // pred_check_branch
      %9518 = sbr.rel (0) target = $region33
    $region32: #{tpu_custom_call.1} parent=1 // pred_region
      %s9520 = ssub.s32 256, 256
      %9521 = vsyncadd [#allocation4], %s9520
      %s9522 = sshll.u32 [#allocation5], 4
      %s9523 = int_to_ptr.vmem [resolvable:$true] %s9522
      %9528 = dma.vmem_to_hbm [thread:$0]  %s9523, 256, %s6, [#allocation4], 128, 128, 8
    $region33: #{tpu_custom_call.1} parent=1 // pred_fallthru
      _
    // Predicated region
    $region34: #{tpu_custom_call.1} parent=1 // pred_check
      _
    $region35: #{tpu_custom_call.1} parent=1 // pred_check_branch
      %9530 = sbr.rel (0) target = $region37
    $region36: #{tpu_custom_call.1} parent=1 // pred_region
      %9531 = dma.done [#allocation4], 256
    $region37: #{tpu_custom_call.1} parent=1 // pred_fallthru
      _
    %9532 = vsyncpa [#allocation3], 1
    %9533 = vsyncpa [#allocation4], 1

</llo_original>
